<compile_context>
chip_gen: v7x
topology: tpu7x:2x2x1
jax: 0.10.0
libtpu: 0.0.40
codegen_flags: <defaults>
</compile_context>

<pallas_src>
import jax
import jax.numpy as jnp
import numpy as np
from jax.experimental import pallas as pl
from jax.experimental.pallas import tpu as pltpu


# ------------------------------- the kernel ---------------------------------

def make_mfn_kernel(sum_h, memory_dim, output_dim):
    SH, MEM = int(sum_h), int(memory_dim)

    def kernel(x_ref, wx_ref, wh_ref, bl_ref,
               a1w1_ref, a1b1_ref, a1w2_ref, a1b2_ref,
               a2w1_ref, a2b1_ref, a2w2_ref, a2b2_ref,
               gw1_ref, gb1_ref, gw2_ref, gb2_ref,
               ow1_ref, ob1_ref, ow2_ref, ob2_ref,
               out_ref):
        T, B, _ = x_ref.shape

        def dot(a, b):
            return jnp.dot(a, b, preferred_element_type=jnp.float32)

        def bcast(b_row):
            # Hoisted sublane broadcast of a (1, N) bias to (B, N).
            return jnp.broadcast_to(b_row, (B, b_row.shape[-1]))

        # Hoist every weight load / static row-split / bias broadcast out of
        # the time loop (JAX does not CSE repeated ref loads or broadcasts).
        wx, wh = wx_ref[...], wh_ref[...]
        bl = bcast(bl_ref[...])
        a1w1_p, a1w1_n = a1w1_ref[0:SH, :], a1w1_ref[SH:2 * SH, :]
        a1b1, a1w2, a1b2 = bcast(a1b1_ref[...]), a1w2_ref[...], bcast(a1b2_ref[...])
        a2w1_p, a2w1_n = a2w1_ref[0:SH, :], a2w1_ref[SH:2 * SH, :]
        a2b1, a2w2, a2b2 = bcast(a2b1_ref[...]), a2w2_ref[...], bcast(a2b2_ref[...])
        gw1_p = gw1_ref[0:SH, :]
        gw1_n = gw1_ref[SH:2 * SH, :]
        gw1_m = gw1_ref[2 * SH:2 * SH + MEM, :]
        gb1, gw2, gb2 = bcast(gb1_ref[...]), gw2_ref[...], bcast(gb2_ref[...])
        ow1_h, ow1_m = ow1_ref[0:SH, :], ow1_ref[SH:SH + MEM, :]
        ob1, ow2, ob2 = bcast(ob1_ref[...]), ow2_ref[...], bcast(ob2_ref[...])

        def step(t, carry):
            h, c, mem = carry

            # ---- fused multi-modality LSTM cell (gate-major columns) ------
            x_t = x_ref[t]                                    # (B, sum_D)
            gates = dot(x_t, wx) + dot(h, wh) + bl            # (B, 4*SH)
            i_g = jax.nn.sigmoid(gates[:, 0 * SH:1 * SH])
            f_g = jax.nn.sigmoid(gates[:, 1 * SH:2 * SH])
            g_g = jnp.tanh(gates[:, 2 * SH:3 * SH])
            o_g = jax.nn.sigmoid(gates[:, 3 * SH:4 * SH])
            c_new = f_g * c + i_g * g_g
            h_new = o_g * jnp.tanh(c_new)

            # ---- attention over c_star = [prev_c | new_c] ------------------
            # (no concat: partial matmuls over the row-split W1; softmax is
            # over the full feature dim, like nn.Softmax(dim=1))
            h1 = jnp.maximum(dot(c, a1w1_p) + dot(c_new, a1w1_n) + a1b1, 0.0)
            y = dot(h1, a1w2) + a1b2                          # (B, 2*SH)
            m = jnp.max(y, axis=1, keepdims=True)
            e = jnp.exp(y - m)
            att = e * pl.reciprocal(jnp.sum(e, axis=1, keepdims=True),
                                    approx=True)
            csa_p = att[:, 0:SH] * c                          # attention*c_star
            csa_n = att[:, SH:2 * SH] * c_new

            # ---- attn2: c_hat = tanh(SimpleNet(c_star_attn)) ---------------
            h2 = jnp.maximum(dot(csa_p, a2w1_p) + dot(csa_n, a2w1_n) + a2b1,
                             0.0)
            c_hat = jnp.tanh(dot(h2, a2w2) + a2b2)            # (B, MEM)

            # ---- fused gamma nets on temp_memory = [c_star_attn | mem] -----
            hg = jnp.maximum(dot(csa_p, gw1_p) + dot(csa_n, gw1_n)
                             + dot(mem, gw1_m) + gb1, 0.0)
            g12 = jax.nn.sigmoid(dot(hg, gw2) + gb2)          # (B, 2*MEM)
            mem_new = g12[:, 0:MEM] * mem + g12[:, MEM:2 * MEM] * c_hat

            # ---- output head on [new_h | mem_new] --------------------------
            ho = jnp.maximum(dot(h_new, ow1_h) + dot(mem_new, ow1_m) + ob1,
                             0.0)
            out = dot(ho, ow2) + ob2                          # (B, output_dim)
            if output_dim != 1:
                mo = jnp.max(out, axis=-1, keepdims=True)
                s = out - mo
                out = s - jnp.log(jnp.sum(jnp.exp(s), axis=-1, keepdims=True))
            out_ref[t] = out.astype(out_ref.dtype)
            return h_new, c_new, mem_new

        carry = (jnp.zeros((B, SH), jnp.float32),   # h_cat
                 jnp.zeros((B, SH), jnp.float32),   # c_cat
                 jnp.zeros((B, MEM), jnp.float32))  # memory
        if T <= 32:
            # Fully unroll short fixed sequences at trace time (LLO visibility).
            for t in range(T):
                carry = step(t, carry)
        else:
            jax.lax.fori_loop(0, T, step, carry)

    return kernel


# ------------------------------- the wrapper ---------------------------------

def mfn_forward(in_modalities, params, hidden_dims, memory_dim, output_dim):
    in_modalities = in_modalities[:-2]               # mirrors the PyTorch forward
    input_dims = [int(x.shape[-1]) for x in in_modalities]
    B, T, _ = in_modalities[0].shape
    SD, SH, MEM = sum(input_dims), sum(hidden_dims), int(memory_dim)

    # Pad batch to a multiple of 8 sublanes; rows are independent, padded
    # rows are sliced off at the end.
    B_pad = max(8, ((B + 7) // 8) * 8)

    x_cat = jnp.concatenate([jnp.asarray(x, jnp.float32)
                             for x in in_modalities], axis=-1)   # (B, T, SD)
    if B_pad != B:
        x_cat = jnp.pad(x_cat, ((0, B_pad - B), (0, 0), (0, 0)))
    # One-time tiny re-layout so the in-kernel loop indexes the leading axis.
    x_tm = jnp.transpose(x_cat, (1, 0, 2))                       # (T, B_pad, SD)

    # ---- fuse the per-modality LSTM weights (gate-major, block-diagonal) ----
    Wx = np.zeros((SD, 4 * SH), np.float32)
    Wh = np.zeros((SH, 4 * SH), np.float32)
    bl = np.zeros((1, 4 * SH), np.float32)
    doff = hoff = 0
    for D, H, p in zip(input_dims, hidden_dims, params["lstm"]):
        Wih = np.asarray(p["Wih"], np.float32)   # (D, 4H), gate order [i|f|g|o]
        Whh = np.asarray(p["Whh"], np.float32)   # (H, 4H)
        b = np.asarray(p["b"], np.float32)       # (1, 4H)
        for g in range(4):
            coff = g * SH + hoff
            Wx[doff:doff + D, coff:coff + H] = Wih[:, g * H:(g + 1) * H]
            Wh[hoff:hoff + H, coff:coff + H] = Whh[:, g * H:(g + 1) * H]
            bl[:, coff:coff + H] = b[:, g * H:(g + 1) * H]
        doff += D
        hoff += H
    Wx, Wh, bl = jnp.asarray(Wx), jnp.asarray(Wh), jnp.asarray(bl)

    # ---- fuse the two gamma SimpleNets --------------------------------------
    g0p, g1p = params["gamma0"], params["gamma1"]
    C0, C1 = int(g0p["W1"].shape[1]), int(g1p["W1"].shape[1])
    gW1 = jnp.concatenate([g0p["W1"], g1p["W1"]], axis=1)        # (gamma_in, C0+C1)
    gb1 = jnp.concatenate([g0p["b1"], g1p["b1"]], axis=1)
    gW2 = np.zeros((C0 + C1, 2 * MEM), np.float32)               # block-diagonal
    gW2[:C0, :MEM] = np.asarray(g0p["W2"], np.float32)
    gW2[C0:, MEM:] = np.asarray(g1p["W2"], np.float32)
    gW2 = jnp.asarray(gW2)
    gb2 = jnp.concatenate([g0p["b2"], g1p["b2"]], axis=1)

    a1, a2, op = params["attn1"], params["attn2"], params["out"]
    inputs = [x_tm, Wx, Wh, bl,
              a1["W1"], a1["b1"], a1["W2"], a1["b2"],
              a2["W1"], a2["b1"], a2["W2"], a2["b2"],
              gW1, gb1, gW2, gb2,
              op["W1"], op["b1"], op["W2"], op["b2"]]
    inputs = [jnp.asarray(w, jnp.float32) for w in inputs]

    in_specs = [pl.BlockSpec(w.shape, lambda i, nd=w.ndim: (0,) * nd)
                for w in inputs]
    out_specs = pl.BlockSpec((T, B_pad, output_dim), lambda i: (0, 0, 0))

    kernel = make_mfn_kernel(SH, MEM, output_dim)
    out_tm = pl.pallas_call(
        kernel,
        out_shape=jax.ShapeDtypeStruct((T, B_pad, output_dim), jnp.float32),
        grid_spec=pltpu.PrefetchScalarGridSpec(
            num_scalar_prefetch=0,
            grid=(1,),                      # whole recurrence inside one step
            in_specs=in_specs,
            out_specs=out_specs),
        compiler_params=pltpu.CompilerParams(
            dimension_semantics=("arbitrary",)),
    )(*inputs)

    return jnp.transpose(out_tm[:, :B, :], (1, 0, 2))            # (B, T, out)


# --------------------------- params & reference ------------------------------

def init_params(key, input_dims, hidden_dims, memory_dim, window_dim,
                attn_cell_dims, gamma_cell_dims, output_cell_dim, output_dim):
    total_cell = sum(hidden_dims)
    attn_in = total_cell * window_dim
    keys = iter(jax.random.split(key, 128))

    def lin(din, dout, scale=0.1):
        W = scale * jax.random.normal(next(keys), (din, dout), jnp.float32)
        b = scale * jax.random.normal(next(keys), (1, dout), jnp.float32)
        return W, b

    def net(din, dh, dout):
        W1, b1 = lin(din, dh)
        W2, b2 = lin(dh, dout)
        return {"W1": W1, "b1": b1, "W2": W2, "b2": b2}

    gamma_in = attn_in + memory_dim
    final_in = total_cell + memory_dim

    params = {"lstm": []}
    for D, H in zip(input_dims, hidden_dims):
        Wih = 0.1 * jax.random.normal(next(keys), (D, 4 * H), jnp.float32)
        Whh = 0.1 * jax.random.normal(next(keys), (H, 4 * H), jnp.float32)
        b = 0.1 * jax.random.normal(next(keys), (1, 4 * H), jnp.float32)
        params["lstm"].append({"Wih": Wih, "Whh": Whh, "b": b})
    params["attn1"] = net(attn_in, attn_cell_dims[0], attn_in)
    params["attn2"] = net(attn_in, attn_cell_dims[1], memory_dim)
    params["gamma0"] = net(gamma_in, gamma_cell_dims[0], memory_dim)
    params["gamma1"] = net(gamma_in, gamma_cell_dims[1], memory_dim)
    params["out"] = net(final_in, output_cell_dim, output_dim)
    return params


def mfn_reference(in_modalities, params, hidden_dims, memory_dim, output_dim):
    """Pure-JAX reference mirroring the PyTorch forward (eval mode)."""
    in_modalities = in_modalities[:-2]
    M = len(in_modalities)
    B, T, _ = in_modalities[0].shape
    h = [jnp.zeros((B, H), jnp.float32) for H in hidden_dims]
    c = [jnp.zeros((B, H), jnp.float32) for H in hidden_dims]
    mem = jnp.zeros((B, memory_dim), jnp.float32)

    def sig(x):
        return 1.0 / (1.0 + jnp.exp(-x))

    def snet(p, x, act):
        hid = jnp.maximum(x @ p["W1"] + p["b1"], 0.0)
        y = hid @ p["W2"] + p["b2"]
        return act(y) if act is not None else y

    outs = []
    for t in range(T):
        prev_c = c
        new_h, new_c = [], []
        for i in range(M):
            x = in_modalities[i][:, t, :]
            p = params["lstm"][i]
            g = x @ p["Wih"] + h[i] @ p["Whh"] + p["b"]
            H = hidden_dims[i]
            i_g, f_g = sig(g[:, :H]), sig(g[:, H:2 * H])
            g_g, o_g = jnp.tanh(g[:, 2 * H:3 * H]), sig(g[:, 3 * H:])
            cn = f_g * c[i] + i_g * g_g
            hn = o_g * jnp.tanh(cn)
            new_h.append(hn)
            new_c.append(cn)
        c_star = jnp.concatenate(prev_c + new_c, axis=1)
        attn = snet(params["attn1"], c_star,
                    lambda y: jax.nn.softmax(y, axis=1))
        csa = attn * c_star
        c_hat = snet(params["attn2"], csa, jnp.tanh)
        tm = jnp.concatenate([csa, mem], axis=1)
        g1 = snet(params["gamma0"], tm, sig)
        g2 = snet(params["gamma1"], tm, sig)
        mem = g1 * mem + g2 * c_hat
        h, c = new_h, new_c
        o = snet(params["out"], jnp.concatenate(new_h + [mem], axis=1), None)
        if output_dim != 1:
            o = jax.nn.log_softmax(o, axis=-1)
        outs.append(o)
    return jnp.stack(outs, axis=-2)


# ------------------------------------ main -----------------------------------

if __name__ == "__main__":
    # Small synthetic config (deterministic).
    input_dims = [16, 8, 8]
    hidden_dims = [16, 8, 8]
    memory_dim = 16
    window_dim = 2
    attn_cell_dims = [32, 32]
    gamma_cell_dims = [32, 32]
    output_cell_dim = 32
    output_dim = 4
    B, T = 2, 8

    key = jax.random.PRNGKey(0)
    kp, kx = jax.random.split(key)
    params = init_params(kp, input_dims, hidden_dims, memory_dim, window_dim,
                         attn_cell_dims, gamma_cell_dims, output_cell_dim,
                         output_dim)

    xkeys = jax.random.split(kx, len(input_dims))
    mods = [jax.random.normal(k, (B, T, D), jnp.float32)
            for k, D in zip(xkeys, input_dims)]
    # forward() drops the last two list entries (lengths/labels) -> add dummies.
    dummy = jnp.zeros((B,), jnp.float32)
    in_modalities = mods + [dummy, dummy]

    out = mfn_forward(in_modalities, params, hidden_dims, memory_dim, output_dim)
    out = jax.block_until_ready(out)

    ref = mfn_reference(in_modalities, params, hidden_dims, memory_dim,
                        output_dim)
    np.testing.assert_allclose(np.asarray(out), np.asarray(ref),
                               rtol=1e-2, atol=1e-2)
    assert out.shape == (B, T, output_dim)
    print("KERNEL_OK")
</pallas_src>

<mosaic_0001>
module attributes {stable_mosaic.version = 11 : i64} {
  func.func @kernel(%arg0: i32, %arg1: memref<8x8x32xf32, #tpu.memory_space<vmem>>, %arg2: memref<32x128xf32, #tpu.memory_space<vmem>>, %arg3: memref<32x128xf32, #tpu.memory_space<vmem>>, %arg4: memref<1x128xf32, #tpu.memory_space<vmem>>, %arg5: memref<64x32xf32, #tpu.memory_space<vmem>>, %arg6: memref<1x32xf32, #tpu.memory_space<vmem>>, %arg7: memref<32x64xf32, #tpu.memory_space<vmem>>, %arg8: memref<1x64xf32, #tpu.memory_space<vmem>>, %arg9: memref<64x32xf32, #tpu.memory_space<vmem>>, %arg10: memref<1x32xf32, #tpu.memory_space<vmem>>, %arg11: memref<32x16xf32, #tpu.memory_space<vmem>>, %arg12: memref<1x16xf32, #tpu.memory_space<vmem>>, %arg13: memref<80x64xf32, #tpu.memory_space<vmem>>, %arg14: memref<1x64xf32, #tpu.memory_space<vmem>>, %arg15: memref<64x32xf32, #tpu.memory_space<vmem>>, %arg16: memref<1x32xf32, #tpu.memory_space<vmem>>, %arg17: memref<48x32xf32, #tpu.memory_space<vmem>>, %arg18: memref<1x32xf32, #tpu.memory_space<vmem>>, %arg19: memref<32x4xf32, #tpu.memory_space<vmem>>, %arg20: memref<1x4xf32, #tpu.memory_space<vmem>>, %arg21: memref<8x8x4xf32, #tpu.memory_space<vmem>>) attributes {dimension_semantics = [#tpu.dimension_semantics<arbitrary>], iteration_bounds = array<i64: 1>, scalar_prefetch = 0 : i64, scratch_operands = 0 : i64, tpu.core_type = #tpu.core_type<tc>, window_params = [{pipeline_mode = #tpu.pipeline_mode<synchronous>, transform_indices = @transform_0, window_bounds = array<i64: 8, 8, 32>}, {pipeline_mode = #tpu.pipeline_mode<synchronous>, transform_indices = @transform_1, window_bounds = array<i64: 32, 128>}, {pipeline_mode = #tpu.pipeline_mode<synchronous>, transform_indices = @transform_2, window_bounds = array<i64: 32, 128>}, {pipeline_mode = #tpu.pipeline_mode<synchronous>, transform_indices = @transform_3, window_bounds = array<i64: 1, 128>}, {pipeline_mode = #tpu.pipeline_mode<synchronous>, transform_indices = @transform_4, window_bounds = array<i64: 64, 32>}, {pipeline_mode = #tpu.pipeline_mode<synchronous>, transform_indices = @transform_5, window_bounds = array<i64: 1, 32>}, {pipeline_mode = #tpu.pipeline_mode<synchronous>, transform_indices = @transform_6, window_bounds = array<i64: 32, 64>}, {pipeline_mode = #tpu.pipeline_mode<synchronous>, transform_indices = @transform_7, window_bounds = array<i64: 1, 64>}, {pipeline_mode = #tpu.pipeline_mode<synchronous>, transform_indices = @transform_8, window_bounds = array<i64: 64, 32>}, {pipeline_mode = #tpu.pipeline_mode<synchronous>, transform_indices = @transform_9, window_bounds = array<i64: 1, 32>}, {pipeline_mode = #tpu.pipeline_mode<synchronous>, transform_indices = @transform_10, window_bounds = array<i64: 32, 16>}, {pipeline_mode = #tpu.pipeline_mode<synchronous>, transform_indices = @transform_11, window_bounds = array<i64: 1, 16>}, {pipeline_mode = #tpu.pipeline_mode<synchronous>, transform_indices = @transform_12, window_bounds = array<i64: 80, 64>}, {pipeline_mode = #tpu.pipeline_mode<synchronous>, transform_indices = @transform_13, window_bounds = array<i64: 1, 64>}, {pipeline_mode = #tpu.pipeline_mode<synchronous>, transform_indices = @transform_14, window_bounds = array<i64: 64, 32>}, {pipeline_mode = #tpu.pipeline_mode<synchronous>, transform_indices = @transform_15, window_bounds = array<i64: 1, 32>}, {pipeline_mode = #tpu.pipeline_mode<synchronous>, transform_indices = @transform_16, window_bounds = array<i64: 48, 32>}, {pipeline_mode = #tpu.pipeline_mode<synchronous>, transform_indices = @transform_17, window_bounds = array<i64: 1, 32>}, {pipeline_mode = #tpu.pipeline_mode<synchronous>, transform_indices = @transform_18, window_bounds = array<i64: 32, 4>}, {pipeline_mode = #tpu.pipeline_mode<synchronous>, transform_indices = @transform_19, window_bounds = array<i64: 1, 4>}, {pipeline_mode = #tpu.pipeline_mode<synchronous>, transform_indices = @transform_20, window_bounds = array<i64: 8, 8, 4>}]} {
    %c0 = arith.constant 0 : index
    %c0_0 = arith.constant 0 : index
    %0 = vector.load %arg2[%c0, %c0_0] : memref<32x128xf32, #tpu.memory_space<vmem>>, vector<32x128xf32>
    %c0_1 = arith.constant 0 : index
    %c0_2 = arith.constant 0 : index
    %1 = vector.load %arg3[%c0_1, %c0_2] : memref<32x128xf32, #tpu.memory_space<vmem>>, vector<32x128xf32>
    %c0_3 = arith.constant 0 : index
    %c0_4 = arith.constant 0 : index
    %2 = vector.load %arg4[%c0_3, %c0_4] : memref<1x128xf32, #tpu.memory_space<vmem>>, vector<1x128xf32>
    %3 = vector.shape_cast %2 : vector<1x128xf32> to vector<1x128xf32>
    %4 = vector.broadcast %3 : vector<1x128xf32> to vector<8x128xf32>
    %c0_5 = arith.constant 0 : index
    %c0_6 = arith.constant 0 : index
    %5 = vector.load %arg5[%c0_5, %c0_6] : memref<64x32xf32, #tpu.memory_space<vmem>>, vector<32x32xf32>
    %c32 = arith.constant 32 : index
    %c0_7 = arith.constant 0 : index
    %6 = vector.load %arg5[%c32, %c0_7] : memref<64x32xf32, #tpu.memory_space<vmem>>, vector<32x32xf32>
    %c0_8 = arith.constant 0 : index
    %c0_9 = arith.constant 0 : index
    %7 = vector.load %arg6[%c0_8, %c0_9] : memref<1x32xf32, #tpu.memory_space<vmem>>, vector<1x32xf32>
    %8 = vector.shape_cast %7 : vector<1x32xf32> to vector<1x32xf32>
    %9 = vector.broadcast %8 : vector<1x32xf32> to vector<8x32xf32>
    %c0_10 = arith.constant 0 : index
    %c0_11 = arith.constant 0 : index
    %10 = vector.load %arg7[%c0_10, %c0_11] : memref<32x64xf32, #tpu.memory_space<vmem>>, vector<32x64xf32>
    %c0_12 = arith.constant 0 : index
    %c0_13 = arith.constant 0 : index
    %11 = vector.load %arg8[%c0_12, %c0_13] : memref<1x64xf32, #tpu.memory_space<vmem>>, vector<1x64xf32>
    %12 = vector.shape_cast %11 : vector<1x64xf32> to vector<1x64xf32>
    %13 = vector.broadcast %12 : vector<1x64xf32> to vector<8x64xf32>
    %c0_14 = arith.constant 0 : index
    %c0_15 = arith.constant 0 : index
    %14 = vector.load %arg9[%c0_14, %c0_15] : memref<64x32xf32, #tpu.memory_space<vmem>>, vector<32x32xf32>
    %c32_16 = arith.constant 32 : index
    %c0_17 = arith.constant 0 : index
    %15 = vector.load %arg9[%c32_16, %c0_17] : memref<64x32xf32, #tpu.memory_space<vmem>>, vector<32x32xf32>
    %c0_18 = arith.constant 0 : index
    %c0_19 = arith.constant 0 : index
    %16 = vector.load %arg10[%c0_18, %c0_19] : memref<1x32xf32, #tpu.memory_space<vmem>>, vector<1x32xf32>
    %17 = vector.shape_cast %16 : vector<1x32xf32> to vector<1x32xf32>
    %18 = vector.broadcast %17 : vector<1x32xf32> to vector<8x32xf32>
    %c0_20 = arith.constant 0 : index
    %c0_21 = arith.constant 0 : index
    %19 = vector.load %arg11[%c0_20, %c0_21] : memref<32x16xf32, #tpu.memory_space<vmem>>, vector<32x16xf32>
    %c0_22 = arith.constant 0 : index
    %c0_23 = arith.constant 0 : index
    %20 = vector.load %arg12[%c0_22, %c0_23] : memref<1x16xf32, #tpu.memory_space<vmem>>, vector<1x16xf32>
    %21 = vector.shape_cast %20 : vector<1x16xf32> to vector<1x16xf32>
    %22 = vector.broadcast %21 : vector<1x16xf32> to vector<8x16xf32>
    %c0_24 = arith.constant 0 : index
    %c0_25 = arith.constant 0 : index
    %23 = vector.load %arg13[%c0_24, %c0_25] : memref<80x64xf32, #tpu.memory_space<vmem>>, vector<32x64xf32>
    %c32_26 = arith.constant 32 : index
    %c0_27 = arith.constant 0 : index
    %24 = vector.load %arg13[%c32_26, %c0_27] : memref<80x64xf32, #tpu.memory_space<vmem>>, vector<32x64xf32>
    %c64 = arith.constant 64 : index
    %c0_28 = arith.constant 0 : index
    %25 = vector.load %arg13[%c64, %c0_28] : memref<80x64xf32, #tpu.memory_space<vmem>>, vector<16x64xf32>
    %c0_29 = arith.constant 0 : index
    %c0_30 = arith.constant 0 : index
    %26 = vector.load %arg14[%c0_29, %c0_30] : memref<1x64xf32, #tpu.memory_space<vmem>>, vector<1x64xf32>
    %27 = vector.shape_cast %26 : vector<1x64xf32> to vector<1x64xf32>
    %28 = vector.broadcast %27 : vector<1x64xf32> to vector<8x64xf32>
    %c0_31 = arith.constant 0 : index
    %c0_32 = arith.constant 0 : index
    %29 = vector.load %arg15[%c0_31, %c0_32] : memref<64x32xf32, #tpu.memory_space<vmem>>, vector<64x32xf32>
    %c0_33 = arith.constant 0 : index
    %c0_34 = arith.constant 0 : index
    %30 = vector.load %arg16[%c0_33, %c0_34] : memref<1x32xf32, #tpu.memory_space<vmem>>, vector<1x32xf32>
    %31 = vector.shape_cast %30 : vector<1x32xf32> to vector<1x32xf32>
    %32 = vector.broadcast %31 : vector<1x32xf32> to vector<8x32xf32>
    %c0_35 = arith.constant 0 : index
    %c0_36 = arith.constant 0 : index
    %33 = vector.load %arg17[%c0_35, %c0_36] : memref<48x32xf32, #tpu.memory_space<vmem>>, vector<32x32xf32>
    %c32_37 = arith.constant 32 : index
    %c0_38 = arith.constant 0 : index
    %34 = vector.load %arg17[%c32_37, %c0_38] : memref<48x32xf32, #tpu.memory_space<vmem>>, vector<16x32xf32>
    %c0_39 = arith.constant 0 : index
    %c0_40 = arith.constant 0 : index
    %35 = vector.load %arg18[%c0_39, %c0_40] : memref<1x32xf32, #tpu.memory_space<vmem>>, vector<1x32xf32>
    %36 = vector.shape_cast %35 : vector<1x32xf32> to vector<1x32xf32>
    %37 = vector.broadcast %36 : vector<1x32xf32> to vector<8x32xf32>
    %c0_41 = arith.constant 0 : index
    %c0_42 = arith.constant 0 : index
    %38 = vector.load %arg19[%c0_41, %c0_42] : memref<32x4xf32, #tpu.memory_space<vmem>>, vector<32x4xf32>
    %c0_43 = arith.constant 0 : index
    %c0_44 = arith.constant 0 : index
    %39 = vector.load %arg20[%c0_43, %c0_44] : memref<1x4xf32, #tpu.memory_space<vmem>>, vector<1x4xf32>
    %40 = vector.shape_cast %39 : vector<1x4xf32> to vector<1x4xf32>
    %41 = vector.broadcast %40 : vector<1x4xf32> to vector<8x4xf32>
    %cst = arith.constant 0.000000e+00 : f32
    %42 = vector.broadcast %cst : f32 to vector<8x32xf32>
    %cst_45 = arith.constant 0.000000e+00 : f32
    %43 = vector.broadcast %cst_45 : f32 to vector<8x32xf32>
    %cst_46 = arith.constant 0.000000e+00 : f32
    %44 = vector.broadcast %cst_46 : f32 to vector<8x16xf32>
    %c0_47 = arith.constant 0 : index
    %c0_48 = arith.constant 0 : index
    %c0_49 = arith.constant 0 : index
    %45 = vector.load %arg1[%c0_47, %c0_48, %c0_49] : memref<8x8x32xf32, #tpu.memory_space<vmem>>, vector<1x8x32xf32>
    %46 = vector.shape_cast %45 : vector<1x8x32xf32> to vector<8x32xf32>
    %cst_50 = arith.constant dense<0.000000e+00> : vector<8x128xf32>
    %47 = tpu.matmul %46, %0, %cst_50 {dimension_numbers = #tpu.dot_dimension_numbers<[1], [0], [0], [1], [0, 0, 1, 1], [], []>} : vector<8x32xf32>, vector<32x128xf32>, vector<8x128xf32> -> vector<8x128xf32>
    %cst_51 = arith.constant dense<0.000000e+00> : vector<8x128xf32>
    %48 = tpu.matmul %42, %1, %cst_51 {dimension_numbers = #tpu.dot_dimension_numbers<[1], [0], [0], [1], [0, 0, 1, 1], [], []>} : vector<8x32xf32>, vector<32x128xf32>, vector<8x128xf32> -> vector<8x128xf32>
    %49 = arith.addf %47, %48 : vector<8x128xf32>
    %50 = arith.addf %49, %4 : vector<8x128xf32>
    %51 = vector.extract_strided_slice %50 {offsets = [0, 0], sizes = [8, 32], strides = [1, 1]} : vector<8x128xf32> to vector<8x32xf32>
    %52 = arith.negf %51 : vector<8x32xf32>
    %53 = math.exp %52 : vector<8x32xf32>
    %cst_52 = arith.constant 1.000000e+00 : f32
    %54 = vector.broadcast %cst_52 : f32 to vector<8x32xf32>
    %55 = arith.addf %54, %53 : vector<8x32xf32>
    %56 = arith.divf %54, %55 : vector<8x32xf32>
    %57 = vector.extract_strided_slice %50 {offsets = [0, 32], sizes = [8, 32], strides = [1, 1]} : vector<8x128xf32> to vector<8x32xf32>
    %58 = arith.negf %57 : vector<8x32xf32>
    %59 = math.exp %58 : vector<8x32xf32>
    %cst_53 = arith.constant 1.000000e+00 : f32
    %60 = vector.broadcast %cst_53 : f32 to vector<8x32xf32>
    %61 = arith.addf %60, %59 : vector<8x32xf32>
    %62 = arith.divf %60, %61 : vector<8x32xf32>
    %63 = vector.extract_strided_slice %50 {offsets = [0, 64], sizes = [8, 32], strides = [1, 1]} : vector<8x128xf32> to vector<8x32xf32>
    %64 = math.tanh %63 : vector<8x32xf32>
    %65 = vector.extract_strided_slice %50 {offsets = [0, 96], sizes = [8, 32], strides = [1, 1]} : vector<8x128xf32> to vector<8x32xf32>
    %66 = arith.negf %65 : vector<8x32xf32>
    %67 = math.exp %66 : vector<8x32xf32>
    %cst_54 = arith.constant 1.000000e+00 : f32
    %68 = vector.broadcast %cst_54 : f32 to vector<8x32xf32>
    %69 = arith.addf %68, %67 : vector<8x32xf32>
    %70 = arith.divf %68, %69 : vector<8x32xf32>
    %71 = arith.mulf %62, %43 : vector<8x32xf32>
    %72 = arith.mulf %56, %64 : vector<8x32xf32>
    %73 = arith.addf %71, %72 : vector<8x32xf32>
    %74 = math.tanh %73 : vector<8x32xf32>
    %75 = arith.mulf %70, %74 : vector<8x32xf32>
    %cst_55 = arith.constant dense<0.000000e+00> : vector<8x32xf32>
    %76 = tpu.matmul %43, %5, %cst_55 {dimension_numbers = #tpu.dot_dimension_numbers<[1], [0], [0], [1], [0, 0, 1, 1], [], []>} : vector<8x32xf32>, vector<32x32xf32>, vector<8x32xf32> -> vector<8x32xf32>
    %cst_56 = arith.constant dense<0.000000e+00> : vector<8x32xf32>
    %77 = tpu.matmul %73, %6, %cst_56 {dimension_numbers = #tpu.dot_dimension_numbers<[1], [0], [0], [1], [0, 0, 1, 1], [], []>} : vector<8x32xf32>, vector<32x32xf32>, vector<8x32xf32> -> vector<8x32xf32>
    %78 = arith.addf %76, %77 : vector<8x32xf32>
    %79 = arith.addf %78, %9 : vector<8x32xf32>
    %cst_57 = arith.constant 0.000000e+00 : f32
    %80 = vector.broadcast %cst_57 : f32 to vector<8x32xf32>
    %81 = arith.maximumf %79, %80 : vector<8x32xf32>
    %cst_58 = arith.constant dense<0.000000e+00> : vector<8x64xf32>
    %82 = tpu.matmul %81, %10, %cst_58 {dimension_numbers = #tpu.dot_dimension_numbers<[1], [0], [0], [1], [0, 0, 1, 1], [], []>} : vector<8x32xf32>, vector<32x64xf32>, vector<8x64xf32> -> vector<8x64xf32>
    %83 = arith.addf %82, %13 : vector<8x64xf32>
    %cst_59 = arith.constant dense<0xFF800000> : vector<8xf32>
    %84 = vector.multi_reduction <maximumf>, %83, %cst_59 [1] : vector<8x64xf32> to vector<8xf32>
    %85 = vector.shape_cast %84 : vector<8xf32> to vector<8x1xf32>
    %86 = vector.broadcast %85 : vector<8x1xf32> to vector<8x64xf32>
    %87 = arith.subf %83, %86 : vector<8x64xf32>
    %88 = math.exp %87 : vector<8x64xf32>
    %cst_60 = arith.constant dense<0.000000e+00> : vector<8xf32>
    %89 = vector.multi_reduction <add>, %88, %cst_60 [1] : vector<8x64xf32> to vector<8xf32>
    %90 = vector.shape_cast %89 : vector<8xf32> to vector<8x1xf32>
    %91 = tpu.reciprocal %90 {approx = true} : vector<8x1xf32> -> vector<8x1xf32>
    %92 = vector.broadcast %91 : vector<8x1xf32> to vector<8x64xf32>
    %93 = arith.mulf %88, %92 : vector<8x64xf32>
    %94 = vector.extract_strided_slice %93 {offsets = [0, 0], sizes = [8, 32], strides = [1, 1]} : vector<8x64xf32> to vector<8x32xf32>
    %95 = arith.mulf %94, %43 : vector<8x32xf32>
    %96 = vector.extract_strided_slice %93 {offsets = [0, 32], sizes = [8, 32], strides = [1, 1]} : vector<8x64xf32> to vector<8x32xf32>
    %97 = arith.mulf %96, %73 : vector<8x32xf32>
    %cst_61 = arith.constant dense<0.000000e+00> : vector<8x32xf32>
    %98 = tpu.matmul %95, %14, %cst_61 {dimension_numbers = #tpu.dot_dimension_numbers<[1], [0], [0], [1], [0, 0, 1, 1], [], []>} : vector<8x32xf32>, vector<32x32xf32>, vector<8x32xf32> -> vector<8x32xf32>
    %cst_62 = arith.constant dense<0.000000e+00> : vector<8x32xf32>
    %99 = tpu.matmul %97, %15, %cst_62 {dimension_numbers = #tpu.dot_dimension_numbers<[1], [0], [0], [1], [0, 0, 1, 1], [], []>} : vector<8x32xf32>, vector<32x32xf32>, vector<8x32xf32> -> vector<8x32xf32>
    %100 = arith.addf %98, %99 : vector<8x32xf32>
    %101 = arith.addf %100, %18 : vector<8x32xf32>
    %cst_63 = arith.constant 0.000000e+00 : f32
    %102 = vector.broadcast %cst_63 : f32 to vector<8x32xf32>
    %103 = arith.maximumf %101, %102 : vector<8x32xf32>
    %cst_64 = arith.constant dense<0.000000e+00> : vector<8x16xf32>
    %104 = tpu.matmul %103, %19, %cst_64 {dimension_numbers = #tpu.dot_dimension_numbers<[1], [0], [0], [1], [0, 0, 1, 1], [], []>} : vector<8x32xf32>, vector<32x16xf32>, vector<8x16xf32> -> vector<8x16xf32>
    %105 = arith.addf %104, %22 : vector<8x16xf32>
    %106 = math.tanh %105 : vector<8x16xf32>
    %cst_65 = arith.constant dense<0.000000e+00> : vector<8x64xf32>
    %107 = tpu.matmul %95, %23, %cst_65 {dimension_numbers = #tpu.dot_dimension_numbers<[1], [0], [0], [1], [0, 0, 1, 1], [], []>} : vector<8x32xf32>, vector<32x64xf32>, vector<8x64xf32> -> vector<8x64xf32>
    %cst_66 = arith.constant dense<0.000000e+00> : vector<8x64xf32>
    %108 = tpu.matmul %97, %24, %cst_66 {dimension_numbers = #tpu.dot_dimension_numbers<[1], [0], [0], [1], [0, 0, 1, 1], [], []>} : vector<8x32xf32>, vector<32x64xf32>, vector<8x64xf32> -> vector<8x64xf32>
    %109 = arith.addf %107, %108 : vector<8x64xf32>
    %cst_67 = arith.constant dense<0.000000e+00> : vector<8x64xf32>
    %110 = tpu.matmul %44, %25, %cst_67 {dimension_numbers = #tpu.dot_dimension_numbers<[1], [0], [0], [1], [0, 0, 1, 1], [], []>} : vector<8x16xf32>, vector<16x64xf32>, vector<8x64xf32> -> vector<8x64xf32>
    %111 = arith.addf %109, %110 : vector<8x64xf32>
    %112 = arith.addf %111, %28 : vector<8x64xf32>
    %cst_68 = arith.constant 0.000000e+00 : f32
    %113 = vector.broadcast %cst_68 : f32 to vector<8x64xf32>
    %114 = arith.maximumf %112, %113 : vector<8x64xf32>
    %cst_69 = arith.constant dense<0.000000e+00> : vector<8x32xf32>
    %115 = tpu.matmul %114, %29, %cst_69 {dimension_numbers = #tpu.dot_dimension_numbers<[1], [0], [0], [1], [0, 0, 1, 1], [], []>} : vector<8x64xf32>, vector<64x32xf32>, vector<8x32xf32> -> vector<8x32xf32>
    %116 = arith.addf %115, %32 : vector<8x32xf32>
    %117 = arith.negf %116 : vector<8x32xf32>
    %118 = math.exp %117 : vector<8x32xf32>
    %cst_70 = arith.constant 1.000000e+00 : f32
    %119 = vector.broadcast %cst_70 : f32 to vector<8x32xf32>
    %120 = arith.addf %119, %118 : vector<8x32xf32>
    %121 = arith.divf %119, %120 : vector<8x32xf32>
    %122 = vector.extract_strided_slice %121 {offsets = [0, 0], sizes = [8, 16], strides = [1, 1]} : vector<8x32xf32> to vector<8x16xf32>
    %123 = arith.mulf %122, %44 : vector<8x16xf32>
    %124 = vector.extract_strided_slice %121 {offsets = [0, 16], sizes = [8, 16], strides = [1, 1]} : vector<8x32xf32> to vector<8x16xf32>
    %125 = arith.mulf %124, %106 : vector<8x16xf32>
    %126 = arith.addf %123, %125 : vector<8x16xf32>
    %cst_71 = arith.constant dense<0.000000e+00> : vector<8x32xf32>
    %127 = tpu.matmul %75, %33, %cst_71 {dimension_numbers = #tpu.dot_dimension_numbers<[1], [0], [0], [1], [0, 0, 1, 1], [], []>} : vector<8x32xf32>, vector<32x32xf32>, vector<8x32xf32> -> vector<8x32xf32>
    %cst_72 = arith.constant dense<0.000000e+00> : vector<8x32xf32>
    %128 = tpu.matmul %126, %34, %cst_72 {dimension_numbers = #tpu.dot_dimension_numbers<[1], [0], [0], [1], [0, 0, 1, 1], [], []>} : vector<8x16xf32>, vector<16x32xf32>, vector<8x32xf32> -> vector<8x32xf32>
    %129 = arith.addf %127, %128 : vector<8x32xf32>
    %130 = arith.addf %129, %37 : vector<8x32xf32>
    %cst_73 = arith.constant 0.000000e+00 : f32
    %131 = vector.broadcast %cst_73 : f32 to vector<8x32xf32>
    %132 = arith.maximumf %130, %131 : vector<8x32xf32>
    %cst_74 = arith.constant dense<0.000000e+00> : vector<8x4xf32>
    %133 = tpu.matmul %132, %38, %cst_74 {dimension_numbers = #tpu.dot_dimension_numbers<[1], [0], [0], [1], [0, 0, 1, 1], [], []>} : vector<8x32xf32>, vector<32x4xf32>, vector<8x4xf32> -> vector<8x4xf32>
    %134 = arith.addf %133, %41 : vector<8x4xf32>
    %cst_75 = arith.constant dense<0xFF800000> : vector<8xf32>
    %135 = vector.multi_reduction <maximumf>, %134, %cst_75 [1] : vector<8x4xf32> to vector<8xf32>
    %136 = vector.shape_cast %135 : vector<8xf32> to vector<8x1xf32>
    %137 = vector.broadcast %136 : vector<8x1xf32> to vector<8x4xf32>
    %138 = arith.subf %134, %137 : vector<8x4xf32>
    %139 = math.exp %138 : vector<8x4xf32>
    %cst_76 = arith.constant dense<0.000000e+00> : vector<8xf32>
    %140 = vector.multi_reduction <add>, %139, %cst_76 [1] : vector<8x4xf32> to vector<8xf32>
    %141 = vector.shape_cast %140 : vector<8xf32> to vector<8x1xf32>
    %142 = math.log %141 : vector<8x1xf32>
    %143 = vector.broadcast %142 : vector<8x1xf32> to vector<8x4xf32>
    %144 = arith.subf %138, %143 : vector<8x4xf32>
    %c0_77 = arith.constant 0 : index
    %c0_78 = arith.constant 0 : index
    %c0_79 = arith.constant 0 : index
    %145 = vector.load %arg21[%c0_77, %c0_78, %c0_79] : memref<8x8x4xf32, #tpu.memory_space<vmem>>, vector<1x8x4xf32>
    %146 = vector.shape_cast %145 : vector<1x8x4xf32> to vector<8x4xf32>
    %147 = vector.shape_cast %144 : vector<8x4xf32> to vector<1x8x4xf32>
    tpu.vector_store %arg21[%c0_77, %c0_78, %c0_79], %147 {strides = array<i32>} : memref<8x8x4xf32, #tpu.memory_space<vmem>>, vector<1x8x4xf32>,
    %c1 = arith.constant 1 : index
    %c0_80 = arith.constant 0 : index
    %c0_81 = arith.constant 0 : index
    %148 = vector.load %arg1[%c1, %c0_80, %c0_81] : memref<8x8x32xf32, #tpu.memory_space<vmem>>, vector<1x8x32xf32>
    %149 = vector.shape_cast %148 : vector<1x8x32xf32> to vector<8x32xf32>
    %cst_82 = arith.constant dense<0.000000e+00> : vector<8x128xf32>
    %150 = tpu.matmul %149, %0, %cst_82 {dimension_numbers = #tpu.dot_dimension_numbers<[1], [0], [0], [1], [0, 0, 1, 1], [], []>} : vector<8x32xf32>, vector<32x128xf32>, vector<8x128xf32> -> vector<8x128xf32>
    %cst_83 = arith.constant dense<0.000000e+00> : vector<8x128xf32>
    %151 = tpu.matmul %75, %1, %cst_83 {dimension_numbers = #tpu.dot_dimension_numbers<[1], [0], [0], [1], [0, 0, 1, 1], [], []>} : vector<8x32xf32>, vector<32x128xf32>, vector<8x128xf32> -> vector<8x128xf32>
    %152 = arith.addf %150, %151 : vector<8x128xf32>
    %153 = arith.addf %152, %4 : vector<8x128xf32>
    %154 = vector.extract_strided_slice %153 {offsets = [0, 0], sizes = [8, 32], strides = [1, 1]} : vector<8x128xf32> to vector<8x32xf32>
    %155 = arith.negf %154 : vector<8x32xf32>
    %156 = math.exp %155 : vector<8x32xf32>
    %cst_84 = arith.constant 1.000000e+00 : f32
    %157 = vector.broadcast %cst_84 : f32 to vector<8x32xf32>
    %158 = arith.addf %157, %156 : vector<8x32xf32>
    %159 = arith.divf %157, %158 : vector<8x32xf32>
    %160 = vector.extract_strided_slice %153 {offsets = [0, 32], sizes = [8, 32], strides = [1, 1]} : vector<8x128xf32> to vector<8x32xf32>
    %161 = arith.negf %160 : vector<8x32xf32>
    %162 = math.exp %161 : vector<8x32xf32>
    %cst_85 = arith.constant 1.000000e+00 : f32
    %163 = vector.broadcast %cst_85 : f32 to vector<8x32xf32>
    %164 = arith.addf %163, %162 : vector<8x32xf32>
    %165 = arith.divf %163, %164 : vector<8x32xf32>
    %166 = vector.extract_strided_slice %153 {offsets = [0, 64], sizes = [8, 32], strides = [1, 1]} : vector<8x128xf32> to vector<8x32xf32>
    %167 = math.tanh %166 : vector<8x32xf32>
    %168 = vector.extract_strided_slice %153 {offsets = [0, 96], sizes = [8, 32], strides = [1, 1]} : vector<8x128xf32> to vector<8x32xf32>
    %169 = arith.negf %168 : vector<8x32xf32>
    %170 = math.exp %169 : vector<8x32xf32>
    %cst_86 = arith.constant 1.000000e+00 : f32
    %171 = vector.broadcast %cst_86 : f32 to vector<8x32xf32>
    %172 = arith.addf %171, %170 : vector<8x32xf32>
    %173 = arith.divf %171, %172 : vector<8x32xf32>
    %174 = arith.mulf %165, %73 : vector<8x32xf32>
    %175 = arith.mulf %159, %167 : vector<8x32xf32>
    %176 = arith.addf %174, %175 : vector<8x32xf32>
    %177 = math.tanh %176 : vector<8x32xf32>
    %178 = arith.mulf %173, %177 : vector<8x32xf32>
    %cst_87 = arith.constant dense<0.000000e+00> : vector<8x32xf32>
    %179 = tpu.matmul %73, %5, %cst_87 {dimension_numbers = #tpu.dot_dimension_numbers<[1], [0], [0], [1], [0, 0, 1, 1], [], []>} : vector<8x32xf32>, vector<32x32xf32>, vector<8x32xf32> -> vector<8x32xf32>
    %cst_88 = arith.constant dense<0.000000e+00> : vector<8x32xf32>
    %180 = tpu.matmul %176, %6, %cst_88 {dimension_numbers = #tpu.dot_dimension_numbers<[1], [0], [0], [1], [0, 0, 1, 1], [], []>} : vector<8x32xf32>, vector<32x32xf32>, vector<8x32xf32> -> vector<8x32xf32>
    %181 = arith.addf %179, %180 : vector<8x32xf32>
    %182 = arith.addf %181, %9 : vector<8x32xf32>
    %cst_89 = arith.constant 0.000000e+00 : f32
    %183 = vector.broadcast %cst_89 : f32 to vector<8x32xf32>
    %184 = arith.maximumf %182, %183 : vector<8x32xf32>
    %cst_90 = arith.constant dense<0.000000e+00> : vector<8x64xf32>
    %185 = tpu.matmul %184, %10, %cst_90 {dimension_numbers = #tpu.dot_dimension_numbers<[1], [0], [0], [1], [0, 0, 1, 1], [], []>} : vector<8x32xf32>, vector<32x64xf32>, vector<8x64xf32> -> vector<8x64xf32>
    %186 = arith.addf %185, %13 : vector<8x64xf32>
    %cst_91 = arith.constant dense<0xFF800000> : vector<8xf32>
    %187 = vector.multi_reduction <maximumf>, %186, %cst_91 [1] : vector<8x64xf32> to vector<8xf32>
    %188 = vector.shape_cast %187 : vector<8xf32> to vector<8x1xf32>
    %189 = vector.broadcast %188 : vector<8x1xf32> to vector<8x64xf32>
    %190 = arith.subf %186, %189 : vector<8x64xf32>
    %191 = math.exp %190 : vector<8x64xf32>
    %cst_92 = arith.constant dense<0.000000e+00> : vector<8xf32>
    %192 = vector.multi_reduction <add>, %191, %cst_92 [1] : vector<8x64xf32> to vector<8xf32>
    %193 = vector.shape_cast %192 : vector<8xf32> to vector<8x1xf32>
    %194 = tpu.reciprocal %193 {approx = true} : vector<8x1xf32> -> vector<8x1xf32>
    %195 = vector.broadcast %194 : vector<8x1xf32> to vector<8x64xf32>
    %196 = arith.mulf %191, %195 : vector<8x64xf32>
    %197 = vector.extract_strided_slice %196 {offsets = [0, 0], sizes = [8, 32], strides = [1, 1]} : vector<8x64xf32> to vector<8x32xf32>
    %198 = arith.mulf %197, %73 : vector<8x32xf32>
    %199 = vector.extract_strided_slice %196 {offsets = [0, 32], sizes = [8, 32], strides = [1, 1]} : vector<8x64xf32> to vector<8x32xf32>
    %200 = arith.mulf %199, %176 : vector<8x32xf32>
    %cst_93 = arith.constant dense<0.000000e+00> : vector<8x32xf32>
    %201 = tpu.matmul %198, %14, %cst_93 {dimension_numbers = #tpu.dot_dimension_numbers<[1], [0], [0], [1], [0, 0, 1, 1], [], []>} : vector<8x32xf32>, vector<32x32xf32>, vector<8x32xf32> -> vector<8x32xf32>
    %cst_94 = arith.constant dense<0.000000e+00> : vector<8x32xf32>
    %202 = tpu.matmul %200, %15, %cst_94 {dimension_numbers = #tpu.dot_dimension_numbers<[1], [0], [0], [1], [0, 0, 1, 1], [], []>} : vector<8x32xf32>, vector<32x32xf32>, vector<8x32xf32> -> vector<8x32xf32>
    %203 = arith.addf %201, %202 : vector<8x32xf32>
    %204 = arith.addf %203, %18 : vector<8x32xf32>
    %cst_95 = arith.constant 0.000000e+00 : f32
    %205 = vector.broadcast %cst_95 : f32 to vector<8x32xf32>
    %206 = arith.maximumf %204, %205 : vector<8x32xf32>
    %cst_96 = arith.constant dense<0.000000e+00> : vector<8x16xf32>
    %207 = tpu.matmul %206, %19, %cst_96 {dimension_numbers = #tpu.dot_dimension_numbers<[1], [0], [0], [1], [0, 0, 1, 1], [], []>} : vector<8x32xf32>, vector<32x16xf32>, vector<8x16xf32> -> vector<8x16xf32>
    %208 = arith.addf %207, %22 : vector<8x16xf32>
    %209 = math.tanh %208 : vector<8x16xf32>
    %cst_97 = arith.constant dense<0.000000e+00> : vector<8x64xf32>
    %210 = tpu.matmul %198, %23, %cst_97 {dimension_numbers = #tpu.dot_dimension_numbers<[1], [0], [0], [1], [0, 0, 1, 1], [], []>} : vector<8x32xf32>, vector<32x64xf32>, vector<8x64xf32> -> vector<8x64xf32>
    %cst_98 = arith.constant dense<0.000000e+00> : vector<8x64xf32>
    %211 = tpu.matmul %200, %24, %cst_98 {dimension_numbers = #tpu.dot_dimension_numbers<[1], [0], [0], [1], [0, 0, 1, 1], [], []>} : vector<8x32xf32>, vector<32x64xf32>, vector<8x64xf32> -> vector<8x64xf32>
    %212 = arith.addf %210, %211 : vector<8x64xf32>
    %cst_99 = arith.constant dense<0.000000e+00> : vector<8x64xf32>
    %213 = tpu.matmul %126, %25, %cst_99 {dimension_numbers = #tpu.dot_dimension_numbers<[1], [0], [0], [1], [0, 0, 1, 1], [], []>} : vector<8x16xf32>, vector<16x64xf32>, vector<8x64xf32> -> vector<8x64xf32>
    %214 = arith.addf %212, %213 : vector<8x64xf32>
    %215 = arith.addf %214, %28 : vector<8x64xf32>
    %cst_100 = arith.constant 0.000000e+00 : f32
    %216 = vector.broadcast %cst_100 : f32 to vector<8x64xf32>
    %217 = arith.maximumf %215, %216 : vector<8x64xf32>
    %cst_101 = arith.constant dense<0.000000e+00> : vector<8x32xf32>
    %218 = tpu.matmul %217, %29, %cst_101 {dimension_numbers = #tpu.dot_dimension_numbers<[1], [0], [0], [1], [0, 0, 1, 1], [], []>} : vector<8x64xf32>, vector<64x32xf32>, vector<8x32xf32> -> vector<8x32xf32>
    %219 = arith.addf %218, %32 : vector<8x32xf32>
    %220 = arith.negf %219 : vector<8x32xf32>
    %221 = math.exp %220 : vector<8x32xf32>
    %cst_102 = arith.constant 1.000000e+00 : f32
    %222 = vector.broadcast %cst_102 : f32 to vector<8x32xf32>
    %223 = arith.addf %222, %221 : vector<8x32xf32>
    %224 = arith.divf %222, %223 : vector<8x32xf32>
    %225 = vector.extract_strided_slice %224 {offsets = [0, 0], sizes = [8, 16], strides = [1, 1]} : vector<8x32xf32> to vector<8x16xf32>
    %226 = arith.mulf %225, %126 : vector<8x16xf32>
    %227 = vector.extract_strided_slice %224 {offsets = [0, 16], sizes = [8, 16], strides = [1, 1]} : vector<8x32xf32> to vector<8x16xf32>
    %228 = arith.mulf %227, %209 : vector<8x16xf32>
    %229 = arith.addf %226, %228 : vector<8x16xf32>
    %cst_103 = arith.constant dense<0.000000e+00> : vector<8x32xf32>
    %230 = tpu.matmul %178, %33, %cst_103 {dimension_numbers = #tpu.dot_dimension_numbers<[1], [0], [0], [1], [0, 0, 1, 1], [], []>} : vector<8x32xf32>, vector<32x32xf32>, vector<8x32xf32> -> vector<8x32xf32>
    %cst_104 = arith.constant dense<0.000000e+00> : vector<8x32xf32>
    %231 = tpu.matmul %229, %34, %cst_104 {dimension_numbers = #tpu.dot_dimension_numbers<[1], [0], [0], [1], [0, 0, 1, 1], [], []>} : vector<8x16xf32>, vector<16x32xf32>, vector<8x32xf32> -> vector<8x32xf32>
    %232 = arith.addf %230, %231 : vector<8x32xf32>
    %233 = arith.addf %232, %37 : vector<8x32xf32>
    %cst_105 = arith.constant 0.000000e+00 : f32
    %234 = vector.broadcast %cst_105 : f32 to vector<8x32xf32>
    %235 = arith.maximumf %233, %234 : vector<8x32xf32>
    %cst_106 = arith.constant dense<0.000000e+00> : vector<8x4xf32>
    %236 = tpu.matmul %235, %38, %cst_106 {dimension_numbers = #tpu.dot_dimension_numbers<[1], [0], [0], [1], [0, 0, 1, 1], [], []>} : vector<8x32xf32>, vector<32x4xf32>, vector<8x4xf32> -> vector<8x4xf32>
    %237 = arith.addf %236, %41 : vector<8x4xf32>
    %cst_107 = arith.constant dense<0xFF800000> : vector<8xf32>
    %238 = vector.multi_reduction <maximumf>, %237, %cst_107 [1] : vector<8x4xf32> to vector<8xf32>
    %239 = vector.shape_cast %238 : vector<8xf32> to vector<8x1xf32>
    %240 = vector.broadcast %239 : vector<8x1xf32> to vector<8x4xf32>
    %241 = arith.subf %237, %240 : vector<8x4xf32>
    %242 = math.exp %241 : vector<8x4xf32>
    %cst_108 = arith.constant dense<0.000000e+00> : vector<8xf32>
    %243 = vector.multi_reduction <add>, %242, %cst_108 [1] : vector<8x4xf32> to vector<8xf32>
    %244 = vector.shape_cast %243 : vector<8xf32> to vector<8x1xf32>
    %245 = math.log %244 : vector<8x1xf32>
    %246 = vector.broadcast %245 : vector<8x1xf32> to vector<8x4xf32>
    %247 = arith.subf %241, %246 : vector<8x4xf32>
    %c1_109 = arith.constant 1 : index
    %c0_110 = arith.constant 0 : index
    %c0_111 = arith.constant 0 : index
    %248 = vector.load %arg21[%c1_109, %c0_110, %c0_111] : memref<8x8x4xf32, #tpu.memory_space<vmem>>, vector<1x8x4xf32>
    %249 = vector.shape_cast %248 : vector<1x8x4xf32> to vector<8x4xf32>
    %250 = vector.shape_cast %247 : vector<8x4xf32> to vector<1x8x4xf32>
    tpu.vector_store %arg21[%c1_109, %c0_110, %c0_111], %250 {strides = array<i32>} : memref<8x8x4xf32, #tpu.memory_space<vmem>>, vector<1x8x4xf32>,
    %c2 = arith.constant 2 : index
    %c0_112 = arith.constant 0 : index
    %c0_113 = arith.constant 0 : index
    %251 = vector.load %arg1[%c2, %c0_112, %c0_113] : memref<8x8x32xf32, #tpu.memory_space<vmem>>, vector<1x8x32xf32>
    %252 = vector.shape_cast %251 : vector<1x8x32xf32> to vector<8x32xf32>
    %cst_114 = arith.constant dense<0.000000e+00> : vector<8x128xf32>
    %253 = tpu.matmul %252, %0, %cst_114 {dimension_numbers = #tpu.dot_dimension_numbers<[1], [0], [0], [1], [0, 0, 1, 1], [], []>} : vector<8x32xf32>, vector<32x128xf32>, vector<8x128xf32> -> vector<8x128xf32>
    %cst_115 = arith.constant dense<0.000000e+00> : vector<8x128xf32>
    %254 = tpu.matmul %178, %1, %cst_115 {dimension_numbers = #tpu.dot_dimension_numbers<[1], [0], [0], [1], [0, 0, 1, 1], [], []>} : vector<8x32xf32>, vector<32x128xf32>, vector<8x128xf32> -> vector<8x128xf32>
    %255 = arith.addf %253, %254 : vector<8x128xf32>
    %256 = arith.addf %255, %4 : vector<8x128xf32>
    %257 = vector.extract_strided_slice %256 {offsets = [0, 0], sizes = [8, 32], strides = [1, 1]} : vector<8x128xf32> to vector<8x32xf32>
    %258 = arith.negf %257 : vector<8x32xf32>
    %259 = math.exp %258 : vector<8x32xf32>
    %cst_116 = arith.constant 1.000000e+00 : f32
    %260 = vector.broadcast %cst_116 : f32 to vector<8x32xf32>
    %261 = arith.addf %260, %259 : vector<8x32xf32>
    %262 = arith.divf %260, %261 : vector<8x32xf32>
    %263 = vector.extract_strided_slice %256 {offsets = [0, 32], sizes = [8, 32], strides = [1, 1]} : vector<8x128xf32> to vector<8x32xf32>
    %264 = arith.negf %263 : vector<8x32xf32>
    %265 = math.exp %264 : vector<8x32xf32>
    %cst_117 = arith.constant 1.000000e+00 : f32
    %266 = vector.broadcast %cst_117 : f32 to vector<8x32xf32>
    %267 = arith.addf %266, %265 : vector<8x32xf32>
    %268 = arith.divf %266, %267 : vector<8x32xf32>
    %269 = vector.extract_strided_slice %256 {offsets = [0, 64], sizes = [8, 32], strides = [1, 1]} : vector<8x128xf32> to vector<8x32xf32>
    %270 = math.tanh %269 : vector<8x32xf32>
    %271 = vector.extract_strided_slice %256 {offsets = [0, 96], sizes = [8, 32], strides = [1, 1]} : vector<8x128xf32> to vector<8x32xf32>
    %272 = arith.negf %271 : vector<8x32xf32>
    %273 = math.exp %272 : vector<8x32xf32>
    %cst_118 = arith.constant 1.000000e+00 : f32
    %274 = vector.broadcast %cst_118 : f32 to vector<8x32xf32>
    %275 = arith.addf %274, %273 : vector<8x32xf32>
    %276 = arith.divf %274, %275 : vector<8x32xf32>
    %277 = arith.mulf %268, %176 : vector<8x32xf32>
    %278 = arith.mulf %262, %270 : vector<8x32xf32>
    %279 = arith.addf %277, %278 : vector<8x32xf32>
    %280 = math.tanh %279 : vector<8x32xf32>
    %281 = arith.mulf %276, %280 : vector<8x32xf32>
    %cst_119 = arith.constant dense<0.000000e+00> : vector<8x32xf32>
    %282 = tpu.matmul %176, %5, %cst_119 {dimension_numbers = #tpu.dot_dimension_numbers<[1], [0], [0], [1], [0, 0, 1, 1], [], []>} : vector<8x32xf32>, vector<32x32xf32>, vector<8x32xf32> -> vector<8x32xf32>
    %cst_120 = arith.constant dense<0.000000e+00> : vector<8x32xf32>
    %283 = tpu.matmul %279, %6, %cst_120 {dimension_numbers = #tpu.dot_dimension_numbers<[1], [0], [0], [1], [0, 0, 1, 1], [], []>} : vector<8x32xf32>, vector<32x32xf32>, vector<8x32xf32> -> vector<8x32xf32>
    %284 = arith.addf %282, %283 : vector<8x32xf32>
    %285 = arith.addf %284, %9 : vector<8x32xf32>
    %cst_121 = arith.constant 0.000000e+00 : f32
    %286 = vector.broadcast %cst_121 : f32 to vector<8x32xf32>
    %287 = arith.maximumf %285, %286 : vector<8x32xf32>
    %cst_122 = arith.constant dense<0.000000e+00> : vector<8x64xf32>
    %288 = tpu.matmul %287, %10, %cst_122 {dimension_numbers = #tpu.dot_dimension_numbers<[1], [0], [0], [1], [0, 0, 1, 1], [], []>} : vector<8x32xf32>, vector<32x64xf32>, vector<8x64xf32> -> vector<8x64xf32>
    %289 = arith.addf %288, %13 : vector<8x64xf32>
    %cst_123 = arith.constant dense<0xFF800000> : vector<8xf32>
    %290 = vector.multi_reduction <maximumf>, %289, %cst_123 [1] : vector<8x64xf32> to vector<8xf32>
    %291 = vector.shape_cast %290 : vector<8xf32> to vector<8x1xf32>
    %292 = vector.broadcast %291 : vector<8x1xf32> to vector<8x64xf32>
    %293 = arith.subf %289, %292 : vector<8x64xf32>
    %294 = math.exp %293 : vector<8x64xf32>
    %cst_124 = arith.constant dense<0.000000e+00> : vector<8xf32>
    %295 = vector.multi_reduction <add>, %294, %cst_124 [1] : vector<8x64xf32> to vector<8xf32>
    %296 = vector.shape_cast %295 : vector<8xf32> to vector<8x1xf32>
    %297 = tpu.reciprocal %296 {approx = true} : vector<8x1xf32> -> vector<8x1xf32>
    %298 = vector.broadcast %297 : vector<8x1xf32> to vector<8x64xf32>
    %299 = arith.mulf %294, %298 : vector<8x64xf32>
    %300 = vector.extract_strided_slice %299 {offsets = [0, 0], sizes = [8, 32], strides = [1, 1]} : vector<8x64xf32> to vector<8x32xf32>
    %301 = arith.mulf %300, %176 : vector<8x32xf32>
    %302 = vector.extract_strided_slice %299 {offsets = [0, 32], sizes = [8, 32], strides = [1, 1]} : vector<8x64xf32> to vector<8x32xf32>
    %303 = arith.mulf %302, %279 : vector<8x32xf32>
    %cst_125 = arith.constant dense<0.000000e+00> : vector<8x32xf32>
    %304 = tpu.matmul %301, %14, %cst_125 {dimension_numbers = #tpu.dot_dimension_numbers<[1], [0], [0], [1], [0, 0, 1, 1], [], []>} : vector<8x32xf32>, vector<32x32xf32>, vector<8x32xf32> -> vector<8x32xf32>
    %cst_126 = arith.constant dense<0.000000e+00> : vector<8x32xf32>
    %305 = tpu.matmul %303, %15, %cst_126 {dimension_numbers = #tpu.dot_dimension_numbers<[1], [0], [0], [1], [0, 0, 1, 1], [], []>} : vector<8x32xf32>, vector<32x32xf32>, vector<8x32xf32> -> vector<8x32xf32>
    %306 = arith.addf %304, %305 : vector<8x32xf32>
    %307 = arith.addf %306, %18 : vector<8x32xf32>
    %cst_127 = arith.constant 0.000000e+00 : f32
    %308 = vector.broadcast %cst_127 : f32 to vector<8x32xf32>
    %309 = arith.maximumf %307, %308 : vector<8x32xf32>
    %cst_128 = arith.constant dense<0.000000e+00> : vector<8x16xf32>
    %310 = tpu.matmul %309, %19, %cst_128 {dimension_numbers = #tpu.dot_dimension_numbers<[1], [0], [0], [1], [0, 0, 1, 1], [], []>} : vector<8x32xf32>, vector<32x16xf32>, vector<8x16xf32> -> vector<8x16xf32>
    %311 = arith.addf %310, %22 : vector<8x16xf32>
    %312 = math.tanh %311 : vector<8x16xf32>
    %cst_129 = arith.constant dense<0.000000e+00> : vector<8x64xf32>
    %313 = tpu.matmul %301, %23, %cst_129 {dimension_numbers = #tpu.dot_dimension_numbers<[1], [0], [0], [1], [0, 0, 1, 1], [], []>} : vector<8x32xf32>, vector<32x64xf32>, vector<8x64xf32> -> vector<8x64xf32>
    %cst_130 = arith.constant dense<0.000000e+00> : vector<8x64xf32>
    %314 = tpu.matmul %303, %24, %cst_130 {dimension_numbers = #tpu.dot_dimension_numbers<[1], [0], [0], [1], [0, 0, 1, 1], [], []>} : vector<8x32xf32>, vector<32x64xf32>, vector<8x64xf32> -> vector<8x64xf32>
    %315 = arith.addf %313, %314 : vector<8x64xf32>
    %cst_131 = arith.constant dense<0.000000e+00> : vector<8x64xf32>
    %316 = tpu.matmul %229, %25, %cst_131 {dimension_numbers = #tpu.dot_dimension_numbers<[1], [0], [0], [1], [0, 0, 1, 1], [], []>} : vector<8x16xf32>, vector<16x64xf32>, vector<8x64xf32> -> vector<8x64xf32>
    %317 = arith.addf %315, %316 : vector<8x64xf32>
    %318 = arith.addf %317, %28 : vector<8x64xf32>
    %cst_132 = arith.constant 0.000000e+00 : f32
    %319 = vector.broadcast %cst_132 : f32 to vector<8x64xf32>
    %320 = arith.maximumf %318, %319 : vector<8x64xf32>
    %cst_133 = arith.constant dense<0.000000e+00> : vector<8x32xf32>
    %321 = tpu.matmul %320, %29, %cst_133 {dimension_numbers = #tpu.dot_dimension_numbers<[1], [0], [0], [1], [0, 0, 1, 1], [], []>} : vector<8x64xf32>, vector<64x32xf32>, vector<8x32xf32> -> vector<8x32xf32>
    %322 = arith.addf %321, %32 : vector<8x32xf32>
    %323 = arith.negf %322 : vector<8x32xf32>
    %324 = math.exp %323 : vector<8x32xf32>
    %cst_134 = arith.constant 1.000000e+00 : f32
    %325 = vector.broadcast %cst_134 : f32 to vector<8x32xf32>
    %326 = arith.addf %325, %324 : vector<8x32xf32>
    %327 = arith.divf %325, %326 : vector<8x32xf32>
    %328 = vector.extract_strided_slice %327 {offsets = [0, 0], sizes = [8, 16], strides = [1, 1]} : vector<8x32xf32> to vector<8x16xf32>
    %329 = arith.mulf %328, %229 : vector<8x16xf32>
    %330 = vector.extract_strided_slice %327 {offsets = [0, 16], sizes = [8, 16], strides = [1, 1]} : vector<8x32xf32> to vector<8x16xf32>
    %331 = arith.mulf %330, %312 : vector<8x16xf32>
    %332 = arith.addf %329, %331 : vector<8x16xf32>
    %cst_135 = arith.constant dense<0.000000e+00> : vector<8x32xf32>
    %333 = tpu.matmul %281, %33, %cst_135 {dimension_numbers = #tpu.dot_dimension_numbers<[1], [0], [0], [1], [0, 0, 1, 1], [], []>} : vector<8x32xf32>, vector<32x32xf32>, vector<8x32xf32> -> vector<8x32xf32>
    %cst_136 = arith.constant dense<0.000000e+00> : vector<8x32xf32>
    %334 = tpu.matmul %332, %34, %cst_136 {dimension_numbers = #tpu.dot_dimension_numbers<[1], [0], [0], [1], [0, 0, 1, 1], [], []>} : vector<8x16xf32>, vector<16x32xf32>, vector<8x32xf32> -> vector<8x32xf32>
    %335 = arith.addf %333, %334 : vector<8x32xf32>
    %336 = arith.addf %335, %37 : vector<8x32xf32>
    %cst_137 = arith.constant 0.000000e+00 : f32
    %337 = vector.broadcast %cst_137 : f32 to vector<8x32xf32>
    %338 = arith.maximumf %336, %337 : vector<8x32xf32>
    %cst_138 = arith.constant dense<0.000000e+00> : vector<8x4xf32>
    %339 = tpu.matmul %338, %38, %cst_138 {dimension_numbers = #tpu.dot_dimension_numbers<[1], [0], [0], [1], [0, 0, 1, 1], [], []>} : vector<8x32xf32>, vector<32x4xf32>, vector<8x4xf32> -> vector<8x4xf32>
    %340 = arith.addf %339, %41 : vector<8x4xf32>
    %cst_139 = arith.constant dense<0xFF800000> : vector<8xf32>
    %341 = vector.multi_reduction <maximumf>, %340, %cst_139 [1] : vector<8x4xf32> to vector<8xf32>
    %342 = vector.shape_cast %341 : vector<8xf32> to vector<8x1xf32>
    %343 = vector.broadcast %342 : vector<8x1xf32> to vector<8x4xf32>
    %344 = arith.subf %340, %343 : vector<8x4xf32>
    %345 = math.exp %344 : vector<8x4xf32>
    %cst_140 = arith.constant dense<0.000000e+00> : vector<8xf32>
    %346 = vector.multi_reduction <add>, %345, %cst_140 [1] : vector<8x4xf32> to vector<8xf32>
    %347 = vector.shape_cast %346 : vector<8xf32> to vector<8x1xf32>
    %348 = math.log %347 : vector<8x1xf32>
    %349 = vector.broadcast %348 : vector<8x1xf32> to vector<8x4xf32>
    %350 = arith.subf %344, %349 : vector<8x4xf32>
    %c2_141 = arith.constant 2 : index
    %c0_142 = arith.constant 0 : index
    %c0_143 = arith.constant 0 : index
    %351 = vector.load %arg21[%c2_141, %c0_142, %c0_143] : memref<8x8x4xf32, #tpu.memory_space<vmem>>, vector<1x8x4xf32>
    %352 = vector.shape_cast %351 : vector<1x8x4xf32> to vector<8x4xf32>
    %353 = vector.shape_cast %350 : vector<8x4xf32> to vector<1x8x4xf32>
    tpu.vector_store %arg21[%c2_141, %c0_142, %c0_143], %353 {strides = array<i32>} : memref<8x8x4xf32, #tpu.memory_space<vmem>>, vector<1x8x4xf32>,
    %c3 = arith.constant 3 : index
    %c0_144 = arith.constant 0 : index
    %c0_145 = arith.constant 0 : index
    %354 = vector.load %arg1[%c3, %c0_144, %c0_145] : memref<8x8x32xf32, #tpu.memory_space<vmem>>, vector<1x8x32xf32>
    %355 = vector.shape_cast %354 : vector<1x8x32xf32> to vector<8x32xf32>
    %cst_146 = arith.constant dense<0.000000e+00> : vector<8x128xf32>
    %356 = tpu.matmul %355, %0, %cst_146 {dimension_numbers = #tpu.dot_dimension_numbers<[1], [0], [0], [1], [0, 0, 1, 1], [], []>} : vector<8x32xf32>, vector<32x128xf32>, vector<8x128xf32> -> vector<8x128xf32>
    %cst_147 = arith.constant dense<0.000000e+00> : vector<8x128xf32>
    %357 = tpu.matmul %281, %1, %cst_147 {dimension_numbers = #tpu.dot_dimension_numbers<[1], [0], [0], [1], [0, 0, 1, 1], [], []>} : vector<8x32xf32>, vector<32x128xf32>, vector<8x128xf32> -> vector<8x128xf32>
    %358 = arith.addf %356, %357 : vector<8x128xf32>
    %359 = arith.addf %358, %4 : vector<8x128xf32>
    %360 = vector.extract_strided_slice %359 {offsets = [0, 0], sizes = [8, 32], strides = [1, 1]} : vector<8x128xf32> to vector<8x32xf32>
    %361 = arith.negf %360 : vector<8x32xf32>
    %362 = math.exp %361 : vector<8x32xf32>
    %cst_148 = arith.constant 1.000000e+00 : f32
    %363 = vector.broadcast %cst_148 : f32 to vector<8x32xf32>
    %364 = arith.addf %363, %362 : vector<8x32xf32>
    %365 = arith.divf %363, %364 : vector<8x32xf32>
    %366 = vector.extract_strided_slice %359 {offsets = [0, 32], sizes = [8, 32], strides = [1, 1]} : vector<8x128xf32> to vector<8x32xf32>
    %367 = arith.negf %366 : vector<8x32xf32>
    %368 = math.exp %367 : vector<8x32xf32>
    %cst_149 = arith.constant 1.000000e+00 : f32
    %369 = vector.broadcast %cst_149 : f32 to vector<8x32xf32>
    %370 = arith.addf %369, %368 : vector<8x32xf32>
    %371 = arith.divf %369, %370 : vector<8x32xf32>
    %372 = vector.extract_strided_slice %359 {offsets = [0, 64], sizes = [8, 32], strides = [1, 1]} : vector<8x128xf32> to vector<8x32xf32>
    %373 = math.tanh %372 : vector<8x32xf32>
    %374 = vector.extract_strided_slice %359 {offsets = [0, 96], sizes = [8, 32], strides = [1, 1]} : vector<8x128xf32> to vector<8x32xf32>
    %375 = arith.negf %374 : vector<8x32xf32>
    %376 = math.exp %375 : vector<8x32xf32>
    %cst_150 = arith.constant 1.000000e+00 : f32
    %377 = vector.broadcast %cst_150 : f32 to vector<8x32xf32>
    %378 = arith.addf %377, %376 : vector<8x32xf32>
    %379 = arith.divf %377, %378 : vector<8x32xf32>
    %380 = arith.mulf %371, %279 : vector<8x32xf32>
    %381 = arith.mulf %365, %373 : vector<8x32xf32>
    %382 = arith.addf %380, %381 : vector<8x32xf32>
    %383 = math.tanh %382 : vector<8x32xf32>
    %384 = arith.mulf %379, %383 : vector<8x32xf32>
    %cst_151 = arith.constant dense<0.000000e+00> : vector<8x32xf32>
    %385 = tpu.matmul %279, %5, %cst_151 {dimension_numbers = #tpu.dot_dimension_numbers<[1], [0], [0], [1], [0, 0, 1, 1], [], []>} : vector<8x32xf32>, vector<32x32xf32>, vector<8x32xf32> -> vector<8x32xf32>
    %cst_152 = arith.constant dense<0.000000e+00> : vector<8x32xf32>
    %386 = tpu.matmul %382, %6, %cst_152 {dimension_numbers = #tpu.dot_dimension_numbers<[1], [0], [0], [1], [0, 0, 1, 1], [], []>} : vector<8x32xf32>, vector<32x32xf32>, vector<8x32xf32> -> vector<8x32xf32>
    %387 = arith.addf %385, %386 : vector<8x32xf32>
    %388 = arith.addf %387, %9 : vector<8x32xf32>
    %cst_153 = arith.constant 0.000000e+00 : f32
    %389 = vector.broadcast %cst_153 : f32 to vector<8x32xf32>
    %390 = arith.maximumf %388, %389 : vector<8x32xf32>
    %cst_154 = arith.constant dense<0.000000e+00> : vector<8x64xf32>
    %391 = tpu.matmul %390, %10, %cst_154 {dimension_numbers = #tpu.dot_dimension_numbers<[1], [0], [0], [1], [0, 0, 1, 1], [], []>} : vector<8x32xf32>, vector<32x64xf32>, vector<8x64xf32> -> vector<8x64xf32>
    %392 = arith.addf %391, %13 : vector<8x64xf32>
    %cst_155 = arith.constant dense<0xFF800000> : vector<8xf32>
    %393 = vector.multi_reduction <maximumf>, %392, %cst_155 [1] : vector<8x64xf32> to vector<8xf32>
    %394 = vector.shape_cast %393 : vector<8xf32> to vector<8x1xf32>
    %395 = vector.broadcast %394 : vector<8x1xf32> to vector<8x64xf32>
    %396 = arith.subf %392, %395 : vector<8x64xf32>
    %397 = math.exp %396 : vector<8x64xf32>
    %cst_156 = arith.constant dense<0.000000e+00> : vector<8xf32>
    %398 = vector.multi_reduction <add>, %397, %cst_156 [1] : vector<8x64xf32> to vector<8xf32>
    %399 = vector.shape_cast %398 : vector<8xf32> to vector<8x1xf32>
    %400 = tpu.reciprocal %399 {approx = true} : vector<8x1xf32> -> vector<8x1xf32>
    %401 = vector.broadcast %400 : vector<8x1xf32> to vector<8x64xf32>
    %402 = arith.mulf %397, %401 : vector<8x64xf32>
    %403 = vector.extract_strided_slice %402 {offsets = [0, 0], sizes = [8, 32], strides = [1, 1]} : vector<8x64xf32> to vector<8x32xf32>
    %404 = arith.mulf %403, %279 : vector<8x32xf32>
    %405 = vector.extract_strided_slice %402 {offsets = [0, 32], sizes = [8, 32], strides = [1, 1]} : vector<8x64xf32> to vector<8x32xf32>
    %406 = arith.mulf %405, %382 : vector<8x32xf32>
    %cst_157 = arith.constant dense<0.000000e+00> : vector<8x32xf32>
    %407 = tpu.matmul %404, %14, %cst_157 {dimension_numbers = #tpu.dot_dimension_numbers<[1], [0], [0], [1], [0, 0, 1, 1], [], []>} : vector<8x32xf32>, vector<32x32xf32>, vector<8x32xf32> -> vector<8x32xf32>
    %cst_158 = arith.constant dense<0.000000e+00> : vector<8x32xf32>
    %408 = tpu.matmul %406, %15, %cst_158 {dimension_numbers = #tpu.dot_dimension_numbers<[1], [0], [0], [1], [0, 0, 1, 1], [], []>} : vector<8x32xf32>, vector<32x32xf32>, vector<8x32xf32> -> vector<8x32xf32>
    %409 = arith.addf %407, %408 : vector<8x32xf32>
    %410 = arith.addf %409, %18 : vector<8x32xf32>
    %cst_159 = arith.constant 0.000000e+00 : f32
    %411 = vector.broadcast %cst_159 : f32 to vector<8x32xf32>
    %412 = arith.maximumf %410, %411 : vector<8x32xf32>
    %cst_160 = arith.constant dense<0.000000e+00> : vector<8x16xf32>
    %413 = tpu.matmul %412, %19, %cst_160 {dimension_numbers = #tpu.dot_dimension_numbers<[1], [0], [0], [1], [0, 0, 1, 1], [], []>} : vector<8x32xf32>, vector<32x16xf32>, vector<8x16xf32> -> vector<8x16xf32>
    %414 = arith.addf %413, %22 : vector<8x16xf32>
    %415 = math.tanh %414 : vector<8x16xf32>
    %cst_161 = arith.constant dense<0.000000e+00> : vector<8x64xf32>
    %416 = tpu.matmul %404, %23, %cst_161 {dimension_numbers = #tpu.dot_dimension_numbers<[1], [0], [0], [1], [0, 0, 1, 1], [], []>} : vector<8x32xf32>, vector<32x64xf32>, vector<8x64xf32> -> vector<8x64xf32>
    %cst_162 = arith.constant dense<0.000000e+00> : vector<8x64xf32>
    %417 = tpu.matmul %406, %24, %cst_162 {dimension_numbers = #tpu.dot_dimension_numbers<[1], [0], [0], [1], [0, 0, 1, 1], [], []>} : vector<8x32xf32>, vector<32x64xf32>, vector<8x64xf32> -> vector<8x64xf32>
    %418 = arith.addf %416, %417 : vector<8x64xf32>
    %cst_163 = arith.constant dense<0.000000e+00> : vector<8x64xf32>
    %419 = tpu.matmul %332, %25, %cst_163 {dimension_numbers = #tpu.dot_dimension_numbers<[1], [0], [0], [1], [0, 0, 1, 1], [], []>} : vector<8x16xf32>, vector<16x64xf32>, vector<8x64xf32> -> vector<8x64xf32>
    %420 = arith.addf %418, %419 : vector<8x64xf32>
    %421 = arith.addf %420, %28 : vector<8x64xf32>
    %cst_164 = arith.constant 0.000000e+00 : f32
    %422 = vector.broadcast %cst_164 : f32 to vector<8x64xf32>
    %423 = arith.maximumf %421, %422 : vector<8x64xf32>
    %cst_165 = arith.constant dense<0.000000e+00> : vector<8x32xf32>
    %424 = tpu.matmul %423, %29, %cst_165 {dimension_numbers = #tpu.dot_dimension_numbers<[1], [0], [0], [1], [0, 0, 1, 1], [], []>} : vector<8x64xf32>, vector<64x32xf32>, vector<8x32xf32> -> vector<8x32xf32>
    %425 = arith.addf %424, %32 : vector<8x32xf32>
    %426 = arith.negf %425 : vector<8x32xf32>
    %427 = math.exp %426 : vector<8x32xf32>
    %cst_166 = arith.constant 1.000000e+00 : f32
    %428 = vector.broadcast %cst_166 : f32 to vector<8x32xf32>
    %429 = arith.addf %428, %427 : vector<8x32xf32>
    %430 = arith.divf %428, %429 : vector<8x32xf32>
    %431 = vector.extract_strided_slice %430 {offsets = [0, 0], sizes = [8, 16], strides = [1, 1]} : vector<8x32xf32> to vector<8x16xf32>
    %432 = arith.mulf %431, %332 : vector<8x16xf32>
    %433 = vector.extract_strided_slice %430 {offsets = [0, 16], sizes = [8, 16], strides = [1, 1]} : vector<8x32xf32> to vector<8x16xf32>
    %434 = arith.mulf %433, %415 : vector<8x16xf32>
    %435 = arith.addf %432, %434 : vector<8x16xf32>
    %cst_167 = arith.constant dense<0.000000e+00> : vector<8x32xf32>
    %436 = tpu.matmul %384, %33, %cst_167 {dimension_numbers = #tpu.dot_dimension_numbers<[1], [0], [0], [1], [0, 0, 1, 1], [], []>} : vector<8x32xf32>, vector<32x32xf32>, vector<8x32xf32> -> vector<8x32xf32>
    %cst_168 = arith.constant dense<0.000000e+00> : vector<8x32xf32>
    %437 = tpu.matmul %435, %34, %cst_168 {dimension_numbers = #tpu.dot_dimension_numbers<[1], [0], [0], [1], [0, 0, 1, 1], [], []>} : vector<8x16xf32>, vector<16x32xf32>, vector<8x32xf32> -> vector<8x32xf32>
    %438 = arith.addf %436, %437 : vector<8x32xf32>
    %439 = arith.addf %438, %37 : vector<8x32xf32>
    %cst_169 = arith.constant 0.000000e+00 : f32
    %440 = vector.broadcast %cst_169 : f32 to vector<8x32xf32>
    %441 = arith.maximumf %439, %440 : vector<8x32xf32>
    %cst_170 = arith.constant dense<0.000000e+00> : vector<8x4xf32>
    %442 = tpu.matmul %441, %38, %cst_170 {dimension_numbers = #tpu.dot_dimension_numbers<[1], [0], [0], [1], [0, 0, 1, 1], [], []>} : vector<8x32xf32>, vector<32x4xf32>, vector<8x4xf32> -> vector<8x4xf32>
    %443 = arith.addf %442, %41 : vector<8x4xf32>
    %cst_171 = arith.constant dense<0xFF800000> : vector<8xf32>
    %444 = vector.multi_reduction <maximumf>, %443, %cst_171 [1] : vector<8x4xf32> to vector<8xf32>
    %445 = vector.shape_cast %444 : vector<8xf32> to vector<8x1xf32>
    %446 = vector.broadcast %445 : vector<8x1xf32> to vector<8x4xf32>
    %447 = arith.subf %443, %446 : vector<8x4xf32>
    %448 = math.exp %447 : vector<8x4xf32>
    %cst_172 = arith.constant dense<0.000000e+00> : vector<8xf32>
    %449 = vector.multi_reduction <add>, %448, %cst_172 [1] : vector<8x4xf32> to vector<8xf32>
    %450 = vector.shape_cast %449 : vector<8xf32> to vector<8x1xf32>
    %451 = math.log %450 : vector<8x1xf32>
    %452 = vector.broadcast %451 : vector<8x1xf32> to vector<8x4xf32>
    %453 = arith.subf %447, %452 : vector<8x4xf32>
    %c3_173 = arith.constant 3 : index
    %c0_174 = arith.constant 0 : index
    %c0_175 = arith.constant 0 : index
    %454 = vector.load %arg21[%c3_173, %c0_174, %c0_175] : memref<8x8x4xf32, #tpu.memory_space<vmem>>, vector<1x8x4xf32>
    %455 = vector.shape_cast %454 : vector<1x8x4xf32> to vector<8x4xf32>
    %456 = vector.shape_cast %453 : vector<8x4xf32> to vector<1x8x4xf32>
    tpu.vector_store %arg21[%c3_173, %c0_174, %c0_175], %456 {strides = array<i32>} : memref<8x8x4xf32, #tpu.memory_space<vmem>>, vector<1x8x4xf32>,
    %c4 = arith.constant 4 : index
    %c0_176 = arith.constant 0 : index
    %c0_177 = arith.constant 0 : index
    %457 = vector.load %arg1[%c4, %c0_176, %c0_177] : memref<8x8x32xf32, #tpu.memory_space<vmem>>, vector<1x8x32xf32>
    %458 = vector.shape_cast %457 : vector<1x8x32xf32> to vector<8x32xf32>
    %cst_178 = arith.constant dense<0.000000e+00> : vector<8x128xf32>
    %459 = tpu.matmul %458, %0, %cst_178 {dimension_numbers = #tpu.dot_dimension_numbers<[1], [0], [0], [1], [0, 0, 1, 1], [], []>} : vector<8x32xf32>, vector<32x128xf32>, vector<8x128xf32> -> vector<8x128xf32>
    %cst_179 = arith.constant dense<0.000000e+00> : vector<8x128xf32>
    %460 = tpu.matmul %384, %1, %cst_179 {dimension_numbers = #tpu.dot_dimension_numbers<[1], [0], [0], [1], [0, 0, 1, 1], [], []>} : vector<8x32xf32>, vector<32x128xf32>, vector<8x128xf32> -> vector<8x128xf32>
    %461 = arith.addf %459, %460 : vector<8x128xf32>
    %462 = arith.addf %461, %4 : vector<8x128xf32>
    %463 = vector.extract_strided_slice %462 {offsets = [0, 0], sizes = [8, 32], strides = [1, 1]} : vector<8x128xf32> to vector<8x32xf32>
    %464 = arith.negf %463 : vector<8x32xf32>
    %465 = math.exp %464 : vector<8x32xf32>
    %cst_180 = arith.constant 1.000000e+00 : f32
    %466 = vector.broadcast %cst_180 : f32 to vector<8x32xf32>
    %467 = arith.addf %466, %465 : vector<8x32xf32>
    %468 = arith.divf %466, %467 : vector<8x32xf32>
    %469 = vector.extract_strided_slice %462 {offsets = [0, 32], sizes = [8, 32], strides = [1, 1]} : vector<8x128xf32> to vector<8x32xf32>
    %470 = arith.negf %469 : vector<8x32xf32>
    %471 = math.exp %470 : vector<8x32xf32>
    %cst_181 = arith.constant 1.000000e+00 : f32
    %472 = vector.broadcast %cst_181 : f32 to vector<8x32xf32>
    %473 = arith.addf %472, %471 : vector<8x32xf32>
    %474 = arith.divf %472, %473 : vector<8x32xf32>
    %475 = vector.extract_strided_slice %462 {offsets = [0, 64], sizes = [8, 32], strides = [1, 1]} : vector<8x128xf32> to vector<8x32xf32>
    %476 = math.tanh %475 : vector<8x32xf32>
    %477 = vector.extract_strided_slice %462 {offsets = [0, 96], sizes = [8, 32], strides = [1, 1]} : vector<8x128xf32> to vector<8x32xf32>
    %478 = arith.negf %477 : vector<8x32xf32>
    %479 = math.exp %478 : vector<8x32xf32>
    %cst_182 = arith.constant 1.000000e+00 : f32
    %480 = vector.broadcast %cst_182 : f32 to vector<8x32xf32>
    %481 = arith.addf %480, %479 : vector<8x32xf32>
    %482 = arith.divf %480, %481 : vector<8x32xf32>
    %483 = arith.mulf %474, %382 : vector<8x32xf32>
    %484 = arith.mulf %468, %476 : vector<8x32xf32>
    %485 = arith.addf %483, %484 : vector<8x32xf32>
    %486 = math.tanh %485 : vector<8x32xf32>
    %487 = arith.mulf %482, %486 : vector<8x32xf32>
    %cst_183 = arith.constant dense<0.000000e+00> : vector<8x32xf32>
    %488 = tpu.matmul %382, %5, %cst_183 {dimension_numbers = #tpu.dot_dimension_numbers<[1], [0], [0], [1], [0, 0, 1, 1], [], []>} : vector<8x32xf32>, vector<32x32xf32>, vector<8x32xf32> -> vector<8x32xf32>
    %cst_184 = arith.constant dense<0.000000e+00> : vector<8x32xf32>
    %489 = tpu.matmul %485, %6, %cst_184 {dimension_numbers = #tpu.dot_dimension_numbers<[1], [0], [0], [1], [0, 0, 1, 1], [], []>} : vector<8x32xf32>, vector<32x32xf32>, vector<8x32xf32> -> vector<8x32xf32>
    %490 = arith.addf %488, %489 : vector<8x32xf32>
    %491 = arith.addf %490, %9 : vector<8x32xf32>
    %cst_185 = arith.constant 0.000000e+00 : f32
    %492 = vector.broadcast %cst_185 : f32 to vector<8x32xf32>
    %493 = arith.maximumf %491, %492 : vector<8x32xf32>
    %cst_186 = arith.constant dense<0.000000e+00> : vector<8x64xf32>
    %494 = tpu.matmul %493, %10, %cst_186 {dimension_numbers = #tpu.dot_dimension_numbers<[1], [0], [0], [1], [0, 0, 1, 1], [], []>} : vector<8x32xf32>, vector<32x64xf32>, vector<8x64xf32> -> vector<8x64xf32>
    %495 = arith.addf %494, %13 : vector<8x64xf32>
    %cst_187 = arith.constant dense<0xFF800000> : vector<8xf32>
    %496 = vector.multi_reduction <maximumf>, %495, %cst_187 [1] : vector<8x64xf32> to vector<8xf32>
    %497 = vector.shape_cast %496 : vector<8xf32> to vector<8x1xf32>
    %498 = vector.broadcast %497 : vector<8x1xf32> to vector<8x64xf32>
    %499 = arith.subf %495, %498 : vector<8x64xf32>
    %500 = math.exp %499 : vector<8x64xf32>
    %cst_188 = arith.constant dense<0.000000e+00> : vector<8xf32>
    %501 = vector.multi_reduction <add>, %500, %cst_188 [1] : vector<8x64xf32> to vector<8xf32>
    %502 = vector.shape_cast %501 : vector<8xf32> to vector<8x1xf32>
    %503 = tpu.reciprocal %502 {approx = true} : vector<8x1xf32> -> vector<8x1xf32>
    %504 = vector.broadcast %503 : vector<8x1xf32> to vector<8x64xf32>
    %505 = arith.mulf %500, %504 : vector<8x64xf32>
    %506 = vector.extract_strided_slice %505 {offsets = [0, 0], sizes = [8, 32], strides = [1, 1]} : vector<8x64xf32> to vector<8x32xf32>
    %507 = arith.mulf %506, %382 : vector<8x32xf32>
    %508 = vector.extract_strided_slice %505 {offsets = [0, 32], sizes = [8, 32], strides = [1, 1]} : vector<8x64xf32> to vector<8x32xf32>
    %509 = arith.mulf %508, %485 : vector<8x32xf32>
    %cst_189 = arith.constant dense<0.000000e+00> : vector<8x32xf32>
    %510 = tpu.matmul %507, %14, %cst_189 {dimension_numbers = #tpu.dot_dimension_numbers<[1], [0], [0], [1], [0, 0, 1, 1], [], []>} : vector<8x32xf32>, vector<32x32xf32>, vector<8x32xf32> -> vector<8x32xf32>
    %cst_190 = arith.constant dense<0.000000e+00> : vector<8x32xf32>
    %511 = tpu.matmul %509, %15, %cst_190 {dimension_numbers = #tpu.dot_dimension_numbers<[1], [0], [0], [1], [0, 0, 1, 1], [], []>} : vector<8x32xf32>, vector<32x32xf32>, vector<8x32xf32> -> vector<8x32xf32>
    %512 = arith.addf %510, %511 : vector<8x32xf32>
    %513 = arith.addf %512, %18 : vector<8x32xf32>
    %cst_191 = arith.constant 0.000000e+00 : f32
    %514 = vector.broadcast %cst_191 : f32 to vector<8x32xf32>
    %515 = arith.maximumf %513, %514 : vector<8x32xf32>
    %cst_192 = arith.constant dense<0.000000e+00> : vector<8x16xf32>
    %516 = tpu.matmul %515, %19, %cst_192 {dimension_numbers = #tpu.dot_dimension_numbers<[1], [0], [0], [1], [0, 0, 1, 1], [], []>} : vector<8x32xf32>, vector<32x16xf32>, vector<8x16xf32> -> vector<8x16xf32>
    %517 = arith.addf %516, %22 : vector<8x16xf32>
    %518 = math.tanh %517 : vector<8x16xf32>
    %cst_193 = arith.constant dense<0.000000e+00> : vector<8x64xf32>
    %519 = tpu.matmul %507, %23, %cst_193 {dimension_numbers = #tpu.dot_dimension_numbers<[1], [0], [0], [1], [0, 0, 1, 1], [], []>} : vector<8x32xf32>, vector<32x64xf32>, vector<8x64xf32> -> vector<8x64xf32>
    %cst_194 = arith.constant dense<0.000000e+00> : vector<8x64xf32>
    %520 = tpu.matmul %509, %24, %cst_194 {dimension_numbers = #tpu.dot_dimension_numbers<[1], [0], [0], [1], [0, 0, 1, 1], [], []>} : vector<8x32xf32>, vector<32x64xf32>, vector<8x64xf32> -> vector<8x64xf32>
    %521 = arith.addf %519, %520 : vector<8x64xf32>
    %cst_195 = arith.constant dense<0.000000e+00> : vector<8x64xf32>
    %522 = tpu.matmul %435, %25, %cst_195 {dimension_numbers = #tpu.dot_dimension_numbers<[1], [0], [0], [1], [0, 0, 1, 1], [], []>} : vector<8x16xf32>, vector<16x64xf32>, vector<8x64xf32> -> vector<8x64xf32>
    %523 = arith.addf %521, %522 : vector<8x64xf32>
    %524 = arith.addf %523, %28 : vector<8x64xf32>
    %cst_196 = arith.constant 0.000000e+00 : f32
    %525 = vector.broadcast %cst_196 : f32 to vector<8x64xf32>
    %526 = arith.maximumf %524, %525 : vector<8x64xf32>
    %cst_197 = arith.constant dense<0.000000e+00> : vector<8x32xf32>
    %527 = tpu.matmul %526, %29, %cst_197 {dimension_numbers = #tpu.dot_dimension_numbers<[1], [0], [0], [1], [0, 0, 1, 1], [], []>} : vector<8x64xf32>, vector<64x32xf32>, vector<8x32xf32> -> vector<8x32xf32>
    %528 = arith.addf %527, %32 : vector<8x32xf32>
    %529 = arith.negf %528 : vector<8x32xf32>
    %530 = math.exp %529 : vector<8x32xf32>
    %cst_198 = arith.constant 1.000000e+00 : f32
    %531 = vector.broadcast %cst_198 : f32 to vector<8x32xf32>
    %532 = arith.addf %531, %530 : vector<8x32xf32>
    %533 = arith.divf %531, %532 : vector<8x32xf32>
    %534 = vector.extract_strided_slice %533 {offsets = [0, 0], sizes = [8, 16], strides = [1, 1]} : vector<8x32xf32> to vector<8x16xf32>
    %535 = arith.mulf %534, %435 : vector<8x16xf32>
    %536 = vector.extract_strided_slice %533 {offsets = [0, 16], sizes = [8, 16], strides = [1, 1]} : vector<8x32xf32> to vector<8x16xf32>
    %537 = arith.mulf %536, %518 : vector<8x16xf32>
    %538 = arith.addf %535, %537 : vector<8x16xf32>
    %cst_199 = arith.constant dense<0.000000e+00> : vector<8x32xf32>
    %539 = tpu.matmul %487, %33, %cst_199 {dimension_numbers = #tpu.dot_dimension_numbers<[1], [0], [0], [1], [0, 0, 1, 1], [], []>} : vector<8x32xf32>, vector<32x32xf32>, vector<8x32xf32> -> vector<8x32xf32>
    %cst_200 = arith.constant dense<0.000000e+00> : vector<8x32xf32>
    %540 = tpu.matmul %538, %34, %cst_200 {dimension_numbers = #tpu.dot_dimension_numbers<[1], [0], [0], [1], [0, 0, 1, 1], [], []>} : vector<8x16xf32>, vector<16x32xf32>, vector<8x32xf32> -> vector<8x32xf32>
    %541 = arith.addf %539, %540 : vector<8x32xf32>
    %542 = arith.addf %541, %37 : vector<8x32xf32>
    %cst_201 = arith.constant 0.000000e+00 : f32
    %543 = vector.broadcast %cst_201 : f32 to vector<8x32xf32>
    %544 = arith.maximumf %542, %543 : vector<8x32xf32>
    %cst_202 = arith.constant dense<0.000000e+00> : vector<8x4xf32>
    %545 = tpu.matmul %544, %38, %cst_202 {dimension_numbers = #tpu.dot_dimension_numbers<[1], [0], [0], [1], [0, 0, 1, 1], [], []>} : vector<8x32xf32>, vector<32x4xf32>, vector<8x4xf32> -> vector<8x4xf32>
    %546 = arith.addf %545, %41 : vector<8x4xf32>
    %cst_203 = arith.constant dense<0xFF800000> : vector<8xf32>
    %547 = vector.multi_reduction <maximumf>, %546, %cst_203 [1] : vector<8x4xf32> to vector<8xf32>
    %548 = vector.shape_cast %547 : vector<8xf32> to vector<8x1xf32>
    %549 = vector.broadcast %548 : vector<8x1xf32> to vector<8x4xf32>
    %550 = arith.subf %546, %549 : vector<8x4xf32>
    %551 = math.exp %550 : vector<8x4xf32>
    %cst_204 = arith.constant dense<0.000000e+00> : vector<8xf32>
    %552 = vector.multi_reduction <add>, %551, %cst_204 [1] : vector<8x4xf32> to vector<8xf32>
    %553 = vector.shape_cast %552 : vector<8xf32> to vector<8x1xf32>
    %554 = math.log %553 : vector<8x1xf32>
    %555 = vector.broadcast %554 : vector<8x1xf32> to vector<8x4xf32>
    %556 = arith.subf %550, %555 : vector<8x4xf32>
    %c4_205 = arith.constant 4 : index
    %c0_206 = arith.constant 0 : index
    %c0_207 = arith.constant 0 : index
    %557 = vector.load %arg21[%c4_205, %c0_206, %c0_207] : memref<8x8x4xf32, #tpu.memory_space<vmem>>, vector<1x8x4xf32>
    %558 = vector.shape_cast %557 : vector<1x8x4xf32> to vector<8x4xf32>
    %559 = vector.shape_cast %556 : vector<8x4xf32> to vector<1x8x4xf32>
    tpu.vector_store %arg21[%c4_205, %c0_206, %c0_207], %559 {strides = array<i32>} : memref<8x8x4xf32, #tpu.memory_space<vmem>>, vector<1x8x4xf32>,
    %c5 = arith.constant 5 : index
    %c0_208 = arith.constant 0 : index
    %c0_209 = arith.constant 0 : index
    %560 = vector.load %arg1[%c5, %c0_208, %c0_209] : memref<8x8x32xf32, #tpu.memory_space<vmem>>, vector<1x8x32xf32>
    %561 = vector.shape_cast %560 : vector<1x8x32xf32> to vector<8x32xf32>
    %cst_210 = arith.constant dense<0.000000e+00> : vector<8x128xf32>
    %562 = tpu.matmul %561, %0, %cst_210 {dimension_numbers = #tpu.dot_dimension_numbers<[1], [0], [0], [1], [0, 0, 1, 1], [], []>} : vector<8x32xf32>, vector<32x128xf32>, vector<8x128xf32> -> vector<8x128xf32>
    %cst_211 = arith.constant dense<0.000000e+00> : vector<8x128xf32>
    %563 = tpu.matmul %487, %1, %cst_211 {dimension_numbers = #tpu.dot_dimension_numbers<[1], [0], [0], [1], [0, 0, 1, 1], [], []>} : vector<8x32xf32>, vector<32x128xf32>, vector<8x128xf32> -> vector<8x128xf32>
    %564 = arith.addf %562, %563 : vector<8x128xf32>
    %565 = arith.addf %564, %4 : vector<8x128xf32>
    %566 = vector.extract_strided_slice %565 {offsets = [0, 0], sizes = [8, 32], strides = [1, 1]} : vector<8x128xf32> to vector<8x32xf32>
    %567 = arith.negf %566 : vector<8x32xf32>
    %568 = math.exp %567 : vector<8x32xf32>
    %cst_212 = arith.constant 1.000000e+00 : f32
    %569 = vector.broadcast %cst_212 : f32 to vector<8x32xf32>
    %570 = arith.addf %569, %568 : vector<8x32xf32>
    %571 = arith.divf %569, %570 : vector<8x32xf32>
    %572 = vector.extract_strided_slice %565 {offsets = [0, 32], sizes = [8, 32], strides = [1, 1]} : vector<8x128xf32> to vector<8x32xf32>
    %573 = arith.negf %572 : vector<8x32xf32>
    %574 = math.exp %573 : vector<8x32xf32>
    %cst_213 = arith.constant 1.000000e+00 : f32
    %575 = vector.broadcast %cst_213 : f32 to vector<8x32xf32>
    %576 = arith.addf %575, %574 : vector<8x32xf32>
    %577 = arith.divf %575, %576 : vector<8x32xf32>
    %578 = vector.extract_strided_slice %565 {offsets = [0, 64], sizes = [8, 32], strides = [1, 1]} : vector<8x128xf32> to vector<8x32xf32>
    %579 = math.tanh %578 : vector<8x32xf32>
    %580 = vector.extract_strided_slice %565 {offsets = [0, 96], sizes = [8, 32], strides = [1, 1]} : vector<8x128xf32> to vector<8x32xf32>
    %581 = arith.negf %580 : vector<8x32xf32>
    %582 = math.exp %581 : vector<8x32xf32>
    %cst_214 = arith.constant 1.000000e+00 : f32
    %583 = vector.broadcast %cst_214 : f32 to vector<8x32xf32>
    %584 = arith.addf %583, %582 : vector<8x32xf32>
    %585 = arith.divf %583, %584 : vector<8x32xf32>
    %586 = arith.mulf %577, %485 : vector<8x32xf32>
    %587 = arith.mulf %571, %579 : vector<8x32xf32>
    %588 = arith.addf %586, %587 : vector<8x32xf32>
    %589 = math.tanh %588 : vector<8x32xf32>
    %590 = arith.mulf %585, %589 : vector<8x32xf32>
    %cst_215 = arith.constant dense<0.000000e+00> : vector<8x32xf32>
    %591 = tpu.matmul %485, %5, %cst_215 {dimension_numbers = #tpu.dot_dimension_numbers<[1], [0], [0], [1], [0, 0, 1, 1], [], []>} : vector<8x32xf32>, vector<32x32xf32>, vector<8x32xf32> -> vector<8x32xf32>
    %cst_216 = arith.constant dense<0.000000e+00> : vector<8x32xf32>
    %592 = tpu.matmul %588, %6, %cst_216 {dimension_numbers = #tpu.dot_dimension_numbers<[1], [0], [0], [1], [0, 0, 1, 1], [], []>} : vector<8x32xf32>, vector<32x32xf32>, vector<8x32xf32> -> vector<8x32xf32>
    %593 = arith.addf %591, %592 : vector<8x32xf32>
    %594 = arith.addf %593, %9 : vector<8x32xf32>
    %cst_217 = arith.constant 0.000000e+00 : f32
    %595 = vector.broadcast %cst_217 : f32 to vector<8x32xf32>
    %596 = arith.maximumf %594, %595 : vector<8x32xf32>
    %cst_218 = arith.constant dense<0.000000e+00> : vector<8x64xf32>
    %597 = tpu.matmul %596, %10, %cst_218 {dimension_numbers = #tpu.dot_dimension_numbers<[1], [0], [0], [1], [0, 0, 1, 1], [], []>} : vector<8x32xf32>, vector<32x64xf32>, vector<8x64xf32> -> vector<8x64xf32>
    %598 = arith.addf %597, %13 : vector<8x64xf32>
    %cst_219 = arith.constant dense<0xFF800000> : vector<8xf32>
    %599 = vector.multi_reduction <maximumf>, %598, %cst_219 [1] : vector<8x64xf32> to vector<8xf32>
    %600 = vector.shape_cast %599 : vector<8xf32> to vector<8x1xf32>
    %601 = vector.broadcast %600 : vector<8x1xf32> to vector<8x64xf32>
    %602 = arith.subf %598, %601 : vector<8x64xf32>
    %603 = math.exp %602 : vector<8x64xf32>
    %cst_220 = arith.constant dense<0.000000e+00> : vector<8xf32>
    %604 = vector.multi_reduction <add>, %603, %cst_220 [1] : vector<8x64xf32> to vector<8xf32>
    %605 = vector.shape_cast %604 : vector<8xf32> to vector<8x1xf32>
    %606 = tpu.reciprocal %605 {approx = true} : vector<8x1xf32> -> vector<8x1xf32>
    %607 = vector.broadcast %606 : vector<8x1xf32> to vector<8x64xf32>
    %608 = arith.mulf %603, %607 : vector<8x64xf32>
    %609 = vector.extract_strided_slice %608 {offsets = [0, 0], sizes = [8, 32], strides = [1, 1]} : vector<8x64xf32> to vector<8x32xf32>
    %610 = arith.mulf %609, %485 : vector<8x32xf32>
    %611 = vector.extract_strided_slice %608 {offsets = [0, 32], sizes = [8, 32], strides = [1, 1]} : vector<8x64xf32> to vector<8x32xf32>
    %612 = arith.mulf %611, %588 : vector<8x32xf32>
    %cst_221 = arith.constant dense<0.000000e+00> : vector<8x32xf32>
    %613 = tpu.matmul %610, %14, %cst_221 {dimension_numbers = #tpu.dot_dimension_numbers<[1], [0], [0], [1], [0, 0, 1, 1], [], []>} : vector<8x32xf32>, vector<32x32xf32>, vector<8x32xf32> -> vector<8x32xf32>
    %cst_222 = arith.constant dense<0.000000e+00> : vector<8x32xf32>
    %614 = tpu.matmul %612, %15, %cst_222 {dimension_numbers = #tpu.dot_dimension_numbers<[1], [0], [0], [1], [0, 0, 1, 1], [], []>} : vector<8x32xf32>, vector<32x32xf32>, vector<8x32xf32> -> vector<8x32xf32>
    %615 = arith.addf %613, %614 : vector<8x32xf32>
    %616 = arith.addf %615, %18 : vector<8x32xf32>
    %cst_223 = arith.constant 0.000000e+00 : f32
    %617 = vector.broadcast %cst_223 : f32 to vector<8x32xf32>
    %618 = arith.maximumf %616, %617 : vector<8x32xf32>
    %cst_224 = arith.constant dense<0.000000e+00> : vector<8x16xf32>
    %619 = tpu.matmul %618, %19, %cst_224 {dimension_numbers = #tpu.dot_dimension_numbers<[1], [0], [0], [1], [0, 0, 1, 1], [], []>} : vector<8x32xf32>, vector<32x16xf32>, vector<8x16xf32> -> vector<8x16xf32>
    %620 = arith.addf %619, %22 : vector<8x16xf32>
    %621 = math.tanh %620 : vector<8x16xf32>
    %cst_225 = arith.constant dense<0.000000e+00> : vector<8x64xf32>
    %622 = tpu.matmul %610, %23, %cst_225 {dimension_numbers = #tpu.dot_dimension_numbers<[1], [0], [0], [1], [0, 0, 1, 1], [], []>} : vector<8x32xf32>, vector<32x64xf32>, vector<8x64xf32> -> vector<8x64xf32>
    %cst_226 = arith.constant dense<0.000000e+00> : vector<8x64xf32>
    %623 = tpu.matmul %612, %24, %cst_226 {dimension_numbers = #tpu.dot_dimension_numbers<[1], [0], [0], [1], [0, 0, 1, 1], [], []>} : vector<8x32xf32>, vector<32x64xf32>, vector<8x64xf32> -> vector<8x64xf32>
    %624 = arith.addf %622, %623 : vector<8x64xf32>
    %cst_227 = arith.constant dense<0.000000e+00> : vector<8x64xf32>
    %625 = tpu.matmul %538, %25, %cst_227 {dimension_numbers = #tpu.dot_dimension_numbers<[1], [0], [0], [1], [0, 0, 1, 1], [], []>} : vector<8x16xf32>, vector<16x64xf32>, vector<8x64xf32> -> vector<8x64xf32>
    %626 = arith.addf %624, %625 : vector<8x64xf32>
    %627 = arith.addf %626, %28 : vector<8x64xf32>
    %cst_228 = arith.constant 0.000000e+00 : f32
    %628 = vector.broadcast %cst_228 : f32 to vector<8x64xf32>
    %629 = arith.maximumf %627, %628 : vector<8x64xf32>
    %cst_229 = arith.constant dense<0.000000e+00> : vector<8x32xf32>
    %630 = tpu.matmul %629, %29, %cst_229 {dimension_numbers = #tpu.dot_dimension_numbers<[1], [0], [0], [1], [0, 0, 1, 1], [], []>} : vector<8x64xf32>, vector<64x32xf32>, vector<8x32xf32> -> vector<8x32xf32>
    %631 = arith.addf %630, %32 : vector<8x32xf32>
    %632 = arith.negf %631 : vector<8x32xf32>
    %633 = math.exp %632 : vector<8x32xf32>
    %cst_230 = arith.constant 1.000000e+00 : f32
    %634 = vector.broadcast %cst_230 : f32 to vector<8x32xf32>
    %635 = arith.addf %634, %633 : vector<8x32xf32>
    %636 = arith.divf %634, %635 : vector<8x32xf32>
    %637 = vector.extract_strided_slice %636 {offsets = [0, 0], sizes = [8, 16], strides = [1, 1]} : vector<8x32xf32> to vector<8x16xf32>
    %638 = arith.mulf %637, %538 : vector<8x16xf32>
    %639 = vector.extract_strided_slice %636 {offsets = [0, 16], sizes = [8, 16], strides = [1, 1]} : vector<8x32xf32> to vector<8x16xf32>
    %640 = arith.mulf %639, %621 : vector<8x16xf32>
    %641 = arith.addf %638, %640 : vector<8x16xf32>
    %cst_231 = arith.constant dense<0.000000e+00> : vector<8x32xf32>
    %642 = tpu.matmul %590, %33, %cst_231 {dimension_numbers = #tpu.dot_dimension_numbers<[1], [0], [0], [1], [0, 0, 1, 1], [], []>} : vector<8x32xf32>, vector<32x32xf32>, vector<8x32xf32> -> vector<8x32xf32>
    %cst_232 = arith.constant dense<0.000000e+00> : vector<8x32xf32>
    %643 = tpu.matmul %641, %34, %cst_232 {dimension_numbers = #tpu.dot_dimension_numbers<[1], [0], [0], [1], [0, 0, 1, 1], [], []>} : vector<8x16xf32>, vector<16x32xf32>, vector<8x32xf32> -> vector<8x32xf32>
    %644 = arith.addf %642, %643 : vector<8x32xf32>
    %645 = arith.addf %644, %37 : vector<8x32xf32>
    %cst_233 = arith.constant 0.000000e+00 : f32
    %646 = vector.broadcast %cst_233 : f32 to vector<8x32xf32>
    %647 = arith.maximumf %645, %646 : vector<8x32xf32>
    %cst_234 = arith.constant dense<0.000000e+00> : vector<8x4xf32>
    %648 = tpu.matmul %647, %38, %cst_234 {dimension_numbers = #tpu.dot_dimension_numbers<[1], [0], [0], [1], [0, 0, 1, 1], [], []>} : vector<8x32xf32>, vector<32x4xf32>, vector<8x4xf32> -> vector<8x4xf32>
    %649 = arith.addf %648, %41 : vector<8x4xf32>
    %cst_235 = arith.constant dense<0xFF800000> : vector<8xf32>
    %650 = vector.multi_reduction <maximumf>, %649, %cst_235 [1] : vector<8x4xf32> to vector<8xf32>
    %651 = vector.shape_cast %650 : vector<8xf32> to vector<8x1xf32>
    %652 = vector.broadcast %651 : vector<8x1xf32> to vector<8x4xf32>
    %653 = arith.subf %649, %652 : vector<8x4xf32>
    %654 = math.exp %653 : vector<8x4xf32>
    %cst_236 = arith.constant dense<0.000000e+00> : vector<8xf32>
    %655 = vector.multi_reduction <add>, %654, %cst_236 [1] : vector<8x4xf32> to vector<8xf32>
    %656 = vector.shape_cast %655 : vector<8xf32> to vector<8x1xf32>
    %657 = math.log %656 : vector<8x1xf32>
    %658 = vector.broadcast %657 : vector<8x1xf32> to vector<8x4xf32>
    %659 = arith.subf %653, %658 : vector<8x4xf32>
    %c5_237 = arith.constant 5 : index
    %c0_238 = arith.constant 0 : index
    %c0_239 = arith.constant 0 : index
    %660 = vector.load %arg21[%c5_237, %c0_238, %c0_239] : memref<8x8x4xf32, #tpu.memory_space<vmem>>, vector<1x8x4xf32>
    %661 = vector.shape_cast %660 : vector<1x8x4xf32> to vector<8x4xf32>
    %662 = vector.shape_cast %659 : vector<8x4xf32> to vector<1x8x4xf32>
    tpu.vector_store %arg21[%c5_237, %c0_238, %c0_239], %662 {strides = array<i32>} : memref<8x8x4xf32, #tpu.memory_space<vmem>>, vector<1x8x4xf32>,
    %c6 = arith.constant 6 : index
    %c0_240 = arith.constant 0 : index
    %c0_241 = arith.constant 0 : index
    %663 = vector.load %arg1[%c6, %c0_240, %c0_241] : memref<8x8x32xf32, #tpu.memory_space<vmem>>, vector<1x8x32xf32>
    %664 = vector.shape_cast %663 : vector<1x8x32xf32> to vector<8x32xf32>
    %cst_242 = arith.constant dense<0.000000e+00> : vector<8x128xf32>
    %665 = tpu.matmul %664, %0, %cst_242 {dimension_numbers = #tpu.dot_dimension_numbers<[1], [0], [0], [1], [0, 0, 1, 1], [], []>} : vector<8x32xf32>, vector<32x128xf32>, vector<8x128xf32> -> vector<8x128xf32>
    %cst_243 = arith.constant dense<0.000000e+00> : vector<8x128xf32>
    %666 = tpu.matmul %590, %1, %cst_243 {dimension_numbers = #tpu.dot_dimension_numbers<[1], [0], [0], [1], [0, 0, 1, 1], [], []>} : vector<8x32xf32>, vector<32x128xf32>, vector<8x128xf32> -> vector<8x128xf32>
    %667 = arith.addf %665, %666 : vector<8x128xf32>
    %668 = arith.addf %667, %4 : vector<8x128xf32>
    %669 = vector.extract_strided_slice %668 {offsets = [0, 0], sizes = [8, 32], strides = [1, 1]} : vector<8x128xf32> to vector<8x32xf32>
    %670 = arith.negf %669 : vector<8x32xf32>
    %671 = math.exp %670 : vector<8x32xf32>
    %cst_244 = arith.constant 1.000000e+00 : f32
    %672 = vector.broadcast %cst_244 : f32 to vector<8x32xf32>
    %673 = arith.addf %672, %671 : vector<8x32xf32>
    %674 = arith.divf %672, %673 : vector<8x32xf32>
    %675 = vector.extract_strided_slice %668 {offsets = [0, 32], sizes = [8, 32], strides = [1, 1]} : vector<8x128xf32> to vector<8x32xf32>
    %676 = arith.negf %675 : vector<8x32xf32>
    %677 = math.exp %676 : vector<8x32xf32>
    %cst_245 = arith.constant 1.000000e+00 : f32
    %678 = vector.broadcast %cst_245 : f32 to vector<8x32xf32>
    %679 = arith.addf %678, %677 : vector<8x32xf32>
    %680 = arith.divf %678, %679 : vector<8x32xf32>
    %681 = vector.extract_strided_slice %668 {offsets = [0, 64], sizes = [8, 32], strides = [1, 1]} : vector<8x128xf32> to vector<8x32xf32>
    %682 = math.tanh %681 : vector<8x32xf32>
    %683 = vector.extract_strided_slice %668 {offsets = [0, 96], sizes = [8, 32], strides = [1, 1]} : vector<8x128xf32> to vector<8x32xf32>
    %684 = arith.negf %683 : vector<8x32xf32>
    %685 = math.exp %684 : vector<8x32xf32>
    %cst_246 = arith.constant 1.000000e+00 : f32
    %686 = vector.broadcast %cst_246 : f32 to vector<8x32xf32>
    %687 = arith.addf %686, %685 : vector<8x32xf32>
    %688 = arith.divf %686, %687 : vector<8x32xf32>
    %689 = arith.mulf %680, %588 : vector<8x32xf32>
    %690 = arith.mulf %674, %682 : vector<8x32xf32>
    %691 = arith.addf %689, %690 : vector<8x32xf32>
    %692 = math.tanh %691 : vector<8x32xf32>
    %693 = arith.mulf %688, %692 : vector<8x32xf32>
    %cst_247 = arith.constant dense<0.000000e+00> : vector<8x32xf32>
    %694 = tpu.matmul %588, %5, %cst_247 {dimension_numbers = #tpu.dot_dimension_numbers<[1], [0], [0], [1], [0, 0, 1, 1], [], []>} : vector<8x32xf32>, vector<32x32xf32>, vector<8x32xf32> -> vector<8x32xf32>
    %cst_248 = arith.constant dense<0.000000e+00> : vector<8x32xf32>
    %695 = tpu.matmul %691, %6, %cst_248 {dimension_numbers = #tpu.dot_dimension_numbers<[1], [0], [0], [1], [0, 0, 1, 1], [], []>} : vector<8x32xf32>, vector<32x32xf32>, vector<8x32xf32> -> vector<8x32xf32>
    %696 = arith.addf %694, %695 : vector<8x32xf32>
    %697 = arith.addf %696, %9 : vector<8x32xf32>
    %cst_249 = arith.constant 0.000000e+00 : f32
    %698 = vector.broadcast %cst_249 : f32 to vector<8x32xf32>
    %699 = arith.maximumf %697, %698 : vector<8x32xf32>
    %cst_250 = arith.constant dense<0.000000e+00> : vector<8x64xf32>
    %700 = tpu.matmul %699, %10, %cst_250 {dimension_numbers = #tpu.dot_dimension_numbers<[1], [0], [0], [1], [0, 0, 1, 1], [], []>} : vector<8x32xf32>, vector<32x64xf32>, vector<8x64xf32> -> vector<8x64xf32>
    %701 = arith.addf %700, %13 : vector<8x64xf32>
    %cst_251 = arith.constant dense<0xFF800000> : vector<8xf32>
    %702 = vector.multi_reduction <maximumf>, %701, %cst_251 [1] : vector<8x64xf32> to vector<8xf32>
    %703 = vector.shape_cast %702 : vector<8xf32> to vector<8x1xf32>
    %704 = vector.broadcast %703 : vector<8x1xf32> to vector<8x64xf32>
    %705 = arith.subf %701, %704 : vector<8x64xf32>
    %706 = math.exp %705 : vector<8x64xf32>
    %cst_252 = arith.constant dense<0.000000e+00> : vector<8xf32>
    %707 = vector.multi_reduction <add>, %706, %cst_252 [1] : vector<8x64xf32> to vector<8xf32>
    %708 = vector.shape_cast %707 : vector<8xf32> to vector<8x1xf32>
    %709 = tpu.reciprocal %708 {approx = true} : vector<8x1xf32> -> vector<8x1xf32>
    %710 = vector.broadcast %709 : vector<8x1xf32> to vector<8x64xf32>
    %711 = arith.mulf %706, %710 : vector<8x64xf32>
    %712 = vector.extract_strided_slice %711 {offsets = [0, 0], sizes = [8, 32], strides = [1, 1]} : vector<8x64xf32> to vector<8x32xf32>
    %713 = arith.mulf %712, %588 : vector<8x32xf32>
    %714 = vector.extract_strided_slice %711 {offsets = [0, 32], sizes = [8, 32], strides = [1, 1]} : vector<8x64xf32> to vector<8x32xf32>
    %715 = arith.mulf %714, %691 : vector<8x32xf32>
    %cst_253 = arith.constant dense<0.000000e+00> : vector<8x32xf32>
    %716 = tpu.matmul %713, %14, %cst_253 {dimension_numbers = #tpu.dot_dimension_numbers<[1], [0], [0], [1], [0, 0, 1, 1], [], []>} : vector<8x32xf32>, vector<32x32xf32>, vector<8x32xf32> -> vector<8x32xf32>
    %cst_254 = arith.constant dense<0.000000e+00> : vector<8x32xf32>
    %717 = tpu.matmul %715, %15, %cst_254 {dimension_numbers = #tpu.dot_dimension_numbers<[1], [0], [0], [1], [0, 0, 1, 1], [], []>} : vector<8x32xf32>, vector<32x32xf32>, vector<8x32xf32> -> vector<8x32xf32>
    %718 = arith.addf %716, %717 : vector<8x32xf32>
    %719 = arith.addf %718, %18 : vector<8x32xf32>
    %cst_255 = arith.constant 0.000000e+00 : f32
    %720 = vector.broadcast %cst_255 : f32 to vector<8x32xf32>
    %721 = arith.maximumf %719, %720 : vector<8x32xf32>
    %cst_256 = arith.constant dense<0.000000e+00> : vector<8x16xf32>
    %722 = tpu.matmul %721, %19, %cst_256 {dimension_numbers = #tpu.dot_dimension_numbers<[1], [0], [0], [1], [0, 0, 1, 1], [], []>} : vector<8x32xf32>, vector<32x16xf32>, vector<8x16xf32> -> vector<8x16xf32>
    %723 = arith.addf %722, %22 : vector<8x16xf32>
    %724 = math.tanh %723 : vector<8x16xf32>
    %cst_257 = arith.constant dense<0.000000e+00> : vector<8x64xf32>
    %725 = tpu.matmul %713, %23, %cst_257 {dimension_numbers = #tpu.dot_dimension_numbers<[1], [0], [0], [1], [0, 0, 1, 1], [], []>} : vector<8x32xf32>, vector<32x64xf32>, vector<8x64xf32> -> vector<8x64xf32>
    %cst_258 = arith.constant dense<0.000000e+00> : vector<8x64xf32>
    %726 = tpu.matmul %715, %24, %cst_258 {dimension_numbers = #tpu.dot_dimension_numbers<[1], [0], [0], [1], [0, 0, 1, 1], [], []>} : vector<8x32xf32>, vector<32x64xf32>, vector<8x64xf32> -> vector<8x64xf32>
    %727 = arith.addf %725, %726 : vector<8x64xf32>
    %cst_259 = arith.constant dense<0.000000e+00> : vector<8x64xf32>
    %728 = tpu.matmul %641, %25, %cst_259 {dimension_numbers = #tpu.dot_dimension_numbers<[1], [0], [0], [1], [0, 0, 1, 1], [], []>} : vector<8x16xf32>, vector<16x64xf32>, vector<8x64xf32> -> vector<8x64xf32>
    %729 = arith.addf %727, %728 : vector<8x64xf32>
    %730 = arith.addf %729, %28 : vector<8x64xf32>
    %cst_260 = arith.constant 0.000000e+00 : f32
    %731 = vector.broadcast %cst_260 : f32 to vector<8x64xf32>
    %732 = arith.maximumf %730, %731 : vector<8x64xf32>
    %cst_261 = arith.constant dense<0.000000e+00> : vector<8x32xf32>
    %733 = tpu.matmul %732, %29, %cst_261 {dimension_numbers = #tpu.dot_dimension_numbers<[1], [0], [0], [1], [0, 0, 1, 1], [], []>} : vector<8x64xf32>, vector<64x32xf32>, vector<8x32xf32> -> vector<8x32xf32>
    %734 = arith.addf %733, %32 : vector<8x32xf32>
    %735 = arith.negf %734 : vector<8x32xf32>
    %736 = math.exp %735 : vector<8x32xf32>
    %cst_262 = arith.constant 1.000000e+00 : f32
    %737 = vector.broadcast %cst_262 : f32 to vector<8x32xf32>
    %738 = arith.addf %737, %736 : vector<8x32xf32>
    %739 = arith.divf %737, %738 : vector<8x32xf32>
    %740 = vector.extract_strided_slice %739 {offsets = [0, 0], sizes = [8, 16], strides = [1, 1]} : vector<8x32xf32> to vector<8x16xf32>
    %741 = arith.mulf %740, %641 : vector<8x16xf32>
    %742 = vector.extract_strided_slice %739 {offsets = [0, 16], sizes = [8, 16], strides = [1, 1]} : vector<8x32xf32> to vector<8x16xf32>
    %743 = arith.mulf %742, %724 : vector<8x16xf32>
    %744 = arith.addf %741, %743 : vector<8x16xf32>
    %cst_263 = arith.constant dense<0.000000e+00> : vector<8x32xf32>
    %745 = tpu.matmul %693, %33, %cst_263 {dimension_numbers = #tpu.dot_dimension_numbers<[1], [0], [0], [1], [0, 0, 1, 1], [], []>} : vector<8x32xf32>, vector<32x32xf32>, vector<8x32xf32> -> vector<8x32xf32>
    %cst_264 = arith.constant dense<0.000000e+00> : vector<8x32xf32>
    %746 = tpu.matmul %744, %34, %cst_264 {dimension_numbers = #tpu.dot_dimension_numbers<[1], [0], [0], [1], [0, 0, 1, 1], [], []>} : vector<8x16xf32>, vector<16x32xf32>, vector<8x32xf32> -> vector<8x32xf32>
    %747 = arith.addf %745, %746 : vector<8x32xf32>
    %748 = arith.addf %747, %37 : vector<8x32xf32>
    %cst_265 = arith.constant 0.000000e+00 : f32
    %749 = vector.broadcast %cst_265 : f32 to vector<8x32xf32>
    %750 = arith.maximumf %748, %749 : vector<8x32xf32>
    %cst_266 = arith.constant dense<0.000000e+00> : vector<8x4xf32>
    %751 = tpu.matmul %750, %38, %cst_266 {dimension_numbers = #tpu.dot_dimension_numbers<[1], [0], [0], [1], [0, 0, 1, 1], [], []>} : vector<8x32xf32>, vector<32x4xf32>, vector<8x4xf32> -> vector<8x4xf32>
    %752 = arith.addf %751, %41 : vector<8x4xf32>
    %cst_267 = arith.constant dense<0xFF800000> : vector<8xf32>
    %753 = vector.multi_reduction <maximumf>, %752, %cst_267 [1] : vector<8x4xf32> to vector<8xf32>
    %754 = vector.shape_cast %753 : vector<8xf32> to vector<8x1xf32>
    %755 = vector.broadcast %754 : vector<8x1xf32> to vector<8x4xf32>
    %756 = arith.subf %752, %755 : vector<8x4xf32>
    %757 = math.exp %756 : vector<8x4xf32>
    %cst_268 = arith.constant dense<0.000000e+00> : vector<8xf32>
    %758 = vector.multi_reduction <add>, %757, %cst_268 [1] : vector<8x4xf32> to vector<8xf32>
    %759 = vector.shape_cast %758 : vector<8xf32> to vector<8x1xf32>
    %760 = math.log %759 : vector<8x1xf32>
    %761 = vector.broadcast %760 : vector<8x1xf32> to vector<8x4xf32>
    %762 = arith.subf %756, %761 : vector<8x4xf32>
    %c6_269 = arith.constant 6 : index
    %c0_270 = arith.constant 0 : index
    %c0_271 = arith.constant 0 : index
    %763 = vector.load %arg21[%c6_269, %c0_270, %c0_271] : memref<8x8x4xf32, #tpu.memory_space<vmem>>, vector<1x8x4xf32>
    %764 = vector.shape_cast %763 : vector<1x8x4xf32> to vector<8x4xf32>
    %765 = vector.shape_cast %762 : vector<8x4xf32> to vector<1x8x4xf32>
    tpu.vector_store %arg21[%c6_269, %c0_270, %c0_271], %765 {strides = array<i32>} : memref<8x8x4xf32, #tpu.memory_space<vmem>>, vector<1x8x4xf32>,
    %c7 = arith.constant 7 : index
    %c0_272 = arith.constant 0 : index
    %c0_273 = arith.constant 0 : index
    %766 = vector.load %arg1[%c7, %c0_272, %c0_273] : memref<8x8x32xf32, #tpu.memory_space<vmem>>, vector<1x8x32xf32>
    %767 = vector.shape_cast %766 : vector<1x8x32xf32> to vector<8x32xf32>
    %cst_274 = arith.constant dense<0.000000e+00> : vector<8x128xf32>
    %768 = tpu.matmul %767, %0, %cst_274 {dimension_numbers = #tpu.dot_dimension_numbers<[1], [0], [0], [1], [0, 0, 1, 1], [], []>} : vector<8x32xf32>, vector<32x128xf32>, vector<8x128xf32> -> vector<8x128xf32>
    %cst_275 = arith.constant dense<0.000000e+00> : vector<8x128xf32>
    %769 = tpu.matmul %693, %1, %cst_275 {dimension_numbers = #tpu.dot_dimension_numbers<[1], [0], [0], [1], [0, 0, 1, 1], [], []>} : vector<8x32xf32>, vector<32x128xf32>, vector<8x128xf32> -> vector<8x128xf32>
    %770 = arith.addf %768, %769 : vector<8x128xf32>
    %771 = arith.addf %770, %4 : vector<8x128xf32>
    %772 = vector.extract_strided_slice %771 {offsets = [0, 0], sizes = [8, 32], strides = [1, 1]} : vector<8x128xf32> to vector<8x32xf32>
    %773 = arith.negf %772 : vector<8x32xf32>
    %774 = math.exp %773 : vector<8x32xf32>
    %cst_276 = arith.constant 1.000000e+00 : f32
    %775 = vector.broadcast %cst_276 : f32 to vector<8x32xf32>
    %776 = arith.addf %775, %774 : vector<8x32xf32>
    %777 = arith.divf %775, %776 : vector<8x32xf32>
    %778 = vector.extract_strided_slice %771 {offsets = [0, 32], sizes = [8, 32], strides = [1, 1]} : vector<8x128xf32> to vector<8x32xf32>
    %779 = arith.negf %778 : vector<8x32xf32>
    %780 = math.exp %779 : vector<8x32xf32>
    %cst_277 = arith.constant 1.000000e+00 : f32
    %781 = vector.broadcast %cst_277 : f32 to vector<8x32xf32>
    %782 = arith.addf %781, %780 : vector<8x32xf32>
    %783 = arith.divf %781, %782 : vector<8x32xf32>
    %784 = vector.extract_strided_slice %771 {offsets = [0, 64], sizes = [8, 32], strides = [1, 1]} : vector<8x128xf32> to vector<8x32xf32>
    %785 = math.tanh %784 : vector<8x32xf32>
    %786 = vector.extract_strided_slice %771 {offsets = [0, 96], sizes = [8, 32], strides = [1, 1]} : vector<8x128xf32> to vector<8x32xf32>
    %787 = arith.negf %786 : vector<8x32xf32>
    %788 = math.exp %787 : vector<8x32xf32>
    %cst_278 = arith.constant 1.000000e+00 : f32
    %789 = vector.broadcast %cst_278 : f32 to vector<8x32xf32>
    %790 = arith.addf %789, %788 : vector<8x32xf32>
    %791 = arith.divf %789, %790 : vector<8x32xf32>
    %792 = arith.mulf %783, %691 : vector<8x32xf32>
    %793 = arith.mulf %777, %785 : vector<8x32xf32>
    %794 = arith.addf %792, %793 : vector<8x32xf32>
    %795 = math.tanh %794 : vector<8x32xf32>
    %796 = arith.mulf %791, %795 : vector<8x32xf32>
    %cst_279 = arith.constant dense<0.000000e+00> : vector<8x32xf32>
    %797 = tpu.matmul %691, %5, %cst_279 {dimension_numbers = #tpu.dot_dimension_numbers<[1], [0], [0], [1], [0, 0, 1, 1], [], []>} : vector<8x32xf32>, vector<32x32xf32>, vector<8x32xf32> -> vector<8x32xf32>
    %cst_280 = arith.constant dense<0.000000e+00> : vector<8x32xf32>
    %798 = tpu.matmul %794, %6, %cst_280 {dimension_numbers = #tpu.dot_dimension_numbers<[1], [0], [0], [1], [0, 0, 1, 1], [], []>} : vector<8x32xf32>, vector<32x32xf32>, vector<8x32xf32> -> vector<8x32xf32>
    %799 = arith.addf %797, %798 : vector<8x32xf32>
    %800 = arith.addf %799, %9 : vector<8x32xf32>
    %cst_281 = arith.constant 0.000000e+00 : f32
    %801 = vector.broadcast %cst_281 : f32 to vector<8x32xf32>
    %802 = arith.maximumf %800, %801 : vector<8x32xf32>
    %cst_282 = arith.constant dense<0.000000e+00> : vector<8x64xf32>
    %803 = tpu.matmul %802, %10, %cst_282 {dimension_numbers = #tpu.dot_dimension_numbers<[1], [0], [0], [1], [0, 0, 1, 1], [], []>} : vector<8x32xf32>, vector<32x64xf32>, vector<8x64xf32> -> vector<8x64xf32>
    %804 = arith.addf %803, %13 : vector<8x64xf32>
    %cst_283 = arith.constant dense<0xFF800000> : vector<8xf32>
    %805 = vector.multi_reduction <maximumf>, %804, %cst_283 [1] : vector<8x64xf32> to vector<8xf32>
    %806 = vector.shape_cast %805 : vector<8xf32> to vector<8x1xf32>
    %807 = vector.broadcast %806 : vector<8x1xf32> to vector<8x64xf32>
    %808 = arith.subf %804, %807 : vector<8x64xf32>
    %809 = math.exp %808 : vector<8x64xf32>
    %cst_284 = arith.constant dense<0.000000e+00> : vector<8xf32>
    %810 = vector.multi_reduction <add>, %809, %cst_284 [1] : vector<8x64xf32> to vector<8xf32>
    %811 = vector.shape_cast %810 : vector<8xf32> to vector<8x1xf32>
    %812 = tpu.reciprocal %811 {approx = true} : vector<8x1xf32> -> vector<8x1xf32>
    %813 = vector.broadcast %812 : vector<8x1xf32> to vector<8x64xf32>
    %814 = arith.mulf %809, %813 : vector<8x64xf32>
    %815 = vector.extract_strided_slice %814 {offsets = [0, 0], sizes = [8, 32], strides = [1, 1]} : vector<8x64xf32> to vector<8x32xf32>
    %816 = arith.mulf %815, %691 : vector<8x32xf32>
    %817 = vector.extract_strided_slice %814 {offsets = [0, 32], sizes = [8, 32], strides = [1, 1]} : vector<8x64xf32> to vector<8x32xf32>
    %818 = arith.mulf %817, %794 : vector<8x32xf32>
    %cst_285 = arith.constant dense<0.000000e+00> : vector<8x32xf32>
    %819 = tpu.matmul %816, %14, %cst_285 {dimension_numbers = #tpu.dot_dimension_numbers<[1], [0], [0], [1], [0, 0, 1, 1], [], []>} : vector<8x32xf32>, vector<32x32xf32>, vector<8x32xf32> -> vector<8x32xf32>
    %cst_286 = arith.constant dense<0.000000e+00> : vector<8x32xf32>
    %820 = tpu.matmul %818, %15, %cst_286 {dimension_numbers = #tpu.dot_dimension_numbers<[1], [0], [0], [1], [0, 0, 1, 1], [], []>} : vector<8x32xf32>, vector<32x32xf32>, vector<8x32xf32> -> vector<8x32xf32>
    %821 = arith.addf %819, %820 : vector<8x32xf32>
    %822 = arith.addf %821, %18 : vector<8x32xf32>
    %cst_287 = arith.constant 0.000000e+00 : f32
    %823 = vector.broadcast %cst_287 : f32 to vector<8x32xf32>
    %824 = arith.maximumf %822, %823 : vector<8x32xf32>
    %cst_288 = arith.constant dense<0.000000e+00> : vector<8x16xf32>
    %825 = tpu.matmul %824, %19, %cst_288 {dimension_numbers = #tpu.dot_dimension_numbers<[1], [0], [0], [1], [0, 0, 1, 1], [], []>} : vector<8x32xf32>, vector<32x16xf32>, vector<8x16xf32> -> vector<8x16xf32>
    %826 = arith.addf %825, %22 : vector<8x16xf32>
    %827 = math.tanh %826 : vector<8x16xf32>
    %cst_289 = arith.constant dense<0.000000e+00> : vector<8x64xf32>
    %828 = tpu.matmul %816, %23, %cst_289 {dimension_numbers = #tpu.dot_dimension_numbers<[1], [0], [0], [1], [0, 0, 1, 1], [], []>} : vector<8x32xf32>, vector<32x64xf32>, vector<8x64xf32> -> vector<8x64xf32>
    %cst_290 = arith.constant dense<0.000000e+00> : vector<8x64xf32>
    %829 = tpu.matmul %818, %24, %cst_290 {dimension_numbers = #tpu.dot_dimension_numbers<[1], [0], [0], [1], [0, 0, 1, 1], [], []>} : vector<8x32xf32>, vector<32x64xf32>, vector<8x64xf32> -> vector<8x64xf32>
    %830 = arith.addf %828, %829 : vector<8x64xf32>
    %cst_291 = arith.constant dense<0.000000e+00> : vector<8x64xf32>
    %831 = tpu.matmul %744, %25, %cst_291 {dimension_numbers = #tpu.dot_dimension_numbers<[1], [0], [0], [1], [0, 0, 1, 1], [], []>} : vector<8x16xf32>, vector<16x64xf32>, vector<8x64xf32> -> vector<8x64xf32>
    %832 = arith.addf %830, %831 : vector<8x64xf32>
    %833 = arith.addf %832, %28 : vector<8x64xf32>
    %cst_292 = arith.constant 0.000000e+00 : f32
    %834 = vector.broadcast %cst_292 : f32 to vector<8x64xf32>
    %835 = arith.maximumf %833, %834 : vector<8x64xf32>
    %cst_293 = arith.constant dense<0.000000e+00> : vector<8x32xf32>
    %836 = tpu.matmul %835, %29, %cst_293 {dimension_numbers = #tpu.dot_dimension_numbers<[1], [0], [0], [1], [0, 0, 1, 1], [], []>} : vector<8x64xf32>, vector<64x32xf32>, vector<8x32xf32> -> vector<8x32xf32>
    %837 = arith.addf %836, %32 : vector<8x32xf32>
    %838 = arith.negf %837 : vector<8x32xf32>
    %839 = math.exp %838 : vector<8x32xf32>
    %cst_294 = arith.constant 1.000000e+00 : f32
    %840 = vector.broadcast %cst_294 : f32 to vector<8x32xf32>
    %841 = arith.addf %840, %839 : vector<8x32xf32>
    %842 = arith.divf %840, %841 : vector<8x32xf32>
    %843 = vector.extract_strided_slice %842 {offsets = [0, 0], sizes = [8, 16], strides = [1, 1]} : vector<8x32xf32> to vector<8x16xf32>
    %844 = arith.mulf %843, %744 : vector<8x16xf32>
    %845 = vector.extract_strided_slice %842 {offsets = [0, 16], sizes = [8, 16], strides = [1, 1]} : vector<8x32xf32> to vector<8x16xf32>
    %846 = arith.mulf %845, %827 : vector<8x16xf32>
    %847 = arith.addf %844, %846 : vector<8x16xf32>
    %cst_295 = arith.constant dense<0.000000e+00> : vector<8x32xf32>
    %848 = tpu.matmul %796, %33, %cst_295 {dimension_numbers = #tpu.dot_dimension_numbers<[1], [0], [0], [1], [0, 0, 1, 1], [], []>} : vector<8x32xf32>, vector<32x32xf32>, vector<8x32xf32> -> vector<8x32xf32>
    %cst_296 = arith.constant dense<0.000000e+00> : vector<8x32xf32>
    %849 = tpu.matmul %847, %34, %cst_296 {dimension_numbers = #tpu.dot_dimension_numbers<[1], [0], [0], [1], [0, 0, 1, 1], [], []>} : vector<8x16xf32>, vector<16x32xf32>, vector<8x32xf32> -> vector<8x32xf32>
    %850 = arith.addf %848, %849 : vector<8x32xf32>
    %851 = arith.addf %850, %37 : vector<8x32xf32>
    %cst_297 = arith.constant 0.000000e+00 : f32
    %852 = vector.broadcast %cst_297 : f32 to vector<8x32xf32>
    %853 = arith.maximumf %851, %852 : vector<8x32xf32>
    %cst_298 = arith.constant dense<0.000000e+00> : vector<8x4xf32>
    %854 = tpu.matmul %853, %38, %cst_298 {dimension_numbers = #tpu.dot_dimension_numbers<[1], [0], [0], [1], [0, 0, 1, 1], [], []>} : vector<8x32xf32>, vector<32x4xf32>, vector<8x4xf32> -> vector<8x4xf32>
    %855 = arith.addf %854, %41 : vector<8x4xf32>
    %cst_299 = arith.constant dense<0xFF800000> : vector<8xf32>
    %856 = vector.multi_reduction <maximumf>, %855, %cst_299 [1] : vector<8x4xf32> to vector<8xf32>
    %857 = vector.shape_cast %856 : vector<8xf32> to vector<8x1xf32>
    %858 = vector.broadcast %857 : vector<8x1xf32> to vector<8x4xf32>
    %859 = arith.subf %855, %858 : vector<8x4xf32>
    %860 = math.exp %859 : vector<8x4xf32>
    %cst_300 = arith.constant dense<0.000000e+00> : vector<8xf32>
    %861 = vector.multi_reduction <add>, %860, %cst_300 [1] : vector<8x4xf32> to vector<8xf32>
    %862 = vector.shape_cast %861 : vector<8xf32> to vector<8x1xf32>
    %863 = math.log %862 : vector<8x1xf32>
    %864 = vector.broadcast %863 : vector<8x1xf32> to vector<8x4xf32>
    %865 = arith.subf %859, %864 : vector<8x4xf32>
    %c7_301 = arith.constant 7 : index
    %c0_302 = arith.constant 0 : index
    %c0_303 = arith.constant 0 : index
    %866 = vector.load %arg21[%c7_301, %c0_302, %c0_303] : memref<8x8x4xf32, #tpu.memory_space<vmem>>, vector<1x8x4xf32>
    %867 = vector.shape_cast %866 : vector<1x8x4xf32> to vector<8x4xf32>
    %868 = vector.shape_cast %865 : vector<8x4xf32> to vector<1x8x4xf32>
    tpu.vector_store %arg21[%c7_301, %c0_302, %c0_303], %868 {strides = array<i32>} : memref<8x8x4xf32, #tpu.memory_space<vmem>>, vector<1x8x4xf32>,
    return
  }
  func.func @transform_0(%arg0: i32) -> (i32, i32, i32) {
    %c0_i32 = arith.constant 0 : i32
    %c0_i32_0 = arith.constant 0 : i32
    %c0_i32_1 = arith.constant 0 : i32
    %c0_i32_2 = arith.constant 0 : i32
    return %c0_i32, %c0_i32_0, %c0_i32_1 : i32, i32, i32
  }
  func.func @transform_1(%arg0: i32) -> (i32, i32) {
    %c0_i32 = arith.constant 0 : i32
    %c0_i32_0 = arith.constant 0 : i32
    %c0_i32_1 = arith.constant 0 : i32
    return %c0_i32, %c0_i32_0 : i32, i32
  }
  func.func @transform_2(%arg0: i32) -> (i32, i32) {
    %c0_i32 = arith.constant 0 : i32
    %c0_i32_0 = arith.constant 0 : i32
    %c0_i32_1 = arith.constant 0 : i32
    return %c0_i32, %c0_i32_0 : i32, i32
  }
  func.func @transform_3(%arg0: i32) -> (i32, i32) {
    %c0_i32 = arith.constant 0 : i32
    %c0_i32_0 = arith.constant 0 : i32
    %c0_i32_1 = arith.constant 0 : i32
    return %c0_i32, %c0_i32_0 : i32, i32
  }
  func.func @transform_4(%arg0: i32) -> (i32, i32) {
    %c0_i32 = arith.constant 0 : i32
    %c0_i32_0 = arith.constant 0 : i32
    %c0_i32_1 = arith.constant 0 : i32
    return %c0_i32, %c0_i32_0 : i32, i32
  }
  func.func @transform_5(%arg0: i32) -> (i32, i32) {
    %c0_i32 = arith.constant 0 : i32
    %c0_i32_0 = arith.constant 0 : i32
    %c0_i32_1 = arith.constant 0 : i32
    return %c0_i32, %c0_i32_0 : i32, i32
  }
  func.func @transform_6(%arg0: i32) -> (i32, i32) {
    %c0_i32 = arith.constant 0 : i32
    %c0_i32_0 = arith.constant 0 : i32
    %c0_i32_1 = arith.constant 0 : i32
    return %c0_i32, %c0_i32_0 : i32, i32
  }
  func.func @transform_7(%arg0: i32) -> (i32, i32) {
    %c0_i32 = arith.constant 0 : i32
    %c0_i32_0 = arith.constant 0 : i32
    %c0_i32_1 = arith.constant 0 : i32
    return %c0_i32, %c0_i32_0 : i32, i32
  }
  func.func @transform_8(%arg0: i32) -> (i32, i32) {
    %c0_i32 = arith.constant 0 : i32
    %c0_i32_0 = arith.constant 0 : i32
    %c0_i32_1 = arith.constant 0 : i32
    return %c0_i32, %c0_i32_0 : i32, i32
  }
  func.func @transform_9(%arg0: i32) -> (i32, i32) {
    %c0_i32 = arith.constant 0 : i32
    %c0_i32_0 = arith.constant 0 : i32
    %c0_i32_1 = arith.constant 0 : i32
    return %c0_i32, %c0_i32_0 : i32, i32
  }
  func.func @transform_10(%arg0: i32) -> (i32, i32) {
    %c0_i32 = arith.constant 0 : i32
    %c0_i32_0 = arith.constant 0 : i32
    %c0_i32_1 = arith.constant 0 : i32
    return %c0_i32, %c0_i32_0 : i32, i32
  }
  func.func @transform_11(%arg0: i32) -> (i32, i32) {
    %c0_i32 = arith.constant 0 : i32
    %c0_i32_0 = arith.constant 0 : i32
    %c0_i32_1 = arith.constant 0 : i32
    return %c0_i32, %c0_i32_0 : i32, i32
  }
  func.func @transform_12(%arg0: i32) -> (i32, i32) {
    %c0_i32 = arith.constant 0 : i32
    %c0_i32_0 = arith.constant 0 : i32
    %c0_i32_1 = arith.constant 0 : i32
    return %c0_i32, %c0_i32_0 : i32, i32
  }
  func.func @transform_13(%arg0: i32) -> (i32, i32) {
    %c0_i32 = arith.constant 0 : i32
    %c0_i32_0 = arith.constant 0 : i32
    %c0_i32_1 = arith.constant 0 : i32
    return %c0_i32, %c0_i32_0 : i32, i32
  }
  func.func @transform_14(%arg0: i32) -> (i32, i32) {
    %c0_i32 = arith.constant 0 : i32
    %c0_i32_0 = arith.constant 0 : i32
    %c0_i32_1 = arith.constant 0 : i32
    return %c0_i32, %c0_i32_0 : i32, i32
  }
  func.func @transform_15(%arg0: i32) -> (i32, i32) {
    %c0_i32 = arith.constant 0 : i32
    %c0_i32_0 = arith.constant 0 : i32
    %c0_i32_1 = arith.constant 0 : i32
    return %c0_i32, %c0_i32_0 : i32, i32
  }
  func.func @transform_16(%arg0: i32) -> (i32, i32) {
    %c0_i32 = arith.constant 0 : i32
    %c0_i32_0 = arith.constant 0 : i32
    %c0_i32_1 = arith.constant 0 : i32
    return %c0_i32, %c0_i32_0 : i32, i32
  }
  func.func @transform_17(%arg0: i32) -> (i32, i32) {
    %c0_i32 = arith.constant 0 : i32
    %c0_i32_0 = arith.constant 0 : i32
    %c0_i32_1 = arith.constant 0 : i32
    return %c0_i32, %c0_i32_0 : i32, i32
  }
  func.func @transform_18(%arg0: i32) -> (i32, i32) {
    %c0_i32 = arith.constant 0 : i32
    %c0_i32_0 = arith.constant 0 : i32
    %c0_i32_1 = arith.constant 0 : i32
    return %c0_i32, %c0_i32_0 : i32, i32
  }
  func.func @transform_19(%arg0: i32) -> (i32, i32) {
    %c0_i32 = arith.constant 0 : i32
    %c0_i32_0 = arith.constant 0 : i32
    %c0_i32_1 = arith.constant 0 : i32
    return %c0_i32, %c0_i32_0 : i32, i32
  }
  func.func @transform_20(%arg0: i32) -> (i32, i32, i32) {
    %c0_i32 = arith.constant 0 : i32
    %c0_i32_0 = arith.constant 0 : i32
    %c0_i32_1 = arith.constant 0 : i32
    %c0_i32_2 = arith.constant 0 : i32
    return %c0_i32, %c0_i32_0, %c0_i32_1 : i32, i32, i32
  }
}

</mosaic_0001>

<llo_original>
// kernel: tpu_custom_call.1
$region0: #{tpu_custom_call.1}
  #allocation0 [shape = 'u32[]', space=smem, size = 0x4, offset = 0x4, fixed_abs, tag = 'smem constant byte address 0x4 - core index']
  #allocation1 [shape = 'u32[144,128]{1,0:T(1,128)}', space=vmem, size = 0x12000, scoped, tag = 'internal scratch']
  %s0 = inlined_call_operand.vmem [shape: f32[8,8,32], index: 0, kind: input, shape index: {}]
  %s1 = inlined_call_operand.vmem [shape: f32[32,128], index: 1, kind: input, shape index: {}]
  %s2 = inlined_call_operand.vmem [shape: f32[32,128], index: 2, kind: input, shape index: {}]
  %s3 = inlined_call_operand.vmem [shape: f32[1,128], index: 3, kind: input, shape index: {}]
  %s4 = inlined_call_operand.vmem [shape: f32[64,32], index: 4, kind: input, shape index: {}]
  %s5 = inlined_call_operand.vmem [shape: f32[1,32], index: 5, kind: input, shape index: {}]
  %s6 = inlined_call_operand.vmem [shape: f32[32,64], index: 6, kind: input, shape index: {}]
  %s7 = inlined_call_operand.vmem [shape: f32[1,64], index: 7, kind: input, shape index: {}]
  %s8 = inlined_call_operand.vmem [shape: f32[64,32], index: 8, kind: input, shape index: {}]
  %s9 = inlined_call_operand.vmem [shape: f32[1,32], index: 9, kind: input, shape index: {}]
  %s10 = inlined_call_operand.vmem [shape: f32[32,16], index: 10, kind: input, shape index: {}]
  %s11 = inlined_call_operand.vmem [shape: f32[1,16], index: 11, kind: input, shape index: {}]
  %s12 = inlined_call_operand.vmem [shape: f32[80,64], index: 12, kind: input, shape index: {}]
  %s13 = inlined_call_operand.vmem [shape: f32[1,64], index: 13, kind: input, shape index: {}]
  %s14 = inlined_call_operand.vmem [shape: f32[64,32], index: 14, kind: input, shape index: {}]
  %s15 = inlined_call_operand.vmem [shape: f32[1,32], index: 15, kind: input, shape index: {}]
  %s16 = inlined_call_operand.vmem [shape: f32[48,32], index: 16, kind: input, shape index: {}]
  %s17 = inlined_call_operand.vmem [shape: f32[1,32], index: 17, kind: input, shape index: {}]
  %s18 = inlined_call_operand.vmem [shape: f32[32,4], index: 18, kind: input, shape index: {}]
  %s19 = inlined_call_operand.vmem [shape: f32[1,4], index: 19, kind: input, shape index: {}]
  %s20 = inlined_call_operand.vmem [shape: f32[8,8,4], index: 20, kind: output, shape index: {}]
  %s21 = sld [smem:[#allocation0]]
  $region90: #{tpu_custom_call.1} parent=0
    _
  %s23 = ssub.s32 1, %s21
  %s24 = scalar_select 0, %s23, %s21
  // Predicated region
  $region2: #{tpu_custom_call.1} parent=0 // pred_check
    _
  $region3: #{tpu_custom_call.1} parent=0 // pred_check_branch
    %26 = sbr.rel (0) target = $region5
  $region4: #{tpu_custom_call.1} parent=0 // pred_region
    _
  $region5: #{tpu_custom_call.1} parent=0 // pred_fallthru
    _
  // Predicated region
  $region6: #{tpu_custom_call.1} parent=0 // pred_check
    _
  $region7: #{tpu_custom_call.1} parent=0 // pred_check_branch
    %28 = sbr.rel (0) target = $region9
  $region8: #{tpu_custom_call.1} parent=0 // pred_region
    _
  $region9: #{tpu_custom_call.1} parent=0 // pred_fallthru
    _
  // Predicated region
  $region10: #{tpu_custom_call.1} parent=0 // pred_check
    _
  $region11: #{tpu_custom_call.1} parent=0 // pred_check_branch
    %30 = sbr.rel (0) target = $region13
  $region12: #{tpu_custom_call.1} parent=0 // pred_region
    _
  $region13: #{tpu_custom_call.1} parent=0 // pred_fallthru
    _
  // Predicated region
  $region14: #{tpu_custom_call.1} parent=0 // pred_check
    _
  $region15: #{tpu_custom_call.1} parent=0 // pred_check_branch
    %32 = sbr.rel (0) target = $region17
  $region16: #{tpu_custom_call.1} parent=0 // pred_region
    _
  $region17: #{tpu_custom_call.1} parent=0 // pred_fallthru
    _
  // Predicated region
  $region18: #{tpu_custom_call.1} parent=0 // pred_check
    _
  $region19: #{tpu_custom_call.1} parent=0 // pred_check_branch
    %34 = sbr.rel (0) target = $region21
  $region20: #{tpu_custom_call.1} parent=0 // pred_region
    _
  $region21: #{tpu_custom_call.1} parent=0 // pred_fallthru
    _
  // Predicated region
  $region22: #{tpu_custom_call.1} parent=0 // pred_check
    _
  $region23: #{tpu_custom_call.1} parent=0 // pred_check_branch
    %36 = sbr.rel (0) target = $region25
  $region24: #{tpu_custom_call.1} parent=0 // pred_region
    _
  $region25: #{tpu_custom_call.1} parent=0 // pred_fallthru
    _
  // Predicated region
  $region26: #{tpu_custom_call.1} parent=0 // pred_check
    _
  $region27: #{tpu_custom_call.1} parent=0 // pred_check_branch
    %38 = sbr.rel (0) target = $region29
  $region28: #{tpu_custom_call.1} parent=0 // pred_region
    _
  $region29: #{tpu_custom_call.1} parent=0 // pred_fallthru
    _
  // Predicated region
  $region30: #{tpu_custom_call.1} parent=0 // pred_check
    _
  $region31: #{tpu_custom_call.1} parent=0 // pred_check_branch
    %40 = sbr.rel (0) target = $region33
  $region32: #{tpu_custom_call.1} parent=0 // pred_region
    _
  $region33: #{tpu_custom_call.1} parent=0 // pred_fallthru
    _
  // Predicated region
  $region34: #{tpu_custom_call.1} parent=0 // pred_check
    _
  $region35: #{tpu_custom_call.1} parent=0 // pred_check_branch
    %42 = sbr.rel (0) target = $region37
  $region36: #{tpu_custom_call.1} parent=0 // pred_region
    _
  $region37: #{tpu_custom_call.1} parent=0 // pred_fallthru
    _
  // Predicated region
  $region38: #{tpu_custom_call.1} parent=0 // pred_check
    _
  $region39: #{tpu_custom_call.1} parent=0 // pred_check_branch
    %44 = sbr.rel (0) target = $region41
  $region40: #{tpu_custom_call.1} parent=0 // pred_region
    _
  $region41: #{tpu_custom_call.1} parent=0 // pred_fallthru
    _
  // Predicated region
  $region42: #{tpu_custom_call.1} parent=0 // pred_check
    _
  $region43: #{tpu_custom_call.1} parent=0 // pred_check_branch
    %46 = sbr.rel (0) target = $region45
  $region44: #{tpu_custom_call.1} parent=0 // pred_region
    _
  $region45: #{tpu_custom_call.1} parent=0 // pred_fallthru
    _
  // Predicated region
  $region46: #{tpu_custom_call.1} parent=0 // pred_check
    _
  $region47: #{tpu_custom_call.1} parent=0 // pred_check_branch
    %48 = sbr.rel (0) target = $region49
  $region48: #{tpu_custom_call.1} parent=0 // pred_region
    _
  $region49: #{tpu_custom_call.1} parent=0 // pred_fallthru
    _
  // Predicated region
  $region50: #{tpu_custom_call.1} parent=0 // pred_check
    _
  $region51: #{tpu_custom_call.1} parent=0 // pred_check_branch
    %50 = sbr.rel (0) target = $region53
  $region52: #{tpu_custom_call.1} parent=0 // pred_region
    _
  $region53: #{tpu_custom_call.1} parent=0 // pred_fallthru
    _
  // Predicated region
  $region54: #{tpu_custom_call.1} parent=0 // pred_check
    _
  $region55: #{tpu_custom_call.1} parent=0 // pred_check_branch
    %52 = sbr.rel (0) target = $region57
  $region56: #{tpu_custom_call.1} parent=0 // pred_region
    _
  $region57: #{tpu_custom_call.1} parent=0 // pred_fallthru
    _
  // Predicated region
  $region58: #{tpu_custom_call.1} parent=0 // pred_check
    _
  $region59: #{tpu_custom_call.1} parent=0 // pred_check_branch
    %54 = sbr.rel (0) target = $region61
  $region60: #{tpu_custom_call.1} parent=0 // pred_region
    _
  $region61: #{tpu_custom_call.1} parent=0 // pred_fallthru
    _
  // Predicated region
  $region62: #{tpu_custom_call.1} parent=0 // pred_check
    _
  $region63: #{tpu_custom_call.1} parent=0 // pred_check_branch
    %56 = sbr.rel (0) target = $region65
  $region64: #{tpu_custom_call.1} parent=0 // pred_region
    _
  $region65: #{tpu_custom_call.1} parent=0 // pred_fallthru
    _
  // Predicated region
  $region66: #{tpu_custom_call.1} parent=0 // pred_check
    _
  $region67: #{tpu_custom_call.1} parent=0 // pred_check_branch
    %58 = sbr.rel (0) target = $region69
  $region68: #{tpu_custom_call.1} parent=0 // pred_region
    _
  $region69: #{tpu_custom_call.1} parent=0 // pred_fallthru
    _
  // Predicated region
  $region70: #{tpu_custom_call.1} parent=0 // pred_check
    _
  $region71: #{tpu_custom_call.1} parent=0 // pred_check_branch
    %60 = sbr.rel (0) target = $region73
  $region72: #{tpu_custom_call.1} parent=0 // pred_region
    _
  $region73: #{tpu_custom_call.1} parent=0 // pred_fallthru
    _
  // Predicated region
  $region74: #{tpu_custom_call.1} parent=0 // pred_check
    _
  $region75: #{tpu_custom_call.1} parent=0 // pred_check_branch
    %62 = sbr.rel (0) target = $region77
  $region76: #{tpu_custom_call.1} parent=0 // pred_region
    _
  $region77: #{tpu_custom_call.1} parent=0 // pred_fallthru
    _
  // Predicated region
  $region78: #{tpu_custom_call.1} parent=0 // pred_check
    _
  $region79: #{tpu_custom_call.1} parent=0 // pred_check_branch
    %64 = sbr.rel (0) target = $region81
  $region80: #{tpu_custom_call.1} parent=0 // pred_region
    _
  $region81: #{tpu_custom_call.1} parent=0 // pred_fallthru
    _
  %v65 = vld [vmem:[%s1] sm:$0xff]
  %v66 = vld [vmem:[%s1 + $0x8] sm:$0xff]
  %v67 = vld [vmem:[%s1 + $0x10] sm:$0xff]
  %v68 = vld [vmem:[%s1 + $0x18] sm:$0xff]
  %v69 = vld [vmem:[%s2] sm:$0xff]
  %v70 = vld [vmem:[%s2 + $0x8] sm:$0xff]
  %v71 = vld [vmem:[%s2 + $0x10] sm:$0xff]
  %v72 = vld [vmem:[%s2 + $0x18] sm:$0xff]
  %v73 = vld [vmem:[%s3] sm:$0x1]
  %v75 = vlaneseq
  %v76 = vshrl.u32 %v75, 7
  %v77 = vsub.s32 0, %v76
  %v78 = vrot.slane %v73, %v77
  %v80 = vld [vmem:[%s4] sm:$0xff]
  %v81 = vld [vmem:[%s4 + $0x8] sm:$0xff]
  %v82 = vld [vmem:[%s4 + $0x10] sm:$0xff]
  %v83 = vld [vmem:[%s4 + $0x18] sm:$0xff]
  %v84 = vld [vmem:[%s4 + $0x20] sm:$0xff]
  %v85 = vld [vmem:[%s4 + $0x28] sm:$0xff]
  %v86 = vld [vmem:[%s4 + $0x30] sm:$0xff]
  %v87 = vld [vmem:[%s4 + $0x38] sm:$0xff]
  %v88 = vld [vmem:[%s5] sm:$0x1]
  %v90 = vlaneseq
  %v91 = vshrl.u32 %v90, 7
  %v92 = vsub.s32 0, %v91
  %v93 = vrot.slane %v88, %v92
  %v95 = vld [vmem:[%s6] sm:$0xff]
  %v96 = vld [vmem:[%s6 + $0x8] sm:$0xff]
  %v97 = vld [vmem:[%s6 + $0x10] sm:$0xff]
  %v98 = vld [vmem:[%s6 + $0x18] sm:$0xff]
  %v99 = vld [vmem:[%s7] sm:$0x1]
  %v101 = vlaneseq
  %v102 = vshrl.u32 %v101, 7
  %v103 = vsub.s32 0, %v102
  %v104 = vrot.slane %v99, %v103
  %v106 = vld [vmem:[%s8] sm:$0xff]
  %v107 = vld [vmem:[%s8 + $0x8] sm:$0xff]
  %v108 = vld [vmem:[%s8 + $0x10] sm:$0xff]
  %v109 = vld [vmem:[%s8 + $0x18] sm:$0xff]
  %v110 = vld [vmem:[%s8 + $0x20] sm:$0xff]
  %v111 = vld [vmem:[%s8 + $0x28] sm:$0xff]
  %v112 = vld [vmem:[%s8 + $0x30] sm:$0xff]
  %v113 = vld [vmem:[%s8 + $0x38] sm:$0xff]
  %v114 = vld [vmem:[%s9] sm:$0x1]
  %v116 = vlaneseq
  %v117 = vshrl.u32 %v116, 7
  %v118 = vsub.s32 0, %v117
  %v119 = vrot.slane %v114, %v118
  %v121 = vld [vmem:[%s10] sm:$0xff]
  %v122 = vld [vmem:[%s10 + $0x8] sm:$0xff]
  %v123 = vld [vmem:[%s10 + $0x10] sm:$0xff]
  %v124 = vld [vmem:[%s10 + $0x18] sm:$0xff]
  %v125 = vld [vmem:[%s11] sm:$0x1]
  %v127 = vlaneseq
  %v128 = vshrl.u32 %v127, 7
  %v129 = vsub.s32 0, %v128
  %v130 = vrot.slane %v125, %v129
  %v132 = vld [vmem:[%s12] sm:$0xff]
  %v133 = vld [vmem:[%s12 + $0x8] sm:$0xff]
  %v134 = vld [vmem:[%s12 + $0x10] sm:$0xff]
  %v135 = vld [vmem:[%s12 + $0x18] sm:$0xff]
  %v136 = vld [vmem:[%s12 + $0x20] sm:$0xff]
  %v137 = vld [vmem:[%s12 + $0x28] sm:$0xff]
  %v138 = vld [vmem:[%s12 + $0x30] sm:$0xff]
  %v139 = vld [vmem:[%s12 + $0x38] sm:$0xff]
  %v140 = vld [vmem:[%s12 + $0x40] sm:$0xff]
  %v141 = vld [vmem:[%s12 + $0x48] sm:$0xff]
  %v142 = vld [vmem:[%s13] sm:$0x1]
  %v144 = vlaneseq
  %v145 = vshrl.u32 %v144, 7
  %v146 = vsub.s32 0, %v145
  %v147 = vrot.slane %v142, %v146
  %v149 = vld [vmem:[%s14] sm:$0xff]
  %v150 = vld [vmem:[%s14 + $0x8] sm:$0xff]
  %v151 = vld [vmem:[%s14 + $0x10] sm:$0xff]
  %v152 = vld [vmem:[%s14 + $0x18] sm:$0xff]
  %v153 = vld [vmem:[%s14 + $0x20] sm:$0xff]
  %v154 = vld [vmem:[%s14 + $0x28] sm:$0xff]
  %v155 = vld [vmem:[%s14 + $0x30] sm:$0xff]
  %v156 = vld [vmem:[%s14 + $0x38] sm:$0xff]
  %v157 = vld [vmem:[%s15] sm:$0x1]
  %v159 = vlaneseq
  %v160 = vshrl.u32 %v159, 7
  %v161 = vsub.s32 0, %v160
  %v162 = vrot.slane %v157, %v161
  %v164 = vld [vmem:[%s16] sm:$0xff]
  %v165 = vld [vmem:[%s16 + $0x8] sm:$0xff]
  %v166 = vld [vmem:[%s16 + $0x10] sm:$0xff]
  %v167 = vld [vmem:[%s16 + $0x18] sm:$0xff]
  %v168 = vld [vmem:[%s16 + $0x20] sm:$0xff]
  %v169 = vld [vmem:[%s16 + $0x28] sm:$0xff]
  %v170 = vld [vmem:[%s17] sm:$0x1]
  %v172 = vlaneseq
  %v173 = vshrl.u32 %v172, 7
  %v174 = vsub.s32 0, %v173
  %v175 = vrot.slane %v170, %v174
  %v177 = vld [vmem:[%s18] sm:$0xff]
  %v178 = vld [vmem:[%s18 + $0x8] sm:$0xff]
  %v179 = vld [vmem:[%s18 + $0x10] sm:$0xff]
  %v180 = vld [vmem:[%s18 + $0x18] sm:$0xff]
  %v181 = vld [vmem:[%s19] sm:$0x1]
  %v183 = vlaneseq
  %v184 = vshrl.u32 %v183, 7
  %v185 = vsub.s32 0, %v184
  %v186 = vrot.slane %v181, %v185
  %v188 = vld [vmem:[%s0] sm:$0xff]
  %vm189 = vcmask 261120
  %v191 = vsel %vm189, 0.0, 0
  %193 = vmatprep.subr.mxu0 0.0
  %194 = vmatpush1.msra.mxu0 %v69
  %195 = vmatprep.subr.mxu0 0.0
  %196 = vmatpush1.msra.mxu0 %v70
  %197 = vmatprep.subr.mxu0 0.0
  %198 = vmatpush1.msra.mxu0 %v71
  %199 = vmatprep.subr.mxu0 0.0
  %200 = vmatpush1.msra.mxu0 %v72
  %201 = vmatprep.subr.mxu0 0.0
  %202 = vmatpush1.msra.mxu0 0.0
  %203 = vmatprep.subr.mxu0 0.0
  %204 = vmatpush1.msra.mxu0 0.0
  %205 = vmatprep.subr.mxu0 0.0
  %206 = vmatpush1.msra.mxu0 0.0
  %207 = vmatprep.subr.mxu0 0.0
  %208 = vmatpush1.msra.mxu0 0.0
  %209 = vmatprep.subr.mxu0 0.0
  %210 = vmatpush1.msra.mxu0 0.0
  %211 = vmatprep.subr.mxu0 0.0
  %212 = vmatpush1.msra.mxu0 0.0
  %213 = vmatprep.subr.mxu0 0.0
  %214 = vmatpush1.msra.mxu0 0.0
  %215 = vmatprep.subr.mxu0 0.0
  %216 = vmatpush1.msra.mxu0 0.0
  %217 = vmatprep.subr.mxu0 0.0
  %218 = vmatpush1.msra.mxu0 0.0
  %219 = vmatprep.subr.mxu0 0.0
  %220 = vmatpush1.msra.mxu0 0.0
  %221 = vmatprep.subr.mxu0 0.0
  %222 = vmatpush1.msra.mxu0 0.0
  %223 = vmatprep.subr.mxu0 0.0
  %224 = vmatpush1.msra.mxu0 0.0
  %225 = vmatprep.subr.mxu0 0.0
  %226 = vmatpush1.msra.mxu0 0.0
  %227 = vmatprep.subr.mxu0 0.0
  %228 = vmatpush1.msra.mxu0 0.0
  %229 = vmatprep.subr.mxu0 0.0
  %230 = vmatpush1.msra.mxu0 0.0
  %231 = vmatprep.subr.mxu0 0.0
  %232 = vmatpush1.msra.mxu0 0.0
  %233 = vmatprep.subr.mxu0 0.0
  %234 = vmatpush1.msra.mxu0 0.0
  %235 = vmatprep.subr.mxu0 0.0
  %236 = vmatpush1.msra.mxu0 0.0
  %237 = vmatprep.subr.mxu0 0.0
  %238 = vmatpush1.msra.mxu0 0.0
  %239 = vmatprep.subr.mxu0 0.0
  %240 = vmatpush1.msra.mxu0 0.0
  %241 = vmatprep.subr.mxu0 0.0
  %242 = vmatpush1.msra.mxu0 0.0
  %243 = vmatprep.subr.mxu0 0.0
  %244 = vmatpush1.msra.mxu0 0.0
  %245 = vmatprep.subr.mxu0 0.0
  %246 = vmatpush1.msra.mxu0 0.0
  %247 = vmatprep.subr.mxu0 0.0
  %248 = vmatpush1.msra.mxu0 0.0
  %249 = vmatprep.subr.mxu0 0.0
  %250 = vmatpush1.msra.mxu0 0.0
  %251 = vmatprep.subr.mxu0 0.0
  %252 = vmatpush1.msra.mxu0 0.0
  %253 = vmatprep.subr.mxu0 0.0
  %254 = vmatpush1.msra.mxu0 0.0
  %255 = vmatprep.subr.mxu0 0.0
  %256 = vmatpush1.msra.mxu0 0.0
  %257 = vmatprep.mubr.f32.mxu0 0.0
  %258 = vmatmul.mubr.f32.gmra.mrb[0].mxu0 %v191
  %v259 = vpop.f32.mrb[0].mxu0
  %v260 = vadd.f32 0.0, %v259
  %v261 = vpop.f32.mrb[0].mxu0
  %262 = vdwg.mxu0
  %v264 = vsel %vm189, %v188, 0
  %266 = vmatprep.subr.mxu0 0.0
  %267 = vmatpush1.msra.mxu0 %v65
  %268 = vmatprep.subr.mxu0 0.0
  %269 = vmatpush1.msra.mxu0 %v66
  %270 = vmatprep.subr.mxu0 0.0
  %271 = vmatpush1.msra.mxu0 %v67
  %272 = vmatprep.subr.mxu0 0.0
  %273 = vmatpush1.msra.mxu0 %v68
  %274 = vmatprep.subr.mxu0 0.0
  %275 = vmatpush1.msra.mxu0 0.0
  %276 = vmatprep.subr.mxu0 0.0
  %277 = vmatpush1.msra.mxu0 0.0
  %278 = vmatprep.subr.mxu0 0.0
  %279 = vmatpush1.msra.mxu0 0.0
  %280 = vmatprep.subr.mxu0 0.0
  %281 = vmatpush1.msra.mxu0 0.0
  %282 = vmatprep.subr.mxu0 0.0
  %283 = vmatpush1.msra.mxu0 0.0
  %284 = vmatprep.subr.mxu0 0.0
  %285 = vmatpush1.msra.mxu0 0.0
  %286 = vmatprep.subr.mxu0 0.0
  %287 = vmatpush1.msra.mxu0 0.0
  %288 = vmatprep.subr.mxu0 0.0
  %289 = vmatpush1.msra.mxu0 0.0
  %290 = vmatprep.subr.mxu0 0.0
  %291 = vmatpush1.msra.mxu0 0.0
  %292 = vmatprep.subr.mxu0 0.0
  %293 = vmatpush1.msra.mxu0 0.0
  %294 = vmatprep.subr.mxu0 0.0
  %295 = vmatpush1.msra.mxu0 0.0
  %296 = vmatprep.subr.mxu0 0.0
  %297 = vmatpush1.msra.mxu0 0.0
  %298 = vmatprep.subr.mxu0 0.0
  %299 = vmatpush1.msra.mxu0 0.0
  %300 = vmatprep.subr.mxu0 0.0
  %301 = vmatpush1.msra.mxu0 0.0
  %302 = vmatprep.subr.mxu0 0.0
  %303 = vmatpush1.msra.mxu0 0.0
  %304 = vmatprep.subr.mxu0 0.0
  %305 = vmatpush1.msra.mxu0 0.0
  %306 = vmatprep.subr.mxu0 0.0
  %307 = vmatpush1.msra.mxu0 0.0
  %308 = vmatprep.subr.mxu0 0.0
  %309 = vmatpush1.msra.mxu0 0.0
  %310 = vmatprep.subr.mxu0 0.0
  %311 = vmatpush1.msra.mxu0 0.0
  %312 = vmatprep.subr.mxu0 0.0
  %313 = vmatpush1.msra.mxu0 0.0
  %314 = vmatprep.subr.mxu0 0.0
  %315 = vmatpush1.msra.mxu0 0.0
  %316 = vmatprep.subr.mxu0 0.0
  %317 = vmatpush1.msra.mxu0 0.0
  %318 = vmatprep.subr.mxu0 0.0
  %319 = vmatpush1.msra.mxu0 0.0
  %320 = vmatprep.subr.mxu0 0.0
  %321 = vmatpush1.msra.mxu0 0.0
  %322 = vmatprep.subr.mxu0 0.0
  %323 = vmatpush1.msra.mxu0 0.0
  %324 = vmatprep.subr.mxu0 0.0
  %325 = vmatpush1.msra.mxu0 0.0
  %326 = vmatprep.subr.mxu0 0.0
  %327 = vmatpush1.msra.mxu0 0.0
  %328 = vmatprep.subr.mxu0 0.0
  %329 = vmatpush1.msra.mxu0 0.0
  %330 = vmatprep.mubr.f32.mxu0 0.0
  %331 = vmatmul.mubr.f32.gmra.mrb[0].mxu0 %v264
  %v332 = vpop.f32.mrb[0].mxu0
  %v333 = vadd.f32 %v260, %v332
  %v334 = vpop.f32.mrb[0].mxu0
  %335 = vdwg.mxu0
  %v336 = vadd.f32 %v333, %v78
  %v337 = vxor.u32 %v336, 2147483648
  %v338 = vmul.f32 %v337, 1.442695
  %v339 = vpow.pop %v338
  %v340 = vadd.f32 %v339, 1.0
  %v341 = vrcp.pop %v340
  %v342 = vmul.f32 1.0, %v341
  %v343 = vtanh.pop %v336
  %v344 = vmul.f32 %v342, 0.0
  %346 = vrot.lane.b32.xlu0 %v343, 64
  %v347 = vpop.permute.xlu0 %346
  %v349 = vmul.f32 %v342, %v347
  %351 = vrot.lane.b32.xlu0 %v349, 32
  %v352 = vpop.permute.xlu0 %351
  %v354 = vadd.f32 %v344, %v352
  %v355 = vtanh.pop %v354
  %357 = vrot.lane.b32.xlu0 %v355, 64
  %v358 = vpop.permute.xlu0 %357
  %v360 = vmul.f32 %v342, %v358
  %362 = vrot.lane.b32.xlu0 %v354, 96
  %v363 = vpop.permute.xlu0 %362
  %v364 = vsel %vm189, %v363, 0
  %366 = vmatprep.subr.mxu0 0.0
  %367 = vmatpush1.msra.mxu0 %v84
  %368 = vmatprep.subr.mxu0 0.0
  %369 = vmatpush1.msra.mxu0 %v85
  %370 = vmatprep.subr.mxu0 0.0
  %371 = vmatpush1.msra.mxu0 %v86
  %372 = vmatprep.subr.mxu0 0.0
  %373 = vmatpush1.msra.mxu0 %v87
  %374 = vmatprep.subr.mxu0 0.0
  %375 = vmatpush1.msra.mxu0 0.0
  %376 = vmatprep.subr.mxu0 0.0
  %377 = vmatpush1.msra.mxu0 0.0
  %378 = vmatprep.subr.mxu0 0.0
  %379 = vmatpush1.msra.mxu0 0.0
  %380 = vmatprep.subr.mxu0 0.0
  %381 = vmatpush1.msra.mxu0 0.0
  %382 = vmatprep.subr.mxu0 0.0
  %383 = vmatpush1.msra.mxu0 0.0
  %384 = vmatprep.subr.mxu0 0.0
  %385 = vmatpush1.msra.mxu0 0.0
  %386 = vmatprep.subr.mxu0 0.0
  %387 = vmatpush1.msra.mxu0 0.0
  %388 = vmatprep.subr.mxu0 0.0
  %389 = vmatpush1.msra.mxu0 0.0
  %390 = vmatprep.subr.mxu0 0.0
  %391 = vmatpush1.msra.mxu0 0.0
  %392 = vmatprep.subr.mxu0 0.0
  %393 = vmatpush1.msra.mxu0 0.0
  %394 = vmatprep.subr.mxu0 0.0
  %395 = vmatpush1.msra.mxu0 0.0
  %396 = vmatprep.subr.mxu0 0.0
  %397 = vmatpush1.msra.mxu0 0.0
  %398 = vmatprep.subr.mxu0 0.0
  %399 = vmatpush1.msra.mxu0 0.0
  %400 = vmatprep.subr.mxu0 0.0
  %401 = vmatpush1.msra.mxu0 0.0
  %402 = vmatprep.subr.mxu0 0.0
  %403 = vmatpush1.msra.mxu0 0.0
  %404 = vmatprep.subr.mxu0 0.0
  %405 = vmatpush1.msra.mxu0 0.0
  %406 = vmatprep.subr.mxu0 0.0
  %407 = vmatpush1.msra.mxu0 0.0
  %408 = vmatprep.subr.mxu0 0.0
  %409 = vmatpush1.msra.mxu0 0.0
  %410 = vmatprep.subr.mxu0 0.0
  %411 = vmatpush1.msra.mxu0 0.0
  %412 = vmatprep.subr.mxu0 0.0
  %413 = vmatpush1.msra.mxu0 0.0
  %414 = vmatprep.subr.mxu0 0.0
  %415 = vmatpush1.msra.mxu0 0.0
  %416 = vmatprep.subr.mxu0 0.0
  %417 = vmatpush1.msra.mxu0 0.0
  %418 = vmatprep.subr.mxu0 0.0
  %419 = vmatpush1.msra.mxu0 0.0
  %420 = vmatprep.subr.mxu0 0.0
  %421 = vmatpush1.msra.mxu0 0.0
  %422 = vmatprep.subr.mxu0 0.0
  %423 = vmatpush1.msra.mxu0 0.0
  %424 = vmatprep.subr.mxu0 0.0
  %425 = vmatpush1.msra.mxu0 0.0
  %426 = vmatprep.subr.mxu0 0.0
  %427 = vmatpush1.msra.mxu0 0.0
  %428 = vmatprep.subr.mxu0 0.0
  %429 = vmatpush1.msra.mxu0 0.0
  %430 = vmatprep.mubr.f32.mxu0 0.0
  %431 = vmatmul.mubr.f32.gmra.mrb[0].mxu0 %v364
  %v432 = vpop.f32.mrb[0].mxu0
  %v433 = vadd.f32 0.0, %v432
  %v434 = vpop.f32.mrb[0].mxu0
  %435 = vdwg.mxu0
  %436 = vmatprep.subr.mxu0 0.0
  %437 = vmatpush1.msra.mxu0 %v80
  %438 = vmatprep.subr.mxu0 0.0
  %439 = vmatpush1.msra.mxu0 %v81
  %440 = vmatprep.subr.mxu0 0.0
  %441 = vmatpush1.msra.mxu0 %v82
  %442 = vmatprep.subr.mxu0 0.0
  %443 = vmatpush1.msra.mxu0 %v83
  %444 = vmatprep.subr.mxu0 0.0
  %445 = vmatpush1.msra.mxu0 0.0
  %446 = vmatprep.subr.mxu0 0.0
  %447 = vmatpush1.msra.mxu0 0.0
  %448 = vmatprep.subr.mxu0 0.0
  %449 = vmatpush1.msra.mxu0 0.0
  %450 = vmatprep.subr.mxu0 0.0
  %451 = vmatpush1.msra.mxu0 0.0
  %452 = vmatprep.subr.mxu0 0.0
  %453 = vmatpush1.msra.mxu0 0.0
  %454 = vmatprep.subr.mxu0 0.0
  %455 = vmatpush1.msra.mxu0 0.0
  %456 = vmatprep.subr.mxu0 0.0
  %457 = vmatpush1.msra.mxu0 0.0
  %458 = vmatprep.subr.mxu0 0.0
  %459 = vmatpush1.msra.mxu0 0.0
  %460 = vmatprep.subr.mxu0 0.0
  %461 = vmatpush1.msra.mxu0 0.0
  %462 = vmatprep.subr.mxu0 0.0
  %463 = vmatpush1.msra.mxu0 0.0
  %464 = vmatprep.subr.mxu0 0.0
  %465 = vmatpush1.msra.mxu0 0.0
  %466 = vmatprep.subr.mxu0 0.0
  %467 = vmatpush1.msra.mxu0 0.0
  %468 = vmatprep.subr.mxu0 0.0
  %469 = vmatpush1.msra.mxu0 0.0
  %470 = vmatprep.subr.mxu0 0.0
  %471 = vmatpush1.msra.mxu0 0.0
  %472 = vmatprep.subr.mxu0 0.0
  %473 = vmatpush1.msra.mxu0 0.0
  %474 = vmatprep.subr.mxu0 0.0
  %475 = vmatpush1.msra.mxu0 0.0
  %476 = vmatprep.subr.mxu0 0.0
  %477 = vmatpush1.msra.mxu0 0.0
  %478 = vmatprep.subr.mxu0 0.0
  %479 = vmatpush1.msra.mxu0 0.0
  %480 = vmatprep.subr.mxu0 0.0
  %481 = vmatpush1.msra.mxu0 0.0
  %482 = vmatprep.subr.mxu0 0.0
  %483 = vmatpush1.msra.mxu0 0.0
  %484 = vmatprep.subr.mxu0 0.0
  %485 = vmatpush1.msra.mxu0 0.0
  %486 = vmatprep.subr.mxu0 0.0
  %487 = vmatpush1.msra.mxu0 0.0
  %488 = vmatprep.subr.mxu0 0.0
  %489 = vmatpush1.msra.mxu0 0.0
  %490 = vmatprep.subr.mxu0 0.0
  %491 = vmatpush1.msra.mxu0 0.0
  %492 = vmatprep.subr.mxu0 0.0
  %493 = vmatpush1.msra.mxu0 0.0
  %494 = vmatprep.subr.mxu0 0.0
  %495 = vmatpush1.msra.mxu0 0.0
  %496 = vmatprep.subr.mxu0 0.0
  %497 = vmatpush1.msra.mxu0 0.0
  %498 = vmatprep.subr.mxu0 0.0
  %499 = vmatpush1.msra.mxu0 0.0
  %500 = vmatprep.mubr.f32.mxu0 0.0
  %501 = vmatmul.mubr.f32.gmra.mrb[0].mxu0 %v191
  %v502 = vpop.f32.mrb[0].mxu0
  %v503 = vadd.f32 %v433, %v502
  %v504 = vpop.f32.mrb[0].mxu0
  %505 = vdwg.mxu0
  %v506 = vadd.f32 %v503, %v93
  %v507 = vmax.f32 %v506, 0.0
  %v509 = vsel %vm189, %v507, 0
  %511 = vmatprep.subr.mxu0 0.0
  %512 = vmatpush1.msra.mxu0 %v95
  %513 = vmatprep.subr.mxu0 0.0
  %514 = vmatpush1.msra.mxu0 %v96
  %515 = vmatprep.subr.mxu0 0.0
  %516 = vmatpush1.msra.mxu0 %v97
  %517 = vmatprep.subr.mxu0 0.0
  %518 = vmatpush1.msra.mxu0 %v98
  %519 = vmatprep.subr.mxu0 0.0
  %520 = vmatpush1.msra.mxu0 0.0
  %521 = vmatprep.subr.mxu0 0.0
  %522 = vmatpush1.msra.mxu0 0.0
  %523 = vmatprep.subr.mxu0 0.0
  %524 = vmatpush1.msra.mxu0 0.0
  %525 = vmatprep.subr.mxu0 0.0
  %526 = vmatpush1.msra.mxu0 0.0
  %527 = vmatprep.subr.mxu0 0.0
  %528 = vmatpush1.msra.mxu0 0.0
  %529 = vmatprep.subr.mxu0 0.0
  %530 = vmatpush1.msra.mxu0 0.0
  %531 = vmatprep.subr.mxu0 0.0
  %532 = vmatpush1.msra.mxu0 0.0
  %533 = vmatprep.subr.mxu0 0.0
  %534 = vmatpush1.msra.mxu0 0.0
  %535 = vmatprep.subr.mxu0 0.0
  %536 = vmatpush1.msra.mxu0 0.0
  %537 = vmatprep.subr.mxu0 0.0
  %538 = vmatpush1.msra.mxu0 0.0
  %539 = vmatprep.subr.mxu0 0.0
  %540 = vmatpush1.msra.mxu0 0.0
  %541 = vmatprep.subr.mxu0 0.0
  %542 = vmatpush1.msra.mxu0 0.0
  %543 = vmatprep.subr.mxu0 0.0
  %544 = vmatpush1.msra.mxu0 0.0
  %545 = vmatprep.subr.mxu0 0.0
  %546 = vmatpush1.msra.mxu0 0.0
  %547 = vmatprep.subr.mxu0 0.0
  %548 = vmatpush1.msra.mxu0 0.0
  %549 = vmatprep.subr.mxu0 0.0
  %550 = vmatpush1.msra.mxu0 0.0
  %551 = vmatprep.subr.mxu0 0.0
  %552 = vmatpush1.msra.mxu0 0.0
  %553 = vmatprep.subr.mxu0 0.0
  %554 = vmatpush1.msra.mxu0 0.0
  %555 = vmatprep.subr.mxu0 0.0
  %556 = vmatpush1.msra.mxu0 0.0
  %557 = vmatprep.subr.mxu0 0.0
  %558 = vmatpush1.msra.mxu0 0.0
  %559 = vmatprep.subr.mxu0 0.0
  %560 = vmatpush1.msra.mxu0 0.0
  %561 = vmatprep.subr.mxu0 0.0
  %562 = vmatpush1.msra.mxu0 0.0
  %563 = vmatprep.subr.mxu0 0.0
  %564 = vmatpush1.msra.mxu0 0.0
  %565 = vmatprep.subr.mxu0 0.0
  %566 = vmatpush1.msra.mxu0 0.0
  %567 = vmatprep.subr.mxu0 0.0
  %568 = vmatpush1.msra.mxu0 0.0
  %569 = vmatprep.subr.mxu0 0.0
  %570 = vmatpush1.msra.mxu0 0.0
  %571 = vmatprep.subr.mxu0 0.0
  %572 = vmatpush1.msra.mxu0 0.0
  %573 = vmatprep.subr.mxu0 0.0
  %574 = vmatpush1.msra.mxu0 0.0
  %575 = vmatprep.mubr.f32.mxu0 0.0
  %576 = vmatmul.mubr.f32.gmra.mrb[0].mxu0 %v509
  %v577 = vpop.f32.mrb[0].mxu0
  %v578 = vadd.f32 %v104, %v577
  %v579 = vpop.f32.mrb[0].mxu0
  %580 = vdwg.mxu0
  %vm581 = vcmask 523264
  %v582 = vsel %vm581, %v578, -inf
  %583 = vmax.xlane.f32.xlu0 %v582
  %v584 = vpop.xlane.xlu0 %583
  %v585 = vsub.f32 %v578, %v584
  %v586 = vmul.f32 %v585, 1.442695
  %v587 = vpow.pop %v586
  %v588 = vsel %vm581, %v587, 0.0
  %589 = vadd.xlane.f32.xlu0 %v588
  %v590 = vpop.xlane.xlu0 %589
  %v591 = vrcp.pop %v590
  %v592 = vmul.f32 %v587, %v591
  %v593 = vmul.f32 %v592, 0.0
  %v594 = vmul.f32 %v592, %v354
  %596 = vrot.lane.b32.xlu0 %v594, 96
  %v597 = vpop.permute.xlu0 %596
  %v598 = vsel %vm189, %v597, 0
  %600 = vmatprep.subr.mxu0 0.0
  %601 = vmatpush1.msra.mxu0 %v110
  %602 = vmatprep.subr.mxu0 0.0
  %603 = vmatpush1.msra.mxu0 %v111
  %604 = vmatprep.subr.mxu0 0.0
  %605 = vmatpush1.msra.mxu0 %v112
  %606 = vmatprep.subr.mxu0 0.0
  %607 = vmatpush1.msra.mxu0 %v113
  %608 = vmatprep.subr.mxu0 0.0
  %609 = vmatpush1.msra.mxu0 0.0
  %610 = vmatprep.subr.mxu0 0.0
  %611 = vmatpush1.msra.mxu0 0.0
  %612 = vmatprep.subr.mxu0 0.0
  %613 = vmatpush1.msra.mxu0 0.0
  %614 = vmatprep.subr.mxu0 0.0
  %615 = vmatpush1.msra.mxu0 0.0
  %616 = vmatprep.subr.mxu0 0.0
  %617 = vmatpush1.msra.mxu0 0.0
  %618 = vmatprep.subr.mxu0 0.0
  %619 = vmatpush1.msra.mxu0 0.0
  %620 = vmatprep.subr.mxu0 0.0
  %621 = vmatpush1.msra.mxu0 0.0
  %622 = vmatprep.subr.mxu0 0.0
  %623 = vmatpush1.msra.mxu0 0.0
  %624 = vmatprep.subr.mxu0 0.0
  %625 = vmatpush1.msra.mxu0 0.0
  %626 = vmatprep.subr.mxu0 0.0
  %627 = vmatpush1.msra.mxu0 0.0
  %628 = vmatprep.subr.mxu0 0.0
  %629 = vmatpush1.msra.mxu0 0.0
  %630 = vmatprep.subr.mxu0 0.0
  %631 = vmatpush1.msra.mxu0 0.0
  %632 = vmatprep.subr.mxu0 0.0
  %633 = vmatpush1.msra.mxu0 0.0
  %634 = vmatprep.subr.mxu0 0.0
  %635 = vmatpush1.msra.mxu0 0.0
  %636 = vmatprep.subr.mxu0 0.0
  %637 = vmatpush1.msra.mxu0 0.0
  %638 = vmatprep.subr.mxu0 0.0
  %639 = vmatpush1.msra.mxu0 0.0
  %640 = vmatprep.subr.mxu0 0.0
  %641 = vmatpush1.msra.mxu0 0.0
  %642 = vmatprep.subr.mxu0 0.0
  %643 = vmatpush1.msra.mxu0 0.0
  %644 = vmatprep.subr.mxu0 0.0
  %645 = vmatpush1.msra.mxu0 0.0
  %646 = vmatprep.subr.mxu0 0.0
  %647 = vmatpush1.msra.mxu0 0.0
  %648 = vmatprep.subr.mxu0 0.0
  %649 = vmatpush1.msra.mxu0 0.0
  %650 = vmatprep.subr.mxu0 0.0
  %651 = vmatpush1.msra.mxu0 0.0
  %652 = vmatprep.subr.mxu0 0.0
  %653 = vmatpush1.msra.mxu0 0.0
  %654 = vmatprep.subr.mxu0 0.0
  %655 = vmatpush1.msra.mxu0 0.0
  %656 = vmatprep.subr.mxu0 0.0
  %657 = vmatpush1.msra.mxu0 0.0
  %658 = vmatprep.subr.mxu0 0.0
  %659 = vmatpush1.msra.mxu0 0.0
  %660 = vmatprep.subr.mxu0 0.0
  %661 = vmatpush1.msra.mxu0 0.0
  %662 = vmatprep.subr.mxu0 0.0
  %663 = vmatpush1.msra.mxu0 0.0
  %664 = vmatprep.mubr.f32.mxu0 0.0
  %665 = vmatmul.mubr.f32.gmra.mrb[0].mxu0 %v598
  %v666 = vpop.f32.mrb[0].mxu0
  %v667 = vadd.f32 0.0, %v666
  %v668 = vpop.f32.mrb[0].mxu0
  %669 = vdwg.mxu0
  %v671 = vsel %vm189, %v593, 0
  %673 = vmatprep.subr.mxu0 0.0
  %674 = vmatpush1.msra.mxu0 %v106
  %675 = vmatprep.subr.mxu0 0.0
  %676 = vmatpush1.msra.mxu0 %v107
  %677 = vmatprep.subr.mxu0 0.0
  %678 = vmatpush1.msra.mxu0 %v108
  %679 = vmatprep.subr.mxu0 0.0
  %680 = vmatpush1.msra.mxu0 %v109
  %681 = vmatprep.subr.mxu0 0.0
  %682 = vmatpush1.msra.mxu0 0.0
  %683 = vmatprep.subr.mxu0 0.0
  %684 = vmatpush1.msra.mxu0 0.0
  %685 = vmatprep.subr.mxu0 0.0
  %686 = vmatpush1.msra.mxu0 0.0
  %687 = vmatprep.subr.mxu0 0.0
  %688 = vmatpush1.msra.mxu0 0.0
  %689 = vmatprep.subr.mxu0 0.0
  %690 = vmatpush1.msra.mxu0 0.0
  %691 = vmatprep.subr.mxu0 0.0
  %692 = vmatpush1.msra.mxu0 0.0
  %693 = vmatprep.subr.mxu0 0.0
  %694 = vmatpush1.msra.mxu0 0.0
  %695 = vmatprep.subr.mxu0 0.0
  %696 = vmatpush1.msra.mxu0 0.0
  %697 = vmatprep.subr.mxu0 0.0
  %698 = vmatpush1.msra.mxu0 0.0
  %699 = vmatprep.subr.mxu0 0.0
  %700 = vmatpush1.msra.mxu0 0.0
  %701 = vmatprep.subr.mxu0 0.0
  %702 = vmatpush1.msra.mxu0 0.0
  %703 = vmatprep.subr.mxu0 0.0
  %704 = vmatpush1.msra.mxu0 0.0
  %705 = vmatprep.subr.mxu0 0.0
  %706 = vmatpush1.msra.mxu0 0.0
  %707 = vmatprep.subr.mxu0 0.0
  %708 = vmatpush1.msra.mxu0 0.0
  %709 = vmatprep.subr.mxu0 0.0
  %710 = vmatpush1.msra.mxu0 0.0
  %711 = vmatprep.subr.mxu0 0.0
  %712 = vmatpush1.msra.mxu0 0.0
  %713 = vmatprep.subr.mxu0 0.0
  %714 = vmatpush1.msra.mxu0 0.0
  %715 = vmatprep.subr.mxu0 0.0
  %716 = vmatpush1.msra.mxu0 0.0
  %717 = vmatprep.subr.mxu0 0.0
  %718 = vmatpush1.msra.mxu0 0.0
  %719 = vmatprep.subr.mxu0 0.0
  %720 = vmatpush1.msra.mxu0 0.0
  %721 = vmatprep.subr.mxu0 0.0
  %722 = vmatpush1.msra.mxu0 0.0
  %723 = vmatprep.subr.mxu0 0.0
  %724 = vmatpush1.msra.mxu0 0.0
  %725 = vmatprep.subr.mxu0 0.0
  %726 = vmatpush1.msra.mxu0 0.0
  %727 = vmatprep.subr.mxu0 0.0
  %728 = vmatpush1.msra.mxu0 0.0
  %729 = vmatprep.subr.mxu0 0.0
  %730 = vmatpush1.msra.mxu0 0.0
  %731 = vmatprep.subr.mxu0 0.0
  %732 = vmatpush1.msra.mxu0 0.0
  %733 = vmatprep.subr.mxu0 0.0
  %734 = vmatpush1.msra.mxu0 0.0
  %735 = vmatprep.subr.mxu0 0.0
  %736 = vmatpush1.msra.mxu0 0.0
  %737 = vmatprep.mubr.f32.mxu0 0.0
  %738 = vmatmul.mubr.f32.gmra.mrb[0].mxu0 %v671
  %v739 = vpop.f32.mrb[0].mxu0
  %v740 = vadd.f32 %v667, %v739
  %v741 = vpop.f32.mrb[0].mxu0
  %742 = vdwg.mxu0
  %v743 = vadd.f32 %v740, %v119
  %v744 = vmax.f32 %v743, 0.0
  %v746 = vsel %vm189, %v744, 0
  %748 = vmatprep.subr.mxu0 0.0
  %749 = vmatpush1.msra.mxu0 %v121
  %750 = vmatprep.subr.mxu0 0.0
  %751 = vmatpush1.msra.mxu0 %v122
  %752 = vmatprep.subr.mxu0 0.0
  %753 = vmatpush1.msra.mxu0 %v123
  %754 = vmatprep.subr.mxu0 0.0
  %755 = vmatpush1.msra.mxu0 %v124
  %756 = vmatprep.subr.mxu0 0.0
  %757 = vmatpush1.msra.mxu0 0.0
  %758 = vmatprep.subr.mxu0 0.0
  %759 = vmatpush1.msra.mxu0 0.0
  %760 = vmatprep.subr.mxu0 0.0
  %761 = vmatpush1.msra.mxu0 0.0
  %762 = vmatprep.subr.mxu0 0.0
  %763 = vmatpush1.msra.mxu0 0.0
  %764 = vmatprep.subr.mxu0 0.0
  %765 = vmatpush1.msra.mxu0 0.0
  %766 = vmatprep.subr.mxu0 0.0
  %767 = vmatpush1.msra.mxu0 0.0
  %768 = vmatprep.subr.mxu0 0.0
  %769 = vmatpush1.msra.mxu0 0.0
  %770 = vmatprep.subr.mxu0 0.0
  %771 = vmatpush1.msra.mxu0 0.0
  %772 = vmatprep.subr.mxu0 0.0
  %773 = vmatpush1.msra.mxu0 0.0
  %774 = vmatprep.subr.mxu0 0.0
  %775 = vmatpush1.msra.mxu0 0.0
  %776 = vmatprep.subr.mxu0 0.0
  %777 = vmatpush1.msra.mxu0 0.0
  %778 = vmatprep.subr.mxu0 0.0
  %779 = vmatpush1.msra.mxu0 0.0
  %780 = vmatprep.subr.mxu0 0.0
  %781 = vmatpush1.msra.mxu0 0.0
  %782 = vmatprep.subr.mxu0 0.0
  %783 = vmatpush1.msra.mxu0 0.0
  %784 = vmatprep.subr.mxu0 0.0
  %785 = vmatpush1.msra.mxu0 0.0
  %786 = vmatprep.subr.mxu0 0.0
  %787 = vmatpush1.msra.mxu0 0.0
  %788 = vmatprep.subr.mxu0 0.0
  %789 = vmatpush1.msra.mxu0 0.0
  %790 = vmatprep.subr.mxu0 0.0
  %791 = vmatpush1.msra.mxu0 0.0
  %792 = vmatprep.subr.mxu0 0.0
  %793 = vmatpush1.msra.mxu0 0.0
  %794 = vmatprep.subr.mxu0 0.0
  %795 = vmatpush1.msra.mxu0 0.0
  %796 = vmatprep.subr.mxu0 0.0
  %797 = vmatpush1.msra.mxu0 0.0
  %798 = vmatprep.subr.mxu0 0.0
  %799 = vmatpush1.msra.mxu0 0.0
  %800 = vmatprep.subr.mxu0 0.0
  %801 = vmatpush1.msra.mxu0 0.0
  %802 = vmatprep.subr.mxu0 0.0
  %803 = vmatpush1.msra.mxu0 0.0
  %804 = vmatprep.subr.mxu0 0.0
  %805 = vmatpush1.msra.mxu0 0.0
  %806 = vmatprep.subr.mxu0 0.0
  %807 = vmatpush1.msra.mxu0 0.0
  %808 = vmatprep.subr.mxu0 0.0
  %809 = vmatpush1.msra.mxu0 0.0
  %810 = vmatprep.subr.mxu0 0.0
  %811 = vmatpush1.msra.mxu0 0.0
  %812 = vmatprep.mubr.f32.mxu0 0.0
  %813 = vmatmul.mubr.f32.gmra.mrb[0].mxu0 %v746
  %v814 = vpop.f32.mrb[0].mxu0
  %v815 = vadd.f32 %v130, %v814
  %v816 = vpop.f32.mrb[0].mxu0
  %817 = vdwg.mxu0
  %v818 = vtanh.pop %v815
  %819 = vmatprep.subr.mxu0 0.0
  %820 = vmatpush1.msra.mxu0 %v136
  %821 = vmatprep.subr.mxu0 0.0
  %822 = vmatpush1.msra.mxu0 %v137
  %823 = vmatprep.subr.mxu0 0.0
  %824 = vmatpush1.msra.mxu0 %v138
  %825 = vmatprep.subr.mxu0 0.0
  %826 = vmatpush1.msra.mxu0 %v139
  %827 = vmatprep.subr.mxu0 0.0
  %828 = vmatpush1.msra.mxu0 0.0
  %829 = vmatprep.subr.mxu0 0.0
  %830 = vmatpush1.msra.mxu0 0.0
  %831 = vmatprep.subr.mxu0 0.0
  %832 = vmatpush1.msra.mxu0 0.0
  %833 = vmatprep.subr.mxu0 0.0
  %834 = vmatpush1.msra.mxu0 0.0
  %835 = vmatprep.subr.mxu0 0.0
  %836 = vmatpush1.msra.mxu0 0.0
  %837 = vmatprep.subr.mxu0 0.0
  %838 = vmatpush1.msra.mxu0 0.0
  %839 = vmatprep.subr.mxu0 0.0
  %840 = vmatpush1.msra.mxu0 0.0
  %841 = vmatprep.subr.mxu0 0.0
  %842 = vmatpush1.msra.mxu0 0.0
  %843 = vmatprep.subr.mxu0 0.0
  %844 = vmatpush1.msra.mxu0 0.0
  %845 = vmatprep.subr.mxu0 0.0
  %846 = vmatpush1.msra.mxu0 0.0
  %847 = vmatprep.subr.mxu0 0.0
  %848 = vmatpush1.msra.mxu0 0.0
  %849 = vmatprep.subr.mxu0 0.0
  %850 = vmatpush1.msra.mxu0 0.0
  %851 = vmatprep.subr.mxu0 0.0
  %852 = vmatpush1.msra.mxu0 0.0
  %853 = vmatprep.subr.mxu0 0.0
  %854 = vmatpush1.msra.mxu0 0.0
  %855 = vmatprep.subr.mxu0 0.0
  %856 = vmatpush1.msra.mxu0 0.0
  %857 = vmatprep.subr.mxu0 0.0
  %858 = vmatpush1.msra.mxu0 0.0
  %859 = vmatprep.subr.mxu0 0.0
  %860 = vmatpush1.msra.mxu0 0.0
  %861 = vmatprep.subr.mxu0 0.0
  %862 = vmatpush1.msra.mxu0 0.0
  %863 = vmatprep.subr.mxu0 0.0
  %864 = vmatpush1.msra.mxu0 0.0
  %865 = vmatprep.subr.mxu0 0.0
  %866 = vmatpush1.msra.mxu0 0.0
  %867 = vmatprep.subr.mxu0 0.0
  %868 = vmatpush1.msra.mxu0 0.0
  %869 = vmatprep.subr.mxu0 0.0
  %870 = vmatpush1.msra.mxu0 0.0
  %871 = vmatprep.subr.mxu0 0.0
  %872 = vmatpush1.msra.mxu0 0.0
  %873 = vmatprep.subr.mxu0 0.0
  %874 = vmatpush1.msra.mxu0 0.0
  %875 = vmatprep.subr.mxu0 0.0
  %876 = vmatpush1.msra.mxu0 0.0
  %877 = vmatprep.subr.mxu0 0.0
  %878 = vmatpush1.msra.mxu0 0.0
  %879 = vmatprep.subr.mxu0 0.0
  %880 = vmatpush1.msra.mxu0 0.0
  %881 = vmatprep.subr.mxu0 0.0
  %882 = vmatpush1.msra.mxu0 0.0
  %883 = vmatprep.mubr.f32.mxu0 0.0
  %884 = vmatmul.mubr.f32.gmra.mrb[0].mxu0 %v598
  %v885 = vpop.f32.mrb[0].mxu0
  %v886 = vadd.f32 0.0, %v885
  %v887 = vpop.f32.mrb[0].mxu0
  %888 = vdwg.mxu0
  %889 = vmatprep.subr.mxu0 0.0
  %890 = vmatpush1.msra.mxu0 %v132
  %891 = vmatprep.subr.mxu0 0.0
  %892 = vmatpush1.msra.mxu0 %v133
  %893 = vmatprep.subr.mxu0 0.0
  %894 = vmatpush1.msra.mxu0 %v134
  %895 = vmatprep.subr.mxu0 0.0
  %896 = vmatpush1.msra.mxu0 %v135
  %897 = vmatprep.subr.mxu0 0.0
  %898 = vmatpush1.msra.mxu0 0.0
  %899 = vmatprep.subr.mxu0 0.0
  %900 = vmatpush1.msra.mxu0 0.0
  %901 = vmatprep.subr.mxu0 0.0
  %902 = vmatpush1.msra.mxu0 0.0
  %903 = vmatprep.subr.mxu0 0.0
  %904 = vmatpush1.msra.mxu0 0.0
  %905 = vmatprep.subr.mxu0 0.0
  %906 = vmatpush1.msra.mxu0 0.0
  %907 = vmatprep.subr.mxu0 0.0
  %908 = vmatpush1.msra.mxu0 0.0
  %909 = vmatprep.subr.mxu0 0.0
  %910 = vmatpush1.msra.mxu0 0.0
  %911 = vmatprep.subr.mxu0 0.0
  %912 = vmatpush1.msra.mxu0 0.0
  %913 = vmatprep.subr.mxu0 0.0
  %914 = vmatpush1.msra.mxu0 0.0
  %915 = vmatprep.subr.mxu0 0.0
  %916 = vmatpush1.msra.mxu0 0.0
  %917 = vmatprep.subr.mxu0 0.0
  %918 = vmatpush1.msra.mxu0 0.0
  %919 = vmatprep.subr.mxu0 0.0
  %920 = vmatpush1.msra.mxu0 0.0
  %921 = vmatprep.subr.mxu0 0.0
  %922 = vmatpush1.msra.mxu0 0.0
  %923 = vmatprep.subr.mxu0 0.0
  %924 = vmatpush1.msra.mxu0 0.0
  %925 = vmatprep.subr.mxu0 0.0
  %926 = vmatpush1.msra.mxu0 0.0
  %927 = vmatprep.subr.mxu0 0.0
  %928 = vmatpush1.msra.mxu0 0.0
  %929 = vmatprep.subr.mxu0 0.0
  %930 = vmatpush1.msra.mxu0 0.0
  %931 = vmatprep.subr.mxu0 0.0
  %932 = vmatpush1.msra.mxu0 0.0
  %933 = vmatprep.subr.mxu0 0.0
  %934 = vmatpush1.msra.mxu0 0.0
  %935 = vmatprep.subr.mxu0 0.0
  %936 = vmatpush1.msra.mxu0 0.0
  %937 = vmatprep.subr.mxu0 0.0
  %938 = vmatpush1.msra.mxu0 0.0
  %939 = vmatprep.subr.mxu0 0.0
  %940 = vmatpush1.msra.mxu0 0.0
  %941 = vmatprep.subr.mxu0 0.0
  %942 = vmatpush1.msra.mxu0 0.0
  %943 = vmatprep.subr.mxu0 0.0
  %944 = vmatpush1.msra.mxu0 0.0
  %945 = vmatprep.subr.mxu0 0.0
  %946 = vmatpush1.msra.mxu0 0.0
  %947 = vmatprep.subr.mxu0 0.0
  %948 = vmatpush1.msra.mxu0 0.0
  %949 = vmatprep.subr.mxu0 0.0
  %950 = vmatpush1.msra.mxu0 0.0
  %951 = vmatprep.subr.mxu0 0.0
  %952 = vmatpush1.msra.mxu0 0.0
  %953 = vmatprep.mubr.f32.mxu0 0.0
  %954 = vmatmul.mubr.f32.gmra.mrb[0].mxu0 %v671
  %v955 = vpop.f32.mrb[0].mxu0
  %v956 = vadd.f32 %v886, %v955
  %v957 = vpop.f32.mrb[0].mxu0
  %958 = vdwg.mxu0
  %vm959 = vcmask 130048
  %v960 = vsel %vm959, 0.0, 0
  %962 = vmatprep.subr.mxu0 0.0
  %963 = vmatpush1.msra.mxu0 %v140
  %964 = vmatprep.subr.mxu0 0.0
  %965 = vmatpush1.msra.mxu0 %v141
  %966 = vmatprep.subr.mxu0 0.0
  %967 = vmatpush1.msra.mxu0 0.0
  %968 = vmatprep.subr.mxu0 0.0
  %969 = vmatpush1.msra.mxu0 0.0
  %970 = vmatprep.subr.mxu0 0.0
  %971 = vmatpush1.msra.mxu0 0.0
  %972 = vmatprep.subr.mxu0 0.0
  %973 = vmatpush1.msra.mxu0 0.0
  %974 = vmatprep.subr.mxu0 0.0
  %975 = vmatpush1.msra.mxu0 0.0
  %976 = vmatprep.subr.mxu0 0.0
  %977 = vmatpush1.msra.mxu0 0.0
  %978 = vmatprep.subr.mxu0 0.0
  %979 = vmatpush1.msra.mxu0 0.0
  %980 = vmatprep.subr.mxu0 0.0
  %981 = vmatpush1.msra.mxu0 0.0
  %982 = vmatprep.subr.mxu0 0.0
  %983 = vmatpush1.msra.mxu0 0.0
  %984 = vmatprep.subr.mxu0 0.0
  %985 = vmatpush1.msra.mxu0 0.0
  %986 = vmatprep.subr.mxu0 0.0
  %987 = vmatpush1.msra.mxu0 0.0
  %988 = vmatprep.subr.mxu0 0.0
  %989 = vmatpush1.msra.mxu0 0.0
  %990 = vmatprep.subr.mxu0 0.0
  %991 = vmatpush1.msra.mxu0 0.0
  %992 = vmatprep.subr.mxu0 0.0
  %993 = vmatpush1.msra.mxu0 0.0
  %994 = vmatprep.subr.mxu0 0.0
  %995 = vmatpush1.msra.mxu0 0.0
  %996 = vmatprep.subr.mxu0 0.0
  %997 = vmatpush1.msra.mxu0 0.0
  %998 = vmatprep.subr.mxu0 0.0
  %999 = vmatpush1.msra.mxu0 0.0
  %1000 = vmatprep.subr.mxu0 0.0
  %1001 = vmatpush1.msra.mxu0 0.0
  %1002 = vmatprep.subr.mxu0 0.0
  %1003 = vmatpush1.msra.mxu0 0.0
  %1004 = vmatprep.subr.mxu0 0.0
  %1005 = vmatpush1.msra.mxu0 0.0
  %1006 = vmatprep.subr.mxu0 0.0
  %1007 = vmatpush1.msra.mxu0 0.0
  %1008 = vmatprep.subr.mxu0 0.0
  %1009 = vmatpush1.msra.mxu0 0.0
  %1010 = vmatprep.subr.mxu0 0.0
  %1011 = vmatpush1.msra.mxu0 0.0
  %1012 = vmatprep.subr.mxu0 0.0
  %1013 = vmatpush1.msra.mxu0 0.0
  %1014 = vmatprep.subr.mxu0 0.0
  %1015 = vmatpush1.msra.mxu0 0.0
  %1016 = vmatprep.subr.mxu0 0.0
  %1017 = vmatpush1.msra.mxu0 0.0
  %1018 = vmatprep.subr.mxu0 0.0
  %1019 = vmatpush1.msra.mxu0 0.0
  %1020 = vmatprep.subr.mxu0 0.0
  %1021 = vmatpush1.msra.mxu0 0.0
  %1022 = vmatprep.subr.mxu0 0.0
  %1023 = vmatpush1.msra.mxu0 0.0
  %1024 = vmatprep.subr.mxu0 0.0
  %1025 = vmatpush1.msra.mxu0 0.0
  %1026 = vmatprep.mubr.f32.mxu0 0.0
  %1027 = vmatmul.mubr.f32.gmra.mrb[0].mxu0 %v960
  %v1028 = vpop.f32.mrb[0].mxu0
  %v1029 = vadd.f32 0.0, %v1028
  %v1030 = vpop.f32.mrb[0].mxu0
  %1031 = vdwg.mxu0
  %v1032 = vadd.f32 %v956, %v1029
  %v1033 = vadd.f32 %v1032, %v147
  %v1034 = vmax.f32 %v1033, 0.0
  %v1036 = vsel %vm581, %v1034, 0
  %1038 = vmatprep.subr.mxu0 0.0
  %1039 = vmatpush1.msra.mxu0 %v149
  %1040 = vmatprep.subr.mxu0 0.0
  %1041 = vmatpush1.msra.mxu0 %v150
  %1042 = vmatprep.subr.mxu0 0.0
  %1043 = vmatpush1.msra.mxu0 %v151
  %1044 = vmatprep.subr.mxu0 0.0
  %1045 = vmatpush1.msra.mxu0 %v152
  %1046 = vmatprep.subr.mxu0 0.0
  %1047 = vmatpush1.msra.mxu0 %v153
  %1048 = vmatprep.subr.mxu0 0.0
  %1049 = vmatpush1.msra.mxu0 %v154
  %1050 = vmatprep.subr.mxu0 0.0
  %1051 = vmatpush1.msra.mxu0 %v155
  %1052 = vmatprep.subr.mxu0 0.0
  %1053 = vmatpush1.msra.mxu0 %v156
  %1054 = vmatprep.subr.mxu0 0.0
  %1055 = vmatpush1.msra.mxu0 0.0
  %1056 = vmatprep.subr.mxu0 0.0
  %1057 = vmatpush1.msra.mxu0 0.0
  %1058 = vmatprep.subr.mxu0 0.0
  %1059 = vmatpush1.msra.mxu0 0.0
  %1060 = vmatprep.subr.mxu0 0.0
  %1061 = vmatpush1.msra.mxu0 0.0
  %1062 = vmatprep.subr.mxu0 0.0
  %1063 = vmatpush1.msra.mxu0 0.0
  %1064 = vmatprep.subr.mxu0 0.0
  %1065 = vmatpush1.msra.mxu0 0.0
  %1066 = vmatprep.subr.mxu0 0.0
  %1067 = vmatpush1.msra.mxu0 0.0
  %1068 = vmatprep.subr.mxu0 0.0
  %1069 = vmatpush1.msra.mxu0 0.0
  %1070 = vmatprep.subr.mxu0 0.0
  %1071 = vmatpush1.msra.mxu0 0.0
  %1072 = vmatprep.subr.mxu0 0.0
  %1073 = vmatpush1.msra.mxu0 0.0
  %1074 = vmatprep.subr.mxu0 0.0
  %1075 = vmatpush1.msra.mxu0 0.0
  %1076 = vmatprep.subr.mxu0 0.0
  %1077 = vmatpush1.msra.mxu0 0.0
  %1078 = vmatprep.subr.mxu0 0.0
  %1079 = vmatpush1.msra.mxu0 0.0
  %1080 = vmatprep.subr.mxu0 0.0
  %1081 = vmatpush1.msra.mxu0 0.0
  %1082 = vmatprep.subr.mxu0 0.0
  %1083 = vmatpush1.msra.mxu0 0.0
  %1084 = vmatprep.subr.mxu0 0.0
  %1085 = vmatpush1.msra.mxu0 0.0
  %1086 = vmatprep.subr.mxu0 0.0
  %1087 = vmatpush1.msra.mxu0 0.0
  %1088 = vmatprep.subr.mxu0 0.0
  %1089 = vmatpush1.msra.mxu0 0.0
  %1090 = vmatprep.subr.mxu0 0.0
  %1091 = vmatpush1.msra.mxu0 0.0
  %1092 = vmatprep.subr.mxu0 0.0
  %1093 = vmatpush1.msra.mxu0 0.0
  %1094 = vmatprep.subr.mxu0 0.0
  %1095 = vmatpush1.msra.mxu0 0.0
  %1096 = vmatprep.subr.mxu0 0.0
  %1097 = vmatpush1.msra.mxu0 0.0
  %1098 = vmatprep.subr.mxu0 0.0
  %1099 = vmatpush1.msra.mxu0 0.0
  %1100 = vmatprep.subr.mxu0 0.0
  %1101 = vmatpush1.msra.mxu0 0.0
  %1102 = vmatprep.mubr.f32.mxu0 0.0
  %1103 = vmatmul.mubr.f32.gmra.mrb[0].mxu0 %v1036
  %v1104 = vpop.f32.mrb[0].mxu0
  %v1105 = vadd.f32 %v162, %v1104
  %v1106 = vpop.f32.mrb[0].mxu0
  %1107 = vdwg.mxu0
  %v1108 = vxor.u32 %v1105, 2147483648
  %v1109 = vmul.f32 %v1108, 1.442695
  %v1110 = vpow.pop %v1109
  %v1111 = vadd.f32 %v1110, 1.0
  %v1112 = vrcp.pop %v1111
  %v1113 = vmul.f32 1.0, %v1112
  %v1114 = vmul.f32 %v1113, 0.0
  %1116 = vrot.lane.b32.xlu0 %v818, 16
  %v1117 = vpop.permute.xlu0 %1116
  %v1119 = vmul.f32 %v1113, %v1117
  %1121 = vrot.lane.b32.xlu0 %v1119, 112
  %v1122 = vpop.permute.xlu0 %1121
  %v1124 = vadd.f32 %v1114, %v1122
  %v1126 = vsel %vm959, %v1124, 0
  %1128 = vmatprep.subr.mxu0 0.0
  %1129 = vmatpush1.msra.mxu0 %v168
  %1130 = vmatprep.subr.mxu0 0.0
  %1131 = vmatpush1.msra.mxu0 %v169
  %1132 = vmatprep.subr.mxu0 0.0
  %1133 = vmatpush1.msra.mxu0 0.0
  %1134 = vmatprep.subr.mxu0 0.0
  %1135 = vmatpush1.msra.mxu0 0.0
  %1136 = vmatprep.subr.mxu0 0.0
  %1137 = vmatpush1.msra.mxu0 0.0
  %1138 = vmatprep.subr.mxu0 0.0
  %1139 = vmatpush1.msra.mxu0 0.0
  %1140 = vmatprep.subr.mxu0 0.0
  %1141 = vmatpush1.msra.mxu0 0.0
  %1142 = vmatprep.subr.mxu0 0.0
  %1143 = vmatpush1.msra.mxu0 0.0
  %1144 = vmatprep.subr.mxu0 0.0
  %1145 = vmatpush1.msra.mxu0 0.0
  %1146 = vmatprep.subr.mxu0 0.0
  %1147 = vmatpush1.msra.mxu0 0.0
  %1148 = vmatprep.subr.mxu0 0.0
  %1149 = vmatpush1.msra.mxu0 0.0
  %1150 = vmatprep.subr.mxu0 0.0
  %1151 = vmatpush1.msra.mxu0 0.0
  %1152 = vmatprep.subr.mxu0 0.0
  %1153 = vmatpush1.msra.mxu0 0.0
  %1154 = vmatprep.subr.mxu0 0.0
  %1155 = vmatpush1.msra.mxu0 0.0
  %1156 = vmatprep.subr.mxu0 0.0
  %1157 = vmatpush1.msra.mxu0 0.0
  %1158 = vmatprep.subr.mxu0 0.0
  %1159 = vmatpush1.msra.mxu0 0.0
  %1160 = vmatprep.subr.mxu0 0.0
  %1161 = vmatpush1.msra.mxu0 0.0
  %1162 = vmatprep.subr.mxu0 0.0
  %1163 = vmatpush1.msra.mxu0 0.0
  %1164 = vmatprep.subr.mxu0 0.0
  %1165 = vmatpush1.msra.mxu0 0.0
  %1166 = vmatprep.subr.mxu0 0.0
  %1167 = vmatpush1.msra.mxu0 0.0
  %1168 = vmatprep.subr.mxu0 0.0
  %1169 = vmatpush1.msra.mxu0 0.0
  %1170 = vmatprep.subr.mxu0 0.0
  %1171 = vmatpush1.msra.mxu0 0.0
  %1172 = vmatprep.subr.mxu0 0.0
  %1173 = vmatpush1.msra.mxu0 0.0
  %1174 = vmatprep.subr.mxu0 0.0
  %1175 = vmatpush1.msra.mxu0 0.0
  %1176 = vmatprep.subr.mxu0 0.0
  %1177 = vmatpush1.msra.mxu0 0.0
  %1178 = vmatprep.subr.mxu0 0.0
  %1179 = vmatpush1.msra.mxu0 0.0
  %1180 = vmatprep.subr.mxu0 0.0
  %1181 = vmatpush1.msra.mxu0 0.0
  %1182 = vmatprep.subr.mxu0 0.0
  %1183 = vmatpush1.msra.mxu0 0.0
  %1184 = vmatprep.subr.mxu0 0.0
  %1185 = vmatpush1.msra.mxu0 0.0
  %1186 = vmatprep.subr.mxu0 0.0
  %1187 = vmatpush1.msra.mxu0 0.0
  %1188 = vmatprep.subr.mxu0 0.0
  %1189 = vmatpush1.msra.mxu0 0.0
  %1190 = vmatprep.subr.mxu0 0.0
  %1191 = vmatpush1.msra.mxu0 0.0
  %1192 = vmatprep.mubr.f32.mxu0 0.0
  %1193 = vmatmul.mubr.f32.gmra.mrb[0].mxu0 %v1126
  %v1194 = vpop.f32.mrb[0].mxu0
  %v1195 = vadd.f32 0.0, %v1194
  %v1196 = vpop.f32.mrb[0].mxu0
  %1197 = vdwg.mxu0
  %1199 = vrot.lane.b32.xlu0 %v360, 32
  %v1200 = vpop.permute.xlu0 %1199
  %v1201 = vsel %vm189, %v1200, 0
  %1203 = vmatprep.subr.mxu0 0.0
  %1204 = vmatpush1.msra.mxu0 %v164
  %1205 = vmatprep.subr.mxu0 0.0
  %1206 = vmatpush1.msra.mxu0 %v165
  %1207 = vmatprep.subr.mxu0 0.0
  %1208 = vmatpush1.msra.mxu0 %v166
  %1209 = vmatprep.subr.mxu0 0.0
  %1210 = vmatpush1.msra.mxu0 %v167
  %1211 = vmatprep.subr.mxu0 0.0
  %1212 = vmatpush1.msra.mxu0 0.0
  %1213 = vmatprep.subr.mxu0 0.0
  %1214 = vmatpush1.msra.mxu0 0.0
  %1215 = vmatprep.subr.mxu0 0.0
  %1216 = vmatpush1.msra.mxu0 0.0
  %1217 = vmatprep.subr.mxu0 0.0
  %1218 = vmatpush1.msra.mxu0 0.0
  %1219 = vmatprep.subr.mxu0 0.0
  %1220 = vmatpush1.msra.mxu0 0.0
  %1221 = vmatprep.subr.mxu0 0.0
  %1222 = vmatpush1.msra.mxu0 0.0
  %1223 = vmatprep.subr.mxu0 0.0
  %1224 = vmatpush1.msra.mxu0 0.0
  %1225 = vmatprep.subr.mxu0 0.0
  %1226 = vmatpush1.msra.mxu0 0.0
  %1227 = vmatprep.subr.mxu0 0.0
  %1228 = vmatpush1.msra.mxu0 0.0
  %1229 = vmatprep.subr.mxu0 0.0
  %1230 = vmatpush1.msra.mxu0 0.0
  %1231 = vmatprep.subr.mxu0 0.0
  %1232 = vmatpush1.msra.mxu0 0.0
  %1233 = vmatprep.subr.mxu0 0.0
  %1234 = vmatpush1.msra.mxu0 0.0
  %1235 = vmatprep.subr.mxu0 0.0
  %1236 = vmatpush1.msra.mxu0 0.0
  %1237 = vmatprep.subr.mxu0 0.0
  %1238 = vmatpush1.msra.mxu0 0.0
  %1239 = vmatprep.subr.mxu0 0.0
  %1240 = vmatpush1.msra.mxu0 0.0
  %1241 = vmatprep.subr.mxu0 0.0
  %1242 = vmatpush1.msra.mxu0 0.0
  %1243 = vmatprep.subr.mxu0 0.0
  %1244 = vmatpush1.msra.mxu0 0.0
  %1245 = vmatprep.subr.mxu0 0.0
  %1246 = vmatpush1.msra.mxu0 0.0
  %1247 = vmatprep.subr.mxu0 0.0
  %1248 = vmatpush1.msra.mxu0 0.0
  %1249 = vmatprep.subr.mxu0 0.0
  %1250 = vmatpush1.msra.mxu0 0.0
  %1251 = vmatprep.subr.mxu0 0.0
  %1252 = vmatpush1.msra.mxu0 0.0
  %1253 = vmatprep.subr.mxu0 0.0
  %1254 = vmatpush1.msra.mxu0 0.0
  %1255 = vmatprep.subr.mxu0 0.0
  %1256 = vmatpush1.msra.mxu0 0.0
  %1257 = vmatprep.subr.mxu0 0.0
  %1258 = vmatpush1.msra.mxu0 0.0
  %1259 = vmatprep.subr.mxu0 0.0
  %1260 = vmatpush1.msra.mxu0 0.0
  %1261 = vmatprep.subr.mxu0 0.0
  %1262 = vmatpush1.msra.mxu0 0.0
  %1263 = vmatprep.subr.mxu0 0.0
  %1264 = vmatpush1.msra.mxu0 0.0
  %1265 = vmatprep.subr.mxu0 0.0
  %1266 = vmatpush1.msra.mxu0 0.0
  %1267 = vmatprep.mubr.f32.mxu0 0.0
  %1268 = vmatmul.mubr.f32.gmra.mrb[0].mxu0 %v1201
  %v1269 = vpop.f32.mrb[0].mxu0
  %v1270 = vadd.f32 %v1195, %v1269
  %v1271 = vpop.f32.mrb[0].mxu0
  %1272 = vdwg.mxu0
  %v1273 = vadd.f32 %v1270, %v175
  %v1274 = vmax.f32 %v1273, 0.0
  %v1276 = vsel %vm189, %v1274, 0
  %1278 = vmatprep.subr.mxu0 0.0
  %1279 = vmatpush1.msra.mxu0 %v177
  %1280 = vmatprep.subr.mxu0 0.0
  %1281 = vmatpush1.msra.mxu0 %v178
  %1282 = vmatprep.subr.mxu0 0.0
  %1283 = vmatpush1.msra.mxu0 %v179
  %1284 = vmatprep.subr.mxu0 0.0
  %1285 = vmatpush1.msra.mxu0 %v180
  %1286 = vmatprep.subr.mxu0 0.0
  %1287 = vmatpush1.msra.mxu0 0.0
  %1288 = vmatprep.subr.mxu0 0.0
  %1289 = vmatpush1.msra.mxu0 0.0
  %1290 = vmatprep.subr.mxu0 0.0
  %1291 = vmatpush1.msra.mxu0 0.0
  %1292 = vmatprep.subr.mxu0 0.0
  %1293 = vmatpush1.msra.mxu0 0.0
  %1294 = vmatprep.subr.mxu0 0.0
  %1295 = vmatpush1.msra.mxu0 0.0
  %1296 = vmatprep.subr.mxu0 0.0
  %1297 = vmatpush1.msra.mxu0 0.0
  %1298 = vmatprep.subr.mxu0 0.0
  %1299 = vmatpush1.msra.mxu0 0.0
  %1300 = vmatprep.subr.mxu0 0.0
  %1301 = vmatpush1.msra.mxu0 0.0
  %1302 = vmatprep.subr.mxu0 0.0
  %1303 = vmatpush1.msra.mxu0 0.0
  %1304 = vmatprep.subr.mxu0 0.0
  %1305 = vmatpush1.msra.mxu0 0.0
  %1306 = vmatprep.subr.mxu0 0.0
  %1307 = vmatpush1.msra.mxu0 0.0
  %1308 = vmatprep.subr.mxu0 0.0
  %1309 = vmatpush1.msra.mxu0 0.0
  %1310 = vmatprep.subr.mxu0 0.0
  %1311 = vmatpush1.msra.mxu0 0.0
  %1312 = vmatprep.subr.mxu0 0.0
  %1313 = vmatpush1.msra.mxu0 0.0
  %1314 = vmatprep.subr.mxu0 0.0
  %1315 = vmatpush1.msra.mxu0 0.0
  %1316 = vmatprep.subr.mxu0 0.0
  %1317 = vmatpush1.msra.mxu0 0.0
  %1318 = vmatprep.subr.mxu0 0.0
  %1319 = vmatpush1.msra.mxu0 0.0
  %1320 = vmatprep.subr.mxu0 0.0
  %1321 = vmatpush1.msra.mxu0 0.0
  %1322 = vmatprep.subr.mxu0 0.0
  %1323 = vmatpush1.msra.mxu0 0.0
  %1324 = vmatprep.subr.mxu0 0.0
  %1325 = vmatpush1.msra.mxu0 0.0
  %1326 = vmatprep.subr.mxu0 0.0
  %1327 = vmatpush1.msra.mxu0 0.0
  %1328 = vmatprep.subr.mxu0 0.0
  %1329 = vmatpush1.msra.mxu0 0.0
  %1330 = vmatprep.subr.mxu0 0.0
  %1331 = vmatpush1.msra.mxu0 0.0
  %1332 = vmatprep.subr.mxu0 0.0
  %1333 = vmatpush1.msra.mxu0 0.0
  %1334 = vmatprep.subr.mxu0 0.0
  %1335 = vmatpush1.msra.mxu0 0.0
  %1336 = vmatprep.subr.mxu0 0.0
  %1337 = vmatpush1.msra.mxu0 0.0
  %1338 = vmatprep.subr.mxu0 0.0
  %1339 = vmatpush1.msra.mxu0 0.0
  %1340 = vmatprep.subr.mxu0 0.0
  %1341 = vmatpush1.msra.mxu0 0.0
  %1342 = vmatprep.mubr.f32.mxu0 0.0
  %1343 = vmatmul.mubr.f32.gmra.mrb[0].mxu0 %v1276
  %v1344 = vpop.f32.mrb[0].mxu0
  %v1345 = vadd.f32 %v186, %v1344
  %v1346 = vpop.f32.mrb[0].mxu0
  %1347 = vdwg.mxu0
  %vm1348 = vcmask 31744
  %v1349 = vsel %vm1348, %v1345, -inf
  %1350 = vmax.xlane.f32.xlu0 %v1349
  %v1351 = vpop.xlane.xlu0 %1350
  %v1352 = vsub.f32 %v1345, %v1351
  %v1353 = vmul.f32 %v1352, 1.442695
  %v1354 = vpow.pop %v1353
  %v1355 = vsel %vm1348, %v1354, 0.0
  %1356 = vadd.xlane.f32.xlu0 %v1355
  %v1357 = vpop.xlane.xlu0 %1356
  %v1358 = vlog2.pop %v1357
  %v1359 = vmul.f32 %v1358, 0.6931472
  %v1360 = vsub.f32 %v1352, %v1359
  %1361 = vst.msk [vmem:[%s20] sm:$0xff] %vm1348, %v1360
  %s1362 = scalar_lea.vmem %s0, 8
  %v1363 = vld [vmem:[%s1362] sm:$0xff]
  %1364 = vmatprep.subr.mxu0 0.0
  %1365 = vmatpush1.msra.mxu0 %v69
  %1366 = vmatprep.subr.mxu0 0.0
  %1367 = vmatpush1.msra.mxu0 %v70
  %1368 = vmatprep.subr.mxu0 0.0
  %1369 = vmatpush1.msra.mxu0 %v71
  %1370 = vmatprep.subr.mxu0 0.0
  %1371 = vmatpush1.msra.mxu0 %v72
  %1372 = vmatprep.subr.mxu0 0.0
  %1373 = vmatpush1.msra.mxu0 0.0
  %1374 = vmatprep.subr.mxu0 0.0
  %1375 = vmatpush1.msra.mxu0 0.0
  %1376 = vmatprep.subr.mxu0 0.0
  %1377 = vmatpush1.msra.mxu0 0.0
  %1378 = vmatprep.subr.mxu0 0.0
  %1379 = vmatpush1.msra.mxu0 0.0
  %1380 = vmatprep.subr.mxu0 0.0
  %1381 = vmatpush1.msra.mxu0 0.0
  %1382 = vmatprep.subr.mxu0 0.0
  %1383 = vmatpush1.msra.mxu0 0.0
  %1384 = vmatprep.subr.mxu0 0.0
  %1385 = vmatpush1.msra.mxu0 0.0
  %1386 = vmatprep.subr.mxu0 0.0
  %1387 = vmatpush1.msra.mxu0 0.0
  %1388 = vmatprep.subr.mxu0 0.0
  %1389 = vmatpush1.msra.mxu0 0.0
  %1390 = vmatprep.subr.mxu0 0.0
  %1391 = vmatpush1.msra.mxu0 0.0
  %1392 = vmatprep.subr.mxu0 0.0
  %1393 = vmatpush1.msra.mxu0 0.0
  %1394 = vmatprep.subr.mxu0 0.0
  %1395 = vmatpush1.msra.mxu0 0.0
  %1396 = vmatprep.subr.mxu0 0.0
  %1397 = vmatpush1.msra.mxu0 0.0
  %1398 = vmatprep.subr.mxu0 0.0
  %1399 = vmatpush1.msra.mxu0 0.0
  %1400 = vmatprep.subr.mxu0 0.0
  %1401 = vmatpush1.msra.mxu0 0.0
  %1402 = vmatprep.subr.mxu0 0.0
  %1403 = vmatpush1.msra.mxu0 0.0
  %1404 = vmatprep.subr.mxu0 0.0
  %1405 = vmatpush1.msra.mxu0 0.0
  %1406 = vmatprep.subr.mxu0 0.0
  %1407 = vmatpush1.msra.mxu0 0.0
  %1408 = vmatprep.subr.mxu0 0.0
  %1409 = vmatpush1.msra.mxu0 0.0
  %1410 = vmatprep.subr.mxu0 0.0
  %1411 = vmatpush1.msra.mxu0 0.0
  %1412 = vmatprep.subr.mxu0 0.0
  %1413 = vmatpush1.msra.mxu0 0.0
  %1414 = vmatprep.subr.mxu0 0.0
  %1415 = vmatpush1.msra.mxu0 0.0
  %1416 = vmatprep.subr.mxu0 0.0
  %1417 = vmatpush1.msra.mxu0 0.0
  %1418 = vmatprep.subr.mxu0 0.0
  %1419 = vmatpush1.msra.mxu0 0.0
  %1420 = vmatprep.subr.mxu0 0.0
  %1421 = vmatpush1.msra.mxu0 0.0
  %1422 = vmatprep.subr.mxu0 0.0
  %1423 = vmatpush1.msra.mxu0 0.0
  %1424 = vmatprep.subr.mxu0 0.0
  %1425 = vmatpush1.msra.mxu0 0.0
  %1426 = vmatprep.subr.mxu0 0.0
  %1427 = vmatpush1.msra.mxu0 0.0
  %1428 = vmatprep.mubr.f32.mxu0 0.0
  %1429 = vmatmul.mubr.f32.gmra.mrb[0].mxu0 %v1201
  %v1430 = vpop.f32.mrb[0].mxu0
  %v1431 = vadd.f32 0.0, %v1430
  %v1432 = vpop.f32.mrb[0].mxu0
  %1433 = vdwg.mxu0
  %v1435 = vsel %vm189, %v1363, 0
  %1437 = vmatprep.subr.mxu0 0.0
  %1438 = vmatpush1.msra.mxu0 %v65
  %1439 = vmatprep.subr.mxu0 0.0
  %1440 = vmatpush1.msra.mxu0 %v66
  %1441 = vmatprep.subr.mxu0 0.0
  %1442 = vmatpush1.msra.mxu0 %v67
  %1443 = vmatprep.subr.mxu0 0.0
  %1444 = vmatpush1.msra.mxu0 %v68
  %1445 = vmatprep.subr.mxu0 0.0
  %1446 = vmatpush1.msra.mxu0 0.0
  %1447 = vmatprep.subr.mxu0 0.0
  %1448 = vmatpush1.msra.mxu0 0.0
  %1449 = vmatprep.subr.mxu0 0.0
  %1450 = vmatpush1.msra.mxu0 0.0
  %1451 = vmatprep.subr.mxu0 0.0
  %1452 = vmatpush1.msra.mxu0 0.0
  %1453 = vmatprep.subr.mxu0 0.0
  %1454 = vmatpush1.msra.mxu0 0.0
  %1455 = vmatprep.subr.mxu0 0.0
  %1456 = vmatpush1.msra.mxu0 0.0
  %1457 = vmatprep.subr.mxu0 0.0
  %1458 = vmatpush1.msra.mxu0 0.0
  %1459 = vmatprep.subr.mxu0 0.0
  %1460 = vmatpush1.msra.mxu0 0.0
  %1461 = vmatprep.subr.mxu0 0.0
  %1462 = vmatpush1.msra.mxu0 0.0
  %1463 = vmatprep.subr.mxu0 0.0
  %1464 = vmatpush1.msra.mxu0 0.0
  %1465 = vmatprep.subr.mxu0 0.0
  %1466 = vmatpush1.msra.mxu0 0.0
  %1467 = vmatprep.subr.mxu0 0.0
  %1468 = vmatpush1.msra.mxu0 0.0
  %1469 = vmatprep.subr.mxu0 0.0
  %1470 = vmatpush1.msra.mxu0 0.0
  %1471 = vmatprep.subr.mxu0 0.0
  %1472 = vmatpush1.msra.mxu0 0.0
  %1473 = vmatprep.subr.mxu0 0.0
  %1474 = vmatpush1.msra.mxu0 0.0
  %1475 = vmatprep.subr.mxu0 0.0
  %1476 = vmatpush1.msra.mxu0 0.0
  %1477 = vmatprep.subr.mxu0 0.0
  %1478 = vmatpush1.msra.mxu0 0.0
  %1479 = vmatprep.subr.mxu0 0.0
  %1480 = vmatpush1.msra.mxu0 0.0
  %1481 = vmatprep.subr.mxu0 0.0
  %1482 = vmatpush1.msra.mxu0 0.0
  %1483 = vmatprep.subr.mxu0 0.0
  %1484 = vmatpush1.msra.mxu0 0.0
  %1485 = vmatprep.subr.mxu0 0.0
  %1486 = vmatpush1.msra.mxu0 0.0
  %1487 = vmatprep.subr.mxu0 0.0
  %1488 = vmatpush1.msra.mxu0 0.0
  %1489 = vmatprep.subr.mxu0 0.0
  %1490 = vmatpush1.msra.mxu0 0.0
  %1491 = vmatprep.subr.mxu0 0.0
  %1492 = vmatpush1.msra.mxu0 0.0
  %1493 = vmatprep.subr.mxu0 0.0
  %1494 = vmatpush1.msra.mxu0 0.0
  %1495 = vmatprep.subr.mxu0 0.0
  %1496 = vmatpush1.msra.mxu0 0.0
  %1497 = vmatprep.subr.mxu0 0.0
  %1498 = vmatpush1.msra.mxu0 0.0
  %1499 = vmatprep.subr.mxu0 0.0
  %1500 = vmatpush1.msra.mxu0 0.0
  %1501 = vmatprep.mubr.f32.mxu0 0.0
  %1502 = vmatmul.mubr.f32.gmra.mrb[0].mxu0 %v1435
  %v1503 = vpop.f32.mrb[0].mxu0
  %v1504 = vadd.f32 %v1431, %v1503
  %v1505 = vpop.f32.mrb[0].mxu0
  %1506 = vdwg.mxu0
  %v1507 = vadd.f32 %v1504, %v78
  %v1508 = vxor.u32 %v1507, 2147483648
  %v1509 = vmul.f32 %v1508, 1.442695
  %v1510 = vpow.pop %v1509
  %v1511 = vadd.f32 %v1510, 1.0
  %v1512 = vrcp.pop %v1511
  %v1513 = vmul.f32 1.0, %v1512
  %v1514 = vtanh.pop %v1507
  %v1515 = vmul.f32 %v1513, %v354
  %1517 = vrot.lane.b32.xlu0 %v1514, 64
  %v1518 = vpop.permute.xlu0 %1517
  %v1520 = vmul.f32 %v1513, %v1518
  %1522 = vrot.lane.b32.xlu0 %v1520, 32
  %v1523 = vpop.permute.xlu0 %1522
  %v1525 = vadd.f32 %v1515, %v1523
  %v1526 = vtanh.pop %v1525
  %1528 = vrot.lane.b32.xlu0 %v1526, 64
  %v1529 = vpop.permute.xlu0 %1528
  %v1531 = vmul.f32 %v1513, %v1529
  %1533 = vrot.lane.b32.xlu0 %v1525, 96
  %v1534 = vpop.permute.xlu0 %1533
  %v1535 = vsel %vm189, %v1534, 0
  %1537 = vmatprep.subr.mxu0 0.0
  %1538 = vmatpush1.msra.mxu0 %v84
  %1539 = vmatprep.subr.mxu0 0.0
  %1540 = vmatpush1.msra.mxu0 %v85
  %1541 = vmatprep.subr.mxu0 0.0
  %1542 = vmatpush1.msra.mxu0 %v86
  %1543 = vmatprep.subr.mxu0 0.0
  %1544 = vmatpush1.msra.mxu0 %v87
  %1545 = vmatprep.subr.mxu0 0.0
  %1546 = vmatpush1.msra.mxu0 0.0
  %1547 = vmatprep.subr.mxu0 0.0
  %1548 = vmatpush1.msra.mxu0 0.0
  %1549 = vmatprep.subr.mxu0 0.0
  %1550 = vmatpush1.msra.mxu0 0.0
  %1551 = vmatprep.subr.mxu0 0.0
  %1552 = vmatpush1.msra.mxu0 0.0
  %1553 = vmatprep.subr.mxu0 0.0
  %1554 = vmatpush1.msra.mxu0 0.0
  %1555 = vmatprep.subr.mxu0 0.0
  %1556 = vmatpush1.msra.mxu0 0.0
  %1557 = vmatprep.subr.mxu0 0.0
  %1558 = vmatpush1.msra.mxu0 0.0
  %1559 = vmatprep.subr.mxu0 0.0
  %1560 = vmatpush1.msra.mxu0 0.0
  %1561 = vmatprep.subr.mxu0 0.0
  %1562 = vmatpush1.msra.mxu0 0.0
  %1563 = vmatprep.subr.mxu0 0.0
  %1564 = vmatpush1.msra.mxu0 0.0
  %1565 = vmatprep.subr.mxu0 0.0
  %1566 = vmatpush1.msra.mxu0 0.0
  %1567 = vmatprep.subr.mxu0 0.0
  %1568 = vmatpush1.msra.mxu0 0.0
  %1569 = vmatprep.subr.mxu0 0.0
  %1570 = vmatpush1.msra.mxu0 0.0
  %1571 = vmatprep.subr.mxu0 0.0
  %1572 = vmatpush1.msra.mxu0 0.0
  %1573 = vmatprep.subr.mxu0 0.0
  %1574 = vmatpush1.msra.mxu0 0.0
  %1575 = vmatprep.subr.mxu0 0.0
  %1576 = vmatpush1.msra.mxu0 0.0
  %1577 = vmatprep.subr.mxu0 0.0
  %1578 = vmatpush1.msra.mxu0 0.0
  %1579 = vmatprep.subr.mxu0 0.0
  %1580 = vmatpush1.msra.mxu0 0.0
  %1581 = vmatprep.subr.mxu0 0.0
  %1582 = vmatpush1.msra.mxu0 0.0
  %1583 = vmatprep.subr.mxu0 0.0
  %1584 = vmatpush1.msra.mxu0 0.0
  %1585 = vmatprep.subr.mxu0 0.0
  %1586 = vmatpush1.msra.mxu0 0.0
  %1587 = vmatprep.subr.mxu0 0.0
  %1588 = vmatpush1.msra.mxu0 0.0
  %1589 = vmatprep.subr.mxu0 0.0
  %1590 = vmatpush1.msra.mxu0 0.0
  %1591 = vmatprep.subr.mxu0 0.0
  %1592 = vmatpush1.msra.mxu0 0.0
  %1593 = vmatprep.subr.mxu0 0.0
  %1594 = vmatpush1.msra.mxu0 0.0
  %1595 = vmatprep.subr.mxu0 0.0
  %1596 = vmatpush1.msra.mxu0 0.0
  %1597 = vmatprep.subr.mxu0 0.0
  %1598 = vmatpush1.msra.mxu0 0.0
  %1599 = vmatprep.subr.mxu0 0.0
  %1600 = vmatpush1.msra.mxu0 0.0
  %1601 = vmatprep.mubr.f32.mxu0 0.0
  %1602 = vmatmul.mubr.f32.gmra.mrb[0].mxu0 %v1535
  %v1603 = vpop.f32.mrb[0].mxu0
  %v1604 = vadd.f32 0.0, %v1603
  %v1605 = vpop.f32.mrb[0].mxu0
  %1606 = vdwg.mxu0
  %1607 = vmatprep.subr.mxu0 0.0
  %1608 = vmatpush1.msra.mxu0 %v80
  %1609 = vmatprep.subr.mxu0 0.0
  %1610 = vmatpush1.msra.mxu0 %v81
  %1611 = vmatprep.subr.mxu0 0.0
  %1612 = vmatpush1.msra.mxu0 %v82
  %1613 = vmatprep.subr.mxu0 0.0
  %1614 = vmatpush1.msra.mxu0 %v83
  %1615 = vmatprep.subr.mxu0 0.0
  %1616 = vmatpush1.msra.mxu0 0.0
  %1617 = vmatprep.subr.mxu0 0.0
  %1618 = vmatpush1.msra.mxu0 0.0
  %1619 = vmatprep.subr.mxu0 0.0
  %1620 = vmatpush1.msra.mxu0 0.0
  %1621 = vmatprep.subr.mxu0 0.0
  %1622 = vmatpush1.msra.mxu0 0.0
  %1623 = vmatprep.subr.mxu0 0.0
  %1624 = vmatpush1.msra.mxu0 0.0
  %1625 = vmatprep.subr.mxu0 0.0
  %1626 = vmatpush1.msra.mxu0 0.0
  %1627 = vmatprep.subr.mxu0 0.0
  %1628 = vmatpush1.msra.mxu0 0.0
  %1629 = vmatprep.subr.mxu0 0.0
  %1630 = vmatpush1.msra.mxu0 0.0
  %1631 = vmatprep.subr.mxu0 0.0
  %1632 = vmatpush1.msra.mxu0 0.0
  %1633 = vmatprep.subr.mxu0 0.0
  %1634 = vmatpush1.msra.mxu0 0.0
  %1635 = vmatprep.subr.mxu0 0.0
  %1636 = vmatpush1.msra.mxu0 0.0
  %1637 = vmatprep.subr.mxu0 0.0
  %1638 = vmatpush1.msra.mxu0 0.0
  %1639 = vmatprep.subr.mxu0 0.0
  %1640 = vmatpush1.msra.mxu0 0.0
  %1641 = vmatprep.subr.mxu0 0.0
  %1642 = vmatpush1.msra.mxu0 0.0
  %1643 = vmatprep.subr.mxu0 0.0
  %1644 = vmatpush1.msra.mxu0 0.0
  %1645 = vmatprep.subr.mxu0 0.0
  %1646 = vmatpush1.msra.mxu0 0.0
  %1647 = vmatprep.subr.mxu0 0.0
  %1648 = vmatpush1.msra.mxu0 0.0
  %1649 = vmatprep.subr.mxu0 0.0
  %1650 = vmatpush1.msra.mxu0 0.0
  %1651 = vmatprep.subr.mxu0 0.0
  %1652 = vmatpush1.msra.mxu0 0.0
  %1653 = vmatprep.subr.mxu0 0.0
  %1654 = vmatpush1.msra.mxu0 0.0
  %1655 = vmatprep.subr.mxu0 0.0
  %1656 = vmatpush1.msra.mxu0 0.0
  %1657 = vmatprep.subr.mxu0 0.0
  %1658 = vmatpush1.msra.mxu0 0.0
  %1659 = vmatprep.subr.mxu0 0.0
  %1660 = vmatpush1.msra.mxu0 0.0
  %1661 = vmatprep.subr.mxu0 0.0
  %1662 = vmatpush1.msra.mxu0 0.0
  %1663 = vmatprep.subr.mxu0 0.0
  %1664 = vmatpush1.msra.mxu0 0.0
  %1665 = vmatprep.subr.mxu0 0.0
  %1666 = vmatpush1.msra.mxu0 0.0
  %1667 = vmatprep.subr.mxu0 0.0
  %1668 = vmatpush1.msra.mxu0 0.0
  %1669 = vmatprep.subr.mxu0 0.0
  %1670 = vmatpush1.msra.mxu0 0.0
  %1671 = vmatprep.mubr.f32.mxu0 0.0
  %1672 = vmatmul.mubr.f32.gmra.mrb[0].mxu0 %v364
  %v1673 = vpop.f32.mrb[0].mxu0
  %v1674 = vadd.f32 %v1604, %v1673
  %v1675 = vpop.f32.mrb[0].mxu0
  %1676 = vdwg.mxu0
  %v1677 = vadd.f32 %v1674, %v93
  %v1678 = vmax.f32 %v1677, 0.0
  %v1680 = vsel %vm189, %v1678, 0
  %1682 = vmatprep.subr.mxu0 0.0
  %1683 = vmatpush1.msra.mxu0 %v95
  %1684 = vmatprep.subr.mxu0 0.0
  %1685 = vmatpush1.msra.mxu0 %v96
  %1686 = vmatprep.subr.mxu0 0.0
  %1687 = vmatpush1.msra.mxu0 %v97
  %1688 = vmatprep.subr.mxu0 0.0
  %1689 = vmatpush1.msra.mxu0 %v98
  %1690 = vmatprep.subr.mxu0 0.0
  %1691 = vmatpush1.msra.mxu0 0.0
  %1692 = vmatprep.subr.mxu0 0.0
  %1693 = vmatpush1.msra.mxu0 0.0
  %1694 = vmatprep.subr.mxu0 0.0
  %1695 = vmatpush1.msra.mxu0 0.0
  %1696 = vmatprep.subr.mxu0 0.0
  %1697 = vmatpush1.msra.mxu0 0.0
  %1698 = vmatprep.subr.mxu0 0.0
  %1699 = vmatpush1.msra.mxu0 0.0
  %1700 = vmatprep.subr.mxu0 0.0
  %1701 = vmatpush1.msra.mxu0 0.0
  %1702 = vmatprep.subr.mxu0 0.0
  %1703 = vmatpush1.msra.mxu0 0.0
  %1704 = vmatprep.subr.mxu0 0.0
  %1705 = vmatpush1.msra.mxu0 0.0
  %1706 = vmatprep.subr.mxu0 0.0
  %1707 = vmatpush1.msra.mxu0 0.0
  %1708 = vmatprep.subr.mxu0 0.0
  %1709 = vmatpush1.msra.mxu0 0.0
  %1710 = vmatprep.subr.mxu0 0.0
  %1711 = vmatpush1.msra.mxu0 0.0
  %1712 = vmatprep.subr.mxu0 0.0
  %1713 = vmatpush1.msra.mxu0 0.0
  %1714 = vmatprep.subr.mxu0 0.0
  %1715 = vmatpush1.msra.mxu0 0.0
  %1716 = vmatprep.subr.mxu0 0.0
  %1717 = vmatpush1.msra.mxu0 0.0
  %1718 = vmatprep.subr.mxu0 0.0
  %1719 = vmatpush1.msra.mxu0 0.0
  %1720 = vmatprep.subr.mxu0 0.0
  %1721 = vmatpush1.msra.mxu0 0.0
  %1722 = vmatprep.subr.mxu0 0.0
  %1723 = vmatpush1.msra.mxu0 0.0
  %1724 = vmatprep.subr.mxu0 0.0
  %1725 = vmatpush1.msra.mxu0 0.0
  %1726 = vmatprep.subr.mxu0 0.0
  %1727 = vmatpush1.msra.mxu0 0.0
  %1728 = vmatprep.subr.mxu0 0.0
  %1729 = vmatpush1.msra.mxu0 0.0
  %1730 = vmatprep.subr.mxu0 0.0
  %1731 = vmatpush1.msra.mxu0 0.0
  %1732 = vmatprep.subr.mxu0 0.0
  %1733 = vmatpush1.msra.mxu0 0.0
  %1734 = vmatprep.subr.mxu0 0.0
  %1735 = vmatpush1.msra.mxu0 0.0
  %1736 = vmatprep.subr.mxu0 0.0
  %1737 = vmatpush1.msra.mxu0 0.0
  %1738 = vmatprep.subr.mxu0 0.0
  %1739 = vmatpush1.msra.mxu0 0.0
  %1740 = vmatprep.subr.mxu0 0.0
  %1741 = vmatpush1.msra.mxu0 0.0
  %1742 = vmatprep.subr.mxu0 0.0
  %1743 = vmatpush1.msra.mxu0 0.0
  %1744 = vmatprep.subr.mxu0 0.0
  %1745 = vmatpush1.msra.mxu0 0.0
  %1746 = vmatprep.mubr.f32.mxu0 0.0
  %1747 = vmatmul.mubr.f32.gmra.mrb[0].mxu0 %v1680
  %v1748 = vpop.f32.mrb[0].mxu0
  %v1749 = vadd.f32 %v104, %v1748
  %v1750 = vpop.f32.mrb[0].mxu0
  %1751 = vdwg.mxu0
  %v1752 = vsel %vm581, %v1749, -inf
  %1753 = vmax.xlane.f32.xlu0 %v1752
  %v1754 = vpop.xlane.xlu0 %1753
  %v1755 = vsub.f32 %v1749, %v1754
  %v1756 = vmul.f32 %v1755, 1.442695
  %v1757 = vpow.pop %v1756
  %v1758 = vsel %vm581, %v1757, 0.0
  %1759 = vadd.xlane.f32.xlu0 %v1758
  %v1760 = vpop.xlane.xlu0 %1759
  %v1761 = vrcp.pop %v1760
  %v1762 = vmul.f32 %v1757, %v1761
  %v1764 = vmul.f32 %v1762, %v363
  %v1765 = vmul.f32 %v1762, %v1525
  %1767 = vrot.lane.b32.xlu0 %v1765, 96
  %v1768 = vpop.permute.xlu0 %1767
  %v1769 = vsel %vm189, %v1768, 0
  %1771 = vmatprep.subr.mxu0 0.0
  %1772 = vmatpush1.msra.mxu0 %v110
  %1773 = vmatprep.subr.mxu0 0.0
  %1774 = vmatpush1.msra.mxu0 %v111
  %1775 = vmatprep.subr.mxu0 0.0
  %1776 = vmatpush1.msra.mxu0 %v112
  %1777 = vmatprep.subr.mxu0 0.0
  %1778 = vmatpush1.msra.mxu0 %v113
  %1779 = vmatprep.subr.mxu0 0.0
  %1780 = vmatpush1.msra.mxu0 0.0
  %1781 = vmatprep.subr.mxu0 0.0
  %1782 = vmatpush1.msra.mxu0 0.0
  %1783 = vmatprep.subr.mxu0 0.0
  %1784 = vmatpush1.msra.mxu0 0.0
  %1785 = vmatprep.subr.mxu0 0.0
  %1786 = vmatpush1.msra.mxu0 0.0
  %1787 = vmatprep.subr.mxu0 0.0
  %1788 = vmatpush1.msra.mxu0 0.0
  %1789 = vmatprep.subr.mxu0 0.0
  %1790 = vmatpush1.msra.mxu0 0.0
  %1791 = vmatprep.subr.mxu0 0.0
  %1792 = vmatpush1.msra.mxu0 0.0
  %1793 = vmatprep.subr.mxu0 0.0
  %1794 = vmatpush1.msra.mxu0 0.0
  %1795 = vmatprep.subr.mxu0 0.0
  %1796 = vmatpush1.msra.mxu0 0.0
  %1797 = vmatprep.subr.mxu0 0.0
  %1798 = vmatpush1.msra.mxu0 0.0
  %1799 = vmatprep.subr.mxu0 0.0
  %1800 = vmatpush1.msra.mxu0 0.0
  %1801 = vmatprep.subr.mxu0 0.0
  %1802 = vmatpush1.msra.mxu0 0.0
  %1803 = vmatprep.subr.mxu0 0.0
  %1804 = vmatpush1.msra.mxu0 0.0
  %1805 = vmatprep.subr.mxu0 0.0
  %1806 = vmatpush1.msra.mxu0 0.0
  %1807 = vmatprep.subr.mxu0 0.0
  %1808 = vmatpush1.msra.mxu0 0.0
  %1809 = vmatprep.subr.mxu0 0.0
  %1810 = vmatpush1.msra.mxu0 0.0
  %1811 = vmatprep.subr.mxu0 0.0
  %1812 = vmatpush1.msra.mxu0 0.0
  %1813 = vmatprep.subr.mxu0 0.0
  %1814 = vmatpush1.msra.mxu0 0.0
  %1815 = vmatprep.subr.mxu0 0.0
  %1816 = vmatpush1.msra.mxu0 0.0
  %1817 = vmatprep.subr.mxu0 0.0
  %1818 = vmatpush1.msra.mxu0 0.0
  %1819 = vmatprep.subr.mxu0 0.0
  %1820 = vmatpush1.msra.mxu0 0.0
  %1821 = vmatprep.subr.mxu0 0.0
  %1822 = vmatpush1.msra.mxu0 0.0
  %1823 = vmatprep.subr.mxu0 0.0
  %1824 = vmatpush1.msra.mxu0 0.0
  %1825 = vmatprep.subr.mxu0 0.0
  %1826 = vmatpush1.msra.mxu0 0.0
  %1827 = vmatprep.subr.mxu0 0.0
  %1828 = vmatpush1.msra.mxu0 0.0
  %1829 = vmatprep.subr.mxu0 0.0
  %1830 = vmatpush1.msra.mxu0 0.0
  %1831 = vmatprep.subr.mxu0 0.0
  %1832 = vmatpush1.msra.mxu0 0.0
  %1833 = vmatprep.subr.mxu0 0.0
  %1834 = vmatpush1.msra.mxu0 0.0
  %1835 = vmatprep.mubr.f32.mxu0 0.0
  %1836 = vmatmul.mubr.f32.gmra.mrb[0].mxu0 %v1769
  %v1837 = vpop.f32.mrb[0].mxu0
  %v1838 = vadd.f32 0.0, %v1837
  %v1839 = vpop.f32.mrb[0].mxu0
  %1840 = vdwg.mxu0
  %v1842 = vsel %vm189, %v1764, 0
  %1844 = vmatprep.subr.mxu0 0.0
  %1845 = vmatpush1.msra.mxu0 %v106
  %1846 = vmatprep.subr.mxu0 0.0
  %1847 = vmatpush1.msra.mxu0 %v107
  %1848 = vmatprep.subr.mxu0 0.0
  %1849 = vmatpush1.msra.mxu0 %v108
  %1850 = vmatprep.subr.mxu0 0.0
  %1851 = vmatpush1.msra.mxu0 %v109
  %1852 = vmatprep.subr.mxu0 0.0
  %1853 = vmatpush1.msra.mxu0 0.0
  %1854 = vmatprep.subr.mxu0 0.0
  %1855 = vmatpush1.msra.mxu0 0.0
  %1856 = vmatprep.subr.mxu0 0.0
  %1857 = vmatpush1.msra.mxu0 0.0
  %1858 = vmatprep.subr.mxu0 0.0
  %1859 = vmatpush1.msra.mxu0 0.0
  %1860 = vmatprep.subr.mxu0 0.0
  %1861 = vmatpush1.msra.mxu0 0.0
  %1862 = vmatprep.subr.mxu0 0.0
  %1863 = vmatpush1.msra.mxu0 0.0
  %1864 = vmatprep.subr.mxu0 0.0
  %1865 = vmatpush1.msra.mxu0 0.0
  %1866 = vmatprep.subr.mxu0 0.0
  %1867 = vmatpush1.msra.mxu0 0.0
  %1868 = vmatprep.subr.mxu0 0.0
  %1869 = vmatpush1.msra.mxu0 0.0
  %1870 = vmatprep.subr.mxu0 0.0
  %1871 = vmatpush1.msra.mxu0 0.0
  %1872 = vmatprep.subr.mxu0 0.0
  %1873 = vmatpush1.msra.mxu0 0.0
  %1874 = vmatprep.subr.mxu0 0.0
  %1875 = vmatpush1.msra.mxu0 0.0
  %1876 = vmatprep.subr.mxu0 0.0
  %1877 = vmatpush1.msra.mxu0 0.0
  %1878 = vmatprep.subr.mxu0 0.0
  %1879 = vmatpush1.msra.mxu0 0.0
  %1880 = vmatprep.subr.mxu0 0.0
  %1881 = vmatpush1.msra.mxu0 0.0
  %1882 = vmatprep.subr.mxu0 0.0
  %1883 = vmatpush1.msra.mxu0 0.0
  %1884 = vmatprep.subr.mxu0 0.0
  %1885 = vmatpush1.msra.mxu0 0.0
  %1886 = vmatprep.subr.mxu0 0.0
  %1887 = vmatpush1.msra.mxu0 0.0
  %1888 = vmatprep.subr.mxu0 0.0
  %1889 = vmatpush1.msra.mxu0 0.0
  %1890 = vmatprep.subr.mxu0 0.0
  %1891 = vmatpush1.msra.mxu0 0.0
  %1892 = vmatprep.subr.mxu0 0.0
  %1893 = vmatpush1.msra.mxu0 0.0
  %1894 = vmatprep.subr.mxu0 0.0
  %1895 = vmatpush1.msra.mxu0 0.0
  %1896 = vmatprep.subr.mxu0 0.0
  %1897 = vmatpush1.msra.mxu0 0.0
  %1898 = vmatprep.subr.mxu0 0.0
  %1899 = vmatpush1.msra.mxu0 0.0
  %1900 = vmatprep.subr.mxu0 0.0
  %1901 = vmatpush1.msra.mxu0 0.0
  %1902 = vmatprep.subr.mxu0 0.0
  %1903 = vmatpush1.msra.mxu0 0.0
  %1904 = vmatprep.subr.mxu0 0.0
  %1905 = vmatpush1.msra.mxu0 0.0
  %1906 = vmatprep.subr.mxu0 0.0
  %1907 = vmatpush1.msra.mxu0 0.0
  %1908 = vmatprep.mubr.f32.mxu0 0.0
  %1909 = vmatmul.mubr.f32.gmra.mrb[0].mxu0 %v1842
  %v1910 = vpop.f32.mrb[0].mxu0
  %v1911 = vadd.f32 %v1838, %v1910
  %v1912 = vpop.f32.mrb[0].mxu0
  %1913 = vdwg.mxu0
  %v1914 = vadd.f32 %v1911, %v119
  %v1915 = vmax.f32 %v1914, 0.0
  %v1917 = vsel %vm189, %v1915, 0
  %1919 = vmatprep.subr.mxu0 0.0
  %1920 = vmatpush1.msra.mxu0 %v121
  %1921 = vmatprep.subr.mxu0 0.0
  %1922 = vmatpush1.msra.mxu0 %v122
  %1923 = vmatprep.subr.mxu0 0.0
  %1924 = vmatpush1.msra.mxu0 %v123
  %1925 = vmatprep.subr.mxu0 0.0
  %1926 = vmatpush1.msra.mxu0 %v124
  %1927 = vmatprep.subr.mxu0 0.0
  %1928 = vmatpush1.msra.mxu0 0.0
  %1929 = vmatprep.subr.mxu0 0.0
  %1930 = vmatpush1.msra.mxu0 0.0
  %1931 = vmatprep.subr.mxu0 0.0
  %1932 = vmatpush1.msra.mxu0 0.0
  %1933 = vmatprep.subr.mxu0 0.0
  %1934 = vmatpush1.msra.mxu0 0.0
  %1935 = vmatprep.subr.mxu0 0.0
  %1936 = vmatpush1.msra.mxu0 0.0
  %1937 = vmatprep.subr.mxu0 0.0
  %1938 = vmatpush1.msra.mxu0 0.0
  %1939 = vmatprep.subr.mxu0 0.0
  %1940 = vmatpush1.msra.mxu0 0.0
  %1941 = vmatprep.subr.mxu0 0.0
  %1942 = vmatpush1.msra.mxu0 0.0
  %1943 = vmatprep.subr.mxu0 0.0
  %1944 = vmatpush1.msra.mxu0 0.0
  %1945 = vmatprep.subr.mxu0 0.0
  %1946 = vmatpush1.msra.mxu0 0.0
  %1947 = vmatprep.subr.mxu0 0.0
  %1948 = vmatpush1.msra.mxu0 0.0
  %1949 = vmatprep.subr.mxu0 0.0
  %1950 = vmatpush1.msra.mxu0 0.0
  %1951 = vmatprep.subr.mxu0 0.0
  %1952 = vmatpush1.msra.mxu0 0.0
  %1953 = vmatprep.subr.mxu0 0.0
  %1954 = vmatpush1.msra.mxu0 0.0
  %1955 = vmatprep.subr.mxu0 0.0
  %1956 = vmatpush1.msra.mxu0 0.0
  %1957 = vmatprep.subr.mxu0 0.0
  %1958 = vmatpush1.msra.mxu0 0.0
  %1959 = vmatprep.subr.mxu0 0.0
  %1960 = vmatpush1.msra.mxu0 0.0
  %1961 = vmatprep.subr.mxu0 0.0
  %1962 = vmatpush1.msra.mxu0 0.0
  %1963 = vmatprep.subr.mxu0 0.0
  %1964 = vmatpush1.msra.mxu0 0.0
  %1965 = vmatprep.subr.mxu0 0.0
  %1966 = vmatpush1.msra.mxu0 0.0
  %1967 = vmatprep.subr.mxu0 0.0
  %1968 = vmatpush1.msra.mxu0 0.0
  %1969 = vmatprep.subr.mxu0 0.0
  %1970 = vmatpush1.msra.mxu0 0.0
  %1971 = vmatprep.subr.mxu0 0.0
  %1972 = vmatpush1.msra.mxu0 0.0
  %1973 = vmatprep.subr.mxu0 0.0
  %1974 = vmatpush1.msra.mxu0 0.0
  %1975 = vmatprep.subr.mxu0 0.0
  %1976 = vmatpush1.msra.mxu0 0.0
  %1977 = vmatprep.subr.mxu0 0.0
  %1978 = vmatpush1.msra.mxu0 0.0
  %1979 = vmatprep.subr.mxu0 0.0
  %1980 = vmatpush1.msra.mxu0 0.0
  %1981 = vmatprep.subr.mxu0 0.0
  %1982 = vmatpush1.msra.mxu0 0.0
  %1983 = vmatprep.mubr.f32.mxu0 0.0
  %1984 = vmatmul.mubr.f32.gmra.mrb[0].mxu0 %v1917
  %v1985 = vpop.f32.mrb[0].mxu0
  %v1986 = vadd.f32 %v130, %v1985
  %v1987 = vpop.f32.mrb[0].mxu0
  %1988 = vdwg.mxu0
  %v1989 = vtanh.pop %v1986
  %1990 = vmatprep.subr.mxu0 0.0
  %1991 = vmatpush1.msra.mxu0 %v136
  %1992 = vmatprep.subr.mxu0 0.0
  %1993 = vmatpush1.msra.mxu0 %v137
  %1994 = vmatprep.subr.mxu0 0.0
  %1995 = vmatpush1.msra.mxu0 %v138
  %1996 = vmatprep.subr.mxu0 0.0
  %1997 = vmatpush1.msra.mxu0 %v139
  %1998 = vmatprep.subr.mxu0 0.0
  %1999 = vmatpush1.msra.mxu0 0.0
  %2000 = vmatprep.subr.mxu0 0.0
  %2001 = vmatpush1.msra.mxu0 0.0
  %2002 = vmatprep.subr.mxu0 0.0
  %2003 = vmatpush1.msra.mxu0 0.0
  %2004 = vmatprep.subr.mxu0 0.0
  %2005 = vmatpush1.msra.mxu0 0.0
  %2006 = vmatprep.subr.mxu0 0.0
  %2007 = vmatpush1.msra.mxu0 0.0
  %2008 = vmatprep.subr.mxu0 0.0
  %2009 = vmatpush1.msra.mxu0 0.0
  %2010 = vmatprep.subr.mxu0 0.0
  %2011 = vmatpush1.msra.mxu0 0.0
  %2012 = vmatprep.subr.mxu0 0.0
  %2013 = vmatpush1.msra.mxu0 0.0
  %2014 = vmatprep.subr.mxu0 0.0
  %2015 = vmatpush1.msra.mxu0 0.0
  %2016 = vmatprep.subr.mxu0 0.0
  %2017 = vmatpush1.msra.mxu0 0.0
  %2018 = vmatprep.subr.mxu0 0.0
  %2019 = vmatpush1.msra.mxu0 0.0
  %2020 = vmatprep.subr.mxu0 0.0
  %2021 = vmatpush1.msra.mxu0 0.0
  %2022 = vmatprep.subr.mxu0 0.0
  %2023 = vmatpush1.msra.mxu0 0.0
  %2024 = vmatprep.subr.mxu0 0.0
  %2025 = vmatpush1.msra.mxu0 0.0
  %2026 = vmatprep.subr.mxu0 0.0
  %2027 = vmatpush1.msra.mxu0 0.0
  %2028 = vmatprep.subr.mxu0 0.0
  %2029 = vmatpush1.msra.mxu0 0.0
  %2030 = vmatprep.subr.mxu0 0.0
  %2031 = vmatpush1.msra.mxu0 0.0
  %2032 = vmatprep.subr.mxu0 0.0
  %2033 = vmatpush1.msra.mxu0 0.0
  %2034 = vmatprep.subr.mxu0 0.0
  %2035 = vmatpush1.msra.mxu0 0.0
  %2036 = vmatprep.subr.mxu0 0.0
  %2037 = vmatpush1.msra.mxu0 0.0
  %2038 = vmatprep.subr.mxu0 0.0
  %2039 = vmatpush1.msra.mxu0 0.0
  %2040 = vmatprep.subr.mxu0 0.0
  %2041 = vmatpush1.msra.mxu0 0.0
  %2042 = vmatprep.subr.mxu0 0.0
  %2043 = vmatpush1.msra.mxu0 0.0
  %2044 = vmatprep.subr.mxu0 0.0
  %2045 = vmatpush1.msra.mxu0 0.0
  %2046 = vmatprep.subr.mxu0 0.0
  %2047 = vmatpush1.msra.mxu0 0.0
  %2048 = vmatprep.subr.mxu0 0.0
  %2049 = vmatpush1.msra.mxu0 0.0
  %2050 = vmatprep.subr.mxu0 0.0
  %2051 = vmatpush1.msra.mxu0 0.0
  %2052 = vmatprep.subr.mxu0 0.0
  %2053 = vmatpush1.msra.mxu0 0.0
  %2054 = vmatprep.mubr.f32.mxu0 0.0
  %2055 = vmatmul.mubr.f32.gmra.mrb[0].mxu0 %v1769
  %v2056 = vpop.f32.mrb[0].mxu0
  %v2057 = vadd.f32 0.0, %v2056
  %v2058 = vpop.f32.mrb[0].mxu0
  %2059 = vdwg.mxu0
  %2060 = vmatprep.subr.mxu0 0.0
  %2061 = vmatpush1.msra.mxu0 %v132
  %2062 = vmatprep.subr.mxu0 0.0
  %2063 = vmatpush1.msra.mxu0 %v133
  %2064 = vmatprep.subr.mxu0 0.0
  %2065 = vmatpush1.msra.mxu0 %v134
  %2066 = vmatprep.subr.mxu0 0.0
  %2067 = vmatpush1.msra.mxu0 %v135
  %2068 = vmatprep.subr.mxu0 0.0
  %2069 = vmatpush1.msra.mxu0 0.0
  %2070 = vmatprep.subr.mxu0 0.0
  %2071 = vmatpush1.msra.mxu0 0.0
  %2072 = vmatprep.subr.mxu0 0.0
  %2073 = vmatpush1.msra.mxu0 0.0
  %2074 = vmatprep.subr.mxu0 0.0
  %2075 = vmatpush1.msra.mxu0 0.0
  %2076 = vmatprep.subr.mxu0 0.0
  %2077 = vmatpush1.msra.mxu0 0.0
  %2078 = vmatprep.subr.mxu0 0.0
  %2079 = vmatpush1.msra.mxu0 0.0
  %2080 = vmatprep.subr.mxu0 0.0
  %2081 = vmatpush1.msra.mxu0 0.0
  %2082 = vmatprep.subr.mxu0 0.0
  %2083 = vmatpush1.msra.mxu0 0.0
  %2084 = vmatprep.subr.mxu0 0.0
  %2085 = vmatpush1.msra.mxu0 0.0
  %2086 = vmatprep.subr.mxu0 0.0
  %2087 = vmatpush1.msra.mxu0 0.0
  %2088 = vmatprep.subr.mxu0 0.0
  %2089 = vmatpush1.msra.mxu0 0.0
  %2090 = vmatprep.subr.mxu0 0.0
  %2091 = vmatpush1.msra.mxu0 0.0
  %2092 = vmatprep.subr.mxu0 0.0
  %2093 = vmatpush1.msra.mxu0 0.0
  %2094 = vmatprep.subr.mxu0 0.0
  %2095 = vmatpush1.msra.mxu0 0.0
  %2096 = vmatprep.subr.mxu0 0.0
  %2097 = vmatpush1.msra.mxu0 0.0
  %2098 = vmatprep.subr.mxu0 0.0
  %2099 = vmatpush1.msra.mxu0 0.0
  %2100 = vmatprep.subr.mxu0 0.0
  %2101 = vmatpush1.msra.mxu0 0.0
  %2102 = vmatprep.subr.mxu0 0.0
  %2103 = vmatpush1.msra.mxu0 0.0
  %2104 = vmatprep.subr.mxu0 0.0
  %2105 = vmatpush1.msra.mxu0 0.0
  %2106 = vmatprep.subr.mxu0 0.0
  %2107 = vmatpush1.msra.mxu0 0.0
  %2108 = vmatprep.subr.mxu0 0.0
  %2109 = vmatpush1.msra.mxu0 0.0
  %2110 = vmatprep.subr.mxu0 0.0
  %2111 = vmatpush1.msra.mxu0 0.0
  %2112 = vmatprep.subr.mxu0 0.0
  %2113 = vmatpush1.msra.mxu0 0.0
  %2114 = vmatprep.subr.mxu0 0.0
  %2115 = vmatpush1.msra.mxu0 0.0
  %2116 = vmatprep.subr.mxu0 0.0
  %2117 = vmatpush1.msra.mxu0 0.0
  %2118 = vmatprep.subr.mxu0 0.0
  %2119 = vmatpush1.msra.mxu0 0.0
  %2120 = vmatprep.subr.mxu0 0.0
  %2121 = vmatpush1.msra.mxu0 0.0
  %2122 = vmatprep.subr.mxu0 0.0
  %2123 = vmatpush1.msra.mxu0 0.0
  %2124 = vmatprep.mubr.f32.mxu0 0.0
  %2125 = vmatmul.mubr.f32.gmra.mrb[0].mxu0 %v1842
  %v2126 = vpop.f32.mrb[0].mxu0
  %v2127 = vadd.f32 %v2057, %v2126
  %v2128 = vpop.f32.mrb[0].mxu0
  %2129 = vdwg.mxu0
  %2130 = vmatprep.subr.mxu0 0.0
  %2131 = vmatpush1.msra.mxu0 %v140
  %2132 = vmatprep.subr.mxu0 0.0
  %2133 = vmatpush1.msra.mxu0 %v141
  %2134 = vmatprep.subr.mxu0 0.0
  %2135 = vmatpush1.msra.mxu0 0.0
  %2136 = vmatprep.subr.mxu0 0.0
  %2137 = vmatpush1.msra.mxu0 0.0
  %2138 = vmatprep.subr.mxu0 0.0
  %2139 = vmatpush1.msra.mxu0 0.0
  %2140 = vmatprep.subr.mxu0 0.0
  %2141 = vmatpush1.msra.mxu0 0.0
  %2142 = vmatprep.subr.mxu0 0.0
  %2143 = vmatpush1.msra.mxu0 0.0
  %2144 = vmatprep.subr.mxu0 0.0
  %2145 = vmatpush1.msra.mxu0 0.0
  %2146 = vmatprep.subr.mxu0 0.0
  %2147 = vmatpush1.msra.mxu0 0.0
  %2148 = vmatprep.subr.mxu0 0.0
  %2149 = vmatpush1.msra.mxu0 0.0
  %2150 = vmatprep.subr.mxu0 0.0
  %2151 = vmatpush1.msra.mxu0 0.0
  %2152 = vmatprep.subr.mxu0 0.0
  %2153 = vmatpush1.msra.mxu0 0.0
  %2154 = vmatprep.subr.mxu0 0.0
  %2155 = vmatpush1.msra.mxu0 0.0
  %2156 = vmatprep.subr.mxu0 0.0
  %2157 = vmatpush1.msra.mxu0 0.0
  %2158 = vmatprep.subr.mxu0 0.0
  %2159 = vmatpush1.msra.mxu0 0.0
  %2160 = vmatprep.subr.mxu0 0.0
  %2161 = vmatpush1.msra.mxu0 0.0
  %2162 = vmatprep.subr.mxu0 0.0
  %2163 = vmatpush1.msra.mxu0 0.0
  %2164 = vmatprep.subr.mxu0 0.0
  %2165 = vmatpush1.msra.mxu0 0.0
  %2166 = vmatprep.subr.mxu0 0.0
  %2167 = vmatpush1.msra.mxu0 0.0
  %2168 = vmatprep.subr.mxu0 0.0
  %2169 = vmatpush1.msra.mxu0 0.0
  %2170 = vmatprep.subr.mxu0 0.0
  %2171 = vmatpush1.msra.mxu0 0.0
  %2172 = vmatprep.subr.mxu0 0.0
  %2173 = vmatpush1.msra.mxu0 0.0
  %2174 = vmatprep.subr.mxu0 0.0
  %2175 = vmatpush1.msra.mxu0 0.0
  %2176 = vmatprep.subr.mxu0 0.0
  %2177 = vmatpush1.msra.mxu0 0.0
  %2178 = vmatprep.subr.mxu0 0.0
  %2179 = vmatpush1.msra.mxu0 0.0
  %2180 = vmatprep.subr.mxu0 0.0
  %2181 = vmatpush1.msra.mxu0 0.0
  %2182 = vmatprep.subr.mxu0 0.0
  %2183 = vmatpush1.msra.mxu0 0.0
  %2184 = vmatprep.subr.mxu0 0.0
  %2185 = vmatpush1.msra.mxu0 0.0
  %2186 = vmatprep.subr.mxu0 0.0
  %2187 = vmatpush1.msra.mxu0 0.0
  %2188 = vmatprep.subr.mxu0 0.0
  %2189 = vmatpush1.msra.mxu0 0.0
  %2190 = vmatprep.subr.mxu0 0.0
  %2191 = vmatpush1.msra.mxu0 0.0
  %2192 = vmatprep.subr.mxu0 0.0
  %2193 = vmatpush1.msra.mxu0 0.0
  %2194 = vmatprep.mubr.f32.mxu0 0.0
  %2195 = vmatmul.mubr.f32.gmra.mrb[0].mxu0 %v1126
  %v2196 = vpop.f32.mrb[0].mxu0
  %v2197 = vadd.f32 0.0, %v2196
  %v2198 = vpop.f32.mrb[0].mxu0
  %2199 = vdwg.mxu0
  %v2200 = vadd.f32 %v2127, %v2197
  %v2201 = vadd.f32 %v2200, %v147
  %v2202 = vmax.f32 %v2201, 0.0
  %v2204 = vsel %vm581, %v2202, 0
  %2206 = vmatprep.subr.mxu0 0.0
  %2207 = vmatpush1.msra.mxu0 %v149
  %2208 = vmatprep.subr.mxu0 0.0
  %2209 = vmatpush1.msra.mxu0 %v150
  %2210 = vmatprep.subr.mxu0 0.0
  %2211 = vmatpush1.msra.mxu0 %v151
  %2212 = vmatprep.subr.mxu0 0.0
  %2213 = vmatpush1.msra.mxu0 %v152
  %2214 = vmatprep.subr.mxu0 0.0
  %2215 = vmatpush1.msra.mxu0 %v153
  %2216 = vmatprep.subr.mxu0 0.0
  %2217 = vmatpush1.msra.mxu0 %v154
  %2218 = vmatprep.subr.mxu0 0.0
  %2219 = vmatpush1.msra.mxu0 %v155
  %2220 = vmatprep.subr.mxu0 0.0
  %2221 = vmatpush1.msra.mxu0 %v156
  %2222 = vmatprep.subr.mxu0 0.0
  %2223 = vmatpush1.msra.mxu0 0.0
  %2224 = vmatprep.subr.mxu0 0.0
  %2225 = vmatpush1.msra.mxu0 0.0
  %2226 = vmatprep.subr.mxu0 0.0
  %2227 = vmatpush1.msra.mxu0 0.0
  %2228 = vmatprep.subr.mxu0 0.0
  %2229 = vmatpush1.msra.mxu0 0.0
  %2230 = vmatprep.subr.mxu0 0.0
  %2231 = vmatpush1.msra.mxu0 0.0
  %2232 = vmatprep.subr.mxu0 0.0
  %2233 = vmatpush1.msra.mxu0 0.0
  %2234 = vmatprep.subr.mxu0 0.0
  %2235 = vmatpush1.msra.mxu0 0.0
  %2236 = vmatprep.subr.mxu0 0.0
  %2237 = vmatpush1.msra.mxu0 0.0
  %2238 = vmatprep.subr.mxu0 0.0
  %2239 = vmatpush1.msra.mxu0 0.0
  %2240 = vmatprep.subr.mxu0 0.0
  %2241 = vmatpush1.msra.mxu0 0.0
  %2242 = vmatprep.subr.mxu0 0.0
  %2243 = vmatpush1.msra.mxu0 0.0
  %2244 = vmatprep.subr.mxu0 0.0
  %2245 = vmatpush1.msra.mxu0 0.0
  %2246 = vmatprep.subr.mxu0 0.0
  %2247 = vmatpush1.msra.mxu0 0.0
  %2248 = vmatprep.subr.mxu0 0.0
  %2249 = vmatpush1.msra.mxu0 0.0
  %2250 = vmatprep.subr.mxu0 0.0
  %2251 = vmatpush1.msra.mxu0 0.0
  %2252 = vmatprep.subr.mxu0 0.0
  %2253 = vmatpush1.msra.mxu0 0.0
  %2254 = vmatprep.subr.mxu0 0.0
  %2255 = vmatpush1.msra.mxu0 0.0
  %2256 = vmatprep.subr.mxu0 0.0
  %2257 = vmatpush1.msra.mxu0 0.0
  %2258 = vmatprep.subr.mxu0 0.0
  %2259 = vmatpush1.msra.mxu0 0.0
  %2260 = vmatprep.subr.mxu0 0.0
  %2261 = vmatpush1.msra.mxu0 0.0
  %2262 = vmatprep.subr.mxu0 0.0
  %2263 = vmatpush1.msra.mxu0 0.0
  %2264 = vmatprep.subr.mxu0 0.0
  %2265 = vmatpush1.msra.mxu0 0.0
  %2266 = vmatprep.subr.mxu0 0.0
  %2267 = vmatpush1.msra.mxu0 0.0
  %2268 = vmatprep.subr.mxu0 0.0
  %2269 = vmatpush1.msra.mxu0 0.0
  %2270 = vmatprep.mubr.f32.mxu0 0.0
  %2271 = vmatmul.mubr.f32.gmra.mrb[0].mxu0 %v2204
  %v2272 = vpop.f32.mrb[0].mxu0
  %v2273 = vadd.f32 %v162, %v2272
  %v2274 = vpop.f32.mrb[0].mxu0
  %2275 = vdwg.mxu0
  %v2276 = vxor.u32 %v2273, 2147483648
  %v2277 = vmul.f32 %v2276, 1.442695
  %v2278 = vpow.pop %v2277
  %v2279 = vadd.f32 %v2278, 1.0
  %v2280 = vrcp.pop %v2279
  %v2281 = vmul.f32 1.0, %v2280
  %v2282 = vmul.f32 %v2281, %v1124
  %2284 = vrot.lane.b32.xlu0 %v1989, 16
  %v2285 = vpop.permute.xlu0 %2284
  %v2287 = vmul.f32 %v2281, %v2285
  %2289 = vrot.lane.b32.xlu0 %v2287, 112
  %v2290 = vpop.permute.xlu0 %2289
  %v2292 = vadd.f32 %v2282, %v2290
  %v2294 = vsel %vm959, %v2292, 0
  %2296 = vmatprep.subr.mxu0 0.0
  %2297 = vmatpush1.msra.mxu0 %v168
  %2298 = vmatprep.subr.mxu0 0.0
  %2299 = vmatpush1.msra.mxu0 %v169
  %2300 = vmatprep.subr.mxu0 0.0
  %2301 = vmatpush1.msra.mxu0 0.0
  %2302 = vmatprep.subr.mxu0 0.0
  %2303 = vmatpush1.msra.mxu0 0.0
  %2304 = vmatprep.subr.mxu0 0.0
  %2305 = vmatpush1.msra.mxu0 0.0
  %2306 = vmatprep.subr.mxu0 0.0
  %2307 = vmatpush1.msra.mxu0 0.0
  %2308 = vmatprep.subr.mxu0 0.0
  %2309 = vmatpush1.msra.mxu0 0.0
  %2310 = vmatprep.subr.mxu0 0.0
  %2311 = vmatpush1.msra.mxu0 0.0
  %2312 = vmatprep.subr.mxu0 0.0
  %2313 = vmatpush1.msra.mxu0 0.0
  %2314 = vmatprep.subr.mxu0 0.0
  %2315 = vmatpush1.msra.mxu0 0.0
  %2316 = vmatprep.subr.mxu0 0.0
  %2317 = vmatpush1.msra.mxu0 0.0
  %2318 = vmatprep.subr.mxu0 0.0
  %2319 = vmatpush1.msra.mxu0 0.0
  %2320 = vmatprep.subr.mxu0 0.0
  %2321 = vmatpush1.msra.mxu0 0.0
  %2322 = vmatprep.subr.mxu0 0.0
  %2323 = vmatpush1.msra.mxu0 0.0
  %2324 = vmatprep.subr.mxu0 0.0
  %2325 = vmatpush1.msra.mxu0 0.0
  %2326 = vmatprep.subr.mxu0 0.0
  %2327 = vmatpush1.msra.mxu0 0.0
  %2328 = vmatprep.subr.mxu0 0.0
  %2329 = vmatpush1.msra.mxu0 0.0
  %2330 = vmatprep.subr.mxu0 0.0
  %2331 = vmatpush1.msra.mxu0 0.0
  %2332 = vmatprep.subr.mxu0 0.0
  %2333 = vmatpush1.msra.mxu0 0.0
  %2334 = vmatprep.subr.mxu0 0.0
  %2335 = vmatpush1.msra.mxu0 0.0
  %2336 = vmatprep.subr.mxu0 0.0
  %2337 = vmatpush1.msra.mxu0 0.0
  %2338 = vmatprep.subr.mxu0 0.0
  %2339 = vmatpush1.msra.mxu0 0.0
  %2340 = vmatprep.subr.mxu0 0.0
  %2341 = vmatpush1.msra.mxu0 0.0
  %2342 = vmatprep.subr.mxu0 0.0
  %2343 = vmatpush1.msra.mxu0 0.0
  %2344 = vmatprep.subr.mxu0 0.0
  %2345 = vmatpush1.msra.mxu0 0.0
  %2346 = vmatprep.subr.mxu0 0.0
  %2347 = vmatpush1.msra.mxu0 0.0
  %2348 = vmatprep.subr.mxu0 0.0
  %2349 = vmatpush1.msra.mxu0 0.0
  %2350 = vmatprep.subr.mxu0 0.0
  %2351 = vmatpush1.msra.mxu0 0.0
  %2352 = vmatprep.subr.mxu0 0.0
  %2353 = vmatpush1.msra.mxu0 0.0
  %2354 = vmatprep.subr.mxu0 0.0
  %2355 = vmatpush1.msra.mxu0 0.0
  %2356 = vmatprep.subr.mxu0 0.0
  %2357 = vmatpush1.msra.mxu0 0.0
  %2358 = vmatprep.subr.mxu0 0.0
  %2359 = vmatpush1.msra.mxu0 0.0
  %2360 = vmatprep.mubr.f32.mxu0 0.0
  %2361 = vmatmul.mubr.f32.gmra.mrb[0].mxu0 %v2294
  %v2362 = vpop.f32.mrb[0].mxu0
  %v2363 = vadd.f32 0.0, %v2362
  %v2364 = vpop.f32.mrb[0].mxu0
  %2365 = vdwg.mxu0
  %2367 = vrot.lane.b32.xlu0 %v1531, 32
  %v2368 = vpop.permute.xlu0 %2367
  %v2369 = vsel %vm189, %v2368, 0
  %2371 = vmatprep.subr.mxu0 0.0
  %2372 = vmatpush1.msra.mxu0 %v164
  %2373 = vmatprep.subr.mxu0 0.0
  %2374 = vmatpush1.msra.mxu0 %v165
  %2375 = vmatprep.subr.mxu0 0.0
  %2376 = vmatpush1.msra.mxu0 %v166
  %2377 = vmatprep.subr.mxu0 0.0
  %2378 = vmatpush1.msra.mxu0 %v167
  %2379 = vmatprep.subr.mxu0 0.0
  %2380 = vmatpush1.msra.mxu0 0.0
  %2381 = vmatprep.subr.mxu0 0.0
  %2382 = vmatpush1.msra.mxu0 0.0
  %2383 = vmatprep.subr.mxu0 0.0
  %2384 = vmatpush1.msra.mxu0 0.0
  %2385 = vmatprep.subr.mxu0 0.0
  %2386 = vmatpush1.msra.mxu0 0.0
  %2387 = vmatprep.subr.mxu0 0.0
  %2388 = vmatpush1.msra.mxu0 0.0
  %2389 = vmatprep.subr.mxu0 0.0
  %2390 = vmatpush1.msra.mxu0 0.0
  %2391 = vmatprep.subr.mxu0 0.0
  %2392 = vmatpush1.msra.mxu0 0.0
  %2393 = vmatprep.subr.mxu0 0.0
  %2394 = vmatpush1.msra.mxu0 0.0
  %2395 = vmatprep.subr.mxu0 0.0
  %2396 = vmatpush1.msra.mxu0 0.0
  %2397 = vmatprep.subr.mxu0 0.0
  %2398 = vmatpush1.msra.mxu0 0.0
  %2399 = vmatprep.subr.mxu0 0.0
  %2400 = vmatpush1.msra.mxu0 0.0
  %2401 = vmatprep.subr.mxu0 0.0
  %2402 = vmatpush1.msra.mxu0 0.0
  %2403 = vmatprep.subr.mxu0 0.0
  %2404 = vmatpush1.msra.mxu0 0.0
  %2405 = vmatprep.subr.mxu0 0.0
  %2406 = vmatpush1.msra.mxu0 0.0
  %2407 = vmatprep.subr.mxu0 0.0
  %2408 = vmatpush1.msra.mxu0 0.0
  %2409 = vmatprep.subr.mxu0 0.0
  %2410 = vmatpush1.msra.mxu0 0.0
  %2411 = vmatprep.subr.mxu0 0.0
  %2412 = vmatpush1.msra.mxu0 0.0
  %2413 = vmatprep.subr.mxu0 0.0
  %2414 = vmatpush1.msra.mxu0 0.0
  %2415 = vmatprep.subr.mxu0 0.0
  %2416 = vmatpush1.msra.mxu0 0.0
  %2417 = vmatprep.subr.mxu0 0.0
  %2418 = vmatpush1.msra.mxu0 0.0
  %2419 = vmatprep.subr.mxu0 0.0
  %2420 = vmatpush1.msra.mxu0 0.0
  %2421 = vmatprep.subr.mxu0 0.0
  %2422 = vmatpush1.msra.mxu0 0.0
  %2423 = vmatprep.subr.mxu0 0.0
  %2424 = vmatpush1.msra.mxu0 0.0
  %2425 = vmatprep.subr.mxu0 0.0
  %2426 = vmatpush1.msra.mxu0 0.0
  %2427 = vmatprep.subr.mxu0 0.0
  %2428 = vmatpush1.msra.mxu0 0.0
  %2429 = vmatprep.subr.mxu0 0.0
  %2430 = vmatpush1.msra.mxu0 0.0
  %2431 = vmatprep.subr.mxu0 0.0
  %2432 = vmatpush1.msra.mxu0 0.0
  %2433 = vmatprep.subr.mxu0 0.0
  %2434 = vmatpush1.msra.mxu0 0.0
  %2435 = vmatprep.mubr.f32.mxu0 0.0
  %2436 = vmatmul.mubr.f32.gmra.mrb[0].mxu0 %v2369
  %v2437 = vpop.f32.mrb[0].mxu0
  %v2438 = vadd.f32 %v2363, %v2437
  %v2439 = vpop.f32.mrb[0].mxu0
  %2440 = vdwg.mxu0
  %v2441 = vadd.f32 %v2438, %v175
  %v2442 = vmax.f32 %v2441, 0.0
  %v2444 = vsel %vm189, %v2442, 0
  %2446 = vmatprep.subr.mxu0 0.0
  %2447 = vmatpush1.msra.mxu0 %v177
  %2448 = vmatprep.subr.mxu0 0.0
  %2449 = vmatpush1.msra.mxu0 %v178
  %2450 = vmatprep.subr.mxu0 0.0
  %2451 = vmatpush1.msra.mxu0 %v179
  %2452 = vmatprep.subr.mxu0 0.0
  %2453 = vmatpush1.msra.mxu0 %v180
  %2454 = vmatprep.subr.mxu0 0.0
  %2455 = vmatpush1.msra.mxu0 0.0
  %2456 = vmatprep.subr.mxu0 0.0
  %2457 = vmatpush1.msra.mxu0 0.0
  %2458 = vmatprep.subr.mxu0 0.0
  %2459 = vmatpush1.msra.mxu0 0.0
  %2460 = vmatprep.subr.mxu0 0.0
  %2461 = vmatpush1.msra.mxu0 0.0
  %2462 = vmatprep.subr.mxu0 0.0
  %2463 = vmatpush1.msra.mxu0 0.0
  %2464 = vmatprep.subr.mxu0 0.0
  %2465 = vmatpush1.msra.mxu0 0.0
  %2466 = vmatprep.subr.mxu0 0.0
  %2467 = vmatpush1.msra.mxu0 0.0
  %2468 = vmatprep.subr.mxu0 0.0
  %2469 = vmatpush1.msra.mxu0 0.0
  %2470 = vmatprep.subr.mxu0 0.0
  %2471 = vmatpush1.msra.mxu0 0.0
  %2472 = vmatprep.subr.mxu0 0.0
  %2473 = vmatpush1.msra.mxu0 0.0
  %2474 = vmatprep.subr.mxu0 0.0
  %2475 = vmatpush1.msra.mxu0 0.0
  %2476 = vmatprep.subr.mxu0 0.0
  %2477 = vmatpush1.msra.mxu0 0.0
  %2478 = vmatprep.subr.mxu0 0.0
  %2479 = vmatpush1.msra.mxu0 0.0
  %2480 = vmatprep.subr.mxu0 0.0
  %2481 = vmatpush1.msra.mxu0 0.0
  %2482 = vmatprep.subr.mxu0 0.0
  %2483 = vmatpush1.msra.mxu0 0.0
  %2484 = vmatprep.subr.mxu0 0.0
  %2485 = vmatpush1.msra.mxu0 0.0
  %2486 = vmatprep.subr.mxu0 0.0
  %2487 = vmatpush1.msra.mxu0 0.0
  %2488 = vmatprep.subr.mxu0 0.0
  %2489 = vmatpush1.msra.mxu0 0.0
  %2490 = vmatprep.subr.mxu0 0.0
  %2491 = vmatpush1.msra.mxu0 0.0
  %2492 = vmatprep.subr.mxu0 0.0
  %2493 = vmatpush1.msra.mxu0 0.0
  %2494 = vmatprep.subr.mxu0 0.0
  %2495 = vmatpush1.msra.mxu0 0.0
  %2496 = vmatprep.subr.mxu0 0.0
  %2497 = vmatpush1.msra.mxu0 0.0
  %2498 = vmatprep.subr.mxu0 0.0
  %2499 = vmatpush1.msra.mxu0 0.0
  %2500 = vmatprep.subr.mxu0 0.0
  %2501 = vmatpush1.msra.mxu0 0.0
  %2502 = vmatprep.subr.mxu0 0.0
  %2503 = vmatpush1.msra.mxu0 0.0
  %2504 = vmatprep.subr.mxu0 0.0
  %2505 = vmatpush1.msra.mxu0 0.0
  %2506 = vmatprep.subr.mxu0 0.0
  %2507 = vmatpush1.msra.mxu0 0.0
  %2508 = vmatprep.subr.mxu0 0.0
  %2509 = vmatpush1.msra.mxu0 0.0
  %2510 = vmatprep.mubr.f32.mxu0 0.0
  %2511 = vmatmul.mubr.f32.gmra.mrb[0].mxu0 %v2444
  %v2512 = vpop.f32.mrb[0].mxu0
  %v2513 = vadd.f32 %v186, %v2512
  %v2514 = vpop.f32.mrb[0].mxu0
  %2515 = vdwg.mxu0
  %v2516 = vsel %vm1348, %v2513, -inf
  %2517 = vmax.xlane.f32.xlu0 %v2516
  %v2518 = vpop.xlane.xlu0 %2517
  %v2519 = vsub.f32 %v2513, %v2518
  %v2520 = vmul.f32 %v2519, 1.442695
  %v2521 = vpow.pop %v2520
  %v2522 = vsel %vm1348, %v2521, 0.0
  %2523 = vadd.xlane.f32.xlu0 %v2522
  %v2524 = vpop.xlane.xlu0 %2523
  %v2525 = vlog2.pop %v2524
  %v2526 = vmul.f32 %v2525, 0.6931472
  %v2527 = vsub.f32 %v2519, %v2526
  %s2528 = scalar_lea.vmem %s20, 8
  %2529 = vst.msk [vmem:[%s2528] sm:$0xff] %vm1348, %v2527
  %s2530 = scalar_lea.vmem %s0, 16
  %v2531 = vld [vmem:[%s2530] sm:$0xff]
  %2532 = vmatprep.subr.mxu0 0.0
  %2533 = vmatpush1.msra.mxu0 %v69
  %2534 = vmatprep.subr.mxu0 0.0
  %2535 = vmatpush1.msra.mxu0 %v70
  %2536 = vmatprep.subr.mxu0 0.0
  %2537 = vmatpush1.msra.mxu0 %v71
  %2538 = vmatprep.subr.mxu0 0.0
  %2539 = vmatpush1.msra.mxu0 %v72
  %2540 = vmatprep.subr.mxu0 0.0
  %2541 = vmatpush1.msra.mxu0 0.0
  %2542 = vmatprep.subr.mxu0 0.0
  %2543 = vmatpush1.msra.mxu0 0.0
  %2544 = vmatprep.subr.mxu0 0.0
  %2545 = vmatpush1.msra.mxu0 0.0
  %2546 = vmatprep.subr.mxu0 0.0
  %2547 = vmatpush1.msra.mxu0 0.0
  %2548 = vmatprep.subr.mxu0 0.0
  %2549 = vmatpush1.msra.mxu0 0.0
  %2550 = vmatprep.subr.mxu0 0.0
  %2551 = vmatpush1.msra.mxu0 0.0
  %2552 = vmatprep.subr.mxu0 0.0
  %2553 = vmatpush1.msra.mxu0 0.0
  %2554 = vmatprep.subr.mxu0 0.0
  %2555 = vmatpush1.msra.mxu0 0.0
  %2556 = vmatprep.subr.mxu0 0.0
  %2557 = vmatpush1.msra.mxu0 0.0
  %2558 = vmatprep.subr.mxu0 0.0
  %2559 = vmatpush1.msra.mxu0 0.0
  %2560 = vmatprep.subr.mxu0 0.0
  %2561 = vmatpush1.msra.mxu0 0.0
  %2562 = vmatprep.subr.mxu0 0.0
  %2563 = vmatpush1.msra.mxu0 0.0
  %2564 = vmatprep.subr.mxu0 0.0
  %2565 = vmatpush1.msra.mxu0 0.0
  %2566 = vmatprep.subr.mxu0 0.0
  %2567 = vmatpush1.msra.mxu0 0.0
  %2568 = vmatprep.subr.mxu0 0.0
  %2569 = vmatpush1.msra.mxu0 0.0
  %2570 = vmatprep.subr.mxu0 0.0
  %2571 = vmatpush1.msra.mxu0 0.0
  %2572 = vmatprep.subr.mxu0 0.0
  %2573 = vmatpush1.msra.mxu0 0.0
  %2574 = vmatprep.subr.mxu0 0.0
  %2575 = vmatpush1.msra.mxu0 0.0
  %2576 = vmatprep.subr.mxu0 0.0
  %2577 = vmatpush1.msra.mxu0 0.0
  %2578 = vmatprep.subr.mxu0 0.0
  %2579 = vmatpush1.msra.mxu0 0.0
  %2580 = vmatprep.subr.mxu0 0.0
  %2581 = vmatpush1.msra.mxu0 0.0
  %2582 = vmatprep.subr.mxu0 0.0
  %2583 = vmatpush1.msra.mxu0 0.0
  %2584 = vmatprep.subr.mxu0 0.0
  %2585 = vmatpush1.msra.mxu0 0.0
  %2586 = vmatprep.subr.mxu0 0.0
  %2587 = vmatpush1.msra.mxu0 0.0
  %2588 = vmatprep.subr.mxu0 0.0
  %2589 = vmatpush1.msra.mxu0 0.0
  %2590 = vmatprep.subr.mxu0 0.0
  %2591 = vmatpush1.msra.mxu0 0.0
  %2592 = vmatprep.subr.mxu0 0.0
  %2593 = vmatpush1.msra.mxu0 0.0
  %2594 = vmatprep.subr.mxu0 0.0
  %2595 = vmatpush1.msra.mxu0 0.0
  %2596 = vmatprep.mubr.f32.mxu0 0.0
  %2597 = vmatmul.mubr.f32.gmra.mrb[0].mxu0 %v2369
  %v2598 = vpop.f32.mrb[0].mxu0
  %v2599 = vadd.f32 0.0, %v2598
  %v2600 = vpop.f32.mrb[0].mxu0
  %2601 = vdwg.mxu0
  %v2603 = vsel %vm189, %v2531, 0
  %2605 = vmatprep.subr.mxu0 0.0
  %2606 = vmatpush1.msra.mxu0 %v65
  %2607 = vmatprep.subr.mxu0 0.0
  %2608 = vmatpush1.msra.mxu0 %v66
  %2609 = vmatprep.subr.mxu0 0.0
  %2610 = vmatpush1.msra.mxu0 %v67
  %2611 = vmatprep.subr.mxu0 0.0
  %2612 = vmatpush1.msra.mxu0 %v68
  %2613 = vmatprep.subr.mxu0 0.0
  %2614 = vmatpush1.msra.mxu0 0.0
  %2615 = vmatprep.subr.mxu0 0.0
  %2616 = vmatpush1.msra.mxu0 0.0
  %2617 = vmatprep.subr.mxu0 0.0
  %2618 = vmatpush1.msra.mxu0 0.0
  %2619 = vmatprep.subr.mxu0 0.0
  %2620 = vmatpush1.msra.mxu0 0.0
  %2621 = vmatprep.subr.mxu0 0.0
  %2622 = vmatpush1.msra.mxu0 0.0
  %2623 = vmatprep.subr.mxu0 0.0
  %2624 = vmatpush1.msra.mxu0 0.0
  %2625 = vmatprep.subr.mxu0 0.0
  %2626 = vmatpush1.msra.mxu0 0.0
  %2627 = vmatprep.subr.mxu0 0.0
  %2628 = vmatpush1.msra.mxu0 0.0
  %2629 = vmatprep.subr.mxu0 0.0
  %2630 = vmatpush1.msra.mxu0 0.0
  %2631 = vmatprep.subr.mxu0 0.0
  %2632 = vmatpush1.msra.mxu0 0.0
  %2633 = vmatprep.subr.mxu0 0.0
  %2634 = vmatpush1.msra.mxu0 0.0
  %2635 = vmatprep.subr.mxu0 0.0
  %2636 = vmatpush1.msra.mxu0 0.0
  %2637 = vmatprep.subr.mxu0 0.0
  %2638 = vmatpush1.msra.mxu0 0.0
  %2639 = vmatprep.subr.mxu0 0.0
  %2640 = vmatpush1.msra.mxu0 0.0
  %2641 = vmatprep.subr.mxu0 0.0
  %2642 = vmatpush1.msra.mxu0 0.0
  %2643 = vmatprep.subr.mxu0 0.0
  %2644 = vmatpush1.msra.mxu0 0.0
  %2645 = vmatprep.subr.mxu0 0.0
  %2646 = vmatpush1.msra.mxu0 0.0
  %2647 = vmatprep.subr.mxu0 0.0
  %2648 = vmatpush1.msra.mxu0 0.0
  %2649 = vmatprep.subr.mxu0 0.0
  %2650 = vmatpush1.msra.mxu0 0.0
  %2651 = vmatprep.subr.mxu0 0.0
  %2652 = vmatpush1.msra.mxu0 0.0
  %2653 = vmatprep.subr.mxu0 0.0
  %2654 = vmatpush1.msra.mxu0 0.0
  %2655 = vmatprep.subr.mxu0 0.0
  %2656 = vmatpush1.msra.mxu0 0.0
  %2657 = vmatprep.subr.mxu0 0.0
  %2658 = vmatpush1.msra.mxu0 0.0
  %2659 = vmatprep.subr.mxu0 0.0
  %2660 = vmatpush1.msra.mxu0 0.0
  %2661 = vmatprep.subr.mxu0 0.0
  %2662 = vmatpush1.msra.mxu0 0.0
  %2663 = vmatprep.subr.mxu0 0.0
  %2664 = vmatpush1.msra.mxu0 0.0
  %2665 = vmatprep.subr.mxu0 0.0
  %2666 = vmatpush1.msra.mxu0 0.0
  %2667 = vmatprep.subr.mxu0 0.0
  %2668 = vmatpush1.msra.mxu0 0.0
  %2669 = vmatprep.mubr.f32.mxu0 0.0
  %2670 = vmatmul.mubr.f32.gmra.mrb[0].mxu0 %v2603
  %v2671 = vpop.f32.mrb[0].mxu0
  %v2672 = vadd.f32 %v2599, %v2671
  %v2673 = vpop.f32.mrb[0].mxu0
  %2674 = vdwg.mxu0
  %v2675 = vadd.f32 %v2672, %v78
  %v2676 = vxor.u32 %v2675, 2147483648
  %v2677 = vmul.f32 %v2676, 1.442695
  %v2678 = vpow.pop %v2677
  %v2679 = vadd.f32 %v2678, 1.0
  %v2680 = vrcp.pop %v2679
  %v2681 = vmul.f32 1.0, %v2680
  %v2682 = vtanh.pop %v2675
  %v2683 = vmul.f32 %v2681, %v1525
  %2685 = vrot.lane.b32.xlu0 %v2682, 64
  %v2686 = vpop.permute.xlu0 %2685
  %v2688 = vmul.f32 %v2681, %v2686
  %2690 = vrot.lane.b32.xlu0 %v2688, 32
  %v2691 = vpop.permute.xlu0 %2690
  %v2693 = vadd.f32 %v2683, %v2691
  %v2694 = vtanh.pop %v2693
  %2696 = vrot.lane.b32.xlu0 %v2694, 64
  %v2697 = vpop.permute.xlu0 %2696
  %v2699 = vmul.f32 %v2681, %v2697
  %2701 = vrot.lane.b32.xlu0 %v2693, 96
  %v2702 = vpop.permute.xlu0 %2701
  %v2703 = vsel %vm189, %v2702, 0
  %2705 = vmatprep.subr.mxu0 0.0
  %2706 = vmatpush1.msra.mxu0 %v84
  %2707 = vmatprep.subr.mxu0 0.0
  %2708 = vmatpush1.msra.mxu0 %v85
  %2709 = vmatprep.subr.mxu0 0.0
  %2710 = vmatpush1.msra.mxu0 %v86
  %2711 = vmatprep.subr.mxu0 0.0
  %2712 = vmatpush1.msra.mxu0 %v87
  %2713 = vmatprep.subr.mxu0 0.0
  %2714 = vmatpush1.msra.mxu0 0.0
  %2715 = vmatprep.subr.mxu0 0.0
  %2716 = vmatpush1.msra.mxu0 0.0
  %2717 = vmatprep.subr.mxu0 0.0
  %2718 = vmatpush1.msra.mxu0 0.0
  %2719 = vmatprep.subr.mxu0 0.0
  %2720 = vmatpush1.msra.mxu0 0.0
  %2721 = vmatprep.subr.mxu0 0.0
  %2722 = vmatpush1.msra.mxu0 0.0
  %2723 = vmatprep.subr.mxu0 0.0
  %2724 = vmatpush1.msra.mxu0 0.0
  %2725 = vmatprep.subr.mxu0 0.0
  %2726 = vmatpush1.msra.mxu0 0.0
  %2727 = vmatprep.subr.mxu0 0.0
  %2728 = vmatpush1.msra.mxu0 0.0
  %2729 = vmatprep.subr.mxu0 0.0
  %2730 = vmatpush1.msra.mxu0 0.0
  %2731 = vmatprep.subr.mxu0 0.0
  %2732 = vmatpush1.msra.mxu0 0.0
  %2733 = vmatprep.subr.mxu0 0.0
  %2734 = vmatpush1.msra.mxu0 0.0
  %2735 = vmatprep.subr.mxu0 0.0
  %2736 = vmatpush1.msra.mxu0 0.0
  %2737 = vmatprep.subr.mxu0 0.0
  %2738 = vmatpush1.msra.mxu0 0.0
  %2739 = vmatprep.subr.mxu0 0.0
  %2740 = vmatpush1.msra.mxu0 0.0
  %2741 = vmatprep.subr.mxu0 0.0
  %2742 = vmatpush1.msra.mxu0 0.0
  %2743 = vmatprep.subr.mxu0 0.0
  %2744 = vmatpush1.msra.mxu0 0.0
  %2745 = vmatprep.subr.mxu0 0.0
  %2746 = vmatpush1.msra.mxu0 0.0
  %2747 = vmatprep.subr.mxu0 0.0
  %2748 = vmatpush1.msra.mxu0 0.0
  %2749 = vmatprep.subr.mxu0 0.0
  %2750 = vmatpush1.msra.mxu0 0.0
  %2751 = vmatprep.subr.mxu0 0.0
  %2752 = vmatpush1.msra.mxu0 0.0
  %2753 = vmatprep.subr.mxu0 0.0
  %2754 = vmatpush1.msra.mxu0 0.0
  %2755 = vmatprep.subr.mxu0 0.0
  %2756 = vmatpush1.msra.mxu0 0.0
  %2757 = vmatprep.subr.mxu0 0.0
  %2758 = vmatpush1.msra.mxu0 0.0
  %2759 = vmatprep.subr.mxu0 0.0
  %2760 = vmatpush1.msra.mxu0 0.0
  %2761 = vmatprep.subr.mxu0 0.0
  %2762 = vmatpush1.msra.mxu0 0.0
  %2763 = vmatprep.subr.mxu0 0.0
  %2764 = vmatpush1.msra.mxu0 0.0
  %2765 = vmatprep.subr.mxu0 0.0
  %2766 = vmatpush1.msra.mxu0 0.0
  %2767 = vmatprep.subr.mxu0 0.0
  %2768 = vmatpush1.msra.mxu0 0.0
  %2769 = vmatprep.mubr.f32.mxu0 0.0
  %2770 = vmatmul.mubr.f32.gmra.mrb[0].mxu0 %v2703
  %v2771 = vpop.f32.mrb[0].mxu0
  %v2772 = vadd.f32 0.0, %v2771
  %v2773 = vpop.f32.mrb[0].mxu0
  %2774 = vdwg.mxu0
  %2775 = vmatprep.subr.mxu0 0.0
  %2776 = vmatpush1.msra.mxu0 %v80
  %2777 = vmatprep.subr.mxu0 0.0
  %2778 = vmatpush1.msra.mxu0 %v81
  %2779 = vmatprep.subr.mxu0 0.0
  %2780 = vmatpush1.msra.mxu0 %v82
  %2781 = vmatprep.subr.mxu0 0.0
  %2782 = vmatpush1.msra.mxu0 %v83
  %2783 = vmatprep.subr.mxu0 0.0
  %2784 = vmatpush1.msra.mxu0 0.0
  %2785 = vmatprep.subr.mxu0 0.0
  %2786 = vmatpush1.msra.mxu0 0.0
  %2787 = vmatprep.subr.mxu0 0.0
  %2788 = vmatpush1.msra.mxu0 0.0
  %2789 = vmatprep.subr.mxu0 0.0
  %2790 = vmatpush1.msra.mxu0 0.0
  %2791 = vmatprep.subr.mxu0 0.0
  %2792 = vmatpush1.msra.mxu0 0.0
  %2793 = vmatprep.subr.mxu0 0.0
  %2794 = vmatpush1.msra.mxu0 0.0
  %2795 = vmatprep.subr.mxu0 0.0
  %2796 = vmatpush1.msra.mxu0 0.0
  %2797 = vmatprep.subr.mxu0 0.0
  %2798 = vmatpush1.msra.mxu0 0.0
  %2799 = vmatprep.subr.mxu0 0.0
  %2800 = vmatpush1.msra.mxu0 0.0
  %2801 = vmatprep.subr.mxu0 0.0
  %2802 = vmatpush1.msra.mxu0 0.0
  %2803 = vmatprep.subr.mxu0 0.0
  %2804 = vmatpush1.msra.mxu0 0.0
  %2805 = vmatprep.subr.mxu0 0.0
  %2806 = vmatpush1.msra.mxu0 0.0
  %2807 = vmatprep.subr.mxu0 0.0
  %2808 = vmatpush1.msra.mxu0 0.0
  %2809 = vmatprep.subr.mxu0 0.0
  %2810 = vmatpush1.msra.mxu0 0.0
  %2811 = vmatprep.subr.mxu0 0.0
  %2812 = vmatpush1.msra.mxu0 0.0
  %2813 = vmatprep.subr.mxu0 0.0
  %2814 = vmatpush1.msra.mxu0 0.0
  %2815 = vmatprep.subr.mxu0 0.0
  %2816 = vmatpush1.msra.mxu0 0.0
  %2817 = vmatprep.subr.mxu0 0.0
  %2818 = vmatpush1.msra.mxu0 0.0
  %2819 = vmatprep.subr.mxu0 0.0
  %2820 = vmatpush1.msra.mxu0 0.0
  %2821 = vmatprep.subr.mxu0 0.0
  %2822 = vmatpush1.msra.mxu0 0.0
  %2823 = vmatprep.subr.mxu0 0.0
  %2824 = vmatpush1.msra.mxu0 0.0
  %2825 = vmatprep.subr.mxu0 0.0
  %2826 = vmatpush1.msra.mxu0 0.0
  %2827 = vmatprep.subr.mxu0 0.0
  %2828 = vmatpush1.msra.mxu0 0.0
  %2829 = vmatprep.subr.mxu0 0.0
  %2830 = vmatpush1.msra.mxu0 0.0
  %2831 = vmatprep.subr.mxu0 0.0
  %2832 = vmatpush1.msra.mxu0 0.0
  %2833 = vmatprep.subr.mxu0 0.0
  %2834 = vmatpush1.msra.mxu0 0.0
  %2835 = vmatprep.subr.mxu0 0.0
  %2836 = vmatpush1.msra.mxu0 0.0
  %2837 = vmatprep.subr.mxu0 0.0
  %2838 = vmatpush1.msra.mxu0 0.0
  %2839 = vmatprep.mubr.f32.mxu0 0.0
  %2840 = vmatmul.mubr.f32.gmra.mrb[0].mxu0 %v1535
  %v2841 = vpop.f32.mrb[0].mxu0
  %v2842 = vadd.f32 %v2772, %v2841
  %v2843 = vpop.f32.mrb[0].mxu0
  %2844 = vdwg.mxu0
  %v2845 = vadd.f32 %v2842, %v93
  %v2846 = vmax.f32 %v2845, 0.0
  %v2848 = vsel %vm189, %v2846, 0
  %2850 = vmatprep.subr.mxu0 0.0
  %2851 = vmatpush1.msra.mxu0 %v95
  %2852 = vmatprep.subr.mxu0 0.0
  %2853 = vmatpush1.msra.mxu0 %v96
  %2854 = vmatprep.subr.mxu0 0.0
  %2855 = vmatpush1.msra.mxu0 %v97
  %2856 = vmatprep.subr.mxu0 0.0
  %2857 = vmatpush1.msra.mxu0 %v98
  %2858 = vmatprep.subr.mxu0 0.0
  %2859 = vmatpush1.msra.mxu0 0.0
  %2860 = vmatprep.subr.mxu0 0.0
  %2861 = vmatpush1.msra.mxu0 0.0
  %2862 = vmatprep.subr.mxu0 0.0
  %2863 = vmatpush1.msra.mxu0 0.0
  %2864 = vmatprep.subr.mxu0 0.0
  %2865 = vmatpush1.msra.mxu0 0.0
  %2866 = vmatprep.subr.mxu0 0.0
  %2867 = vmatpush1.msra.mxu0 0.0
  %2868 = vmatprep.subr.mxu0 0.0
  %2869 = vmatpush1.msra.mxu0 0.0
  %2870 = vmatprep.subr.mxu0 0.0
  %2871 = vmatpush1.msra.mxu0 0.0
  %2872 = vmatprep.subr.mxu0 0.0
  %2873 = vmatpush1.msra.mxu0 0.0
  %2874 = vmatprep.subr.mxu0 0.0
  %2875 = vmatpush1.msra.mxu0 0.0
  %2876 = vmatprep.subr.mxu0 0.0
  %2877 = vmatpush1.msra.mxu0 0.0
  %2878 = vmatprep.subr.mxu0 0.0
  %2879 = vmatpush1.msra.mxu0 0.0
  %2880 = vmatprep.subr.mxu0 0.0
  %2881 = vmatpush1.msra.mxu0 0.0
  %2882 = vmatprep.subr.mxu0 0.0
  %2883 = vmatpush1.msra.mxu0 0.0
  %2884 = vmatprep.subr.mxu0 0.0
  %2885 = vmatpush1.msra.mxu0 0.0
  %2886 = vmatprep.subr.mxu0 0.0
  %2887 = vmatpush1.msra.mxu0 0.0
  %2888 = vmatprep.subr.mxu0 0.0
  %2889 = vmatpush1.msra.mxu0 0.0
  %2890 = vmatprep.subr.mxu0 0.0
  %2891 = vmatpush1.msra.mxu0 0.0
  %2892 = vmatprep.subr.mxu0 0.0
  %2893 = vmatpush1.msra.mxu0 0.0
  %2894 = vmatprep.subr.mxu0 0.0
  %2895 = vmatpush1.msra.mxu0 0.0
  %2896 = vmatprep.subr.mxu0 0.0
  %2897 = vmatpush1.msra.mxu0 0.0
  %2898 = vmatprep.subr.mxu0 0.0
  %2899 = vmatpush1.msra.mxu0 0.0
  %2900 = vmatprep.subr.mxu0 0.0
  %2901 = vmatpush1.msra.mxu0 0.0
  %2902 = vmatprep.subr.mxu0 0.0
  %2903 = vmatpush1.msra.mxu0 0.0
  %2904 = vmatprep.subr.mxu0 0.0
  %2905 = vmatpush1.msra.mxu0 0.0
  %2906 = vmatprep.subr.mxu0 0.0
  %2907 = vmatpush1.msra.mxu0 0.0
  %2908 = vmatprep.subr.mxu0 0.0
  %2909 = vmatpush1.msra.mxu0 0.0
  %2910 = vmatprep.subr.mxu0 0.0
  %2911 = vmatpush1.msra.mxu0 0.0
  %2912 = vmatprep.subr.mxu0 0.0
  %2913 = vmatpush1.msra.mxu0 0.0
  %2914 = vmatprep.mubr.f32.mxu0 0.0
  %2915 = vmatmul.mubr.f32.gmra.mrb[0].mxu0 %v2848
  %v2916 = vpop.f32.mrb[0].mxu0
  %v2917 = vadd.f32 %v104, %v2916
  %v2918 = vpop.f32.mrb[0].mxu0
  %2919 = vdwg.mxu0
  %v2920 = vsel %vm581, %v2917, -inf
  %2921 = vmax.xlane.f32.xlu0 %v2920
  %v2922 = vpop.xlane.xlu0 %2921
  %v2923 = vsub.f32 %v2917, %v2922
  %v2924 = vmul.f32 %v2923, 1.442695
  %v2925 = vpow.pop %v2924
  %v2926 = vsel %vm581, %v2925, 0.0
  %2927 = vadd.xlane.f32.xlu0 %v2926
  %v2928 = vpop.xlane.xlu0 %2927
  %v2929 = vrcp.pop %v2928
  %v2930 = vmul.f32 %v2925, %v2929
  %v2932 = vmul.f32 %v2930, %v1534
  %v2933 = vmul.f32 %v2930, %v2693
  %2935 = vrot.lane.b32.xlu0 %v2933, 96
  %v2936 = vpop.permute.xlu0 %2935
  %v2937 = vsel %vm189, %v2936, 0
  %2939 = vmatprep.subr.mxu0 0.0
  %2940 = vmatpush1.msra.mxu0 %v110
  %2941 = vmatprep.subr.mxu0 0.0
  %2942 = vmatpush1.msra.mxu0 %v111
  %2943 = vmatprep.subr.mxu0 0.0
  %2944 = vmatpush1.msra.mxu0 %v112
  %2945 = vmatprep.subr.mxu0 0.0
  %2946 = vmatpush1.msra.mxu0 %v113
  %2947 = vmatprep.subr.mxu0 0.0
  %2948 = vmatpush1.msra.mxu0 0.0
  %2949 = vmatprep.subr.mxu0 0.0
  %2950 = vmatpush1.msra.mxu0 0.0
  %2951 = vmatprep.subr.mxu0 0.0
  %2952 = vmatpush1.msra.mxu0 0.0
  %2953 = vmatprep.subr.mxu0 0.0
  %2954 = vmatpush1.msra.mxu0 0.0
  %2955 = vmatprep.subr.mxu0 0.0
  %2956 = vmatpush1.msra.mxu0 0.0
  %2957 = vmatprep.subr.mxu0 0.0
  %2958 = vmatpush1.msra.mxu0 0.0
  %2959 = vmatprep.subr.mxu0 0.0
  %2960 = vmatpush1.msra.mxu0 0.0
  %2961 = vmatprep.subr.mxu0 0.0
  %2962 = vmatpush1.msra.mxu0 0.0
  %2963 = vmatprep.subr.mxu0 0.0
  %2964 = vmatpush1.msra.mxu0 0.0
  %2965 = vmatprep.subr.mxu0 0.0
  %2966 = vmatpush1.msra.mxu0 0.0
  %2967 = vmatprep.subr.mxu0 0.0
  %2968 = vmatpush1.msra.mxu0 0.0
  %2969 = vmatprep.subr.mxu0 0.0
  %2970 = vmatpush1.msra.mxu0 0.0
  %2971 = vmatprep.subr.mxu0 0.0
  %2972 = vmatpush1.msra.mxu0 0.0
  %2973 = vmatprep.subr.mxu0 0.0
  %2974 = vmatpush1.msra.mxu0 0.0
  %2975 = vmatprep.subr.mxu0 0.0
  %2976 = vmatpush1.msra.mxu0 0.0
  %2977 = vmatprep.subr.mxu0 0.0
  %2978 = vmatpush1.msra.mxu0 0.0
  %2979 = vmatprep.subr.mxu0 0.0
  %2980 = vmatpush1.msra.mxu0 0.0
  %2981 = vmatprep.subr.mxu0 0.0
  %2982 = vmatpush1.msra.mxu0 0.0
  %2983 = vmatprep.subr.mxu0 0.0
  %2984 = vmatpush1.msra.mxu0 0.0
  %2985 = vmatprep.subr.mxu0 0.0
  %2986 = vmatpush1.msra.mxu0 0.0
  %2987 = vmatprep.subr.mxu0 0.0
  %2988 = vmatpush1.msra.mxu0 0.0
  %2989 = vmatprep.subr.mxu0 0.0
  %2990 = vmatpush1.msra.mxu0 0.0
  %2991 = vmatprep.subr.mxu0 0.0
  %2992 = vmatpush1.msra.mxu0 0.0
  %2993 = vmatprep.subr.mxu0 0.0
  %2994 = vmatpush1.msra.mxu0 0.0
  %2995 = vmatprep.subr.mxu0 0.0
  %2996 = vmatpush1.msra.mxu0 0.0
  %2997 = vmatprep.subr.mxu0 0.0
  %2998 = vmatpush1.msra.mxu0 0.0
  %2999 = vmatprep.subr.mxu0 0.0
  %3000 = vmatpush1.msra.mxu0 0.0
  %3001 = vmatprep.subr.mxu0 0.0
  %3002 = vmatpush1.msra.mxu0 0.0
  %3003 = vmatprep.mubr.f32.mxu0 0.0
  %3004 = vmatmul.mubr.f32.gmra.mrb[0].mxu0 %v2937
  %v3005 = vpop.f32.mrb[0].mxu0
  %v3006 = vadd.f32 0.0, %v3005
  %v3007 = vpop.f32.mrb[0].mxu0
  %3008 = vdwg.mxu0
  %v3010 = vsel %vm189, %v2932, 0
  %3012 = vmatprep.subr.mxu0 0.0
  %3013 = vmatpush1.msra.mxu0 %v106
  %3014 = vmatprep.subr.mxu0 0.0
  %3015 = vmatpush1.msra.mxu0 %v107
  %3016 = vmatprep.subr.mxu0 0.0
  %3017 = vmatpush1.msra.mxu0 %v108
  %3018 = vmatprep.subr.mxu0 0.0
  %3019 = vmatpush1.msra.mxu0 %v109
  %3020 = vmatprep.subr.mxu0 0.0
  %3021 = vmatpush1.msra.mxu0 0.0
  %3022 = vmatprep.subr.mxu0 0.0
  %3023 = vmatpush1.msra.mxu0 0.0
  %3024 = vmatprep.subr.mxu0 0.0
  %3025 = vmatpush1.msra.mxu0 0.0
  %3026 = vmatprep.subr.mxu0 0.0
  %3027 = vmatpush1.msra.mxu0 0.0
  %3028 = vmatprep.subr.mxu0 0.0
  %3029 = vmatpush1.msra.mxu0 0.0
  %3030 = vmatprep.subr.mxu0 0.0
  %3031 = vmatpush1.msra.mxu0 0.0
  %3032 = vmatprep.subr.mxu0 0.0
  %3033 = vmatpush1.msra.mxu0 0.0
  %3034 = vmatprep.subr.mxu0 0.0
  %3035 = vmatpush1.msra.mxu0 0.0
  %3036 = vmatprep.subr.mxu0 0.0
  %3037 = vmatpush1.msra.mxu0 0.0
  %3038 = vmatprep.subr.mxu0 0.0
  %3039 = vmatpush1.msra.mxu0 0.0
  %3040 = vmatprep.subr.mxu0 0.0
  %3041 = vmatpush1.msra.mxu0 0.0
  %3042 = vmatprep.subr.mxu0 0.0
  %3043 = vmatpush1.msra.mxu0 0.0
  %3044 = vmatprep.subr.mxu0 0.0
  %3045 = vmatpush1.msra.mxu0 0.0
  %3046 = vmatprep.subr.mxu0 0.0
  %3047 = vmatpush1.msra.mxu0 0.0
  %3048 = vmatprep.subr.mxu0 0.0
  %3049 = vmatpush1.msra.mxu0 0.0
  %3050 = vmatprep.subr.mxu0 0.0
  %3051 = vmatpush1.msra.mxu0 0.0
  %3052 = vmatprep.subr.mxu0 0.0
  %3053 = vmatpush1.msra.mxu0 0.0
  %3054 = vmatprep.subr.mxu0 0.0
  %3055 = vmatpush1.msra.mxu0 0.0
  %3056 = vmatprep.subr.mxu0 0.0
  %3057 = vmatpush1.msra.mxu0 0.0
  %3058 = vmatprep.subr.mxu0 0.0
  %3059 = vmatpush1.msra.mxu0 0.0
  %3060 = vmatprep.subr.mxu0 0.0
  %3061 = vmatpush1.msra.mxu0 0.0
  %3062 = vmatprep.subr.mxu0 0.0
  %3063 = vmatpush1.msra.mxu0 0.0
  %3064 = vmatprep.subr.mxu0 0.0
  %3065 = vmatpush1.msra.mxu0 0.0
  %3066 = vmatprep.subr.mxu0 0.0
  %3067 = vmatpush1.msra.mxu0 0.0
  %3068 = vmatprep.subr.mxu0 0.0
  %3069 = vmatpush1.msra.mxu0 0.0
  %3070 = vmatprep.subr.mxu0 0.0
  %3071 = vmatpush1.msra.mxu0 0.0
  %3072 = vmatprep.subr.mxu0 0.0
  %3073 = vmatpush1.msra.mxu0 0.0
  %3074 = vmatprep.subr.mxu0 0.0
  %3075 = vmatpush1.msra.mxu0 0.0
  %3076 = vmatprep.mubr.f32.mxu0 0.0
  %3077 = vmatmul.mubr.f32.gmra.mrb[0].mxu0 %v3010
  %v3078 = vpop.f32.mrb[0].mxu0
  %v3079 = vadd.f32 %v3006, %v3078
  %v3080 = vpop.f32.mrb[0].mxu0
  %3081 = vdwg.mxu0
  %v3082 = vadd.f32 %v3079, %v119
  %v3083 = vmax.f32 %v3082, 0.0
  %v3085 = vsel %vm189, %v3083, 0
  %3087 = vmatprep.subr.mxu0 0.0
  %3088 = vmatpush1.msra.mxu0 %v121
  %3089 = vmatprep.subr.mxu0 0.0
  %3090 = vmatpush1.msra.mxu0 %v122
  %3091 = vmatprep.subr.mxu0 0.0
  %3092 = vmatpush1.msra.mxu0 %v123
  %3093 = vmatprep.subr.mxu0 0.0
  %3094 = vmatpush1.msra.mxu0 %v124
  %3095 = vmatprep.subr.mxu0 0.0
  %3096 = vmatpush1.msra.mxu0 0.0
  %3097 = vmatprep.subr.mxu0 0.0
  %3098 = vmatpush1.msra.mxu0 0.0
  %3099 = vmatprep.subr.mxu0 0.0
  %3100 = vmatpush1.msra.mxu0 0.0
  %3101 = vmatprep.subr.mxu0 0.0
  %3102 = vmatpush1.msra.mxu0 0.0
  %3103 = vmatprep.subr.mxu0 0.0
  %3104 = vmatpush1.msra.mxu0 0.0
  %3105 = vmatprep.subr.mxu0 0.0
  %3106 = vmatpush1.msra.mxu0 0.0
  %3107 = vmatprep.subr.mxu0 0.0
  %3108 = vmatpush1.msra.mxu0 0.0
  %3109 = vmatprep.subr.mxu0 0.0
  %3110 = vmatpush1.msra.mxu0 0.0
  %3111 = vmatprep.subr.mxu0 0.0
  %3112 = vmatpush1.msra.mxu0 0.0
  %3113 = vmatprep.subr.mxu0 0.0
  %3114 = vmatpush1.msra.mxu0 0.0
  %3115 = vmatprep.subr.mxu0 0.0
  %3116 = vmatpush1.msra.mxu0 0.0
  %3117 = vmatprep.subr.mxu0 0.0
  %3118 = vmatpush1.msra.mxu0 0.0
  %3119 = vmatprep.subr.mxu0 0.0
  %3120 = vmatpush1.msra.mxu0 0.0
  %3121 = vmatprep.subr.mxu0 0.0
  %3122 = vmatpush1.msra.mxu0 0.0
  %3123 = vmatprep.subr.mxu0 0.0
  %3124 = vmatpush1.msra.mxu0 0.0
  %3125 = vmatprep.subr.mxu0 0.0
  %3126 = vmatpush1.msra.mxu0 0.0
  %3127 = vmatprep.subr.mxu0 0.0
  %3128 = vmatpush1.msra.mxu0 0.0
  %3129 = vmatprep.subr.mxu0 0.0
  %3130 = vmatpush1.msra.mxu0 0.0
  %3131 = vmatprep.subr.mxu0 0.0
  %3132 = vmatpush1.msra.mxu0 0.0
  %3133 = vmatprep.subr.mxu0 0.0
  %3134 = vmatpush1.msra.mxu0 0.0
  %3135 = vmatprep.subr.mxu0 0.0
  %3136 = vmatpush1.msra.mxu0 0.0
  %3137 = vmatprep.subr.mxu0 0.0
  %3138 = vmatpush1.msra.mxu0 0.0
  %3139 = vmatprep.subr.mxu0 0.0
  %3140 = vmatpush1.msra.mxu0 0.0
  %3141 = vmatprep.subr.mxu0 0.0
  %3142 = vmatpush1.msra.mxu0 0.0
  %3143 = vmatprep.subr.mxu0 0.0
  %3144 = vmatpush1.msra.mxu0 0.0
  %3145 = vmatprep.subr.mxu0 0.0
  %3146 = vmatpush1.msra.mxu0 0.0
  %3147 = vmatprep.subr.mxu0 0.0
  %3148 = vmatpush1.msra.mxu0 0.0
  %3149 = vmatprep.subr.mxu0 0.0
  %3150 = vmatpush1.msra.mxu0 0.0
  %3151 = vmatprep.mubr.f32.mxu0 0.0
  %3152 = vmatmul.mubr.f32.gmra.mrb[0].mxu0 %v3085
  %v3153 = vpop.f32.mrb[0].mxu0
  %v3154 = vadd.f32 %v130, %v3153
  %v3155 = vpop.f32.mrb[0].mxu0
  %3156 = vdwg.mxu0
  %v3157 = vtanh.pop %v3154
  %3158 = vmatprep.subr.mxu0 0.0
  %3159 = vmatpush1.msra.mxu0 %v136
  %3160 = vmatprep.subr.mxu0 0.0
  %3161 = vmatpush1.msra.mxu0 %v137
  %3162 = vmatprep.subr.mxu0 0.0
  %3163 = vmatpush1.msra.mxu0 %v138
  %3164 = vmatprep.subr.mxu0 0.0
  %3165 = vmatpush1.msra.mxu0 %v139
  %3166 = vmatprep.subr.mxu0 0.0
  %3167 = vmatpush1.msra.mxu0 0.0
  %3168 = vmatprep.subr.mxu0 0.0
  %3169 = vmatpush1.msra.mxu0 0.0
  %3170 = vmatprep.subr.mxu0 0.0
  %3171 = vmatpush1.msra.mxu0 0.0
  %3172 = vmatprep.subr.mxu0 0.0
  %3173 = vmatpush1.msra.mxu0 0.0
  %3174 = vmatprep.subr.mxu0 0.0
  %3175 = vmatpush1.msra.mxu0 0.0
  %3176 = vmatprep.subr.mxu0 0.0
  %3177 = vmatpush1.msra.mxu0 0.0
  %3178 = vmatprep.subr.mxu0 0.0
  %3179 = vmatpush1.msra.mxu0 0.0
  %3180 = vmatprep.subr.mxu0 0.0
  %3181 = vmatpush1.msra.mxu0 0.0
  %3182 = vmatprep.subr.mxu0 0.0
  %3183 = vmatpush1.msra.mxu0 0.0
  %3184 = vmatprep.subr.mxu0 0.0
  %3185 = vmatpush1.msra.mxu0 0.0
  %3186 = vmatprep.subr.mxu0 0.0
  %3187 = vmatpush1.msra.mxu0 0.0
  %3188 = vmatprep.subr.mxu0 0.0
  %3189 = vmatpush1.msra.mxu0 0.0
  %3190 = vmatprep.subr.mxu0 0.0
  %3191 = vmatpush1.msra.mxu0 0.0
  %3192 = vmatprep.subr.mxu0 0.0
  %3193 = vmatpush1.msra.mxu0 0.0
  %3194 = vmatprep.subr.mxu0 0.0
  %3195 = vmatpush1.msra.mxu0 0.0
  %3196 = vmatprep.subr.mxu0 0.0
  %3197 = vmatpush1.msra.mxu0 0.0
  %3198 = vmatprep.subr.mxu0 0.0
  %3199 = vmatpush1.msra.mxu0 0.0
  %3200 = vmatprep.subr.mxu0 0.0
  %3201 = vmatpush1.msra.mxu0 0.0
  %3202 = vmatprep.subr.mxu0 0.0
  %3203 = vmatpush1.msra.mxu0 0.0
  %3204 = vmatprep.subr.mxu0 0.0
  %3205 = vmatpush1.msra.mxu0 0.0
  %3206 = vmatprep.subr.mxu0 0.0
  %3207 = vmatpush1.msra.mxu0 0.0
  %3208 = vmatprep.subr.mxu0 0.0
  %3209 = vmatpush1.msra.mxu0 0.0
  %3210 = vmatprep.subr.mxu0 0.0
  %3211 = vmatpush1.msra.mxu0 0.0
  %3212 = vmatprep.subr.mxu0 0.0
  %3213 = vmatpush1.msra.mxu0 0.0
  %3214 = vmatprep.subr.mxu0 0.0
  %3215 = vmatpush1.msra.mxu0 0.0
  %3216 = vmatprep.subr.mxu0 0.0
  %3217 = vmatpush1.msra.mxu0 0.0
  %3218 = vmatprep.subr.mxu0 0.0
  %3219 = vmatpush1.msra.mxu0 0.0
  %3220 = vmatprep.subr.mxu0 0.0
  %3221 = vmatpush1.msra.mxu0 0.0
  %3222 = vmatprep.mubr.f32.mxu0 0.0
  %3223 = vmatmul.mubr.f32.gmra.mrb[0].mxu0 %v2937
  %v3224 = vpop.f32.mrb[0].mxu0
  %v3225 = vadd.f32 0.0, %v3224
  %v3226 = vpop.f32.mrb[0].mxu0
  %3227 = vdwg.mxu0
  %3228 = vmatprep.subr.mxu0 0.0
  %3229 = vmatpush1.msra.mxu0 %v132
  %3230 = vmatprep.subr.mxu0 0.0
  %3231 = vmatpush1.msra.mxu0 %v133
  %3232 = vmatprep.subr.mxu0 0.0
  %3233 = vmatpush1.msra.mxu0 %v134
  %3234 = vmatprep.subr.mxu0 0.0
  %3235 = vmatpush1.msra.mxu0 %v135
  %3236 = vmatprep.subr.mxu0 0.0
  %3237 = vmatpush1.msra.mxu0 0.0
  %3238 = vmatprep.subr.mxu0 0.0
  %3239 = vmatpush1.msra.mxu0 0.0
  %3240 = vmatprep.subr.mxu0 0.0
  %3241 = vmatpush1.msra.mxu0 0.0
  %3242 = vmatprep.subr.mxu0 0.0
  %3243 = vmatpush1.msra.mxu0 0.0
  %3244 = vmatprep.subr.mxu0 0.0
  %3245 = vmatpush1.msra.mxu0 0.0
  %3246 = vmatprep.subr.mxu0 0.0
  %3247 = vmatpush1.msra.mxu0 0.0
  %3248 = vmatprep.subr.mxu0 0.0
  %3249 = vmatpush1.msra.mxu0 0.0
  %3250 = vmatprep.subr.mxu0 0.0
  %3251 = vmatpush1.msra.mxu0 0.0
  %3252 = vmatprep.subr.mxu0 0.0
  %3253 = vmatpush1.msra.mxu0 0.0
  %3254 = vmatprep.subr.mxu0 0.0
  %3255 = vmatpush1.msra.mxu0 0.0
  %3256 = vmatprep.subr.mxu0 0.0
  %3257 = vmatpush1.msra.mxu0 0.0
  %3258 = vmatprep.subr.mxu0 0.0
  %3259 = vmatpush1.msra.mxu0 0.0
  %3260 = vmatprep.subr.mxu0 0.0
  %3261 = vmatpush1.msra.mxu0 0.0
  %3262 = vmatprep.subr.mxu0 0.0
  %3263 = vmatpush1.msra.mxu0 0.0
  %3264 = vmatprep.subr.mxu0 0.0
  %3265 = vmatpush1.msra.mxu0 0.0
  %3266 = vmatprep.subr.mxu0 0.0
  %3267 = vmatpush1.msra.mxu0 0.0
  %3268 = vmatprep.subr.mxu0 0.0
  %3269 = vmatpush1.msra.mxu0 0.0
  %3270 = vmatprep.subr.mxu0 0.0
  %3271 = vmatpush1.msra.mxu0 0.0
  %3272 = vmatprep.subr.mxu0 0.0
  %3273 = vmatpush1.msra.mxu0 0.0
  %3274 = vmatprep.subr.mxu0 0.0
  %3275 = vmatpush1.msra.mxu0 0.0
  %3276 = vmatprep.subr.mxu0 0.0
  %3277 = vmatpush1.msra.mxu0 0.0
  %3278 = vmatprep.subr.mxu0 0.0
  %3279 = vmatpush1.msra.mxu0 0.0
  %3280 = vmatprep.subr.mxu0 0.0
  %3281 = vmatpush1.msra.mxu0 0.0
  %3282 = vmatprep.subr.mxu0 0.0
  %3283 = vmatpush1.msra.mxu0 0.0
  %3284 = vmatprep.subr.mxu0 0.0
  %3285 = vmatpush1.msra.mxu0 0.0
  %3286 = vmatprep.subr.mxu0 0.0
  %3287 = vmatpush1.msra.mxu0 0.0
  %3288 = vmatprep.subr.mxu0 0.0
  %3289 = vmatpush1.msra.mxu0 0.0
  %3290 = vmatprep.subr.mxu0 0.0
  %3291 = vmatpush1.msra.mxu0 0.0
  %3292 = vmatprep.mubr.f32.mxu0 0.0
  %3293 = vmatmul.mubr.f32.gmra.mrb[0].mxu0 %v3010
  %v3294 = vpop.f32.mrb[0].mxu0
  %v3295 = vadd.f32 %v3225, %v3294
  %v3296 = vpop.f32.mrb[0].mxu0
  %3297 = vdwg.mxu0
  %3298 = vmatprep.subr.mxu0 0.0
  %3299 = vmatpush1.msra.mxu0 %v140
  %3300 = vmatprep.subr.mxu0 0.0
  %3301 = vmatpush1.msra.mxu0 %v141
  %3302 = vmatprep.subr.mxu0 0.0
  %3303 = vmatpush1.msra.mxu0 0.0
  %3304 = vmatprep.subr.mxu0 0.0
  %3305 = vmatpush1.msra.mxu0 0.0
  %3306 = vmatprep.subr.mxu0 0.0
  %3307 = vmatpush1.msra.mxu0 0.0
  %3308 = vmatprep.subr.mxu0 0.0
  %3309 = vmatpush1.msra.mxu0 0.0
  %3310 = vmatprep.subr.mxu0 0.0
  %3311 = vmatpush1.msra.mxu0 0.0
  %3312 = vmatprep.subr.mxu0 0.0
  %3313 = vmatpush1.msra.mxu0 0.0
  %3314 = vmatprep.subr.mxu0 0.0
  %3315 = vmatpush1.msra.mxu0 0.0
  %3316 = vmatprep.subr.mxu0 0.0
  %3317 = vmatpush1.msra.mxu0 0.0
  %3318 = vmatprep.subr.mxu0 0.0
  %3319 = vmatpush1.msra.mxu0 0.0
  %3320 = vmatprep.subr.mxu0 0.0
  %3321 = vmatpush1.msra.mxu0 0.0
  %3322 = vmatprep.subr.mxu0 0.0
  %3323 = vmatpush1.msra.mxu0 0.0
  %3324 = vmatprep.subr.mxu0 0.0
  %3325 = vmatpush1.msra.mxu0 0.0
  %3326 = vmatprep.subr.mxu0 0.0
  %3327 = vmatpush1.msra.mxu0 0.0
  %3328 = vmatprep.subr.mxu0 0.0
  %3329 = vmatpush1.msra.mxu0 0.0
  %3330 = vmatprep.subr.mxu0 0.0
  %3331 = vmatpush1.msra.mxu0 0.0
  %3332 = vmatprep.subr.mxu0 0.0
  %3333 = vmatpush1.msra.mxu0 0.0
  %3334 = vmatprep.subr.mxu0 0.0
  %3335 = vmatpush1.msra.mxu0 0.0
  %3336 = vmatprep.subr.mxu0 0.0
  %3337 = vmatpush1.msra.mxu0 0.0
  %3338 = vmatprep.subr.mxu0 0.0
  %3339 = vmatpush1.msra.mxu0 0.0
  %3340 = vmatprep.subr.mxu0 0.0
  %3341 = vmatpush1.msra.mxu0 0.0
  %3342 = vmatprep.subr.mxu0 0.0
  %3343 = vmatpush1.msra.mxu0 0.0
  %3344 = vmatprep.subr.mxu0 0.0
  %3345 = vmatpush1.msra.mxu0 0.0
  %3346 = vmatprep.subr.mxu0 0.0
  %3347 = vmatpush1.msra.mxu0 0.0
  %3348 = vmatprep.subr.mxu0 0.0
  %3349 = vmatpush1.msra.mxu0 0.0
  %3350 = vmatprep.subr.mxu0 0.0
  %3351 = vmatpush1.msra.mxu0 0.0
  %3352 = vmatprep.subr.mxu0 0.0
  %3353 = vmatpush1.msra.mxu0 0.0
  %3354 = vmatprep.subr.mxu0 0.0
  %3355 = vmatpush1.msra.mxu0 0.0
  %3356 = vmatprep.subr.mxu0 0.0
  %3357 = vmatpush1.msra.mxu0 0.0
  %3358 = vmatprep.subr.mxu0 0.0
  %3359 = vmatpush1.msra.mxu0 0.0
  %3360 = vmatprep.subr.mxu0 0.0
  %3361 = vmatpush1.msra.mxu0 0.0
  %3362 = vmatprep.mubr.f32.mxu0 0.0
  %3363 = vmatmul.mubr.f32.gmra.mrb[0].mxu0 %v2294
  %v3364 = vpop.f32.mrb[0].mxu0
  %v3365 = vadd.f32 0.0, %v3364
  %v3366 = vpop.f32.mrb[0].mxu0
  %3367 = vdwg.mxu0
  %v3368 = vadd.f32 %v3295, %v3365
  %v3369 = vadd.f32 %v3368, %v147
  %v3370 = vmax.f32 %v3369, 0.0
  %v3372 = vsel %vm581, %v3370, 0
  %3374 = vmatprep.subr.mxu0 0.0
  %3375 = vmatpush1.msra.mxu0 %v149
  %3376 = vmatprep.subr.mxu0 0.0
  %3377 = vmatpush1.msra.mxu0 %v150
  %3378 = vmatprep.subr.mxu0 0.0
  %3379 = vmatpush1.msra.mxu0 %v151
  %3380 = vmatprep.subr.mxu0 0.0
  %3381 = vmatpush1.msra.mxu0 %v152
  %3382 = vmatprep.subr.mxu0 0.0
  %3383 = vmatpush1.msra.mxu0 %v153
  %3384 = vmatprep.subr.mxu0 0.0
  %3385 = vmatpush1.msra.mxu0 %v154
  %3386 = vmatprep.subr.mxu0 0.0
  %3387 = vmatpush1.msra.mxu0 %v155
  %3388 = vmatprep.subr.mxu0 0.0
  %3389 = vmatpush1.msra.mxu0 %v156
  %3390 = vmatprep.subr.mxu0 0.0
  %3391 = vmatpush1.msra.mxu0 0.0
  %3392 = vmatprep.subr.mxu0 0.0
  %3393 = vmatpush1.msra.mxu0 0.0
  %3394 = vmatprep.subr.mxu0 0.0
  %3395 = vmatpush1.msra.mxu0 0.0
  %3396 = vmatprep.subr.mxu0 0.0
  %3397 = vmatpush1.msra.mxu0 0.0
  %3398 = vmatprep.subr.mxu0 0.0
  %3399 = vmatpush1.msra.mxu0 0.0
  %3400 = vmatprep.subr.mxu0 0.0
  %3401 = vmatpush1.msra.mxu0 0.0
  %3402 = vmatprep.subr.mxu0 0.0
  %3403 = vmatpush1.msra.mxu0 0.0
  %3404 = vmatprep.subr.mxu0 0.0
  %3405 = vmatpush1.msra.mxu0 0.0
  %3406 = vmatprep.subr.mxu0 0.0
  %3407 = vmatpush1.msra.mxu0 0.0
  %3408 = vmatprep.subr.mxu0 0.0
  %3409 = vmatpush1.msra.mxu0 0.0
  %3410 = vmatprep.subr.mxu0 0.0
  %3411 = vmatpush1.msra.mxu0 0.0
  %3412 = vmatprep.subr.mxu0 0.0
  %3413 = vmatpush1.msra.mxu0 0.0
  %3414 = vmatprep.subr.mxu0 0.0
  %3415 = vmatpush1.msra.mxu0 0.0
  %3416 = vmatprep.subr.mxu0 0.0
  %3417 = vmatpush1.msra.mxu0 0.0
  %3418 = vmatprep.subr.mxu0 0.0
  %3419 = vmatpush1.msra.mxu0 0.0
  %3420 = vmatprep.subr.mxu0 0.0
  %3421 = vmatpush1.msra.mxu0 0.0
  %3422 = vmatprep.subr.mxu0 0.0
  %3423 = vmatpush1.msra.mxu0 0.0
  %3424 = vmatprep.subr.mxu0 0.0
  %3425 = vmatpush1.msra.mxu0 0.0
  %3426 = vmatprep.subr.mxu0 0.0
  %3427 = vmatpush1.msra.mxu0 0.0
  %3428 = vmatprep.subr.mxu0 0.0
  %3429 = vmatpush1.msra.mxu0 0.0
  %3430 = vmatprep.subr.mxu0 0.0
  %3431 = vmatpush1.msra.mxu0 0.0
  %3432 = vmatprep.subr.mxu0 0.0
  %3433 = vmatpush1.msra.mxu0 0.0
  %3434 = vmatprep.subr.mxu0 0.0
  %3435 = vmatpush1.msra.mxu0 0.0
  %3436 = vmatprep.subr.mxu0 0.0
  %3437 = vmatpush1.msra.mxu0 0.0
  %3438 = vmatprep.mubr.f32.mxu0 0.0
  %3439 = vmatmul.mubr.f32.gmra.mrb[0].mxu0 %v3372
  %v3440 = vpop.f32.mrb[0].mxu0
  %v3441 = vadd.f32 %v162, %v3440
  %v3442 = vpop.f32.mrb[0].mxu0
  %3443 = vdwg.mxu0
  %v3444 = vxor.u32 %v3441, 2147483648
  %v3445 = vmul.f32 %v3444, 1.442695
  %v3446 = vpow.pop %v3445
  %v3447 = vadd.f32 %v3446, 1.0
  %v3448 = vrcp.pop %v3447
  %v3449 = vmul.f32 1.0, %v3448
  %v3450 = vmul.f32 %v3449, %v2292
  %3452 = vrot.lane.b32.xlu0 %v3157, 16
  %v3453 = vpop.permute.xlu0 %3452
  %v3455 = vmul.f32 %v3449, %v3453
  %3457 = vrot.lane.b32.xlu0 %v3455, 112
  %v3458 = vpop.permute.xlu0 %3457
  %v3460 = vadd.f32 %v3450, %v3458
  %v3462 = vsel %vm959, %v3460, 0
  %3464 = vmatprep.subr.mxu0 0.0
  %3465 = vmatpush1.msra.mxu0 %v168
  %3466 = vmatprep.subr.mxu0 0.0
  %3467 = vmatpush1.msra.mxu0 %v169
  %3468 = vmatprep.subr.mxu0 0.0
  %3469 = vmatpush1.msra.mxu0 0.0
  %3470 = vmatprep.subr.mxu0 0.0
  %3471 = vmatpush1.msra.mxu0 0.0
  %3472 = vmatprep.subr.mxu0 0.0
  %3473 = vmatpush1.msra.mxu0 0.0
  %3474 = vmatprep.subr.mxu0 0.0
  %3475 = vmatpush1.msra.mxu0 0.0
  %3476 = vmatprep.subr.mxu0 0.0
  %3477 = vmatpush1.msra.mxu0 0.0
  %3478 = vmatprep.subr.mxu0 0.0
  %3479 = vmatpush1.msra.mxu0 0.0
  %3480 = vmatprep.subr.mxu0 0.0
  %3481 = vmatpush1.msra.mxu0 0.0
  %3482 = vmatprep.subr.mxu0 0.0
  %3483 = vmatpush1.msra.mxu0 0.0
  %3484 = vmatprep.subr.mxu0 0.0
  %3485 = vmatpush1.msra.mxu0 0.0
  %3486 = vmatprep.subr.mxu0 0.0
  %3487 = vmatpush1.msra.mxu0 0.0
  %3488 = vmatprep.subr.mxu0 0.0
  %3489 = vmatpush1.msra.mxu0 0.0
  %3490 = vmatprep.subr.mxu0 0.0
  %3491 = vmatpush1.msra.mxu0 0.0
  %3492 = vmatprep.subr.mxu0 0.0
  %3493 = vmatpush1.msra.mxu0 0.0
  %3494 = vmatprep.subr.mxu0 0.0
  %3495 = vmatpush1.msra.mxu0 0.0
  %3496 = vmatprep.subr.mxu0 0.0
  %3497 = vmatpush1.msra.mxu0 0.0
  %3498 = vmatprep.subr.mxu0 0.0
  %3499 = vmatpush1.msra.mxu0 0.0
  %3500 = vmatprep.subr.mxu0 0.0
  %3501 = vmatpush1.msra.mxu0 0.0
  %3502 = vmatprep.subr.mxu0 0.0
  %3503 = vmatpush1.msra.mxu0 0.0
  %3504 = vmatprep.subr.mxu0 0.0
  %3505 = vmatpush1.msra.mxu0 0.0
  %3506 = vmatprep.subr.mxu0 0.0
  %3507 = vmatpush1.msra.mxu0 0.0
  %3508 = vmatprep.subr.mxu0 0.0
  %3509 = vmatpush1.msra.mxu0 0.0
  %3510 = vmatprep.subr.mxu0 0.0
  %3511 = vmatpush1.msra.mxu0 0.0
  %3512 = vmatprep.subr.mxu0 0.0
  %3513 = vmatpush1.msra.mxu0 0.0
  %3514 = vmatprep.subr.mxu0 0.0
  %3515 = vmatpush1.msra.mxu0 0.0
  %3516 = vmatprep.subr.mxu0 0.0
  %3517 = vmatpush1.msra.mxu0 0.0
  %3518 = vmatprep.subr.mxu0 0.0
  %3519 = vmatpush1.msra.mxu0 0.0
  %3520 = vmatprep.subr.mxu0 0.0
  %3521 = vmatpush1.msra.mxu0 0.0
  %3522 = vmatprep.subr.mxu0 0.0
  %3523 = vmatpush1.msra.mxu0 0.0
  %3524 = vmatprep.subr.mxu0 0.0
  %3525 = vmatpush1.msra.mxu0 0.0
  %3526 = vmatprep.subr.mxu0 0.0
  %3527 = vmatpush1.msra.mxu0 0.0
  %3528 = vmatprep.mubr.f32.mxu0 0.0
  %3529 = vmatmul.mubr.f32.gmra.mrb[0].mxu0 %v3462
  %v3530 = vpop.f32.mrb[0].mxu0
  %v3531 = vadd.f32 0.0, %v3530
  %v3532 = vpop.f32.mrb[0].mxu0
  %3533 = vdwg.mxu0
  %3535 = vrot.lane.b32.xlu0 %v2699, 32
  %v3536 = vpop.permute.xlu0 %3535
  %v3537 = vsel %vm189, %v3536, 0
  %3539 = vmatprep.subr.mxu0 0.0
  %3540 = vmatpush1.msra.mxu0 %v164
  %3541 = vmatprep.subr.mxu0 0.0
  %3542 = vmatpush1.msra.mxu0 %v165
  %3543 = vmatprep.subr.mxu0 0.0
  %3544 = vmatpush1.msra.mxu0 %v166
  %3545 = vmatprep.subr.mxu0 0.0
  %3546 = vmatpush1.msra.mxu0 %v167
  %3547 = vmatprep.subr.mxu0 0.0
  %3548 = vmatpush1.msra.mxu0 0.0
  %3549 = vmatprep.subr.mxu0 0.0
  %3550 = vmatpush1.msra.mxu0 0.0
  %3551 = vmatprep.subr.mxu0 0.0
  %3552 = vmatpush1.msra.mxu0 0.0
  %3553 = vmatprep.subr.mxu0 0.0
  %3554 = vmatpush1.msra.mxu0 0.0
  %3555 = vmatprep.subr.mxu0 0.0
  %3556 = vmatpush1.msra.mxu0 0.0
  %3557 = vmatprep.subr.mxu0 0.0
  %3558 = vmatpush1.msra.mxu0 0.0
  %3559 = vmatprep.subr.mxu0 0.0
  %3560 = vmatpush1.msra.mxu0 0.0
  %3561 = vmatprep.subr.mxu0 0.0
  %3562 = vmatpush1.msra.mxu0 0.0
  %3563 = vmatprep.subr.mxu0 0.0
  %3564 = vmatpush1.msra.mxu0 0.0
  %3565 = vmatprep.subr.mxu0 0.0
  %3566 = vmatpush1.msra.mxu0 0.0
  %3567 = vmatprep.subr.mxu0 0.0
  %3568 = vmatpush1.msra.mxu0 0.0
  %3569 = vmatprep.subr.mxu0 0.0
  %3570 = vmatpush1.msra.mxu0 0.0
  %3571 = vmatprep.subr.mxu0 0.0
  %3572 = vmatpush1.msra.mxu0 0.0
  %3573 = vmatprep.subr.mxu0 0.0
  %3574 = vmatpush1.msra.mxu0 0.0
  %3575 = vmatprep.subr.mxu0 0.0
  %3576 = vmatpush1.msra.mxu0 0.0
  %3577 = vmatprep.subr.mxu0 0.0
  %3578 = vmatpush1.msra.mxu0 0.0
  %3579 = vmatprep.subr.mxu0 0.0
  %3580 = vmatpush1.msra.mxu0 0.0
  %3581 = vmatprep.subr.mxu0 0.0
  %3582 = vmatpush1.msra.mxu0 0.0
  %3583 = vmatprep.subr.mxu0 0.0
  %3584 = vmatpush1.msra.mxu0 0.0
  %3585 = vmatprep.subr.mxu0 0.0
  %3586 = vmatpush1.msra.mxu0 0.0
  %3587 = vmatprep.subr.mxu0 0.0
  %3588 = vmatpush1.msra.mxu0 0.0
  %3589 = vmatprep.subr.mxu0 0.0
  %3590 = vmatpush1.msra.mxu0 0.0
  %3591 = vmatprep.subr.mxu0 0.0
  %3592 = vmatpush1.msra.mxu0 0.0
  %3593 = vmatprep.subr.mxu0 0.0
  %3594 = vmatpush1.msra.mxu0 0.0
  %3595 = vmatprep.subr.mxu0 0.0
  %3596 = vmatpush1.msra.mxu0 0.0
  %3597 = vmatprep.subr.mxu0 0.0
  %3598 = vmatpush1.msra.mxu0 0.0
  %3599 = vmatprep.subr.mxu0 0.0
  %3600 = vmatpush1.msra.mxu0 0.0
  %3601 = vmatprep.subr.mxu0 0.0
  %3602 = vmatpush1.msra.mxu0 0.0
  %3603 = vmatprep.mubr.f32.mxu0 0.0
  %3604 = vmatmul.mubr.f32.gmra.mrb[0].mxu0 %v3537
  %v3605 = vpop.f32.mrb[0].mxu0
  %v3606 = vadd.f32 %v3531, %v3605
  %v3607 = vpop.f32.mrb[0].mxu0
  %3608 = vdwg.mxu0
  %v3609 = vadd.f32 %v3606, %v175
  %v3610 = vmax.f32 %v3609, 0.0
  %v3612 = vsel %vm189, %v3610, 0
  %3614 = vmatprep.subr.mxu0 0.0
  %3615 = vmatpush1.msra.mxu0 %v177
  %3616 = vmatprep.subr.mxu0 0.0
  %3617 = vmatpush1.msra.mxu0 %v178
  %3618 = vmatprep.subr.mxu0 0.0
  %3619 = vmatpush1.msra.mxu0 %v179
  %3620 = vmatprep.subr.mxu0 0.0
  %3621 = vmatpush1.msra.mxu0 %v180
  %3622 = vmatprep.subr.mxu0 0.0
  %3623 = vmatpush1.msra.mxu0 0.0
  %3624 = vmatprep.subr.mxu0 0.0
  %3625 = vmatpush1.msra.mxu0 0.0
  %3626 = vmatprep.subr.mxu0 0.0
  %3627 = vmatpush1.msra.mxu0 0.0
  %3628 = vmatprep.subr.mxu0 0.0
  %3629 = vmatpush1.msra.mxu0 0.0
  %3630 = vmatprep.subr.mxu0 0.0
  %3631 = vmatpush1.msra.mxu0 0.0
  %3632 = vmatprep.subr.mxu0 0.0
  %3633 = vmatpush1.msra.mxu0 0.0
  %3634 = vmatprep.subr.mxu0 0.0
  %3635 = vmatpush1.msra.mxu0 0.0
  %3636 = vmatprep.subr.mxu0 0.0
  %3637 = vmatpush1.msra.mxu0 0.0
  %3638 = vmatprep.subr.mxu0 0.0
  %3639 = vmatpush1.msra.mxu0 0.0
  %3640 = vmatprep.subr.mxu0 0.0
  %3641 = vmatpush1.msra.mxu0 0.0
  %3642 = vmatprep.subr.mxu0 0.0
  %3643 = vmatpush1.msra.mxu0 0.0
  %3644 = vmatprep.subr.mxu0 0.0
  %3645 = vmatpush1.msra.mxu0 0.0
  %3646 = vmatprep.subr.mxu0 0.0
  %3647 = vmatpush1.msra.mxu0 0.0
  %3648 = vmatprep.subr.mxu0 0.0
  %3649 = vmatpush1.msra.mxu0 0.0
  %3650 = vmatprep.subr.mxu0 0.0
  %3651 = vmatpush1.msra.mxu0 0.0
  %3652 = vmatprep.subr.mxu0 0.0
  %3653 = vmatpush1.msra.mxu0 0.0
  %3654 = vmatprep.subr.mxu0 0.0
  %3655 = vmatpush1.msra.mxu0 0.0
  %3656 = vmatprep.subr.mxu0 0.0
  %3657 = vmatpush1.msra.mxu0 0.0
  %3658 = vmatprep.subr.mxu0 0.0
  %3659 = vmatpush1.msra.mxu0 0.0
  %3660 = vmatprep.subr.mxu0 0.0
  %3661 = vmatpush1.msra.mxu0 0.0
  %3662 = vmatprep.subr.mxu0 0.0
  %3663 = vmatpush1.msra.mxu0 0.0
  %3664 = vmatprep.subr.mxu0 0.0
  %3665 = vmatpush1.msra.mxu0 0.0
  %3666 = vmatprep.subr.mxu0 0.0
  %3667 = vmatpush1.msra.mxu0 0.0
  %3668 = vmatprep.subr.mxu0 0.0
  %3669 = vmatpush1.msra.mxu0 0.0
  %3670 = vmatprep.subr.mxu0 0.0
  %3671 = vmatpush1.msra.mxu0 0.0
  %3672 = vmatprep.subr.mxu0 0.0
  %3673 = vmatpush1.msra.mxu0 0.0
  %3674 = vmatprep.subr.mxu0 0.0
  %3675 = vmatpush1.msra.mxu0 0.0
  %3676 = vmatprep.subr.mxu0 0.0
  %3677 = vmatpush1.msra.mxu0 0.0
  %3678 = vmatprep.mubr.f32.mxu0 0.0
  %3679 = vmatmul.mubr.f32.gmra.mrb[0].mxu0 %v3612
  %v3680 = vpop.f32.mrb[0].mxu0
  %v3681 = vadd.f32 %v186, %v3680
  %v3682 = vpop.f32.mrb[0].mxu0
  %3683 = vdwg.mxu0
  %v3684 = vsel %vm1348, %v3681, -inf
  %3685 = vmax.xlane.f32.xlu0 %v3684
  %v3686 = vpop.xlane.xlu0 %3685
  %v3687 = vsub.f32 %v3681, %v3686
  %v3688 = vmul.f32 %v3687, 1.442695
  %v3689 = vpow.pop %v3688
  %v3690 = vsel %vm1348, %v3689, 0.0
  %3691 = vadd.xlane.f32.xlu0 %v3690
  %v3692 = vpop.xlane.xlu0 %3691
  %v3693 = vlog2.pop %v3692
  %v3694 = vmul.f32 %v3693, 0.6931472
  %v3695 = vsub.f32 %v3687, %v3694
  %s3696 = scalar_lea.vmem %s20, 16
  %3697 = vst.msk [vmem:[%s3696] sm:$0xff] %vm1348, %v3695
  %s3698 = scalar_lea.vmem %s0, 24
  %v3699 = vld [vmem:[%s3698] sm:$0xff]
  %3700 = vmatprep.subr.mxu0 0.0
  %3701 = vmatpush1.msra.mxu0 %v69
  %3702 = vmatprep.subr.mxu0 0.0
  %3703 = vmatpush1.msra.mxu0 %v70
  %3704 = vmatprep.subr.mxu0 0.0
  %3705 = vmatpush1.msra.mxu0 %v71
  %3706 = vmatprep.subr.mxu0 0.0
  %3707 = vmatpush1.msra.mxu0 %v72
  %3708 = vmatprep.subr.mxu0 0.0
  %3709 = vmatpush1.msra.mxu0 0.0
  %3710 = vmatprep.subr.mxu0 0.0
  %3711 = vmatpush1.msra.mxu0 0.0
  %3712 = vmatprep.subr.mxu0 0.0
  %3713 = vmatpush1.msra.mxu0 0.0
  %3714 = vmatprep.subr.mxu0 0.0
  %3715 = vmatpush1.msra.mxu0 0.0
  %3716 = vmatprep.subr.mxu0 0.0
  %3717 = vmatpush1.msra.mxu0 0.0
  %3718 = vmatprep.subr.mxu0 0.0
  %3719 = vmatpush1.msra.mxu0 0.0
  %3720 = vmatprep.subr.mxu0 0.0
  %3721 = vmatpush1.msra.mxu0 0.0
  %3722 = vmatprep.subr.mxu0 0.0
  %3723 = vmatpush1.msra.mxu0 0.0
  %3724 = vmatprep.subr.mxu0 0.0
  %3725 = vmatpush1.msra.mxu0 0.0
  %3726 = vmatprep.subr.mxu0 0.0
  %3727 = vmatpush1.msra.mxu0 0.0
  %3728 = vmatprep.subr.mxu0 0.0
  %3729 = vmatpush1.msra.mxu0 0.0
  %3730 = vmatprep.subr.mxu0 0.0
  %3731 = vmatpush1.msra.mxu0 0.0
  %3732 = vmatprep.subr.mxu0 0.0
  %3733 = vmatpush1.msra.mxu0 0.0
  %3734 = vmatprep.subr.mxu0 0.0
  %3735 = vmatpush1.msra.mxu0 0.0
  %3736 = vmatprep.subr.mxu0 0.0
  %3737 = vmatpush1.msra.mxu0 0.0
  %3738 = vmatprep.subr.mxu0 0.0
  %3739 = vmatpush1.msra.mxu0 0.0
  %3740 = vmatprep.subr.mxu0 0.0
  %3741 = vmatpush1.msra.mxu0 0.0
  %3742 = vmatprep.subr.mxu0 0.0
  %3743 = vmatpush1.msra.mxu0 0.0
  %3744 = vmatprep.subr.mxu0 0.0
  %3745 = vmatpush1.msra.mxu0 0.0
  %3746 = vmatprep.subr.mxu0 0.0
  %3747 = vmatpush1.msra.mxu0 0.0
  %3748 = vmatprep.subr.mxu0 0.0
  %3749 = vmatpush1.msra.mxu0 0.0
  %3750 = vmatprep.subr.mxu0 0.0
  %3751 = vmatpush1.msra.mxu0 0.0
  %3752 = vmatprep.subr.mxu0 0.0
  %3753 = vmatpush1.msra.mxu0 0.0
  %3754 = vmatprep.subr.mxu0 0.0
  %3755 = vmatpush1.msra.mxu0 0.0
  %3756 = vmatprep.subr.mxu0 0.0
  %3757 = vmatpush1.msra.mxu0 0.0
  %3758 = vmatprep.subr.mxu0 0.0
  %3759 = vmatpush1.msra.mxu0 0.0
  %3760 = vmatprep.subr.mxu0 0.0
  %3761 = vmatpush1.msra.mxu0 0.0
  %3762 = vmatprep.subr.mxu0 0.0
  %3763 = vmatpush1.msra.mxu0 0.0
  %3764 = vmatprep.mubr.f32.mxu0 0.0
  %3765 = vmatmul.mubr.f32.gmra.mrb[0].mxu0 %v3537
  %v3766 = vpop.f32.mrb[0].mxu0
  %v3767 = vadd.f32 0.0, %v3766
  %v3768 = vpop.f32.mrb[0].mxu0
  %3769 = vdwg.mxu0
  %v3771 = vsel %vm189, %v3699, 0
  %3773 = vmatprep.subr.mxu0 0.0
  %3774 = vmatpush1.msra.mxu0 %v65
  %3775 = vmatprep.subr.mxu0 0.0
  %3776 = vmatpush1.msra.mxu0 %v66
  %3777 = vmatprep.subr.mxu0 0.0
  %3778 = vmatpush1.msra.mxu0 %v67
  %3779 = vmatprep.subr.mxu0 0.0
  %3780 = vmatpush1.msra.mxu0 %v68
  %3781 = vmatprep.subr.mxu0 0.0
  %3782 = vmatpush1.msra.mxu0 0.0
  %3783 = vmatprep.subr.mxu0 0.0
  %3784 = vmatpush1.msra.mxu0 0.0
  %3785 = vmatprep.subr.mxu0 0.0
  %3786 = vmatpush1.msra.mxu0 0.0
  %3787 = vmatprep.subr.mxu0 0.0
  %3788 = vmatpush1.msra.mxu0 0.0
  %3789 = vmatprep.subr.mxu0 0.0
  %3790 = vmatpush1.msra.mxu0 0.0
  %3791 = vmatprep.subr.mxu0 0.0
  %3792 = vmatpush1.msra.mxu0 0.0
  %3793 = vmatprep.subr.mxu0 0.0
  %3794 = vmatpush1.msra.mxu0 0.0
  %3795 = vmatprep.subr.mxu0 0.0
  %3796 = vmatpush1.msra.mxu0 0.0
  %3797 = vmatprep.subr.mxu0 0.0
  %3798 = vmatpush1.msra.mxu0 0.0
  %3799 = vmatprep.subr.mxu0 0.0
  %3800 = vmatpush1.msra.mxu0 0.0
  %3801 = vmatprep.subr.mxu0 0.0
  %3802 = vmatpush1.msra.mxu0 0.0
  %3803 = vmatprep.subr.mxu0 0.0
  %3804 = vmatpush1.msra.mxu0 0.0
  %3805 = vmatprep.subr.mxu0 0.0
  %3806 = vmatpush1.msra.mxu0 0.0
  %3807 = vmatprep.subr.mxu0 0.0
  %3808 = vmatpush1.msra.mxu0 0.0
  %3809 = vmatprep.subr.mxu0 0.0
  %3810 = vmatpush1.msra.mxu0 0.0
  %3811 = vmatprep.subr.mxu0 0.0
  %3812 = vmatpush1.msra.mxu0 0.0
  %3813 = vmatprep.subr.mxu0 0.0
  %3814 = vmatpush1.msra.mxu0 0.0
  %3815 = vmatprep.subr.mxu0 0.0
  %3816 = vmatpush1.msra.mxu0 0.0
  %3817 = vmatprep.subr.mxu0 0.0
  %3818 = vmatpush1.msra.mxu0 0.0
  %3819 = vmatprep.subr.mxu0 0.0
  %3820 = vmatpush1.msra.mxu0 0.0
  %3821 = vmatprep.subr.mxu0 0.0
  %3822 = vmatpush1.msra.mxu0 0.0
  %3823 = vmatprep.subr.mxu0 0.0
  %3824 = vmatpush1.msra.mxu0 0.0
  %3825 = vmatprep.subr.mxu0 0.0
  %3826 = vmatpush1.msra.mxu0 0.0
  %3827 = vmatprep.subr.mxu0 0.0
  %3828 = vmatpush1.msra.mxu0 0.0
  %3829 = vmatprep.subr.mxu0 0.0
  %3830 = vmatpush1.msra.mxu0 0.0
  %3831 = vmatprep.subr.mxu0 0.0
  %3832 = vmatpush1.msra.mxu0 0.0
  %3833 = vmatprep.subr.mxu0 0.0
  %3834 = vmatpush1.msra.mxu0 0.0
  %3835 = vmatprep.subr.mxu0 0.0
  %3836 = vmatpush1.msra.mxu0 0.0
  %3837 = vmatprep.mubr.f32.mxu0 0.0
  %3838 = vmatmul.mubr.f32.gmra.mrb[0].mxu0 %v3771
  %v3839 = vpop.f32.mrb[0].mxu0
  %v3840 = vadd.f32 %v3767, %v3839
  %v3841 = vpop.f32.mrb[0].mxu0
  %3842 = vdwg.mxu0
  %v3843 = vadd.f32 %v3840, %v78
  %v3844 = vxor.u32 %v3843, 2147483648
  %v3845 = vmul.f32 %v3844, 1.442695
  %v3846 = vpow.pop %v3845
  %v3847 = vadd.f32 %v3846, 1.0
  %v3848 = vrcp.pop %v3847
  %v3849 = vmul.f32 1.0, %v3848
  %v3850 = vtanh.pop %v3843
  %v3851 = vmul.f32 %v3849, %v2693
  %3853 = vrot.lane.b32.xlu0 %v3850, 64
  %v3854 = vpop.permute.xlu0 %3853
  %v3856 = vmul.f32 %v3849, %v3854
  %3858 = vrot.lane.b32.xlu0 %v3856, 32
  %v3859 = vpop.permute.xlu0 %3858
  %v3861 = vadd.f32 %v3851, %v3859
  %v3862 = vtanh.pop %v3861
  %3864 = vrot.lane.b32.xlu0 %v3862, 64
  %v3865 = vpop.permute.xlu0 %3864
  %v3867 = vmul.f32 %v3849, %v3865
  %3869 = vrot.lane.b32.xlu0 %v3861, 96
  %v3870 = vpop.permute.xlu0 %3869
  %v3871 = vsel %vm189, %v3870, 0
  %3873 = vmatprep.subr.mxu0 0.0
  %3874 = vmatpush1.msra.mxu0 %v84
  %3875 = vmatprep.subr.mxu0 0.0
  %3876 = vmatpush1.msra.mxu0 %v85
  %3877 = vmatprep.subr.mxu0 0.0
  %3878 = vmatpush1.msra.mxu0 %v86
  %3879 = vmatprep.subr.mxu0 0.0
  %3880 = vmatpush1.msra.mxu0 %v87
  %3881 = vmatprep.subr.mxu0 0.0
  %3882 = vmatpush1.msra.mxu0 0.0
  %3883 = vmatprep.subr.mxu0 0.0
  %3884 = vmatpush1.msra.mxu0 0.0
  %3885 = vmatprep.subr.mxu0 0.0
  %3886 = vmatpush1.msra.mxu0 0.0
  %3887 = vmatprep.subr.mxu0 0.0
  %3888 = vmatpush1.msra.mxu0 0.0
  %3889 = vmatprep.subr.mxu0 0.0
  %3890 = vmatpush1.msra.mxu0 0.0
  %3891 = vmatprep.subr.mxu0 0.0
  %3892 = vmatpush1.msra.mxu0 0.0
  %3893 = vmatprep.subr.mxu0 0.0
  %3894 = vmatpush1.msra.mxu0 0.0
  %3895 = vmatprep.subr.mxu0 0.0
  %3896 = vmatpush1.msra.mxu0 0.0
  %3897 = vmatprep.subr.mxu0 0.0
  %3898 = vmatpush1.msra.mxu0 0.0
  %3899 = vmatprep.subr.mxu0 0.0
  %3900 = vmatpush1.msra.mxu0 0.0
  %3901 = vmatprep.subr.mxu0 0.0
  %3902 = vmatpush1.msra.mxu0 0.0
  %3903 = vmatprep.subr.mxu0 0.0
  %3904 = vmatpush1.msra.mxu0 0.0
  %3905 = vmatprep.subr.mxu0 0.0
  %3906 = vmatpush1.msra.mxu0 0.0
  %3907 = vmatprep.subr.mxu0 0.0
  %3908 = vmatpush1.msra.mxu0 0.0
  %3909 = vmatprep.subr.mxu0 0.0
  %3910 = vmatpush1.msra.mxu0 0.0
  %3911 = vmatprep.subr.mxu0 0.0
  %3912 = vmatpush1.msra.mxu0 0.0
  %3913 = vmatprep.subr.mxu0 0.0
  %3914 = vmatpush1.msra.mxu0 0.0
  %3915 = vmatprep.subr.mxu0 0.0
  %3916 = vmatpush1.msra.mxu0 0.0
  %3917 = vmatprep.subr.mxu0 0.0
  %3918 = vmatpush1.msra.mxu0 0.0
  %3919 = vmatprep.subr.mxu0 0.0
  %3920 = vmatpush1.msra.mxu0 0.0
  %3921 = vmatprep.subr.mxu0 0.0
  %3922 = vmatpush1.msra.mxu0 0.0
  %3923 = vmatprep.subr.mxu0 0.0
  %3924 = vmatpush1.msra.mxu0 0.0
  %3925 = vmatprep.subr.mxu0 0.0
  %3926 = vmatpush1.msra.mxu0 0.0
  %3927 = vmatprep.subr.mxu0 0.0
  %3928 = vmatpush1.msra.mxu0 0.0
  %3929 = vmatprep.subr.mxu0 0.0
  %3930 = vmatpush1.msra.mxu0 0.0
  %3931 = vmatprep.subr.mxu0 0.0
  %3932 = vmatpush1.msra.mxu0 0.0
  %3933 = vmatprep.subr.mxu0 0.0
  %3934 = vmatpush1.msra.mxu0 0.0
  %3935 = vmatprep.subr.mxu0 0.0
  %3936 = vmatpush1.msra.mxu0 0.0
  %3937 = vmatprep.mubr.f32.mxu0 0.0
  %3938 = vmatmul.mubr.f32.gmra.mrb[0].mxu0 %v3871
  %v3939 = vpop.f32.mrb[0].mxu0
  %v3940 = vadd.f32 0.0, %v3939
  %v3941 = vpop.f32.mrb[0].mxu0
  %3942 = vdwg.mxu0
  %3943 = vmatprep.subr.mxu0 0.0
  %3944 = vmatpush1.msra.mxu0 %v80
  %3945 = vmatprep.subr.mxu0 0.0
  %3946 = vmatpush1.msra.mxu0 %v81
  %3947 = vmatprep.subr.mxu0 0.0
  %3948 = vmatpush1.msra.mxu0 %v82
  %3949 = vmatprep.subr.mxu0 0.0
  %3950 = vmatpush1.msra.mxu0 %v83
  %3951 = vmatprep.subr.mxu0 0.0
  %3952 = vmatpush1.msra.mxu0 0.0
  %3953 = vmatprep.subr.mxu0 0.0
  %3954 = vmatpush1.msra.mxu0 0.0
  %3955 = vmatprep.subr.mxu0 0.0
  %3956 = vmatpush1.msra.mxu0 0.0
  %3957 = vmatprep.subr.mxu0 0.0
  %3958 = vmatpush1.msra.mxu0 0.0
  %3959 = vmatprep.subr.mxu0 0.0
  %3960 = vmatpush1.msra.mxu0 0.0
  %3961 = vmatprep.subr.mxu0 0.0
  %3962 = vmatpush1.msra.mxu0 0.0
  %3963 = vmatprep.subr.mxu0 0.0
  %3964 = vmatpush1.msra.mxu0 0.0
  %3965 = vmatprep.subr.mxu0 0.0
  %3966 = vmatpush1.msra.mxu0 0.0
  %3967 = vmatprep.subr.mxu0 0.0
  %3968 = vmatpush1.msra.mxu0 0.0
  %3969 = vmatprep.subr.mxu0 0.0
  %3970 = vmatpush1.msra.mxu0 0.0
  %3971 = vmatprep.subr.mxu0 0.0
  %3972 = vmatpush1.msra.mxu0 0.0
  %3973 = vmatprep.subr.mxu0 0.0
  %3974 = vmatpush1.msra.mxu0 0.0
  %3975 = vmatprep.subr.mxu0 0.0
  %3976 = vmatpush1.msra.mxu0 0.0
  %3977 = vmatprep.subr.mxu0 0.0
  %3978 = vmatpush1.msra.mxu0 0.0
  %3979 = vmatprep.subr.mxu0 0.0
  %3980 = vmatpush1.msra.mxu0 0.0
  %3981 = vmatprep.subr.mxu0 0.0
  %3982 = vmatpush1.msra.mxu0 0.0
  %3983 = vmatprep.subr.mxu0 0.0
  %3984 = vmatpush1.msra.mxu0 0.0
  %3985 = vmatprep.subr.mxu0 0.0
  %3986 = vmatpush1.msra.mxu0 0.0
  %3987 = vmatprep.subr.mxu0 0.0
  %3988 = vmatpush1.msra.mxu0 0.0
  %3989 = vmatprep.subr.mxu0 0.0
  %3990 = vmatpush1.msra.mxu0 0.0
  %3991 = vmatprep.subr.mxu0 0.0
  %3992 = vmatpush1.msra.mxu0 0.0
  %3993 = vmatprep.subr.mxu0 0.0
  %3994 = vmatpush1.msra.mxu0 0.0
  %3995 = vmatprep.subr.mxu0 0.0
  %3996 = vmatpush1.msra.mxu0 0.0
  %3997 = vmatprep.subr.mxu0 0.0
  %3998 = vmatpush1.msra.mxu0 0.0
  %3999 = vmatprep.subr.mxu0 0.0
  %4000 = vmatpush1.msra.mxu0 0.0
  %4001 = vmatprep.subr.mxu0 0.0
  %4002 = vmatpush1.msra.mxu0 0.0
  %4003 = vmatprep.subr.mxu0 0.0
  %4004 = vmatpush1.msra.mxu0 0.0
  %4005 = vmatprep.subr.mxu0 0.0
  %4006 = vmatpush1.msra.mxu0 0.0
  %4007 = vmatprep.mubr.f32.mxu0 0.0
  %4008 = vmatmul.mubr.f32.gmra.mrb[0].mxu0 %v2703
  %v4009 = vpop.f32.mrb[0].mxu0
  %v4010 = vadd.f32 %v3940, %v4009
  %v4011 = vpop.f32.mrb[0].mxu0
  %4012 = vdwg.mxu0
  %v4013 = vadd.f32 %v4010, %v93
  %v4014 = vmax.f32 %v4013, 0.0
  %v4016 = vsel %vm189, %v4014, 0
  %4018 = vmatprep.subr.mxu0 0.0
  %4019 = vmatpush1.msra.mxu0 %v95
  %4020 = vmatprep.subr.mxu0 0.0
  %4021 = vmatpush1.msra.mxu0 %v96
  %4022 = vmatprep.subr.mxu0 0.0
  %4023 = vmatpush1.msra.mxu0 %v97
  %4024 = vmatprep.subr.mxu0 0.0
  %4025 = vmatpush1.msra.mxu0 %v98
  %4026 = vmatprep.subr.mxu0 0.0
  %4027 = vmatpush1.msra.mxu0 0.0
  %4028 = vmatprep.subr.mxu0 0.0
  %4029 = vmatpush1.msra.mxu0 0.0
  %4030 = vmatprep.subr.mxu0 0.0
  %4031 = vmatpush1.msra.mxu0 0.0
  %4032 = vmatprep.subr.mxu0 0.0
  %4033 = vmatpush1.msra.mxu0 0.0
  %4034 = vmatprep.subr.mxu0 0.0
  %4035 = vmatpush1.msra.mxu0 0.0
  %4036 = vmatprep.subr.mxu0 0.0
  %4037 = vmatpush1.msra.mxu0 0.0
  %4038 = vmatprep.subr.mxu0 0.0
  %4039 = vmatpush1.msra.mxu0 0.0
  %4040 = vmatprep.subr.mxu0 0.0
  %4041 = vmatpush1.msra.mxu0 0.0
  %4042 = vmatprep.subr.mxu0 0.0
  %4043 = vmatpush1.msra.mxu0 0.0
  %4044 = vmatprep.subr.mxu0 0.0
  %4045 = vmatpush1.msra.mxu0 0.0
  %4046 = vmatprep.subr.mxu0 0.0
  %4047 = vmatpush1.msra.mxu0 0.0
  %4048 = vmatprep.subr.mxu0 0.0
  %4049 = vmatpush1.msra.mxu0 0.0
  %4050 = vmatprep.subr.mxu0 0.0
  %4051 = vmatpush1.msra.mxu0 0.0
  %4052 = vmatprep.subr.mxu0 0.0
  %4053 = vmatpush1.msra.mxu0 0.0
  %4054 = vmatprep.subr.mxu0 0.0
  %4055 = vmatpush1.msra.mxu0 0.0
  %4056 = vmatprep.subr.mxu0 0.0
  %4057 = vmatpush1.msra.mxu0 0.0
  %4058 = vmatprep.subr.mxu0 0.0
  %4059 = vmatpush1.msra.mxu0 0.0
  %4060 = vmatprep.subr.mxu0 0.0
  %4061 = vmatpush1.msra.mxu0 0.0
  %4062 = vmatprep.subr.mxu0 0.0
  %4063 = vmatpush1.msra.mxu0 0.0
  %4064 = vmatprep.subr.mxu0 0.0
  %4065 = vmatpush1.msra.mxu0 0.0
  %4066 = vmatprep.subr.mxu0 0.0
  %4067 = vmatpush1.msra.mxu0 0.0
  %4068 = vmatprep.subr.mxu0 0.0
  %4069 = vmatpush1.msra.mxu0 0.0
  %4070 = vmatprep.subr.mxu0 0.0
  %4071 = vmatpush1.msra.mxu0 0.0
  %4072 = vmatprep.subr.mxu0 0.0
  %4073 = vmatpush1.msra.mxu0 0.0
  %4074 = vmatprep.subr.mxu0 0.0
  %4075 = vmatpush1.msra.mxu0 0.0
  %4076 = vmatprep.subr.mxu0 0.0
  %4077 = vmatpush1.msra.mxu0 0.0
  %4078 = vmatprep.subr.mxu0 0.0
  %4079 = vmatpush1.msra.mxu0 0.0
  %4080 = vmatprep.subr.mxu0 0.0
  %4081 = vmatpush1.msra.mxu0 0.0
  %4082 = vmatprep.mubr.f32.mxu0 0.0
  %4083 = vmatmul.mubr.f32.gmra.mrb[0].mxu0 %v4016
  %v4084 = vpop.f32.mrb[0].mxu0
  %v4085 = vadd.f32 %v104, %v4084
  %v4086 = vpop.f32.mrb[0].mxu0
  %4087 = vdwg.mxu0
  %v4088 = vsel %vm581, %v4085, -inf
  %4089 = vmax.xlane.f32.xlu0 %v4088
  %v4090 = vpop.xlane.xlu0 %4089
  %v4091 = vsub.f32 %v4085, %v4090
  %v4092 = vmul.f32 %v4091, 1.442695
  %v4093 = vpow.pop %v4092
  %v4094 = vsel %vm581, %v4093, 0.0
  %4095 = vadd.xlane.f32.xlu0 %v4094
  %v4096 = vpop.xlane.xlu0 %4095
  %v4097 = vrcp.pop %v4096
  %v4098 = vmul.f32 %v4093, %v4097
  %v4100 = vmul.f32 %v4098, %v2702
  %v4101 = vmul.f32 %v4098, %v3861
  %4103 = vrot.lane.b32.xlu0 %v4101, 96
  %v4104 = vpop.permute.xlu0 %4103
  %v4105 = vsel %vm189, %v4104, 0
  %4107 = vmatprep.subr.mxu0 0.0
  %4108 = vmatpush1.msra.mxu0 %v110
  %4109 = vmatprep.subr.mxu0 0.0
  %4110 = vmatpush1.msra.mxu0 %v111
  %4111 = vmatprep.subr.mxu0 0.0
  %4112 = vmatpush1.msra.mxu0 %v112
  %4113 = vmatprep.subr.mxu0 0.0
  %4114 = vmatpush1.msra.mxu0 %v113
  %4115 = vmatprep.subr.mxu0 0.0
  %4116 = vmatpush1.msra.mxu0 0.0
  %4117 = vmatprep.subr.mxu0 0.0
  %4118 = vmatpush1.msra.mxu0 0.0
  %4119 = vmatprep.subr.mxu0 0.0
  %4120 = vmatpush1.msra.mxu0 0.0
  %4121 = vmatprep.subr.mxu0 0.0
  %4122 = vmatpush1.msra.mxu0 0.0
  %4123 = vmatprep.subr.mxu0 0.0
  %4124 = vmatpush1.msra.mxu0 0.0
  %4125 = vmatprep.subr.mxu0 0.0
  %4126 = vmatpush1.msra.mxu0 0.0
  %4127 = vmatprep.subr.mxu0 0.0
  %4128 = vmatpush1.msra.mxu0 0.0
  %4129 = vmatprep.subr.mxu0 0.0
  %4130 = vmatpush1.msra.mxu0 0.0
  %4131 = vmatprep.subr.mxu0 0.0
  %4132 = vmatpush1.msra.mxu0 0.0
  %4133 = vmatprep.subr.mxu0 0.0
  %4134 = vmatpush1.msra.mxu0 0.0
  %4135 = vmatprep.subr.mxu0 0.0
  %4136 = vmatpush1.msra.mxu0 0.0
  %4137 = vmatprep.subr.mxu0 0.0
  %4138 = vmatpush1.msra.mxu0 0.0
  %4139 = vmatprep.subr.mxu0 0.0
  %4140 = vmatpush1.msra.mxu0 0.0
  %4141 = vmatprep.subr.mxu0 0.0
  %4142 = vmatpush1.msra.mxu0 0.0
  %4143 = vmatprep.subr.mxu0 0.0
  %4144 = vmatpush1.msra.mxu0 0.0
  %4145 = vmatprep.subr.mxu0 0.0
  %4146 = vmatpush1.msra.mxu0 0.0
  %4147 = vmatprep.subr.mxu0 0.0
  %4148 = vmatpush1.msra.mxu0 0.0
  %4149 = vmatprep.subr.mxu0 0.0
  %4150 = vmatpush1.msra.mxu0 0.0
  %4151 = vmatprep.subr.mxu0 0.0
  %4152 = vmatpush1.msra.mxu0 0.0
  %4153 = vmatprep.subr.mxu0 0.0
  %4154 = vmatpush1.msra.mxu0 0.0
  %4155 = vmatprep.subr.mxu0 0.0
  %4156 = vmatpush1.msra.mxu0 0.0
  %4157 = vmatprep.subr.mxu0 0.0
  %4158 = vmatpush1.msra.mxu0 0.0
  %4159 = vmatprep.subr.mxu0 0.0
  %4160 = vmatpush1.msra.mxu0 0.0
  %4161 = vmatprep.subr.mxu0 0.0
  %4162 = vmatpush1.msra.mxu0 0.0
  %4163 = vmatprep.subr.mxu0 0.0
  %4164 = vmatpush1.msra.mxu0 0.0
  %4165 = vmatprep.subr.mxu0 0.0
  %4166 = vmatpush1.msra.mxu0 0.0
  %4167 = vmatprep.subr.mxu0 0.0
  %4168 = vmatpush1.msra.mxu0 0.0
  %4169 = vmatprep.subr.mxu0 0.0
  %4170 = vmatpush1.msra.mxu0 0.0
  %4171 = vmatprep.mubr.f32.mxu0 0.0
  %4172 = vmatmul.mubr.f32.gmra.mrb[0].mxu0 %v4105
  %v4173 = vpop.f32.mrb[0].mxu0
  %v4174 = vadd.f32 0.0, %v4173
  %v4175 = vpop.f32.mrb[0].mxu0
  %4176 = vdwg.mxu0
  %v4178 = vsel %vm189, %v4100, 0
  %4180 = vmatprep.subr.mxu0 0.0
  %4181 = vmatpush1.msra.mxu0 %v106
  %4182 = vmatprep.subr.mxu0 0.0
  %4183 = vmatpush1.msra.mxu0 %v107
  %4184 = vmatprep.subr.mxu0 0.0
  %4185 = vmatpush1.msra.mxu0 %v108
  %4186 = vmatprep.subr.mxu0 0.0
  %4187 = vmatpush1.msra.mxu0 %v109
  %4188 = vmatprep.subr.mxu0 0.0
  %4189 = vmatpush1.msra.mxu0 0.0
  %4190 = vmatprep.subr.mxu0 0.0
  %4191 = vmatpush1.msra.mxu0 0.0
  %4192 = vmatprep.subr.mxu0 0.0
  %4193 = vmatpush1.msra.mxu0 0.0
  %4194 = vmatprep.subr.mxu0 0.0
  %4195 = vmatpush1.msra.mxu0 0.0
  %4196 = vmatprep.subr.mxu0 0.0
  %4197 = vmatpush1.msra.mxu0 0.0
  %4198 = vmatprep.subr.mxu0 0.0
  %4199 = vmatpush1.msra.mxu0 0.0
  %4200 = vmatprep.subr.mxu0 0.0
  %4201 = vmatpush1.msra.mxu0 0.0
  %4202 = vmatprep.subr.mxu0 0.0
  %4203 = vmatpush1.msra.mxu0 0.0
  %4204 = vmatprep.subr.mxu0 0.0
  %4205 = vmatpush1.msra.mxu0 0.0
  %4206 = vmatprep.subr.mxu0 0.0
  %4207 = vmatpush1.msra.mxu0 0.0
  %4208 = vmatprep.subr.mxu0 0.0
  %4209 = vmatpush1.msra.mxu0 0.0
  %4210 = vmatprep.subr.mxu0 0.0
  %4211 = vmatpush1.msra.mxu0 0.0
  %4212 = vmatprep.subr.mxu0 0.0
  %4213 = vmatpush1.msra.mxu0 0.0
  %4214 = vmatprep.subr.mxu0 0.0
  %4215 = vmatpush1.msra.mxu0 0.0
  %4216 = vmatprep.subr.mxu0 0.0
  %4217 = vmatpush1.msra.mxu0 0.0
  %4218 = vmatprep.subr.mxu0 0.0
  %4219 = vmatpush1.msra.mxu0 0.0
  %4220 = vmatprep.subr.mxu0 0.0
  %4221 = vmatpush1.msra.mxu0 0.0
  %4222 = vmatprep.subr.mxu0 0.0
  %4223 = vmatpush1.msra.mxu0 0.0
  %4224 = vmatprep.subr.mxu0 0.0
  %4225 = vmatpush1.msra.mxu0 0.0
  %4226 = vmatprep.subr.mxu0 0.0
  %4227 = vmatpush1.msra.mxu0 0.0
  %4228 = vmatprep.subr.mxu0 0.0
  %4229 = vmatpush1.msra.mxu0 0.0
  %4230 = vmatprep.subr.mxu0 0.0
  %4231 = vmatpush1.msra.mxu0 0.0
  %4232 = vmatprep.subr.mxu0 0.0
  %4233 = vmatpush1.msra.mxu0 0.0
  %4234 = vmatprep.subr.mxu0 0.0
  %4235 = vmatpush1.msra.mxu0 0.0
  %4236 = vmatprep.subr.mxu0 0.0
  %4237 = vmatpush1.msra.mxu0 0.0
  %4238 = vmatprep.subr.mxu0 0.0
  %4239 = vmatpush1.msra.mxu0 0.0
  %4240 = vmatprep.subr.mxu0 0.0
  %4241 = vmatpush1.msra.mxu0 0.0
  %4242 = vmatprep.subr.mxu0 0.0
  %4243 = vmatpush1.msra.mxu0 0.0
  %4244 = vmatprep.mubr.f32.mxu0 0.0
  %4245 = vmatmul.mubr.f32.gmra.mrb[0].mxu0 %v4178
  %v4246 = vpop.f32.mrb[0].mxu0
  %v4247 = vadd.f32 %v4174, %v4246
  %v4248 = vpop.f32.mrb[0].mxu0
  %4249 = vdwg.mxu0
  %v4250 = vadd.f32 %v4247, %v119
  %v4251 = vmax.f32 %v4250, 0.0
  %v4253 = vsel %vm189, %v4251, 0
  %4255 = vmatprep.subr.mxu0 0.0
  %4256 = vmatpush1.msra.mxu0 %v121
  %4257 = vmatprep.subr.mxu0 0.0
  %4258 = vmatpush1.msra.mxu0 %v122
  %4259 = vmatprep.subr.mxu0 0.0
  %4260 = vmatpush1.msra.mxu0 %v123
  %4261 = vmatprep.subr.mxu0 0.0
  %4262 = vmatpush1.msra.mxu0 %v124
  %4263 = vmatprep.subr.mxu0 0.0
  %4264 = vmatpush1.msra.mxu0 0.0
  %4265 = vmatprep.subr.mxu0 0.0
  %4266 = vmatpush1.msra.mxu0 0.0
  %4267 = vmatprep.subr.mxu0 0.0
  %4268 = vmatpush1.msra.mxu0 0.0
  %4269 = vmatprep.subr.mxu0 0.0
  %4270 = vmatpush1.msra.mxu0 0.0
  %4271 = vmatprep.subr.mxu0 0.0
  %4272 = vmatpush1.msra.mxu0 0.0
  %4273 = vmatprep.subr.mxu0 0.0
  %4274 = vmatpush1.msra.mxu0 0.0
  %4275 = vmatprep.subr.mxu0 0.0
  %4276 = vmatpush1.msra.mxu0 0.0
  %4277 = vmatprep.subr.mxu0 0.0
  %4278 = vmatpush1.msra.mxu0 0.0
  %4279 = vmatprep.subr.mxu0 0.0
  %4280 = vmatpush1.msra.mxu0 0.0
  %4281 = vmatprep.subr.mxu0 0.0
  %4282 = vmatpush1.msra.mxu0 0.0
  %4283 = vmatprep.subr.mxu0 0.0
  %4284 = vmatpush1.msra.mxu0 0.0
  %4285 = vmatprep.subr.mxu0 0.0
  %4286 = vmatpush1.msra.mxu0 0.0
  %4287 = vmatprep.subr.mxu0 0.0
  %4288 = vmatpush1.msra.mxu0 0.0
  %4289 = vmatprep.subr.mxu0 0.0
  %4290 = vmatpush1.msra.mxu0 0.0
  %4291 = vmatprep.subr.mxu0 0.0
  %4292 = vmatpush1.msra.mxu0 0.0
  %4293 = vmatprep.subr.mxu0 0.0
  %4294 = vmatpush1.msra.mxu0 0.0
  %4295 = vmatprep.subr.mxu0 0.0
  %4296 = vmatpush1.msra.mxu0 0.0
  %4297 = vmatprep.subr.mxu0 0.0
  %4298 = vmatpush1.msra.mxu0 0.0
  %4299 = vmatprep.subr.mxu0 0.0
  %4300 = vmatpush1.msra.mxu0 0.0
  %4301 = vmatprep.subr.mxu0 0.0
  %4302 = vmatpush1.msra.mxu0 0.0
  %4303 = vmatprep.subr.mxu0 0.0
  %4304 = vmatpush1.msra.mxu0 0.0
  %4305 = vmatprep.subr.mxu0 0.0
  %4306 = vmatpush1.msra.mxu0 0.0
  %4307 = vmatprep.subr.mxu0 0.0
  %4308 = vmatpush1.msra.mxu0 0.0
  %4309 = vmatprep.subr.mxu0 0.0
  %4310 = vmatpush1.msra.mxu0 0.0
  %4311 = vmatprep.subr.mxu0 0.0
  %4312 = vmatpush1.msra.mxu0 0.0
  %4313 = vmatprep.subr.mxu0 0.0
  %4314 = vmatpush1.msra.mxu0 0.0
  %4315 = vmatprep.subr.mxu0 0.0
  %4316 = vmatpush1.msra.mxu0 0.0
  %4317 = vmatprep.subr.mxu0 0.0
  %4318 = vmatpush1.msra.mxu0 0.0
  %4319 = vmatprep.mubr.f32.mxu0 0.0
  %4320 = vmatmul.mubr.f32.gmra.mrb[0].mxu0 %v4253
  %v4321 = vpop.f32.mrb[0].mxu0
  %v4322 = vadd.f32 %v130, %v4321
  %v4323 = vpop.f32.mrb[0].mxu0
  %4324 = vdwg.mxu0
  %v4325 = vtanh.pop %v4322
  %4326 = vmatprep.subr.mxu0 0.0
  %4327 = vmatpush1.msra.mxu0 %v136
  %4328 = vmatprep.subr.mxu0 0.0
  %4329 = vmatpush1.msra.mxu0 %v137
  %4330 = vmatprep.subr.mxu0 0.0
  %4331 = vmatpush1.msra.mxu0 %v138
  %4332 = vmatprep.subr.mxu0 0.0
  %4333 = vmatpush1.msra.mxu0 %v139
  %4334 = vmatprep.subr.mxu0 0.0
  %4335 = vmatpush1.msra.mxu0 0.0
  %4336 = vmatprep.subr.mxu0 0.0
  %4337 = vmatpush1.msra.mxu0 0.0
  %4338 = vmatprep.subr.mxu0 0.0
  %4339 = vmatpush1.msra.mxu0 0.0
  %4340 = vmatprep.subr.mxu0 0.0
  %4341 = vmatpush1.msra.mxu0 0.0
  %4342 = vmatprep.subr.mxu0 0.0
  %4343 = vmatpush1.msra.mxu0 0.0
  %4344 = vmatprep.subr.mxu0 0.0
  %4345 = vmatpush1.msra.mxu0 0.0
  %4346 = vmatprep.subr.mxu0 0.0
  %4347 = vmatpush1.msra.mxu0 0.0
  %4348 = vmatprep.subr.mxu0 0.0
  %4349 = vmatpush1.msra.mxu0 0.0
  %4350 = vmatprep.subr.mxu0 0.0
  %4351 = vmatpush1.msra.mxu0 0.0
  %4352 = vmatprep.subr.mxu0 0.0
  %4353 = vmatpush1.msra.mxu0 0.0
  %4354 = vmatprep.subr.mxu0 0.0
  %4355 = vmatpush1.msra.mxu0 0.0
  %4356 = vmatprep.subr.mxu0 0.0
  %4357 = vmatpush1.msra.mxu0 0.0
  %4358 = vmatprep.subr.mxu0 0.0
  %4359 = vmatpush1.msra.mxu0 0.0
  %4360 = vmatprep.subr.mxu0 0.0
  %4361 = vmatpush1.msra.mxu0 0.0
  %4362 = vmatprep.subr.mxu0 0.0
  %4363 = vmatpush1.msra.mxu0 0.0
  %4364 = vmatprep.subr.mxu0 0.0
  %4365 = vmatpush1.msra.mxu0 0.0
  %4366 = vmatprep.subr.mxu0 0.0
  %4367 = vmatpush1.msra.mxu0 0.0
  %4368 = vmatprep.subr.mxu0 0.0
  %4369 = vmatpush1.msra.mxu0 0.0
  %4370 = vmatprep.subr.mxu0 0.0
  %4371 = vmatpush1.msra.mxu0 0.0
  %4372 = vmatprep.subr.mxu0 0.0
  %4373 = vmatpush1.msra.mxu0 0.0
  %4374 = vmatprep.subr.mxu0 0.0
  %4375 = vmatpush1.msra.mxu0 0.0
  %4376 = vmatprep.subr.mxu0 0.0
  %4377 = vmatpush1.msra.mxu0 0.0
  %4378 = vmatprep.subr.mxu0 0.0
  %4379 = vmatpush1.msra.mxu0 0.0
  %4380 = vmatprep.subr.mxu0 0.0
  %4381 = vmatpush1.msra.mxu0 0.0
  %4382 = vmatprep.subr.mxu0 0.0
  %4383 = vmatpush1.msra.mxu0 0.0
  %4384 = vmatprep.subr.mxu0 0.0
  %4385 = vmatpush1.msra.mxu0 0.0
  %4386 = vmatprep.subr.mxu0 0.0
  %4387 = vmatpush1.msra.mxu0 0.0
  %4388 = vmatprep.subr.mxu0 0.0
  %4389 = vmatpush1.msra.mxu0 0.0
  %4390 = vmatprep.mubr.f32.mxu0 0.0
  %4391 = vmatmul.mubr.f32.gmra.mrb[0].mxu0 %v4105
  %v4392 = vpop.f32.mrb[0].mxu0
  %v4393 = vadd.f32 0.0, %v4392
  %v4394 = vpop.f32.mrb[0].mxu0
  %4395 = vdwg.mxu0
  %4396 = vmatprep.subr.mxu0 0.0
  %4397 = vmatpush1.msra.mxu0 %v132
  %4398 = vmatprep.subr.mxu0 0.0
  %4399 = vmatpush1.msra.mxu0 %v133
  %4400 = vmatprep.subr.mxu0 0.0
  %4401 = vmatpush1.msra.mxu0 %v134
  %4402 = vmatprep.subr.mxu0 0.0
  %4403 = vmatpush1.msra.mxu0 %v135
  %4404 = vmatprep.subr.mxu0 0.0
  %4405 = vmatpush1.msra.mxu0 0.0
  %4406 = vmatprep.subr.mxu0 0.0
  %4407 = vmatpush1.msra.mxu0 0.0
  %4408 = vmatprep.subr.mxu0 0.0
  %4409 = vmatpush1.msra.mxu0 0.0
  %4410 = vmatprep.subr.mxu0 0.0
  %4411 = vmatpush1.msra.mxu0 0.0
  %4412 = vmatprep.subr.mxu0 0.0
  %4413 = vmatpush1.msra.mxu0 0.0
  %4414 = vmatprep.subr.mxu0 0.0
  %4415 = vmatpush1.msra.mxu0 0.0
  %4416 = vmatprep.subr.mxu0 0.0
  %4417 = vmatpush1.msra.mxu0 0.0
  %4418 = vmatprep.subr.mxu0 0.0
  %4419 = vmatpush1.msra.mxu0 0.0
  %4420 = vmatprep.subr.mxu0 0.0
  %4421 = vmatpush1.msra.mxu0 0.0
  %4422 = vmatprep.subr.mxu0 0.0
  %4423 = vmatpush1.msra.mxu0 0.0
  %4424 = vmatprep.subr.mxu0 0.0
  %4425 = vmatpush1.msra.mxu0 0.0
  %4426 = vmatprep.subr.mxu0 0.0
  %4427 = vmatpush1.msra.mxu0 0.0
  %4428 = vmatprep.subr.mxu0 0.0
  %4429 = vmatpush1.msra.mxu0 0.0
  %4430 = vmatprep.subr.mxu0 0.0
  %4431 = vmatpush1.msra.mxu0 0.0
  %4432 = vmatprep.subr.mxu0 0.0
  %4433 = vmatpush1.msra.mxu0 0.0
  %4434 = vmatprep.subr.mxu0 0.0
  %4435 = vmatpush1.msra.mxu0 0.0
  %4436 = vmatprep.subr.mxu0 0.0
  %4437 = vmatpush1.msra.mxu0 0.0
  %4438 = vmatprep.subr.mxu0 0.0
  %4439 = vmatpush1.msra.mxu0 0.0
  %4440 = vmatprep.subr.mxu0 0.0
  %4441 = vmatpush1.msra.mxu0 0.0
  %4442 = vmatprep.subr.mxu0 0.0
  %4443 = vmatpush1.msra.mxu0 0.0
  %4444 = vmatprep.subr.mxu0 0.0
  %4445 = vmatpush1.msra.mxu0 0.0
  %4446 = vmatprep.subr.mxu0 0.0
  %4447 = vmatpush1.msra.mxu0 0.0
  %4448 = vmatprep.subr.mxu0 0.0
  %4449 = vmatpush1.msra.mxu0 0.0
  %4450 = vmatprep.subr.mxu0 0.0
  %4451 = vmatpush1.msra.mxu0 0.0
  %4452 = vmatprep.subr.mxu0 0.0
  %4453 = vmatpush1.msra.mxu0 0.0
  %4454 = vmatprep.subr.mxu0 0.0
  %4455 = vmatpush1.msra.mxu0 0.0
  %4456 = vmatprep.subr.mxu0 0.0
  %4457 = vmatpush1.msra.mxu0 0.0
  %4458 = vmatprep.subr.mxu0 0.0
  %4459 = vmatpush1.msra.mxu0 0.0
  %4460 = vmatprep.mubr.f32.mxu0 0.0
  %4461 = vmatmul.mubr.f32.gmra.mrb[0].mxu0 %v4178
  %v4462 = vpop.f32.mrb[0].mxu0
  %v4463 = vadd.f32 %v4393, %v4462
  %v4464 = vpop.f32.mrb[0].mxu0
  %4465 = vdwg.mxu0
  %4466 = vmatprep.subr.mxu0 0.0
  %4467 = vmatpush1.msra.mxu0 %v140
  %4468 = vmatprep.subr.mxu0 0.0
  %4469 = vmatpush1.msra.mxu0 %v141
  %4470 = vmatprep.subr.mxu0 0.0
  %4471 = vmatpush1.msra.mxu0 0.0
  %4472 = vmatprep.subr.mxu0 0.0
  %4473 = vmatpush1.msra.mxu0 0.0
  %4474 = vmatprep.subr.mxu0 0.0
  %4475 = vmatpush1.msra.mxu0 0.0
  %4476 = vmatprep.subr.mxu0 0.0
  %4477 = vmatpush1.msra.mxu0 0.0
  %4478 = vmatprep.subr.mxu0 0.0
  %4479 = vmatpush1.msra.mxu0 0.0
  %4480 = vmatprep.subr.mxu0 0.0
  %4481 = vmatpush1.msra.mxu0 0.0
  %4482 = vmatprep.subr.mxu0 0.0
  %4483 = vmatpush1.msra.mxu0 0.0
  %4484 = vmatprep.subr.mxu0 0.0
  %4485 = vmatpush1.msra.mxu0 0.0
  %4486 = vmatprep.subr.mxu0 0.0
  %4487 = vmatpush1.msra.mxu0 0.0
  %4488 = vmatprep.subr.mxu0 0.0
  %4489 = vmatpush1.msra.mxu0 0.0
  %4490 = vmatprep.subr.mxu0 0.0
  %4491 = vmatpush1.msra.mxu0 0.0
  %4492 = vmatprep.subr.mxu0 0.0
  %4493 = vmatpush1.msra.mxu0 0.0
  %4494 = vmatprep.subr.mxu0 0.0
  %4495 = vmatpush1.msra.mxu0 0.0
  %4496 = vmatprep.subr.mxu0 0.0
  %4497 = vmatpush1.msra.mxu0 0.0
  %4498 = vmatprep.subr.mxu0 0.0
  %4499 = vmatpush1.msra.mxu0 0.0
  %4500 = vmatprep.subr.mxu0 0.0
  %4501 = vmatpush1.msra.mxu0 0.0
  %4502 = vmatprep.subr.mxu0 0.0
  %4503 = vmatpush1.msra.mxu0 0.0
  %4504 = vmatprep.subr.mxu0 0.0
  %4505 = vmatpush1.msra.mxu0 0.0
  %4506 = vmatprep.subr.mxu0 0.0
  %4507 = vmatpush1.msra.mxu0 0.0
  %4508 = vmatprep.subr.mxu0 0.0
  %4509 = vmatpush1.msra.mxu0 0.0
  %4510 = vmatprep.subr.mxu0 0.0
  %4511 = vmatpush1.msra.mxu0 0.0
  %4512 = vmatprep.subr.mxu0 0.0
  %4513 = vmatpush1.msra.mxu0 0.0
  %4514 = vmatprep.subr.mxu0 0.0
  %4515 = vmatpush1.msra.mxu0 0.0
  %4516 = vmatprep.subr.mxu0 0.0
  %4517 = vmatpush1.msra.mxu0 0.0
  %4518 = vmatprep.subr.mxu0 0.0
  %4519 = vmatpush1.msra.mxu0 0.0
  %4520 = vmatprep.subr.mxu0 0.0
  %4521 = vmatpush1.msra.mxu0 0.0
  %4522 = vmatprep.subr.mxu0 0.0
  %4523 = vmatpush1.msra.mxu0 0.0
  %4524 = vmatprep.subr.mxu0 0.0
  %4525 = vmatpush1.msra.mxu0 0.0
  %4526 = vmatprep.subr.mxu0 0.0
  %4527 = vmatpush1.msra.mxu0 0.0
  %4528 = vmatprep.subr.mxu0 0.0
  %4529 = vmatpush1.msra.mxu0 0.0
  %4530 = vmatprep.mubr.f32.mxu0 0.0
  %4531 = vmatmul.mubr.f32.gmra.mrb[0].mxu0 %v3462
  %v4532 = vpop.f32.mrb[0].mxu0
  %v4533 = vadd.f32 0.0, %v4532
  %v4534 = vpop.f32.mrb[0].mxu0
  %4535 = vdwg.mxu0
  %v4536 = vadd.f32 %v4463, %v4533
  %v4537 = vadd.f32 %v4536, %v147
  %v4538 = vmax.f32 %v4537, 0.0
  %v4540 = vsel %vm581, %v4538, 0
  %4542 = vmatprep.subr.mxu0 0.0
  %4543 = vmatpush1.msra.mxu0 %v149
  %4544 = vmatprep.subr.mxu0 0.0
  %4545 = vmatpush1.msra.mxu0 %v150
  %4546 = vmatprep.subr.mxu0 0.0
  %4547 = vmatpush1.msra.mxu0 %v151
  %4548 = vmatprep.subr.mxu0 0.0
  %4549 = vmatpush1.msra.mxu0 %v152
  %4550 = vmatprep.subr.mxu0 0.0
  %4551 = vmatpush1.msra.mxu0 %v153
  %4552 = vmatprep.subr.mxu0 0.0
  %4553 = vmatpush1.msra.mxu0 %v154
  %4554 = vmatprep.subr.mxu0 0.0
  %4555 = vmatpush1.msra.mxu0 %v155
  %4556 = vmatprep.subr.mxu0 0.0
  %4557 = vmatpush1.msra.mxu0 %v156
  %4558 = vmatprep.subr.mxu0 0.0
  %4559 = vmatpush1.msra.mxu0 0.0
  %4560 = vmatprep.subr.mxu0 0.0
  %4561 = vmatpush1.msra.mxu0 0.0
  %4562 = vmatprep.subr.mxu0 0.0
  %4563 = vmatpush1.msra.mxu0 0.0
  %4564 = vmatprep.subr.mxu0 0.0
  %4565 = vmatpush1.msra.mxu0 0.0
  %4566 = vmatprep.subr.mxu0 0.0
  %4567 = vmatpush1.msra.mxu0 0.0
  %4568 = vmatprep.subr.mxu0 0.0
  %4569 = vmatpush1.msra.mxu0 0.0
  %4570 = vmatprep.subr.mxu0 0.0
  %4571 = vmatpush1.msra.mxu0 0.0
  %4572 = vmatprep.subr.mxu0 0.0
  %4573 = vmatpush1.msra.mxu0 0.0
  %4574 = vmatprep.subr.mxu0 0.0
  %4575 = vmatpush1.msra.mxu0 0.0
  %4576 = vmatprep.subr.mxu0 0.0
  %4577 = vmatpush1.msra.mxu0 0.0
  %4578 = vmatprep.subr.mxu0 0.0
  %4579 = vmatpush1.msra.mxu0 0.0
  %4580 = vmatprep.subr.mxu0 0.0
  %4581 = vmatpush1.msra.mxu0 0.0
  %4582 = vmatprep.subr.mxu0 0.0
  %4583 = vmatpush1.msra.mxu0 0.0
  %4584 = vmatprep.subr.mxu0 0.0
  %4585 = vmatpush1.msra.mxu0 0.0
  %4586 = vmatprep.subr.mxu0 0.0
  %4587 = vmatpush1.msra.mxu0 0.0
  %4588 = vmatprep.subr.mxu0 0.0
  %4589 = vmatpush1.msra.mxu0 0.0
  %4590 = vmatprep.subr.mxu0 0.0
  %4591 = vmatpush1.msra.mxu0 0.0
  %4592 = vmatprep.subr.mxu0 0.0
  %4593 = vmatpush1.msra.mxu0 0.0
  %4594 = vmatprep.subr.mxu0 0.0
  %4595 = vmatpush1.msra.mxu0 0.0
  %4596 = vmatprep.subr.mxu0 0.0
  %4597 = vmatpush1.msra.mxu0 0.0
  %4598 = vmatprep.subr.mxu0 0.0
  %4599 = vmatpush1.msra.mxu0 0.0
  %4600 = vmatprep.subr.mxu0 0.0
  %4601 = vmatpush1.msra.mxu0 0.0
  %4602 = vmatprep.subr.mxu0 0.0
  %4603 = vmatpush1.msra.mxu0 0.0
  %4604 = vmatprep.subr.mxu0 0.0
  %4605 = vmatpush1.msra.mxu0 0.0
  %4606 = vmatprep.mubr.f32.mxu0 0.0
  %4607 = vmatmul.mubr.f32.gmra.mrb[0].mxu0 %v4540
  %v4608 = vpop.f32.mrb[0].mxu0
  %v4609 = vadd.f32 %v162, %v4608
  %v4610 = vpop.f32.mrb[0].mxu0
  %4611 = vdwg.mxu0
  %v4612 = vxor.u32 %v4609, 2147483648
  %v4613 = vmul.f32 %v4612, 1.442695
  %v4614 = vpow.pop %v4613
  %v4615 = vadd.f32 %v4614, 1.0
  %v4616 = vrcp.pop %v4615
  %v4617 = vmul.f32 1.0, %v4616
  %v4618 = vmul.f32 %v4617, %v3460
  %4620 = vrot.lane.b32.xlu0 %v4325, 16
  %v4621 = vpop.permute.xlu0 %4620
  %v4623 = vmul.f32 %v4617, %v4621
  %4625 = vrot.lane.b32.xlu0 %v4623, 112
  %v4626 = vpop.permute.xlu0 %4625
  %v4628 = vadd.f32 %v4618, %v4626
  %v4630 = vsel %vm959, %v4628, 0
  %4632 = vmatprep.subr.mxu0 0.0
  %4633 = vmatpush1.msra.mxu0 %v168
  %4634 = vmatprep.subr.mxu0 0.0
  %4635 = vmatpush1.msra.mxu0 %v169
  %4636 = vmatprep.subr.mxu0 0.0
  %4637 = vmatpush1.msra.mxu0 0.0
  %4638 = vmatprep.subr.mxu0 0.0
  %4639 = vmatpush1.msra.mxu0 0.0
  %4640 = vmatprep.subr.mxu0 0.0
  %4641 = vmatpush1.msra.mxu0 0.0
  %4642 = vmatprep.subr.mxu0 0.0
  %4643 = vmatpush1.msra.mxu0 0.0
  %4644 = vmatprep.subr.mxu0 0.0
  %4645 = vmatpush1.msra.mxu0 0.0
  %4646 = vmatprep.subr.mxu0 0.0
  %4647 = vmatpush1.msra.mxu0 0.0
  %4648 = vmatprep.subr.mxu0 0.0
  %4649 = vmatpush1.msra.mxu0 0.0
  %4650 = vmatprep.subr.mxu0 0.0
  %4651 = vmatpush1.msra.mxu0 0.0
  %4652 = vmatprep.subr.mxu0 0.0
  %4653 = vmatpush1.msra.mxu0 0.0
  %4654 = vmatprep.subr.mxu0 0.0
  %4655 = vmatpush1.msra.mxu0 0.0
  %4656 = vmatprep.subr.mxu0 0.0
  %4657 = vmatpush1.msra.mxu0 0.0
  %4658 = vmatprep.subr.mxu0 0.0
  %4659 = vmatpush1.msra.mxu0 0.0
  %4660 = vmatprep.subr.mxu0 0.0
  %4661 = vmatpush1.msra.mxu0 0.0
  %4662 = vmatprep.subr.mxu0 0.0
  %4663 = vmatpush1.msra.mxu0 0.0
  %4664 = vmatprep.subr.mxu0 0.0
  %4665 = vmatpush1.msra.mxu0 0.0
  %4666 = vmatprep.subr.mxu0 0.0
  %4667 = vmatpush1.msra.mxu0 0.0
  %4668 = vmatprep.subr.mxu0 0.0
  %4669 = vmatpush1.msra.mxu0 0.0
  %4670 = vmatprep.subr.mxu0 0.0
  %4671 = vmatpush1.msra.mxu0 0.0
  %4672 = vmatprep.subr.mxu0 0.0
  %4673 = vmatpush1.msra.mxu0 0.0
  %4674 = vmatprep.subr.mxu0 0.0
  %4675 = vmatpush1.msra.mxu0 0.0
  %4676 = vmatprep.subr.mxu0 0.0
  %4677 = vmatpush1.msra.mxu0 0.0
  %4678 = vmatprep.subr.mxu0 0.0
  %4679 = vmatpush1.msra.mxu0 0.0
  %4680 = vmatprep.subr.mxu0 0.0
  %4681 = vmatpush1.msra.mxu0 0.0
  %4682 = vmatprep.subr.mxu0 0.0
  %4683 = vmatpush1.msra.mxu0 0.0
  %4684 = vmatprep.subr.mxu0 0.0
  %4685 = vmatpush1.msra.mxu0 0.0
  %4686 = vmatprep.subr.mxu0 0.0
  %4687 = vmatpush1.msra.mxu0 0.0
  %4688 = vmatprep.subr.mxu0 0.0
  %4689 = vmatpush1.msra.mxu0 0.0
  %4690 = vmatprep.subr.mxu0 0.0
  %4691 = vmatpush1.msra.mxu0 0.0
  %4692 = vmatprep.subr.mxu0 0.0
  %4693 = vmatpush1.msra.mxu0 0.0
  %4694 = vmatprep.subr.mxu0 0.0
  %4695 = vmatpush1.msra.mxu0 0.0
  %4696 = vmatprep.mubr.f32.mxu0 0.0
  %4697 = vmatmul.mubr.f32.gmra.mrb[0].mxu0 %v4630
  %v4698 = vpop.f32.mrb[0].mxu0
  %v4699 = vadd.f32 0.0, %v4698
  %v4700 = vpop.f32.mrb[0].mxu0
  %4701 = vdwg.mxu0
  %4703 = vrot.lane.b32.xlu0 %v3867, 32
  %v4704 = vpop.permute.xlu0 %4703
  %v4705 = vsel %vm189, %v4704, 0
  %4707 = vmatprep.subr.mxu0 0.0
  %4708 = vmatpush1.msra.mxu0 %v164
  %4709 = vmatprep.subr.mxu0 0.0
  %4710 = vmatpush1.msra.mxu0 %v165
  %4711 = vmatprep.subr.mxu0 0.0
  %4712 = vmatpush1.msra.mxu0 %v166
  %4713 = vmatprep.subr.mxu0 0.0
  %4714 = vmatpush1.msra.mxu0 %v167
  %4715 = vmatprep.subr.mxu0 0.0
  %4716 = vmatpush1.msra.mxu0 0.0
  %4717 = vmatprep.subr.mxu0 0.0
  %4718 = vmatpush1.msra.mxu0 0.0
  %4719 = vmatprep.subr.mxu0 0.0
  %4720 = vmatpush1.msra.mxu0 0.0
  %4721 = vmatprep.subr.mxu0 0.0
  %4722 = vmatpush1.msra.mxu0 0.0
  %4723 = vmatprep.subr.mxu0 0.0
  %4724 = vmatpush1.msra.mxu0 0.0
  %4725 = vmatprep.subr.mxu0 0.0
  %4726 = vmatpush1.msra.mxu0 0.0
  %4727 = vmatprep.subr.mxu0 0.0
  %4728 = vmatpush1.msra.mxu0 0.0
  %4729 = vmatprep.subr.mxu0 0.0
  %4730 = vmatpush1.msra.mxu0 0.0
  %4731 = vmatprep.subr.mxu0 0.0
  %4732 = vmatpush1.msra.mxu0 0.0
  %4733 = vmatprep.subr.mxu0 0.0
  %4734 = vmatpush1.msra.mxu0 0.0
  %4735 = vmatprep.subr.mxu0 0.0
  %4736 = vmatpush1.msra.mxu0 0.0
  %4737 = vmatprep.subr.mxu0 0.0
  %4738 = vmatpush1.msra.mxu0 0.0
  %4739 = vmatprep.subr.mxu0 0.0
  %4740 = vmatpush1.msra.mxu0 0.0
  %4741 = vmatprep.subr.mxu0 0.0
  %4742 = vmatpush1.msra.mxu0 0.0
  %4743 = vmatprep.subr.mxu0 0.0
  %4744 = vmatpush1.msra.mxu0 0.0
  %4745 = vmatprep.subr.mxu0 0.0
  %4746 = vmatpush1.msra.mxu0 0.0
  %4747 = vmatprep.subr.mxu0 0.0
  %4748 = vmatpush1.msra.mxu0 0.0
  %4749 = vmatprep.subr.mxu0 0.0
  %4750 = vmatpush1.msra.mxu0 0.0
  %4751 = vmatprep.subr.mxu0 0.0
  %4752 = vmatpush1.msra.mxu0 0.0
  %4753 = vmatprep.subr.mxu0 0.0
  %4754 = vmatpush1.msra.mxu0 0.0
  %4755 = vmatprep.subr.mxu0 0.0
  %4756 = vmatpush1.msra.mxu0 0.0
  %4757 = vmatprep.subr.mxu0 0.0
  %4758 = vmatpush1.msra.mxu0 0.0
  %4759 = vmatprep.subr.mxu0 0.0
  %4760 = vmatpush1.msra.mxu0 0.0
  %4761 = vmatprep.subr.mxu0 0.0
  %4762 = vmatpush1.msra.mxu0 0.0
  %4763 = vmatprep.subr.mxu0 0.0
  %4764 = vmatpush1.msra.mxu0 0.0
  %4765 = vmatprep.subr.mxu0 0.0
  %4766 = vmatpush1.msra.mxu0 0.0
  %4767 = vmatprep.subr.mxu0 0.0
  %4768 = vmatpush1.msra.mxu0 0.0
  %4769 = vmatprep.subr.mxu0 0.0
  %4770 = vmatpush1.msra.mxu0 0.0
  %4771 = vmatprep.mubr.f32.mxu0 0.0
  %4772 = vmatmul.mubr.f32.gmra.mrb[0].mxu0 %v4705
  %v4773 = vpop.f32.mrb[0].mxu0
  %v4774 = vadd.f32 %v4699, %v4773
  %v4775 = vpop.f32.mrb[0].mxu0
  %4776 = vdwg.mxu0
  %v4777 = vadd.f32 %v4774, %v175
  %v4778 = vmax.f32 %v4777, 0.0
  %v4780 = vsel %vm189, %v4778, 0
  %4782 = vmatprep.subr.mxu0 0.0
  %4783 = vmatpush1.msra.mxu0 %v177
  %4784 = vmatprep.subr.mxu0 0.0
  %4785 = vmatpush1.msra.mxu0 %v178
  %4786 = vmatprep.subr.mxu0 0.0
  %4787 = vmatpush1.msra.mxu0 %v179
  %4788 = vmatprep.subr.mxu0 0.0
  %4789 = vmatpush1.msra.mxu0 %v180
  %4790 = vmatprep.subr.mxu0 0.0
  %4791 = vmatpush1.msra.mxu0 0.0
  %4792 = vmatprep.subr.mxu0 0.0
  %4793 = vmatpush1.msra.mxu0 0.0
  %4794 = vmatprep.subr.mxu0 0.0
  %4795 = vmatpush1.msra.mxu0 0.0
  %4796 = vmatprep.subr.mxu0 0.0
  %4797 = vmatpush1.msra.mxu0 0.0
  %4798 = vmatprep.subr.mxu0 0.0
  %4799 = vmatpush1.msra.mxu0 0.0
  %4800 = vmatprep.subr.mxu0 0.0
  %4801 = vmatpush1.msra.mxu0 0.0
  %4802 = vmatprep.subr.mxu0 0.0
  %4803 = vmatpush1.msra.mxu0 0.0
  %4804 = vmatprep.subr.mxu0 0.0
  %4805 = vmatpush1.msra.mxu0 0.0
  %4806 = vmatprep.subr.mxu0 0.0
  %4807 = vmatpush1.msra.mxu0 0.0
  %4808 = vmatprep.subr.mxu0 0.0
  %4809 = vmatpush1.msra.mxu0 0.0
  %4810 = vmatprep.subr.mxu0 0.0
  %4811 = vmatpush1.msra.mxu0 0.0
  %4812 = vmatprep.subr.mxu0 0.0
  %4813 = vmatpush1.msra.mxu0 0.0
  %4814 = vmatprep.subr.mxu0 0.0
  %4815 = vmatpush1.msra.mxu0 0.0
  %4816 = vmatprep.subr.mxu0 0.0
  %4817 = vmatpush1.msra.mxu0 0.0
  %4818 = vmatprep.subr.mxu0 0.0
  %4819 = vmatpush1.msra.mxu0 0.0
  %4820 = vmatprep.subr.mxu0 0.0
  %4821 = vmatpush1.msra.mxu0 0.0
  %4822 = vmatprep.subr.mxu0 0.0
  %4823 = vmatpush1.msra.mxu0 0.0
  %4824 = vmatprep.subr.mxu0 0.0
  %4825 = vmatpush1.msra.mxu0 0.0
  %4826 = vmatprep.subr.mxu0 0.0
  %4827 = vmatpush1.msra.mxu0 0.0
  %4828 = vmatprep.subr.mxu0 0.0
  %4829 = vmatpush1.msra.mxu0 0.0
  %4830 = vmatprep.subr.mxu0 0.0
  %4831 = vmatpush1.msra.mxu0 0.0
  %4832 = vmatprep.subr.mxu0 0.0
  %4833 = vmatpush1.msra.mxu0 0.0
  %4834 = vmatprep.subr.mxu0 0.0
  %4835 = vmatpush1.msra.mxu0 0.0
  %4836 = vmatprep.subr.mxu0 0.0
  %4837 = vmatpush1.msra.mxu0 0.0
  %4838 = vmatprep.subr.mxu0 0.0
  %4839 = vmatpush1.msra.mxu0 0.0
  %4840 = vmatprep.subr.mxu0 0.0
  %4841 = vmatpush1.msra.mxu0 0.0
  %4842 = vmatprep.subr.mxu0 0.0
  %4843 = vmatpush1.msra.mxu0 0.0
  %4844 = vmatprep.subr.mxu0 0.0
  %4845 = vmatpush1.msra.mxu0 0.0
  %4846 = vmatprep.mubr.f32.mxu0 0.0
  %4847 = vmatmul.mubr.f32.gmra.mrb[0].mxu0 %v4780
  %v4848 = vpop.f32.mrb[0].mxu0
  %v4849 = vadd.f32 %v186, %v4848
  %v4850 = vpop.f32.mrb[0].mxu0
  %4851 = vdwg.mxu0
  %v4852 = vsel %vm1348, %v4849, -inf
  %4853 = vmax.xlane.f32.xlu0 %v4852
  %v4854 = vpop.xlane.xlu0 %4853
  %v4855 = vsub.f32 %v4849, %v4854
  %v4856 = vmul.f32 %v4855, 1.442695
  %v4857 = vpow.pop %v4856
  %v4858 = vsel %vm1348, %v4857, 0.0
  %4859 = vadd.xlane.f32.xlu0 %v4858
  %v4860 = vpop.xlane.xlu0 %4859
  %v4861 = vlog2.pop %v4860
  %v4862 = vmul.f32 %v4861, 0.6931472
  %v4863 = vsub.f32 %v4855, %v4862
  %s4864 = scalar_lea.vmem %s20, 24
  %4865 = vst.msk [vmem:[%s4864] sm:$0xff] %vm1348, %v4863
  %s4866 = scalar_lea.vmem %s0, 32
  %v4867 = vld [vmem:[%s4866] sm:$0xff]
  %4868 = vmatprep.subr.mxu0 0.0
  %4869 = vmatpush1.msra.mxu0 %v69
  %4870 = vmatprep.subr.mxu0 0.0
  %4871 = vmatpush1.msra.mxu0 %v70
  %4872 = vmatprep.subr.mxu0 0.0
  %4873 = vmatpush1.msra.mxu0 %v71
  %4874 = vmatprep.subr.mxu0 0.0
  %4875 = vmatpush1.msra.mxu0 %v72
  %4876 = vmatprep.subr.mxu0 0.0
  %4877 = vmatpush1.msra.mxu0 0.0
  %4878 = vmatprep.subr.mxu0 0.0
  %4879 = vmatpush1.msra.mxu0 0.0
  %4880 = vmatprep.subr.mxu0 0.0
  %4881 = vmatpush1.msra.mxu0 0.0
  %4882 = vmatprep.subr.mxu0 0.0
  %4883 = vmatpush1.msra.mxu0 0.0
  %4884 = vmatprep.subr.mxu0 0.0
  %4885 = vmatpush1.msra.mxu0 0.0
  %4886 = vmatprep.subr.mxu0 0.0
  %4887 = vmatpush1.msra.mxu0 0.0
  %4888 = vmatprep.subr.mxu0 0.0
  %4889 = vmatpush1.msra.mxu0 0.0
  %4890 = vmatprep.subr.mxu0 0.0
  %4891 = vmatpush1.msra.mxu0 0.0
  %4892 = vmatprep.subr.mxu0 0.0
  %4893 = vmatpush1.msra.mxu0 0.0
  %4894 = vmatprep.subr.mxu0 0.0
  %4895 = vmatpush1.msra.mxu0 0.0
  %4896 = vmatprep.subr.mxu0 0.0
  %4897 = vmatpush1.msra.mxu0 0.0
  %4898 = vmatprep.subr.mxu0 0.0
  %4899 = vmatpush1.msra.mxu0 0.0
  %4900 = vmatprep.subr.mxu0 0.0
  %4901 = vmatpush1.msra.mxu0 0.0
  %4902 = vmatprep.subr.mxu0 0.0
  %4903 = vmatpush1.msra.mxu0 0.0
  %4904 = vmatprep.subr.mxu0 0.0
  %4905 = vmatpush1.msra.mxu0 0.0
  %4906 = vmatprep.subr.mxu0 0.0
  %4907 = vmatpush1.msra.mxu0 0.0
  %4908 = vmatprep.subr.mxu0 0.0
  %4909 = vmatpush1.msra.mxu0 0.0
  %4910 = vmatprep.subr.mxu0 0.0
  %4911 = vmatpush1.msra.mxu0 0.0
  %4912 = vmatprep.subr.mxu0 0.0
  %4913 = vmatpush1.msra.mxu0 0.0
  %4914 = vmatprep.subr.mxu0 0.0
  %4915 = vmatpush1.msra.mxu0 0.0
  %4916 = vmatprep.subr.mxu0 0.0
  %4917 = vmatpush1.msra.mxu0 0.0
  %4918 = vmatprep.subr.mxu0 0.0
  %4919 = vmatpush1.msra.mxu0 0.0
  %4920 = vmatprep.subr.mxu0 0.0
  %4921 = vmatpush1.msra.mxu0 0.0
  %4922 = vmatprep.subr.mxu0 0.0
  %4923 = vmatpush1.msra.mxu0 0.0
  %4924 = vmatprep.subr.mxu0 0.0
  %4925 = vmatpush1.msra.mxu0 0.0
  %4926 = vmatprep.subr.mxu0 0.0
  %4927 = vmatpush1.msra.mxu0 0.0
  %4928 = vmatprep.subr.mxu0 0.0
  %4929 = vmatpush1.msra.mxu0 0.0
  %4930 = vmatprep.subr.mxu0 0.0
  %4931 = vmatpush1.msra.mxu0 0.0
  %4932 = vmatprep.mubr.f32.mxu0 0.0
  %4933 = vmatmul.mubr.f32.gmra.mrb[0].mxu0 %v4705
  %v4934 = vpop.f32.mrb[0].mxu0
  %v4935 = vadd.f32 0.0, %v4934
  %v4936 = vpop.f32.mrb[0].mxu0
  %4937 = vdwg.mxu0
  %v4939 = vsel %vm189, %v4867, 0
  %4941 = vmatprep.subr.mxu0 0.0
  %4942 = vmatpush1.msra.mxu0 %v65
  %4943 = vmatprep.subr.mxu0 0.0
  %4944 = vmatpush1.msra.mxu0 %v66
  %4945 = vmatprep.subr.mxu0 0.0
  %4946 = vmatpush1.msra.mxu0 %v67
  %4947 = vmatprep.subr.mxu0 0.0
  %4948 = vmatpush1.msra.mxu0 %v68
  %4949 = vmatprep.subr.mxu0 0.0
  %4950 = vmatpush1.msra.mxu0 0.0
  %4951 = vmatprep.subr.mxu0 0.0
  %4952 = vmatpush1.msra.mxu0 0.0
  %4953 = vmatprep.subr.mxu0 0.0
  %4954 = vmatpush1.msra.mxu0 0.0
  %4955 = vmatprep.subr.mxu0 0.0
  %4956 = vmatpush1.msra.mxu0 0.0
  %4957 = vmatprep.subr.mxu0 0.0
  %4958 = vmatpush1.msra.mxu0 0.0
  %4959 = vmatprep.subr.mxu0 0.0
  %4960 = vmatpush1.msra.mxu0 0.0
  %4961 = vmatprep.subr.mxu0 0.0
  %4962 = vmatpush1.msra.mxu0 0.0
  %4963 = vmatprep.subr.mxu0 0.0
  %4964 = vmatpush1.msra.mxu0 0.0
  %4965 = vmatprep.subr.mxu0 0.0
  %4966 = vmatpush1.msra.mxu0 0.0
  %4967 = vmatprep.subr.mxu0 0.0
  %4968 = vmatpush1.msra.mxu0 0.0
  %4969 = vmatprep.subr.mxu0 0.0
  %4970 = vmatpush1.msra.mxu0 0.0
  %4971 = vmatprep.subr.mxu0 0.0
  %4972 = vmatpush1.msra.mxu0 0.0
  %4973 = vmatprep.subr.mxu0 0.0
  %4974 = vmatpush1.msra.mxu0 0.0
  %4975 = vmatprep.subr.mxu0 0.0
  %4976 = vmatpush1.msra.mxu0 0.0
  %4977 = vmatprep.subr.mxu0 0.0
  %4978 = vmatpush1.msra.mxu0 0.0
  %4979 = vmatprep.subr.mxu0 0.0
  %4980 = vmatpush1.msra.mxu0 0.0
  %4981 = vmatprep.subr.mxu0 0.0
  %4982 = vmatpush1.msra.mxu0 0.0
  %4983 = vmatprep.subr.mxu0 0.0
  %4984 = vmatpush1.msra.mxu0 0.0
  %4985 = vmatprep.subr.mxu0 0.0
  %4986 = vmatpush1.msra.mxu0 0.0
  %4987 = vmatprep.subr.mxu0 0.0
  %4988 = vmatpush1.msra.mxu0 0.0
  %4989 = vmatprep.subr.mxu0 0.0
  %4990 = vmatpush1.msra.mxu0 0.0
  %4991 = vmatprep.subr.mxu0 0.0
  %4992 = vmatpush1.msra.mxu0 0.0
  %4993 = vmatprep.subr.mxu0 0.0
  %4994 = vmatpush1.msra.mxu0 0.0
  %4995 = vmatprep.subr.mxu0 0.0
  %4996 = vmatpush1.msra.mxu0 0.0
  %4997 = vmatprep.subr.mxu0 0.0
  %4998 = vmatpush1.msra.mxu0 0.0
  %4999 = vmatprep.subr.mxu0 0.0
  %5000 = vmatpush1.msra.mxu0 0.0
  %5001 = vmatprep.subr.mxu0 0.0
  %5002 = vmatpush1.msra.mxu0 0.0
  %5003 = vmatprep.subr.mxu0 0.0
  %5004 = vmatpush1.msra.mxu0 0.0
  %5005 = vmatprep.mubr.f32.mxu0 0.0
  %5006 = vmatmul.mubr.f32.gmra.mrb[0].mxu0 %v4939
  %v5007 = vpop.f32.mrb[0].mxu0
  %v5008 = vadd.f32 %v4935, %v5007
  %v5009 = vpop.f32.mrb[0].mxu0
  %5010 = vdwg.mxu0
  %v5011 = vadd.f32 %v5008, %v78
  %v5012 = vxor.u32 %v5011, 2147483648
  %v5013 = vmul.f32 %v5012, 1.442695
  %v5014 = vpow.pop %v5013
  %v5015 = vadd.f32 %v5014, 1.0
  %v5016 = vrcp.pop %v5015
  %v5017 = vmul.f32 1.0, %v5016
  %v5018 = vtanh.pop %v5011
  %v5019 = vmul.f32 %v5017, %v3861
  %5021 = vrot.lane.b32.xlu0 %v5018, 64
  %v5022 = vpop.permute.xlu0 %5021
  %v5024 = vmul.f32 %v5017, %v5022
  %5026 = vrot.lane.b32.xlu0 %v5024, 32
  %v5027 = vpop.permute.xlu0 %5026
  %v5029 = vadd.f32 %v5019, %v5027
  %v5030 = vtanh.pop %v5029
  %5032 = vrot.lane.b32.xlu0 %v5030, 64
  %v5033 = vpop.permute.xlu0 %5032
  %v5035 = vmul.f32 %v5017, %v5033
  %5037 = vrot.lane.b32.xlu0 %v5029, 96
  %v5038 = vpop.permute.xlu0 %5037
  %v5039 = vsel %vm189, %v5038, 0
  %5041 = vmatprep.subr.mxu0 0.0
  %5042 = vmatpush1.msra.mxu0 %v84
  %5043 = vmatprep.subr.mxu0 0.0
  %5044 = vmatpush1.msra.mxu0 %v85
  %5045 = vmatprep.subr.mxu0 0.0
  %5046 = vmatpush1.msra.mxu0 %v86
  %5047 = vmatprep.subr.mxu0 0.0
  %5048 = vmatpush1.msra.mxu0 %v87
  %5049 = vmatprep.subr.mxu0 0.0
  %5050 = vmatpush1.msra.mxu0 0.0
  %5051 = vmatprep.subr.mxu0 0.0
  %5052 = vmatpush1.msra.mxu0 0.0
  %5053 = vmatprep.subr.mxu0 0.0
  %5054 = vmatpush1.msra.mxu0 0.0
  %5055 = vmatprep.subr.mxu0 0.0
  %5056 = vmatpush1.msra.mxu0 0.0
  %5057 = vmatprep.subr.mxu0 0.0
  %5058 = vmatpush1.msra.mxu0 0.0
  %5059 = vmatprep.subr.mxu0 0.0
  %5060 = vmatpush1.msra.mxu0 0.0
  %5061 = vmatprep.subr.mxu0 0.0
  %5062 = vmatpush1.msra.mxu0 0.0
  %5063 = vmatprep.subr.mxu0 0.0
  %5064 = vmatpush1.msra.mxu0 0.0
  %5065 = vmatprep.subr.mxu0 0.0
  %5066 = vmatpush1.msra.mxu0 0.0
  %5067 = vmatprep.subr.mxu0 0.0
  %5068 = vmatpush1.msra.mxu0 0.0
  %5069 = vmatprep.subr.mxu0 0.0
  %5070 = vmatpush1.msra.mxu0 0.0
  %5071 = vmatprep.subr.mxu0 0.0
  %5072 = vmatpush1.msra.mxu0 0.0
  %5073 = vmatprep.subr.mxu0 0.0
  %5074 = vmatpush1.msra.mxu0 0.0
  %5075 = vmatprep.subr.mxu0 0.0
  %5076 = vmatpush1.msra.mxu0 0.0
  %5077 = vmatprep.subr.mxu0 0.0
  %5078 = vmatpush1.msra.mxu0 0.0
  %5079 = vmatprep.subr.mxu0 0.0
  %5080 = vmatpush1.msra.mxu0 0.0
  %5081 = vmatprep.subr.mxu0 0.0
  %5082 = vmatpush1.msra.mxu0 0.0
  %5083 = vmatprep.subr.mxu0 0.0
  %5084 = vmatpush1.msra.mxu0 0.0
  %5085 = vmatprep.subr.mxu0 0.0
  %5086 = vmatpush1.msra.mxu0 0.0
  %5087 = vmatprep.subr.mxu0 0.0
  %5088 = vmatpush1.msra.mxu0 0.0
  %5089 = vmatprep.subr.mxu0 0.0
  %5090 = vmatpush1.msra.mxu0 0.0
  %5091 = vmatprep.subr.mxu0 0.0
  %5092 = vmatpush1.msra.mxu0 0.0
  %5093 = vmatprep.subr.mxu0 0.0
  %5094 = vmatpush1.msra.mxu0 0.0
  %5095 = vmatprep.subr.mxu0 0.0
  %5096 = vmatpush1.msra.mxu0 0.0
  %5097 = vmatprep.subr.mxu0 0.0
  %5098 = vmatpush1.msra.mxu0 0.0
  %5099 = vmatprep.subr.mxu0 0.0
  %5100 = vmatpush1.msra.mxu0 0.0
  %5101 = vmatprep.subr.mxu0 0.0
  %5102 = vmatpush1.msra.mxu0 0.0
  %5103 = vmatprep.subr.mxu0 0.0
  %5104 = vmatpush1.msra.mxu0 0.0
  %5105 = vmatprep.mubr.f32.mxu0 0.0
  %5106 = vmatmul.mubr.f32.gmra.mrb[0].mxu0 %v5039
  %v5107 = vpop.f32.mrb[0].mxu0
  %v5108 = vadd.f32 0.0, %v5107
  %v5109 = vpop.f32.mrb[0].mxu0
  %5110 = vdwg.mxu0
  %5111 = vmatprep.subr.mxu0 0.0
  %5112 = vmatpush1.msra.mxu0 %v80
  %5113 = vmatprep.subr.mxu0 0.0
  %5114 = vmatpush1.msra.mxu0 %v81
  %5115 = vmatprep.subr.mxu0 0.0
  %5116 = vmatpush1.msra.mxu0 %v82
  %5117 = vmatprep.subr.mxu0 0.0
  %5118 = vmatpush1.msra.mxu0 %v83
  %5119 = vmatprep.subr.mxu0 0.0
  %5120 = vmatpush1.msra.mxu0 0.0
  %5121 = vmatprep.subr.mxu0 0.0
  %5122 = vmatpush1.msra.mxu0 0.0
  %5123 = vmatprep.subr.mxu0 0.0
  %5124 = vmatpush1.msra.mxu0 0.0
  %5125 = vmatprep.subr.mxu0 0.0
  %5126 = vmatpush1.msra.mxu0 0.0
  %5127 = vmatprep.subr.mxu0 0.0
  %5128 = vmatpush1.msra.mxu0 0.0
  %5129 = vmatprep.subr.mxu0 0.0
  %5130 = vmatpush1.msra.mxu0 0.0
  %5131 = vmatprep.subr.mxu0 0.0
  %5132 = vmatpush1.msra.mxu0 0.0
  %5133 = vmatprep.subr.mxu0 0.0
  %5134 = vmatpush1.msra.mxu0 0.0
  %5135 = vmatprep.subr.mxu0 0.0
  %5136 = vmatpush1.msra.mxu0 0.0
  %5137 = vmatprep.subr.mxu0 0.0
  %5138 = vmatpush1.msra.mxu0 0.0
  %5139 = vmatprep.subr.mxu0 0.0
  %5140 = vmatpush1.msra.mxu0 0.0
  %5141 = vmatprep.subr.mxu0 0.0
  %5142 = vmatpush1.msra.mxu0 0.0
  %5143 = vmatprep.subr.mxu0 0.0
  %5144 = vmatpush1.msra.mxu0 0.0
  %5145 = vmatprep.subr.mxu0 0.0
  %5146 = vmatpush1.msra.mxu0 0.0
  %5147 = vmatprep.subr.mxu0 0.0
  %5148 = vmatpush1.msra.mxu0 0.0
  %5149 = vmatprep.subr.mxu0 0.0
  %5150 = vmatpush1.msra.mxu0 0.0
  %5151 = vmatprep.subr.mxu0 0.0
  %5152 = vmatpush1.msra.mxu0 0.0
  %5153 = vmatprep.subr.mxu0 0.0
  %5154 = vmatpush1.msra.mxu0 0.0
  %5155 = vmatprep.subr.mxu0 0.0
  %5156 = vmatpush1.msra.mxu0 0.0
  %5157 = vmatprep.subr.mxu0 0.0
  %5158 = vmatpush1.msra.mxu0 0.0
  %5159 = vmatprep.subr.mxu0 0.0
  %5160 = vmatpush1.msra.mxu0 0.0
  %5161 = vmatprep.subr.mxu0 0.0
  %5162 = vmatpush1.msra.mxu0 0.0
  %5163 = vmatprep.subr.mxu0 0.0
  %5164 = vmatpush1.msra.mxu0 0.0
  %5165 = vmatprep.subr.mxu0 0.0
  %5166 = vmatpush1.msra.mxu0 0.0
  %5167 = vmatprep.subr.mxu0 0.0
  %5168 = vmatpush1.msra.mxu0 0.0
  %5169 = vmatprep.subr.mxu0 0.0
  %5170 = vmatpush1.msra.mxu0 0.0
  %5171 = vmatprep.subr.mxu0 0.0
  %5172 = vmatpush1.msra.mxu0 0.0
  %5173 = vmatprep.subr.mxu0 0.0
  %5174 = vmatpush1.msra.mxu0 0.0
  %5175 = vmatprep.mubr.f32.mxu0 0.0
  %5176 = vmatmul.mubr.f32.gmra.mrb[0].mxu0 %v3871
  %v5177 = vpop.f32.mrb[0].mxu0
  %v5178 = vadd.f32 %v5108, %v5177
  %v5179 = vpop.f32.mrb[0].mxu0
  %5180 = vdwg.mxu0
  %v5181 = vadd.f32 %v5178, %v93
  %v5182 = vmax.f32 %v5181, 0.0
  %v5184 = vsel %vm189, %v5182, 0
  %5186 = vmatprep.subr.mxu0 0.0
  %5187 = vmatpush1.msra.mxu0 %v95
  %5188 = vmatprep.subr.mxu0 0.0
  %5189 = vmatpush1.msra.mxu0 %v96
  %5190 = vmatprep.subr.mxu0 0.0
  %5191 = vmatpush1.msra.mxu0 %v97
  %5192 = vmatprep.subr.mxu0 0.0
  %5193 = vmatpush1.msra.mxu0 %v98
  %5194 = vmatprep.subr.mxu0 0.0
  %5195 = vmatpush1.msra.mxu0 0.0
  %5196 = vmatprep.subr.mxu0 0.0
  %5197 = vmatpush1.msra.mxu0 0.0
  %5198 = vmatprep.subr.mxu0 0.0
  %5199 = vmatpush1.msra.mxu0 0.0
  %5200 = vmatprep.subr.mxu0 0.0
  %5201 = vmatpush1.msra.mxu0 0.0
  %5202 = vmatprep.subr.mxu0 0.0
  %5203 = vmatpush1.msra.mxu0 0.0
  %5204 = vmatprep.subr.mxu0 0.0
  %5205 = vmatpush1.msra.mxu0 0.0
  %5206 = vmatprep.subr.mxu0 0.0
  %5207 = vmatpush1.msra.mxu0 0.0
  %5208 = vmatprep.subr.mxu0 0.0
  %5209 = vmatpush1.msra.mxu0 0.0
  %5210 = vmatprep.subr.mxu0 0.0
  %5211 = vmatpush1.msra.mxu0 0.0
  %5212 = vmatprep.subr.mxu0 0.0
  %5213 = vmatpush1.msra.mxu0 0.0
  %5214 = vmatprep.subr.mxu0 0.0
  %5215 = vmatpush1.msra.mxu0 0.0
  %5216 = vmatprep.subr.mxu0 0.0
  %5217 = vmatpush1.msra.mxu0 0.0
  %5218 = vmatprep.subr.mxu0 0.0
  %5219 = vmatpush1.msra.mxu0 0.0
  %5220 = vmatprep.subr.mxu0 0.0
  %5221 = vmatpush1.msra.mxu0 0.0
  %5222 = vmatprep.subr.mxu0 0.0
  %5223 = vmatpush1.msra.mxu0 0.0
  %5224 = vmatprep.subr.mxu0 0.0
  %5225 = vmatpush1.msra.mxu0 0.0
  %5226 = vmatprep.subr.mxu0 0.0
  %5227 = vmatpush1.msra.mxu0 0.0
  %5228 = vmatprep.subr.mxu0 0.0
  %5229 = vmatpush1.msra.mxu0 0.0
  %5230 = vmatprep.subr.mxu0 0.0
  %5231 = vmatpush1.msra.mxu0 0.0
  %5232 = vmatprep.subr.mxu0 0.0
  %5233 = vmatpush1.msra.mxu0 0.0
  %5234 = vmatprep.subr.mxu0 0.0
  %5235 = vmatpush1.msra.mxu0 0.0
  %5236 = vmatprep.subr.mxu0 0.0
  %5237 = vmatpush1.msra.mxu0 0.0
  %5238 = vmatprep.subr.mxu0 0.0
  %5239 = vmatpush1.msra.mxu0 0.0
  %5240 = vmatprep.subr.mxu0 0.0
  %5241 = vmatpush1.msra.mxu0 0.0
  %5242 = vmatprep.subr.mxu0 0.0
  %5243 = vmatpush1.msra.mxu0 0.0
  %5244 = vmatprep.subr.mxu0 0.0
  %5245 = vmatpush1.msra.mxu0 0.0
  %5246 = vmatprep.subr.mxu0 0.0
  %5247 = vmatpush1.msra.mxu0 0.0
  %5248 = vmatprep.subr.mxu0 0.0
  %5249 = vmatpush1.msra.mxu0 0.0
  %5250 = vmatprep.mubr.f32.mxu0 0.0
  %5251 = vmatmul.mubr.f32.gmra.mrb[0].mxu0 %v5184
  %v5252 = vpop.f32.mrb[0].mxu0
  %v5253 = vadd.f32 %v104, %v5252
  %v5254 = vpop.f32.mrb[0].mxu0
  %5255 = vdwg.mxu0
  %v5256 = vsel %vm581, %v5253, -inf
  %5257 = vmax.xlane.f32.xlu0 %v5256
  %v5258 = vpop.xlane.xlu0 %5257
  %v5259 = vsub.f32 %v5253, %v5258
  %v5260 = vmul.f32 %v5259, 1.442695
  %v5261 = vpow.pop %v5260
  %v5262 = vsel %vm581, %v5261, 0.0
  %5263 = vadd.xlane.f32.xlu0 %v5262
  %v5264 = vpop.xlane.xlu0 %5263
  %v5265 = vrcp.pop %v5264
  %v5266 = vmul.f32 %v5261, %v5265
  %v5268 = vmul.f32 %v5266, %v3870
  %v5269 = vmul.f32 %v5266, %v5029
  %5271 = vrot.lane.b32.xlu0 %v5269, 96
  %v5272 = vpop.permute.xlu0 %5271
  %v5273 = vsel %vm189, %v5272, 0
  %5275 = vmatprep.subr.mxu0 0.0
  %5276 = vmatpush1.msra.mxu0 %v110
  %5277 = vmatprep.subr.mxu0 0.0
  %5278 = vmatpush1.msra.mxu0 %v111
  %5279 = vmatprep.subr.mxu0 0.0
  %5280 = vmatpush1.msra.mxu0 %v112
  %5281 = vmatprep.subr.mxu0 0.0
  %5282 = vmatpush1.msra.mxu0 %v113
  %5283 = vmatprep.subr.mxu0 0.0
  %5284 = vmatpush1.msra.mxu0 0.0
  %5285 = vmatprep.subr.mxu0 0.0
  %5286 = vmatpush1.msra.mxu0 0.0
  %5287 = vmatprep.subr.mxu0 0.0
  %5288 = vmatpush1.msra.mxu0 0.0
  %5289 = vmatprep.subr.mxu0 0.0
  %5290 = vmatpush1.msra.mxu0 0.0
  %5291 = vmatprep.subr.mxu0 0.0
  %5292 = vmatpush1.msra.mxu0 0.0
  %5293 = vmatprep.subr.mxu0 0.0
  %5294 = vmatpush1.msra.mxu0 0.0
  %5295 = vmatprep.subr.mxu0 0.0
  %5296 = vmatpush1.msra.mxu0 0.0
  %5297 = vmatprep.subr.mxu0 0.0
  %5298 = vmatpush1.msra.mxu0 0.0
  %5299 = vmatprep.subr.mxu0 0.0
  %5300 = vmatpush1.msra.mxu0 0.0
  %5301 = vmatprep.subr.mxu0 0.0
  %5302 = vmatpush1.msra.mxu0 0.0
  %5303 = vmatprep.subr.mxu0 0.0
  %5304 = vmatpush1.msra.mxu0 0.0
  %5305 = vmatprep.subr.mxu0 0.0
  %5306 = vmatpush1.msra.mxu0 0.0
  %5307 = vmatprep.subr.mxu0 0.0
  %5308 = vmatpush1.msra.mxu0 0.0
  %5309 = vmatprep.subr.mxu0 0.0
  %5310 = vmatpush1.msra.mxu0 0.0
  %5311 = vmatprep.subr.mxu0 0.0
  %5312 = vmatpush1.msra.mxu0 0.0
  %5313 = vmatprep.subr.mxu0 0.0
  %5314 = vmatpush1.msra.mxu0 0.0
  %5315 = vmatprep.subr.mxu0 0.0
  %5316 = vmatpush1.msra.mxu0 0.0
  %5317 = vmatprep.subr.mxu0 0.0
  %5318 = vmatpush1.msra.mxu0 0.0
  %5319 = vmatprep.subr.mxu0 0.0
  %5320 = vmatpush1.msra.mxu0 0.0
  %5321 = vmatprep.subr.mxu0 0.0
  %5322 = vmatpush1.msra.mxu0 0.0
  %5323 = vmatprep.subr.mxu0 0.0
  %5324 = vmatpush1.msra.mxu0 0.0
  %5325 = vmatprep.subr.mxu0 0.0
  %5326 = vmatpush1.msra.mxu0 0.0
  %5327 = vmatprep.subr.mxu0 0.0
  %5328 = vmatpush1.msra.mxu0 0.0
  %5329 = vmatprep.subr.mxu0 0.0
  %5330 = vmatpush1.msra.mxu0 0.0
  %5331 = vmatprep.subr.mxu0 0.0
  %5332 = vmatpush1.msra.mxu0 0.0
  %5333 = vmatprep.subr.mxu0 0.0
  %5334 = vmatpush1.msra.mxu0 0.0
  %5335 = vmatprep.subr.mxu0 0.0
  %5336 = vmatpush1.msra.mxu0 0.0
  %5337 = vmatprep.subr.mxu0 0.0
  %5338 = vmatpush1.msra.mxu0 0.0
  %5339 = vmatprep.mubr.f32.mxu0 0.0
  %5340 = vmatmul.mubr.f32.gmra.mrb[0].mxu0 %v5273
  %v5341 = vpop.f32.mrb[0].mxu0
  %v5342 = vadd.f32 0.0, %v5341
  %v5343 = vpop.f32.mrb[0].mxu0
  %5344 = vdwg.mxu0
  %v5346 = vsel %vm189, %v5268, 0
  %5348 = vmatprep.subr.mxu0 0.0
  %5349 = vmatpush1.msra.mxu0 %v106
  %5350 = vmatprep.subr.mxu0 0.0
  %5351 = vmatpush1.msra.mxu0 %v107
  %5352 = vmatprep.subr.mxu0 0.0
  %5353 = vmatpush1.msra.mxu0 %v108
  %5354 = vmatprep.subr.mxu0 0.0
  %5355 = vmatpush1.msra.mxu0 %v109
  %5356 = vmatprep.subr.mxu0 0.0
  %5357 = vmatpush1.msra.mxu0 0.0
  %5358 = vmatprep.subr.mxu0 0.0
  %5359 = vmatpush1.msra.mxu0 0.0
  %5360 = vmatprep.subr.mxu0 0.0
  %5361 = vmatpush1.msra.mxu0 0.0
  %5362 = vmatprep.subr.mxu0 0.0
  %5363 = vmatpush1.msra.mxu0 0.0
  %5364 = vmatprep.subr.mxu0 0.0
  %5365 = vmatpush1.msra.mxu0 0.0
  %5366 = vmatprep.subr.mxu0 0.0
  %5367 = vmatpush1.msra.mxu0 0.0
  %5368 = vmatprep.subr.mxu0 0.0
  %5369 = vmatpush1.msra.mxu0 0.0
  %5370 = vmatprep.subr.mxu0 0.0
  %5371 = vmatpush1.msra.mxu0 0.0
  %5372 = vmatprep.subr.mxu0 0.0
  %5373 = vmatpush1.msra.mxu0 0.0
  %5374 = vmatprep.subr.mxu0 0.0
  %5375 = vmatpush1.msra.mxu0 0.0
  %5376 = vmatprep.subr.mxu0 0.0
  %5377 = vmatpush1.msra.mxu0 0.0
  %5378 = vmatprep.subr.mxu0 0.0
  %5379 = vmatpush1.msra.mxu0 0.0
  %5380 = vmatprep.subr.mxu0 0.0
  %5381 = vmatpush1.msra.mxu0 0.0
  %5382 = vmatprep.subr.mxu0 0.0
  %5383 = vmatpush1.msra.mxu0 0.0
  %5384 = vmatprep.subr.mxu0 0.0
  %5385 = vmatpush1.msra.mxu0 0.0
  %5386 = vmatprep.subr.mxu0 0.0
  %5387 = vmatpush1.msra.mxu0 0.0
  %5388 = vmatprep.subr.mxu0 0.0
  %5389 = vmatpush1.msra.mxu0 0.0
  %5390 = vmatprep.subr.mxu0 0.0
  %5391 = vmatpush1.msra.mxu0 0.0
  %5392 = vmatprep.subr.mxu0 0.0
  %5393 = vmatpush1.msra.mxu0 0.0
  %5394 = vmatprep.subr.mxu0 0.0
  %5395 = vmatpush1.msra.mxu0 0.0
  %5396 = vmatprep.subr.mxu0 0.0
  %5397 = vmatpush1.msra.mxu0 0.0
  %5398 = vmatprep.subr.mxu0 0.0
  %5399 = vmatpush1.msra.mxu0 0.0
  %5400 = vmatprep.subr.mxu0 0.0
  %5401 = vmatpush1.msra.mxu0 0.0
  %5402 = vmatprep.subr.mxu0 0.0
  %5403 = vmatpush1.msra.mxu0 0.0
  %5404 = vmatprep.subr.mxu0 0.0
  %5405 = vmatpush1.msra.mxu0 0.0
  %5406 = vmatprep.subr.mxu0 0.0
  %5407 = vmatpush1.msra.mxu0 0.0
  %5408 = vmatprep.subr.mxu0 0.0
  %5409 = vmatpush1.msra.mxu0 0.0
  %5410 = vmatprep.subr.mxu0 0.0
  %5411 = vmatpush1.msra.mxu0 0.0
  %5412 = vmatprep.mubr.f32.mxu0 0.0
  %5413 = vmatmul.mubr.f32.gmra.mrb[0].mxu0 %v5346
  %v5414 = vpop.f32.mrb[0].mxu0
  %v5415 = vadd.f32 %v5342, %v5414
  %v5416 = vpop.f32.mrb[0].mxu0
  %5417 = vdwg.mxu0
  %v5418 = vadd.f32 %v5415, %v119
  %v5419 = vmax.f32 %v5418, 0.0
  %v5421 = vsel %vm189, %v5419, 0
  %5423 = vmatprep.subr.mxu0 0.0
  %5424 = vmatpush1.msra.mxu0 %v121
  %5425 = vmatprep.subr.mxu0 0.0
  %5426 = vmatpush1.msra.mxu0 %v122
  %5427 = vmatprep.subr.mxu0 0.0
  %5428 = vmatpush1.msra.mxu0 %v123
  %5429 = vmatprep.subr.mxu0 0.0
  %5430 = vmatpush1.msra.mxu0 %v124
  %5431 = vmatprep.subr.mxu0 0.0
  %5432 = vmatpush1.msra.mxu0 0.0
  %5433 = vmatprep.subr.mxu0 0.0
  %5434 = vmatpush1.msra.mxu0 0.0
  %5435 = vmatprep.subr.mxu0 0.0
  %5436 = vmatpush1.msra.mxu0 0.0
  %5437 = vmatprep.subr.mxu0 0.0
  %5438 = vmatpush1.msra.mxu0 0.0
  %5439 = vmatprep.subr.mxu0 0.0
  %5440 = vmatpush1.msra.mxu0 0.0
  %5441 = vmatprep.subr.mxu0 0.0
  %5442 = vmatpush1.msra.mxu0 0.0
  %5443 = vmatprep.subr.mxu0 0.0
  %5444 = vmatpush1.msra.mxu0 0.0
  %5445 = vmatprep.subr.mxu0 0.0
  %5446 = vmatpush1.msra.mxu0 0.0
  %5447 = vmatprep.subr.mxu0 0.0
  %5448 = vmatpush1.msra.mxu0 0.0
  %5449 = vmatprep.subr.mxu0 0.0
  %5450 = vmatpush1.msra.mxu0 0.0
  %5451 = vmatprep.subr.mxu0 0.0
  %5452 = vmatpush1.msra.mxu0 0.0
  %5453 = vmatprep.subr.mxu0 0.0
  %5454 = vmatpush1.msra.mxu0 0.0
  %5455 = vmatprep.subr.mxu0 0.0
  %5456 = vmatpush1.msra.mxu0 0.0
  %5457 = vmatprep.subr.mxu0 0.0
  %5458 = vmatpush1.msra.mxu0 0.0
  %5459 = vmatprep.subr.mxu0 0.0
  %5460 = vmatpush1.msra.mxu0 0.0
  %5461 = vmatprep.subr.mxu0 0.0
  %5462 = vmatpush1.msra.mxu0 0.0
  %5463 = vmatprep.subr.mxu0 0.0
  %5464 = vmatpush1.msra.mxu0 0.0
  %5465 = vmatprep.subr.mxu0 0.0
  %5466 = vmatpush1.msra.mxu0 0.0
  %5467 = vmatprep.subr.mxu0 0.0
  %5468 = vmatpush1.msra.mxu0 0.0
  %5469 = vmatprep.subr.mxu0 0.0
  %5470 = vmatpush1.msra.mxu0 0.0
  %5471 = vmatprep.subr.mxu0 0.0
  %5472 = vmatpush1.msra.mxu0 0.0
  %5473 = vmatprep.subr.mxu0 0.0
  %5474 = vmatpush1.msra.mxu0 0.0
  %5475 = vmatprep.subr.mxu0 0.0
  %5476 = vmatpush1.msra.mxu0 0.0
  %5477 = vmatprep.subr.mxu0 0.0
  %5478 = vmatpush1.msra.mxu0 0.0
  %5479 = vmatprep.subr.mxu0 0.0
  %5480 = vmatpush1.msra.mxu0 0.0
  %5481 = vmatprep.subr.mxu0 0.0
  %5482 = vmatpush1.msra.mxu0 0.0
  %5483 = vmatprep.subr.mxu0 0.0
  %5484 = vmatpush1.msra.mxu0 0.0
  %5485 = vmatprep.subr.mxu0 0.0
  %5486 = vmatpush1.msra.mxu0 0.0
  %5487 = vmatprep.mubr.f32.mxu0 0.0
  %5488 = vmatmul.mubr.f32.gmra.mrb[0].mxu0 %v5421
  %v5489 = vpop.f32.mrb[0].mxu0
  %v5490 = vadd.f32 %v130, %v5489
  %v5491 = vpop.f32.mrb[0].mxu0
  %5492 = vdwg.mxu0
  %v5493 = vtanh.pop %v5490
  %5494 = vmatprep.subr.mxu0 0.0
  %5495 = vmatpush1.msra.mxu0 %v136
  %5496 = vmatprep.subr.mxu0 0.0
  %5497 = vmatpush1.msra.mxu0 %v137
  %5498 = vmatprep.subr.mxu0 0.0
  %5499 = vmatpush1.msra.mxu0 %v138
  %5500 = vmatprep.subr.mxu0 0.0
  %5501 = vmatpush1.msra.mxu0 %v139
  %5502 = vmatprep.subr.mxu0 0.0
  %5503 = vmatpush1.msra.mxu0 0.0
  %5504 = vmatprep.subr.mxu0 0.0
  %5505 = vmatpush1.msra.mxu0 0.0
  %5506 = vmatprep.subr.mxu0 0.0
  %5507 = vmatpush1.msra.mxu0 0.0
  %5508 = vmatprep.subr.mxu0 0.0
  %5509 = vmatpush1.msra.mxu0 0.0
  %5510 = vmatprep.subr.mxu0 0.0
  %5511 = vmatpush1.msra.mxu0 0.0
  %5512 = vmatprep.subr.mxu0 0.0
  %5513 = vmatpush1.msra.mxu0 0.0
  %5514 = vmatprep.subr.mxu0 0.0
  %5515 = vmatpush1.msra.mxu0 0.0
  %5516 = vmatprep.subr.mxu0 0.0
  %5517 = vmatpush1.msra.mxu0 0.0
  %5518 = vmatprep.subr.mxu0 0.0
  %5519 = vmatpush1.msra.mxu0 0.0
  %5520 = vmatprep.subr.mxu0 0.0
  %5521 = vmatpush1.msra.mxu0 0.0
  %5522 = vmatprep.subr.mxu0 0.0
  %5523 = vmatpush1.msra.mxu0 0.0
  %5524 = vmatprep.subr.mxu0 0.0
  %5525 = vmatpush1.msra.mxu0 0.0
  %5526 = vmatprep.subr.mxu0 0.0
  %5527 = vmatpush1.msra.mxu0 0.0
  %5528 = vmatprep.subr.mxu0 0.0
  %5529 = vmatpush1.msra.mxu0 0.0
  %5530 = vmatprep.subr.mxu0 0.0
  %5531 = vmatpush1.msra.mxu0 0.0
  %5532 = vmatprep.subr.mxu0 0.0
  %5533 = vmatpush1.msra.mxu0 0.0
  %5534 = vmatprep.subr.mxu0 0.0
  %5535 = vmatpush1.msra.mxu0 0.0
  %5536 = vmatprep.subr.mxu0 0.0
  %5537 = vmatpush1.msra.mxu0 0.0
  %5538 = vmatprep.subr.mxu0 0.0
  %5539 = vmatpush1.msra.mxu0 0.0
  %5540 = vmatprep.subr.mxu0 0.0
  %5541 = vmatpush1.msra.mxu0 0.0
  %5542 = vmatprep.subr.mxu0 0.0
  %5543 = vmatpush1.msra.mxu0 0.0
  %5544 = vmatprep.subr.mxu0 0.0
  %5545 = vmatpush1.msra.mxu0 0.0
  %5546 = vmatprep.subr.mxu0 0.0
  %5547 = vmatpush1.msra.mxu0 0.0
  %5548 = vmatprep.subr.mxu0 0.0
  %5549 = vmatpush1.msra.mxu0 0.0
  %5550 = vmatprep.subr.mxu0 0.0
  %5551 = vmatpush1.msra.mxu0 0.0
  %5552 = vmatprep.subr.mxu0 0.0
  %5553 = vmatpush1.msra.mxu0 0.0
  %5554 = vmatprep.subr.mxu0 0.0
  %5555 = vmatpush1.msra.mxu0 0.0
  %5556 = vmatprep.subr.mxu0 0.0
  %5557 = vmatpush1.msra.mxu0 0.0
  %5558 = vmatprep.mubr.f32.mxu0 0.0
  %5559 = vmatmul.mubr.f32.gmra.mrb[0].mxu0 %v5273
  %v5560 = vpop.f32.mrb[0].mxu0
  %v5561 = vadd.f32 0.0, %v5560
  %v5562 = vpop.f32.mrb[0].mxu0
  %5563 = vdwg.mxu0
  %5564 = vmatprep.subr.mxu0 0.0
  %5565 = vmatpush1.msra.mxu0 %v132
  %5566 = vmatprep.subr.mxu0 0.0
  %5567 = vmatpush1.msra.mxu0 %v133
  %5568 = vmatprep.subr.mxu0 0.0
  %5569 = vmatpush1.msra.mxu0 %v134
  %5570 = vmatprep.subr.mxu0 0.0
  %5571 = vmatpush1.msra.mxu0 %v135
  %5572 = vmatprep.subr.mxu0 0.0
  %5573 = vmatpush1.msra.mxu0 0.0
  %5574 = vmatprep.subr.mxu0 0.0
  %5575 = vmatpush1.msra.mxu0 0.0
  %5576 = vmatprep.subr.mxu0 0.0
  %5577 = vmatpush1.msra.mxu0 0.0
  %5578 = vmatprep.subr.mxu0 0.0
  %5579 = vmatpush1.msra.mxu0 0.0
  %5580 = vmatprep.subr.mxu0 0.0
  %5581 = vmatpush1.msra.mxu0 0.0
  %5582 = vmatprep.subr.mxu0 0.0
  %5583 = vmatpush1.msra.mxu0 0.0
  %5584 = vmatprep.subr.mxu0 0.0
  %5585 = vmatpush1.msra.mxu0 0.0
  %5586 = vmatprep.subr.mxu0 0.0
  %5587 = vmatpush1.msra.mxu0 0.0
  %5588 = vmatprep.subr.mxu0 0.0
  %5589 = vmatpush1.msra.mxu0 0.0
  %5590 = vmatprep.subr.mxu0 0.0
  %5591 = vmatpush1.msra.mxu0 0.0
  %5592 = vmatprep.subr.mxu0 0.0
  %5593 = vmatpush1.msra.mxu0 0.0
  %5594 = vmatprep.subr.mxu0 0.0
  %5595 = vmatpush1.msra.mxu0 0.0
  %5596 = vmatprep.subr.mxu0 0.0
  %5597 = vmatpush1.msra.mxu0 0.0
  %5598 = vmatprep.subr.mxu0 0.0
  %5599 = vmatpush1.msra.mxu0 0.0
  %5600 = vmatprep.subr.mxu0 0.0
  %5601 = vmatpush1.msra.mxu0 0.0
  %5602 = vmatprep.subr.mxu0 0.0
  %5603 = vmatpush1.msra.mxu0 0.0
  %5604 = vmatprep.subr.mxu0 0.0
  %5605 = vmatpush1.msra.mxu0 0.0
  %5606 = vmatprep.subr.mxu0 0.0
  %5607 = vmatpush1.msra.mxu0 0.0
  %5608 = vmatprep.subr.mxu0 0.0
  %5609 = vmatpush1.msra.mxu0 0.0
  %5610 = vmatprep.subr.mxu0 0.0
  %5611 = vmatpush1.msra.mxu0 0.0
  %5612 = vmatprep.subr.mxu0 0.0
  %5613 = vmatpush1.msra.mxu0 0.0
  %5614 = vmatprep.subr.mxu0 0.0
  %5615 = vmatpush1.msra.mxu0 0.0
  %5616 = vmatprep.subr.mxu0 0.0
  %5617 = vmatpush1.msra.mxu0 0.0
  %5618 = vmatprep.subr.mxu0 0.0
  %5619 = vmatpush1.msra.mxu0 0.0
  %5620 = vmatprep.subr.mxu0 0.0
  %5621 = vmatpush1.msra.mxu0 0.0
  %5622 = vmatprep.subr.mxu0 0.0
  %5623 = vmatpush1.msra.mxu0 0.0
  %5624 = vmatprep.subr.mxu0 0.0
  %5625 = vmatpush1.msra.mxu0 0.0
  %5626 = vmatprep.subr.mxu0 0.0
  %5627 = vmatpush1.msra.mxu0 0.0
  %5628 = vmatprep.mubr.f32.mxu0 0.0
  %5629 = vmatmul.mubr.f32.gmra.mrb[0].mxu0 %v5346
  %v5630 = vpop.f32.mrb[0].mxu0
  %v5631 = vadd.f32 %v5561, %v5630
  %v5632 = vpop.f32.mrb[0].mxu0
  %5633 = vdwg.mxu0
  %5634 = vmatprep.subr.mxu0 0.0
  %5635 = vmatpush1.msra.mxu0 %v140
  %5636 = vmatprep.subr.mxu0 0.0
  %5637 = vmatpush1.msra.mxu0 %v141
  %5638 = vmatprep.subr.mxu0 0.0
  %5639 = vmatpush1.msra.mxu0 0.0
  %5640 = vmatprep.subr.mxu0 0.0
  %5641 = vmatpush1.msra.mxu0 0.0
  %5642 = vmatprep.subr.mxu0 0.0
  %5643 = vmatpush1.msra.mxu0 0.0
  %5644 = vmatprep.subr.mxu0 0.0
  %5645 = vmatpush1.msra.mxu0 0.0
  %5646 = vmatprep.subr.mxu0 0.0
  %5647 = vmatpush1.msra.mxu0 0.0
  %5648 = vmatprep.subr.mxu0 0.0
  %5649 = vmatpush1.msra.mxu0 0.0
  %5650 = vmatprep.subr.mxu0 0.0
  %5651 = vmatpush1.msra.mxu0 0.0
  %5652 = vmatprep.subr.mxu0 0.0
  %5653 = vmatpush1.msra.mxu0 0.0
  %5654 = vmatprep.subr.mxu0 0.0
  %5655 = vmatpush1.msra.mxu0 0.0
  %5656 = vmatprep.subr.mxu0 0.0
  %5657 = vmatpush1.msra.mxu0 0.0
  %5658 = vmatprep.subr.mxu0 0.0
  %5659 = vmatpush1.msra.mxu0 0.0
  %5660 = vmatprep.subr.mxu0 0.0
  %5661 = vmatpush1.msra.mxu0 0.0
  %5662 = vmatprep.subr.mxu0 0.0
  %5663 = vmatpush1.msra.mxu0 0.0
  %5664 = vmatprep.subr.mxu0 0.0
  %5665 = vmatpush1.msra.mxu0 0.0
  %5666 = vmatprep.subr.mxu0 0.0
  %5667 = vmatpush1.msra.mxu0 0.0
  %5668 = vmatprep.subr.mxu0 0.0
  %5669 = vmatpush1.msra.mxu0 0.0
  %5670 = vmatprep.subr.mxu0 0.0
  %5671 = vmatpush1.msra.mxu0 0.0
  %5672 = vmatprep.subr.mxu0 0.0
  %5673 = vmatpush1.msra.mxu0 0.0
  %5674 = vmatprep.subr.mxu0 0.0
  %5675 = vmatpush1.msra.mxu0 0.0
  %5676 = vmatprep.subr.mxu0 0.0
  %5677 = vmatpush1.msra.mxu0 0.0
  %5678 = vmatprep.subr.mxu0 0.0
  %5679 = vmatpush1.msra.mxu0 0.0
  %5680 = vmatprep.subr.mxu0 0.0
  %5681 = vmatpush1.msra.mxu0 0.0
  %5682 = vmatprep.subr.mxu0 0.0
  %5683 = vmatpush1.msra.mxu0 0.0
  %5684 = vmatprep.subr.mxu0 0.0
  %5685 = vmatpush1.msra.mxu0 0.0
  %5686 = vmatprep.subr.mxu0 0.0
  %5687 = vmatpush1.msra.mxu0 0.0
  %5688 = vmatprep.subr.mxu0 0.0
  %5689 = vmatpush1.msra.mxu0 0.0
  %5690 = vmatprep.subr.mxu0 0.0
  %5691 = vmatpush1.msra.mxu0 0.0
  %5692 = vmatprep.subr.mxu0 0.0
  %5693 = vmatpush1.msra.mxu0 0.0
  %5694 = vmatprep.subr.mxu0 0.0
  %5695 = vmatpush1.msra.mxu0 0.0
  %5696 = vmatprep.subr.mxu0 0.0
  %5697 = vmatpush1.msra.mxu0 0.0
  %5698 = vmatprep.mubr.f32.mxu0 0.0
  %5699 = vmatmul.mubr.f32.gmra.mrb[0].mxu0 %v4630
  %v5700 = vpop.f32.mrb[0].mxu0
  %v5701 = vadd.f32 0.0, %v5700
  %v5702 = vpop.f32.mrb[0].mxu0
  %5703 = vdwg.mxu0
  %v5704 = vadd.f32 %v5631, %v5701
  %v5705 = vadd.f32 %v5704, %v147
  %v5706 = vmax.f32 %v5705, 0.0
  %v5708 = vsel %vm581, %v5706, 0
  %5710 = vmatprep.subr.mxu0 0.0
  %5711 = vmatpush1.msra.mxu0 %v149
  %5712 = vmatprep.subr.mxu0 0.0
  %5713 = vmatpush1.msra.mxu0 %v150
  %5714 = vmatprep.subr.mxu0 0.0
  %5715 = vmatpush1.msra.mxu0 %v151
  %5716 = vmatprep.subr.mxu0 0.0
  %5717 = vmatpush1.msra.mxu0 %v152
  %5718 = vmatprep.subr.mxu0 0.0
  %5719 = vmatpush1.msra.mxu0 %v153
  %5720 = vmatprep.subr.mxu0 0.0
  %5721 = vmatpush1.msra.mxu0 %v154
  %5722 = vmatprep.subr.mxu0 0.0
  %5723 = vmatpush1.msra.mxu0 %v155
  %5724 = vmatprep.subr.mxu0 0.0
  %5725 = vmatpush1.msra.mxu0 %v156
  %5726 = vmatprep.subr.mxu0 0.0
  %5727 = vmatpush1.msra.mxu0 0.0
  %5728 = vmatprep.subr.mxu0 0.0
  %5729 = vmatpush1.msra.mxu0 0.0
  %5730 = vmatprep.subr.mxu0 0.0
  %5731 = vmatpush1.msra.mxu0 0.0
  %5732 = vmatprep.subr.mxu0 0.0
  %5733 = vmatpush1.msra.mxu0 0.0
  %5734 = vmatprep.subr.mxu0 0.0
  %5735 = vmatpush1.msra.mxu0 0.0
  %5736 = vmatprep.subr.mxu0 0.0
  %5737 = vmatpush1.msra.mxu0 0.0
  %5738 = vmatprep.subr.mxu0 0.0
  %5739 = vmatpush1.msra.mxu0 0.0
  %5740 = vmatprep.subr.mxu0 0.0
  %5741 = vmatpush1.msra.mxu0 0.0
  %5742 = vmatprep.subr.mxu0 0.0
  %5743 = vmatpush1.msra.mxu0 0.0
  %5744 = vmatprep.subr.mxu0 0.0
  %5745 = vmatpush1.msra.mxu0 0.0
  %5746 = vmatprep.subr.mxu0 0.0
  %5747 = vmatpush1.msra.mxu0 0.0
  %5748 = vmatprep.subr.mxu0 0.0
  %5749 = vmatpush1.msra.mxu0 0.0
  %5750 = vmatprep.subr.mxu0 0.0
  %5751 = vmatpush1.msra.mxu0 0.0
  %5752 = vmatprep.subr.mxu0 0.0
  %5753 = vmatpush1.msra.mxu0 0.0
  %5754 = vmatprep.subr.mxu0 0.0
  %5755 = vmatpush1.msra.mxu0 0.0
  %5756 = vmatprep.subr.mxu0 0.0
  %5757 = vmatpush1.msra.mxu0 0.0
  %5758 = vmatprep.subr.mxu0 0.0
  %5759 = vmatpush1.msra.mxu0 0.0
  %5760 = vmatprep.subr.mxu0 0.0
  %5761 = vmatpush1.msra.mxu0 0.0
  %5762 = vmatprep.subr.mxu0 0.0
  %5763 = vmatpush1.msra.mxu0 0.0
  %5764 = vmatprep.subr.mxu0 0.0
  %5765 = vmatpush1.msra.mxu0 0.0
  %5766 = vmatprep.subr.mxu0 0.0
  %5767 = vmatpush1.msra.mxu0 0.0
  %5768 = vmatprep.subr.mxu0 0.0
  %5769 = vmatpush1.msra.mxu0 0.0
  %5770 = vmatprep.subr.mxu0 0.0
  %5771 = vmatpush1.msra.mxu0 0.0
  %5772 = vmatprep.subr.mxu0 0.0
  %5773 = vmatpush1.msra.mxu0 0.0
  %5774 = vmatprep.mubr.f32.mxu0 0.0
  %5775 = vmatmul.mubr.f32.gmra.mrb[0].mxu0 %v5708
  %v5776 = vpop.f32.mrb[0].mxu0
  %v5777 = vadd.f32 %v162, %v5776
  %v5778 = vpop.f32.mrb[0].mxu0
  %5779 = vdwg.mxu0
  %v5780 = vxor.u32 %v5777, 2147483648
  %v5781 = vmul.f32 %v5780, 1.442695
  %v5782 = vpow.pop %v5781
  %v5783 = vadd.f32 %v5782, 1.0
  %v5784 = vrcp.pop %v5783
  %v5785 = vmul.f32 1.0, %v5784
  %v5786 = vmul.f32 %v5785, %v4628
  %5788 = vrot.lane.b32.xlu0 %v5493, 16
  %v5789 = vpop.permute.xlu0 %5788
  %v5791 = vmul.f32 %v5785, %v5789
  %5793 = vrot.lane.b32.xlu0 %v5791, 112
  %v5794 = vpop.permute.xlu0 %5793
  %v5796 = vadd.f32 %v5786, %v5794
  %v5798 = vsel %vm959, %v5796, 0
  %5800 = vmatprep.subr.mxu0 0.0
  %5801 = vmatpush1.msra.mxu0 %v168
  %5802 = vmatprep.subr.mxu0 0.0
  %5803 = vmatpush1.msra.mxu0 %v169
  %5804 = vmatprep.subr.mxu0 0.0
  %5805 = vmatpush1.msra.mxu0 0.0
  %5806 = vmatprep.subr.mxu0 0.0
  %5807 = vmatpush1.msra.mxu0 0.0
  %5808 = vmatprep.subr.mxu0 0.0
  %5809 = vmatpush1.msra.mxu0 0.0
  %5810 = vmatprep.subr.mxu0 0.0
  %5811 = vmatpush1.msra.mxu0 0.0
  %5812 = vmatprep.subr.mxu0 0.0
  %5813 = vmatpush1.msra.mxu0 0.0
  %5814 = vmatprep.subr.mxu0 0.0
  %5815 = vmatpush1.msra.mxu0 0.0
  %5816 = vmatprep.subr.mxu0 0.0
  %5817 = vmatpush1.msra.mxu0 0.0
  %5818 = vmatprep.subr.mxu0 0.0
  %5819 = vmatpush1.msra.mxu0 0.0
  %5820 = vmatprep.subr.mxu0 0.0
  %5821 = vmatpush1.msra.mxu0 0.0
  %5822 = vmatprep.subr.mxu0 0.0
  %5823 = vmatpush1.msra.mxu0 0.0
  %5824 = vmatprep.subr.mxu0 0.0
  %5825 = vmatpush1.msra.mxu0 0.0
  %5826 = vmatprep.subr.mxu0 0.0
  %5827 = vmatpush1.msra.mxu0 0.0
  %5828 = vmatprep.subr.mxu0 0.0
  %5829 = vmatpush1.msra.mxu0 0.0
  %5830 = vmatprep.subr.mxu0 0.0
  %5831 = vmatpush1.msra.mxu0 0.0
  %5832 = vmatprep.subr.mxu0 0.0
  %5833 = vmatpush1.msra.mxu0 0.0
  %5834 = vmatprep.subr.mxu0 0.0
  %5835 = vmatpush1.msra.mxu0 0.0
  %5836 = vmatprep.subr.mxu0 0.0
  %5837 = vmatpush1.msra.mxu0 0.0
  %5838 = vmatprep.subr.mxu0 0.0
  %5839 = vmatpush1.msra.mxu0 0.0
  %5840 = vmatprep.subr.mxu0 0.0
  %5841 = vmatpush1.msra.mxu0 0.0
  %5842 = vmatprep.subr.mxu0 0.0
  %5843 = vmatpush1.msra.mxu0 0.0
  %5844 = vmatprep.subr.mxu0 0.0
  %5845 = vmatpush1.msra.mxu0 0.0
  %5846 = vmatprep.subr.mxu0 0.0
  %5847 = vmatpush1.msra.mxu0 0.0
  %5848 = vmatprep.subr.mxu0 0.0
  %5849 = vmatpush1.msra.mxu0 0.0
  %5850 = vmatprep.subr.mxu0 0.0
  %5851 = vmatpush1.msra.mxu0 0.0
  %5852 = vmatprep.subr.mxu0 0.0
  %5853 = vmatpush1.msra.mxu0 0.0
  %5854 = vmatprep.subr.mxu0 0.0
  %5855 = vmatpush1.msra.mxu0 0.0
  %5856 = vmatprep.subr.mxu0 0.0
  %5857 = vmatpush1.msra.mxu0 0.0
  %5858 = vmatprep.subr.mxu0 0.0
  %5859 = vmatpush1.msra.mxu0 0.0
  %5860 = vmatprep.subr.mxu0 0.0
  %5861 = vmatpush1.msra.mxu0 0.0
  %5862 = vmatprep.subr.mxu0 0.0
  %5863 = vmatpush1.msra.mxu0 0.0
  %5864 = vmatprep.mubr.f32.mxu0 0.0
  %5865 = vmatmul.mubr.f32.gmra.mrb[0].mxu0 %v5798
  %v5866 = vpop.f32.mrb[0].mxu0
  %v5867 = vadd.f32 0.0, %v5866
  %v5868 = vpop.f32.mrb[0].mxu0
  %5869 = vdwg.mxu0
  %5871 = vrot.lane.b32.xlu0 %v5035, 32
  %v5872 = vpop.permute.xlu0 %5871
  %v5873 = vsel %vm189, %v5872, 0
  %5875 = vmatprep.subr.mxu0 0.0
  %5876 = vmatpush1.msra.mxu0 %v164
  %5877 = vmatprep.subr.mxu0 0.0
  %5878 = vmatpush1.msra.mxu0 %v165
  %5879 = vmatprep.subr.mxu0 0.0
  %5880 = vmatpush1.msra.mxu0 %v166
  %5881 = vmatprep.subr.mxu0 0.0
  %5882 = vmatpush1.msra.mxu0 %v167
  %5883 = vmatprep.subr.mxu0 0.0
  %5884 = vmatpush1.msra.mxu0 0.0
  %5885 = vmatprep.subr.mxu0 0.0
  %5886 = vmatpush1.msra.mxu0 0.0
  %5887 = vmatprep.subr.mxu0 0.0
  %5888 = vmatpush1.msra.mxu0 0.0
  %5889 = vmatprep.subr.mxu0 0.0
  %5890 = vmatpush1.msra.mxu0 0.0
  %5891 = vmatprep.subr.mxu0 0.0
  %5892 = vmatpush1.msra.mxu0 0.0
  %5893 = vmatprep.subr.mxu0 0.0
  %5894 = vmatpush1.msra.mxu0 0.0
  %5895 = vmatprep.subr.mxu0 0.0
  %5896 = vmatpush1.msra.mxu0 0.0
  %5897 = vmatprep.subr.mxu0 0.0
  %5898 = vmatpush1.msra.mxu0 0.0
  %5899 = vmatprep.subr.mxu0 0.0
  %5900 = vmatpush1.msra.mxu0 0.0
  %5901 = vmatprep.subr.mxu0 0.0
  %5902 = vmatpush1.msra.mxu0 0.0
  %5903 = vmatprep.subr.mxu0 0.0
  %5904 = vmatpush1.msra.mxu0 0.0
  %5905 = vmatprep.subr.mxu0 0.0
  %5906 = vmatpush1.msra.mxu0 0.0
  %5907 = vmatprep.subr.mxu0 0.0
  %5908 = vmatpush1.msra.mxu0 0.0
  %5909 = vmatprep.subr.mxu0 0.0
  %5910 = vmatpush1.msra.mxu0 0.0
  %5911 = vmatprep.subr.mxu0 0.0
  %5912 = vmatpush1.msra.mxu0 0.0
  %5913 = vmatprep.subr.mxu0 0.0
  %5914 = vmatpush1.msra.mxu0 0.0
  %5915 = vmatprep.subr.mxu0 0.0
  %5916 = vmatpush1.msra.mxu0 0.0
  %5917 = vmatprep.subr.mxu0 0.0
  %5918 = vmatpush1.msra.mxu0 0.0
  %5919 = vmatprep.subr.mxu0 0.0
  %5920 = vmatpush1.msra.mxu0 0.0
  %5921 = vmatprep.subr.mxu0 0.0
  %5922 = vmatpush1.msra.mxu0 0.0
  %5923 = vmatprep.subr.mxu0 0.0
  %5924 = vmatpush1.msra.mxu0 0.0
  %5925 = vmatprep.subr.mxu0 0.0
  %5926 = vmatpush1.msra.mxu0 0.0
  %5927 = vmatprep.subr.mxu0 0.0
  %5928 = vmatpush1.msra.mxu0 0.0
  %5929 = vmatprep.subr.mxu0 0.0
  %5930 = vmatpush1.msra.mxu0 0.0
  %5931 = vmatprep.subr.mxu0 0.0
  %5932 = vmatpush1.msra.mxu0 0.0
  %5933 = vmatprep.subr.mxu0 0.0
  %5934 = vmatpush1.msra.mxu0 0.0
  %5935 = vmatprep.subr.mxu0 0.0
  %5936 = vmatpush1.msra.mxu0 0.0
  %5937 = vmatprep.subr.mxu0 0.0
  %5938 = vmatpush1.msra.mxu0 0.0
  %5939 = vmatprep.mubr.f32.mxu0 0.0
  %5940 = vmatmul.mubr.f32.gmra.mrb[0].mxu0 %v5873
  %v5941 = vpop.f32.mrb[0].mxu0
  %v5942 = vadd.f32 %v5867, %v5941
  %v5943 = vpop.f32.mrb[0].mxu0
  %5944 = vdwg.mxu0
  %v5945 = vadd.f32 %v5942, %v175
  %v5946 = vmax.f32 %v5945, 0.0
  %v5948 = vsel %vm189, %v5946, 0
  %5950 = vmatprep.subr.mxu0 0.0
  %5951 = vmatpush1.msra.mxu0 %v177
  %5952 = vmatprep.subr.mxu0 0.0
  %5953 = vmatpush1.msra.mxu0 %v178
  %5954 = vmatprep.subr.mxu0 0.0
  %5955 = vmatpush1.msra.mxu0 %v179
  %5956 = vmatprep.subr.mxu0 0.0
  %5957 = vmatpush1.msra.mxu0 %v180
  %5958 = vmatprep.subr.mxu0 0.0
  %5959 = vmatpush1.msra.mxu0 0.0
  %5960 = vmatprep.subr.mxu0 0.0
  %5961 = vmatpush1.msra.mxu0 0.0
  %5962 = vmatprep.subr.mxu0 0.0
  %5963 = vmatpush1.msra.mxu0 0.0
  %5964 = vmatprep.subr.mxu0 0.0
  %5965 = vmatpush1.msra.mxu0 0.0
  %5966 = vmatprep.subr.mxu0 0.0
  %5967 = vmatpush1.msra.mxu0 0.0
  %5968 = vmatprep.subr.mxu0 0.0
  %5969 = vmatpush1.msra.mxu0 0.0
  %5970 = vmatprep.subr.mxu0 0.0
  %5971 = vmatpush1.msra.mxu0 0.0
  %5972 = vmatprep.subr.mxu0 0.0
  %5973 = vmatpush1.msra.mxu0 0.0
  %5974 = vmatprep.subr.mxu0 0.0
  %5975 = vmatpush1.msra.mxu0 0.0
  %5976 = vmatprep.subr.mxu0 0.0
  %5977 = vmatpush1.msra.mxu0 0.0
  %5978 = vmatprep.subr.mxu0 0.0
  %5979 = vmatpush1.msra.mxu0 0.0
  %5980 = vmatprep.subr.mxu0 0.0
  %5981 = vmatpush1.msra.mxu0 0.0
  %5982 = vmatprep.subr.mxu0 0.0
  %5983 = vmatpush1.msra.mxu0 0.0
  %5984 = vmatprep.subr.mxu0 0.0
  %5985 = vmatpush1.msra.mxu0 0.0
  %5986 = vmatprep.subr.mxu0 0.0
  %5987 = vmatpush1.msra.mxu0 0.0
  %5988 = vmatprep.subr.mxu0 0.0
  %5989 = vmatpush1.msra.mxu0 0.0
  %5990 = vmatprep.subr.mxu0 0.0
  %5991 = vmatpush1.msra.mxu0 0.0
  %5992 = vmatprep.subr.mxu0 0.0
  %5993 = vmatpush1.msra.mxu0 0.0
  %5994 = vmatprep.subr.mxu0 0.0
  %5995 = vmatpush1.msra.mxu0 0.0
  %5996 = vmatprep.subr.mxu0 0.0
  %5997 = vmatpush1.msra.mxu0 0.0
  %5998 = vmatprep.subr.mxu0 0.0
  %5999 = vmatpush1.msra.mxu0 0.0
  %6000 = vmatprep.subr.mxu0 0.0
  %6001 = vmatpush1.msra.mxu0 0.0
  %6002 = vmatprep.subr.mxu0 0.0
  %6003 = vmatpush1.msra.mxu0 0.0
  %6004 = vmatprep.subr.mxu0 0.0
  %6005 = vmatpush1.msra.mxu0 0.0
  %6006 = vmatprep.subr.mxu0 0.0
  %6007 = vmatpush1.msra.mxu0 0.0
  %6008 = vmatprep.subr.mxu0 0.0
  %6009 = vmatpush1.msra.mxu0 0.0
  %6010 = vmatprep.subr.mxu0 0.0
  %6011 = vmatpush1.msra.mxu0 0.0
  %6012 = vmatprep.subr.mxu0 0.0
  %6013 = vmatpush1.msra.mxu0 0.0
  %6014 = vmatprep.mubr.f32.mxu0 0.0
  %6015 = vmatmul.mubr.f32.gmra.mrb[0].mxu0 %v5948
  %v6016 = vpop.f32.mrb[0].mxu0
  %v6017 = vadd.f32 %v186, %v6016
  %v6018 = vpop.f32.mrb[0].mxu0
  %6019 = vdwg.mxu0
  %v6020 = vsel %vm1348, %v6017, -inf
  %6021 = vmax.xlane.f32.xlu0 %v6020
  %v6022 = vpop.xlane.xlu0 %6021
  %v6023 = vsub.f32 %v6017, %v6022
  %v6024 = vmul.f32 %v6023, 1.442695
  %v6025 = vpow.pop %v6024
  %v6026 = vsel %vm1348, %v6025, 0.0
  %6027 = vadd.xlane.f32.xlu0 %v6026
  %v6028 = vpop.xlane.xlu0 %6027
  %v6029 = vlog2.pop %v6028
  %v6030 = vmul.f32 %v6029, 0.6931472
  %v6031 = vsub.f32 %v6023, %v6030
  %s6032 = scalar_lea.vmem %s20, 32
  %6033 = vst.msk [vmem:[%s6032] sm:$0xff] %vm1348, %v6031
  %s6034 = scalar_lea.vmem %s0, 40
  %v6035 = vld [vmem:[%s6034] sm:$0xff]
  %6036 = vmatprep.subr.mxu0 0.0
  %6037 = vmatpush1.msra.mxu0 %v69
  %6038 = vmatprep.subr.mxu0 0.0
  %6039 = vmatpush1.msra.mxu0 %v70
  %6040 = vmatprep.subr.mxu0 0.0
  %6041 = vmatpush1.msra.mxu0 %v71
  %6042 = vmatprep.subr.mxu0 0.0
  %6043 = vmatpush1.msra.mxu0 %v72
  %6044 = vmatprep.subr.mxu0 0.0
  %6045 = vmatpush1.msra.mxu0 0.0
  %6046 = vmatprep.subr.mxu0 0.0
  %6047 = vmatpush1.msra.mxu0 0.0
  %6048 = vmatprep.subr.mxu0 0.0
  %6049 = vmatpush1.msra.mxu0 0.0
  %6050 = vmatprep.subr.mxu0 0.0
  %6051 = vmatpush1.msra.mxu0 0.0
  %6052 = vmatprep.subr.mxu0 0.0
  %6053 = vmatpush1.msra.mxu0 0.0
  %6054 = vmatprep.subr.mxu0 0.0
  %6055 = vmatpush1.msra.mxu0 0.0
  %6056 = vmatprep.subr.mxu0 0.0
  %6057 = vmatpush1.msra.mxu0 0.0
  %6058 = vmatprep.subr.mxu0 0.0
  %6059 = vmatpush1.msra.mxu0 0.0
  %6060 = vmatprep.subr.mxu0 0.0
  %6061 = vmatpush1.msra.mxu0 0.0
  %6062 = vmatprep.subr.mxu0 0.0
  %6063 = vmatpush1.msra.mxu0 0.0
  %6064 = vmatprep.subr.mxu0 0.0
  %6065 = vmatpush1.msra.mxu0 0.0
  %6066 = vmatprep.subr.mxu0 0.0
  %6067 = vmatpush1.msra.mxu0 0.0
  %6068 = vmatprep.subr.mxu0 0.0
  %6069 = vmatpush1.msra.mxu0 0.0
  %6070 = vmatprep.subr.mxu0 0.0
  %6071 = vmatpush1.msra.mxu0 0.0
  %6072 = vmatprep.subr.mxu0 0.0
  %6073 = vmatpush1.msra.mxu0 0.0
  %6074 = vmatprep.subr.mxu0 0.0
  %6075 = vmatpush1.msra.mxu0 0.0
  %6076 = vmatprep.subr.mxu0 0.0
  %6077 = vmatpush1.msra.mxu0 0.0
  %6078 = vmatprep.subr.mxu0 0.0
  %6079 = vmatpush1.msra.mxu0 0.0
  %6080 = vmatprep.subr.mxu0 0.0
  %6081 = vmatpush1.msra.mxu0 0.0
  %6082 = vmatprep.subr.mxu0 0.0
  %6083 = vmatpush1.msra.mxu0 0.0
  %6084 = vmatprep.subr.mxu0 0.0
  %6085 = vmatpush1.msra.mxu0 0.0
  %6086 = vmatprep.subr.mxu0 0.0
  %6087 = vmatpush1.msra.mxu0 0.0
  %6088 = vmatprep.subr.mxu0 0.0
  %6089 = vmatpush1.msra.mxu0 0.0
  %6090 = vmatprep.subr.mxu0 0.0
  %6091 = vmatpush1.msra.mxu0 0.0
  %6092 = vmatprep.subr.mxu0 0.0
  %6093 = vmatpush1.msra.mxu0 0.0
  %6094 = vmatprep.subr.mxu0 0.0
  %6095 = vmatpush1.msra.mxu0 0.0
  %6096 = vmatprep.subr.mxu0 0.0
  %6097 = vmatpush1.msra.mxu0 0.0
  %6098 = vmatprep.subr.mxu0 0.0
  %6099 = vmatpush1.msra.mxu0 0.0
  %6100 = vmatprep.mubr.f32.mxu0 0.0
  %6101 = vmatmul.mubr.f32.gmra.mrb[0].mxu0 %v5873
  %v6102 = vpop.f32.mrb[0].mxu0
  %v6103 = vadd.f32 0.0, %v6102
  %v6104 = vpop.f32.mrb[0].mxu0
  %6105 = vdwg.mxu0
  %v6107 = vsel %vm189, %v6035, 0
  %6109 = vmatprep.subr.mxu0 0.0
  %6110 = vmatpush1.msra.mxu0 %v65
  %6111 = vmatprep.subr.mxu0 0.0
  %6112 = vmatpush1.msra.mxu0 %v66
  %6113 = vmatprep.subr.mxu0 0.0
  %6114 = vmatpush1.msra.mxu0 %v67
  %6115 = vmatprep.subr.mxu0 0.0
  %6116 = vmatpush1.msra.mxu0 %v68
  %6117 = vmatprep.subr.mxu0 0.0
  %6118 = vmatpush1.msra.mxu0 0.0
  %6119 = vmatprep.subr.mxu0 0.0
  %6120 = vmatpush1.msra.mxu0 0.0
  %6121 = vmatprep.subr.mxu0 0.0
  %6122 = vmatpush1.msra.mxu0 0.0
  %6123 = vmatprep.subr.mxu0 0.0
  %6124 = vmatpush1.msra.mxu0 0.0
  %6125 = vmatprep.subr.mxu0 0.0
  %6126 = vmatpush1.msra.mxu0 0.0
  %6127 = vmatprep.subr.mxu0 0.0
  %6128 = vmatpush1.msra.mxu0 0.0
  %6129 = vmatprep.subr.mxu0 0.0
  %6130 = vmatpush1.msra.mxu0 0.0
  %6131 = vmatprep.subr.mxu0 0.0
  %6132 = vmatpush1.msra.mxu0 0.0
  %6133 = vmatprep.subr.mxu0 0.0
  %6134 = vmatpush1.msra.mxu0 0.0
  %6135 = vmatprep.subr.mxu0 0.0
  %6136 = vmatpush1.msra.mxu0 0.0
  %6137 = vmatprep.subr.mxu0 0.0
  %6138 = vmatpush1.msra.mxu0 0.0
  %6139 = vmatprep.subr.mxu0 0.0
  %6140 = vmatpush1.msra.mxu0 0.0
  %6141 = vmatprep.subr.mxu0 0.0
  %6142 = vmatpush1.msra.mxu0 0.0
  %6143 = vmatprep.subr.mxu0 0.0
  %6144 = vmatpush1.msra.mxu0 0.0
  %6145 = vmatprep.subr.mxu0 0.0
  %6146 = vmatpush1.msra.mxu0 0.0
  %6147 = vmatprep.subr.mxu0 0.0
  %6148 = vmatpush1.msra.mxu0 0.0
  %6149 = vmatprep.subr.mxu0 0.0
  %6150 = vmatpush1.msra.mxu0 0.0
  %6151 = vmatprep.subr.mxu0 0.0
  %6152 = vmatpush1.msra.mxu0 0.0
  %6153 = vmatprep.subr.mxu0 0.0
  %6154 = vmatpush1.msra.mxu0 0.0
  %6155 = vmatprep.subr.mxu0 0.0
  %6156 = vmatpush1.msra.mxu0 0.0
  %6157 = vmatprep.subr.mxu0 0.0
  %6158 = vmatpush1.msra.mxu0 0.0
  %6159 = vmatprep.subr.mxu0 0.0
  %6160 = vmatpush1.msra.mxu0 0.0
  %6161 = vmatprep.subr.mxu0 0.0
  %6162 = vmatpush1.msra.mxu0 0.0
  %6163 = vmatprep.subr.mxu0 0.0
  %6164 = vmatpush1.msra.mxu0 0.0
  %6165 = vmatprep.subr.mxu0 0.0
  %6166 = vmatpush1.msra.mxu0 0.0
  %6167 = vmatprep.subr.mxu0 0.0
  %6168 = vmatpush1.msra.mxu0 0.0
  %6169 = vmatprep.subr.mxu0 0.0
  %6170 = vmatpush1.msra.mxu0 0.0
  %6171 = vmatprep.subr.mxu0 0.0
  %6172 = vmatpush1.msra.mxu0 0.0
  %6173 = vmatprep.mubr.f32.mxu0 0.0
  %6174 = vmatmul.mubr.f32.gmra.mrb[0].mxu0 %v6107
  %v6175 = vpop.f32.mrb[0].mxu0
  %v6176 = vadd.f32 %v6103, %v6175
  %v6177 = vpop.f32.mrb[0].mxu0
  %6178 = vdwg.mxu0
  %v6179 = vadd.f32 %v6176, %v78
  %v6180 = vxor.u32 %v6179, 2147483648
  %v6181 = vmul.f32 %v6180, 1.442695
  %v6182 = vpow.pop %v6181
  %v6183 = vadd.f32 %v6182, 1.0
  %v6184 = vrcp.pop %v6183
  %v6185 = vmul.f32 1.0, %v6184
  %v6186 = vtanh.pop %v6179
  %v6187 = vmul.f32 %v6185, %v5029
  %6189 = vrot.lane.b32.xlu0 %v6186, 64
  %v6190 = vpop.permute.xlu0 %6189
  %v6192 = vmul.f32 %v6185, %v6190
  %6194 = vrot.lane.b32.xlu0 %v6192, 32
  %v6195 = vpop.permute.xlu0 %6194
  %v6197 = vadd.f32 %v6187, %v6195
  %v6198 = vtanh.pop %v6197
  %6200 = vrot.lane.b32.xlu0 %v6198, 64
  %v6201 = vpop.permute.xlu0 %6200
  %v6203 = vmul.f32 %v6185, %v6201
  %6205 = vrot.lane.b32.xlu0 %v6197, 96
  %v6206 = vpop.permute.xlu0 %6205
  %v6207 = vsel %vm189, %v6206, 0
  %6209 = vmatprep.subr.mxu0 0.0
  %6210 = vmatpush1.msra.mxu0 %v84
  %6211 = vmatprep.subr.mxu0 0.0
  %6212 = vmatpush1.msra.mxu0 %v85
  %6213 = vmatprep.subr.mxu0 0.0
  %6214 = vmatpush1.msra.mxu0 %v86
  %6215 = vmatprep.subr.mxu0 0.0
  %6216 = vmatpush1.msra.mxu0 %v87
  %6217 = vmatprep.subr.mxu0 0.0
  %6218 = vmatpush1.msra.mxu0 0.0
  %6219 = vmatprep.subr.mxu0 0.0
  %6220 = vmatpush1.msra.mxu0 0.0
  %6221 = vmatprep.subr.mxu0 0.0
  %6222 = vmatpush1.msra.mxu0 0.0
  %6223 = vmatprep.subr.mxu0 0.0
  %6224 = vmatpush1.msra.mxu0 0.0
  %6225 = vmatprep.subr.mxu0 0.0
  %6226 = vmatpush1.msra.mxu0 0.0
  %6227 = vmatprep.subr.mxu0 0.0
  %6228 = vmatpush1.msra.mxu0 0.0
  %6229 = vmatprep.subr.mxu0 0.0
  %6230 = vmatpush1.msra.mxu0 0.0
  %6231 = vmatprep.subr.mxu0 0.0
  %6232 = vmatpush1.msra.mxu0 0.0
  %6233 = vmatprep.subr.mxu0 0.0
  %6234 = vmatpush1.msra.mxu0 0.0
  %6235 = vmatprep.subr.mxu0 0.0
  %6236 = vmatpush1.msra.mxu0 0.0
  %6237 = vmatprep.subr.mxu0 0.0
  %6238 = vmatpush1.msra.mxu0 0.0
  %6239 = vmatprep.subr.mxu0 0.0
  %6240 = vmatpush1.msra.mxu0 0.0
  %6241 = vmatprep.subr.mxu0 0.0
  %6242 = vmatpush1.msra.mxu0 0.0
  %6243 = vmatprep.subr.mxu0 0.0
  %6244 = vmatpush1.msra.mxu0 0.0
  %6245 = vmatprep.subr.mxu0 0.0
  %6246 = vmatpush1.msra.mxu0 0.0
  %6247 = vmatprep.subr.mxu0 0.0
  %6248 = vmatpush1.msra.mxu0 0.0
  %6249 = vmatprep.subr.mxu0 0.0
  %6250 = vmatpush1.msra.mxu0 0.0
  %6251 = vmatprep.subr.mxu0 0.0
  %6252 = vmatpush1.msra.mxu0 0.0
  %6253 = vmatprep.subr.mxu0 0.0
  %6254 = vmatpush1.msra.mxu0 0.0
  %6255 = vmatprep.subr.mxu0 0.0
  %6256 = vmatpush1.msra.mxu0 0.0
  %6257 = vmatprep.subr.mxu0 0.0
  %6258 = vmatpush1.msra.mxu0 0.0
  %6259 = vmatprep.subr.mxu0 0.0
  %6260 = vmatpush1.msra.mxu0 0.0
  %6261 = vmatprep.subr.mxu0 0.0
  %6262 = vmatpush1.msra.mxu0 0.0
  %6263 = vmatprep.subr.mxu0 0.0
  %6264 = vmatpush1.msra.mxu0 0.0
  %6265 = vmatprep.subr.mxu0 0.0
  %6266 = vmatpush1.msra.mxu0 0.0
  %6267 = vmatprep.subr.mxu0 0.0
  %6268 = vmatpush1.msra.mxu0 0.0
  %6269 = vmatprep.subr.mxu0 0.0
  %6270 = vmatpush1.msra.mxu0 0.0
  %6271 = vmatprep.subr.mxu0 0.0
  %6272 = vmatpush1.msra.mxu0 0.0
  %6273 = vmatprep.mubr.f32.mxu0 0.0
  %6274 = vmatmul.mubr.f32.gmra.mrb[0].mxu0 %v6207
  %v6275 = vpop.f32.mrb[0].mxu0
  %v6276 = vadd.f32 0.0, %v6275
  %v6277 = vpop.f32.mrb[0].mxu0
  %6278 = vdwg.mxu0
  %6279 = vmatprep.subr.mxu0 0.0
  %6280 = vmatpush1.msra.mxu0 %v80
  %6281 = vmatprep.subr.mxu0 0.0
  %6282 = vmatpush1.msra.mxu0 %v81
  %6283 = vmatprep.subr.mxu0 0.0
  %6284 = vmatpush1.msra.mxu0 %v82
  %6285 = vmatprep.subr.mxu0 0.0
  %6286 = vmatpush1.msra.mxu0 %v83
  %6287 = vmatprep.subr.mxu0 0.0
  %6288 = vmatpush1.msra.mxu0 0.0
  %6289 = vmatprep.subr.mxu0 0.0
  %6290 = vmatpush1.msra.mxu0 0.0
  %6291 = vmatprep.subr.mxu0 0.0
  %6292 = vmatpush1.msra.mxu0 0.0
  %6293 = vmatprep.subr.mxu0 0.0
  %6294 = vmatpush1.msra.mxu0 0.0
  %6295 = vmatprep.subr.mxu0 0.0
  %6296 = vmatpush1.msra.mxu0 0.0
  %6297 = vmatprep.subr.mxu0 0.0
  %6298 = vmatpush1.msra.mxu0 0.0
  %6299 = vmatprep.subr.mxu0 0.0
  %6300 = vmatpush1.msra.mxu0 0.0
  %6301 = vmatprep.subr.mxu0 0.0
  %6302 = vmatpush1.msra.mxu0 0.0
  %6303 = vmatprep.subr.mxu0 0.0
  %6304 = vmatpush1.msra.mxu0 0.0
  %6305 = vmatprep.subr.mxu0 0.0
  %6306 = vmatpush1.msra.mxu0 0.0
  %6307 = vmatprep.subr.mxu0 0.0
  %6308 = vmatpush1.msra.mxu0 0.0
  %6309 = vmatprep.subr.mxu0 0.0
  %6310 = vmatpush1.msra.mxu0 0.0
  %6311 = vmatprep.subr.mxu0 0.0
  %6312 = vmatpush1.msra.mxu0 0.0
  %6313 = vmatprep.subr.mxu0 0.0
  %6314 = vmatpush1.msra.mxu0 0.0
  %6315 = vmatprep.subr.mxu0 0.0
  %6316 = vmatpush1.msra.mxu0 0.0
  %6317 = vmatprep.subr.mxu0 0.0
  %6318 = vmatpush1.msra.mxu0 0.0
  %6319 = vmatprep.subr.mxu0 0.0
  %6320 = vmatpush1.msra.mxu0 0.0
  %6321 = vmatprep.subr.mxu0 0.0
  %6322 = vmatpush1.msra.mxu0 0.0
  %6323 = vmatprep.subr.mxu0 0.0
  %6324 = vmatpush1.msra.mxu0 0.0
  %6325 = vmatprep.subr.mxu0 0.0
  %6326 = vmatpush1.msra.mxu0 0.0
  %6327 = vmatprep.subr.mxu0 0.0
  %6328 = vmatpush1.msra.mxu0 0.0
  %6329 = vmatprep.subr.mxu0 0.0
  %6330 = vmatpush1.msra.mxu0 0.0
  %6331 = vmatprep.subr.mxu0 0.0
  %6332 = vmatpush1.msra.mxu0 0.0
  %6333 = vmatprep.subr.mxu0 0.0
  %6334 = vmatpush1.msra.mxu0 0.0
  %6335 = vmatprep.subr.mxu0 0.0
  %6336 = vmatpush1.msra.mxu0 0.0
  %6337 = vmatprep.subr.mxu0 0.0
  %6338 = vmatpush1.msra.mxu0 0.0
  %6339 = vmatprep.subr.mxu0 0.0
  %6340 = vmatpush1.msra.mxu0 0.0
  %6341 = vmatprep.subr.mxu0 0.0
  %6342 = vmatpush1.msra.mxu0 0.0
  %6343 = vmatprep.mubr.f32.mxu0 0.0
  %6344 = vmatmul.mubr.f32.gmra.mrb[0].mxu0 %v5039
  %v6345 = vpop.f32.mrb[0].mxu0
  %v6346 = vadd.f32 %v6276, %v6345
  %v6347 = vpop.f32.mrb[0].mxu0
  %6348 = vdwg.mxu0
  %v6349 = vadd.f32 %v6346, %v93
  %v6350 = vmax.f32 %v6349, 0.0
  %v6352 = vsel %vm189, %v6350, 0
  %6354 = vmatprep.subr.mxu0 0.0
  %6355 = vmatpush1.msra.mxu0 %v95
  %6356 = vmatprep.subr.mxu0 0.0
  %6357 = vmatpush1.msra.mxu0 %v96
  %6358 = vmatprep.subr.mxu0 0.0
  %6359 = vmatpush1.msra.mxu0 %v97
  %6360 = vmatprep.subr.mxu0 0.0
  %6361 = vmatpush1.msra.mxu0 %v98
  %6362 = vmatprep.subr.mxu0 0.0
  %6363 = vmatpush1.msra.mxu0 0.0
  %6364 = vmatprep.subr.mxu0 0.0
  %6365 = vmatpush1.msra.mxu0 0.0
  %6366 = vmatprep.subr.mxu0 0.0
  %6367 = vmatpush1.msra.mxu0 0.0
  %6368 = vmatprep.subr.mxu0 0.0
  %6369 = vmatpush1.msra.mxu0 0.0
  %6370 = vmatprep.subr.mxu0 0.0
  %6371 = vmatpush1.msra.mxu0 0.0
  %6372 = vmatprep.subr.mxu0 0.0
  %6373 = vmatpush1.msra.mxu0 0.0
  %6374 = vmatprep.subr.mxu0 0.0
  %6375 = vmatpush1.msra.mxu0 0.0
  %6376 = vmatprep.subr.mxu0 0.0
  %6377 = vmatpush1.msra.mxu0 0.0
  %6378 = vmatprep.subr.mxu0 0.0
  %6379 = vmatpush1.msra.mxu0 0.0
  %6380 = vmatprep.subr.mxu0 0.0
  %6381 = vmatpush1.msra.mxu0 0.0
  %6382 = vmatprep.subr.mxu0 0.0
  %6383 = vmatpush1.msra.mxu0 0.0
  %6384 = vmatprep.subr.mxu0 0.0
  %6385 = vmatpush1.msra.mxu0 0.0
  %6386 = vmatprep.subr.mxu0 0.0
  %6387 = vmatpush1.msra.mxu0 0.0
  %6388 = vmatprep.subr.mxu0 0.0
  %6389 = vmatpush1.msra.mxu0 0.0
  %6390 = vmatprep.subr.mxu0 0.0
  %6391 = vmatpush1.msra.mxu0 0.0
  %6392 = vmatprep.subr.mxu0 0.0
  %6393 = vmatpush1.msra.mxu0 0.0
  %6394 = vmatprep.subr.mxu0 0.0
  %6395 = vmatpush1.msra.mxu0 0.0
  %6396 = vmatprep.subr.mxu0 0.0
  %6397 = vmatpush1.msra.mxu0 0.0
  %6398 = vmatprep.subr.mxu0 0.0
  %6399 = vmatpush1.msra.mxu0 0.0
  %6400 = vmatprep.subr.mxu0 0.0
  %6401 = vmatpush1.msra.mxu0 0.0
  %6402 = vmatprep.subr.mxu0 0.0
  %6403 = vmatpush1.msra.mxu0 0.0
  %6404 = vmatprep.subr.mxu0 0.0
  %6405 = vmatpush1.msra.mxu0 0.0
  %6406 = vmatprep.subr.mxu0 0.0
  %6407 = vmatpush1.msra.mxu0 0.0
  %6408 = vmatprep.subr.mxu0 0.0
  %6409 = vmatpush1.msra.mxu0 0.0
  %6410 = vmatprep.subr.mxu0 0.0
  %6411 = vmatpush1.msra.mxu0 0.0
  %6412 = vmatprep.subr.mxu0 0.0
  %6413 = vmatpush1.msra.mxu0 0.0
  %6414 = vmatprep.subr.mxu0 0.0
  %6415 = vmatpush1.msra.mxu0 0.0
  %6416 = vmatprep.subr.mxu0 0.0
  %6417 = vmatpush1.msra.mxu0 0.0
  %6418 = vmatprep.mubr.f32.mxu0 0.0
  %6419 = vmatmul.mubr.f32.gmra.mrb[0].mxu0 %v6352
  %v6420 = vpop.f32.mrb[0].mxu0
  %v6421 = vadd.f32 %v104, %v6420
  %v6422 = vpop.f32.mrb[0].mxu0
  %6423 = vdwg.mxu0
  %v6424 = vsel %vm581, %v6421, -inf
  %6425 = vmax.xlane.f32.xlu0 %v6424
  %v6426 = vpop.xlane.xlu0 %6425
  %v6427 = vsub.f32 %v6421, %v6426
  %v6428 = vmul.f32 %v6427, 1.442695
  %v6429 = vpow.pop %v6428
  %v6430 = vsel %vm581, %v6429, 0.0
  %6431 = vadd.xlane.f32.xlu0 %v6430
  %v6432 = vpop.xlane.xlu0 %6431
  %v6433 = vrcp.pop %v6432
  %v6434 = vmul.f32 %v6429, %v6433
  %v6436 = vmul.f32 %v6434, %v5038
  %v6437 = vmul.f32 %v6434, %v6197
  %6439 = vrot.lane.b32.xlu0 %v6437, 96
  %v6440 = vpop.permute.xlu0 %6439
  %v6441 = vsel %vm189, %v6440, 0
  %6443 = vmatprep.subr.mxu0 0.0
  %6444 = vmatpush1.msra.mxu0 %v110
  %6445 = vmatprep.subr.mxu0 0.0
  %6446 = vmatpush1.msra.mxu0 %v111
  %6447 = vmatprep.subr.mxu0 0.0
  %6448 = vmatpush1.msra.mxu0 %v112
  %6449 = vmatprep.subr.mxu0 0.0
  %6450 = vmatpush1.msra.mxu0 %v113
  %6451 = vmatprep.subr.mxu0 0.0
  %6452 = vmatpush1.msra.mxu0 0.0
  %6453 = vmatprep.subr.mxu0 0.0
  %6454 = vmatpush1.msra.mxu0 0.0
  %6455 = vmatprep.subr.mxu0 0.0
  %6456 = vmatpush1.msra.mxu0 0.0
  %6457 = vmatprep.subr.mxu0 0.0
  %6458 = vmatpush1.msra.mxu0 0.0
  %6459 = vmatprep.subr.mxu0 0.0
  %6460 = vmatpush1.msra.mxu0 0.0
  %6461 = vmatprep.subr.mxu0 0.0
  %6462 = vmatpush1.msra.mxu0 0.0
  %6463 = vmatprep.subr.mxu0 0.0
  %6464 = vmatpush1.msra.mxu0 0.0
  %6465 = vmatprep.subr.mxu0 0.0
  %6466 = vmatpush1.msra.mxu0 0.0
  %6467 = vmatprep.subr.mxu0 0.0
  %6468 = vmatpush1.msra.mxu0 0.0
  %6469 = vmatprep.subr.mxu0 0.0
  %6470 = vmatpush1.msra.mxu0 0.0
  %6471 = vmatprep.subr.mxu0 0.0
  %6472 = vmatpush1.msra.mxu0 0.0
  %6473 = vmatprep.subr.mxu0 0.0
  %6474 = vmatpush1.msra.mxu0 0.0
  %6475 = vmatprep.subr.mxu0 0.0
  %6476 = vmatpush1.msra.mxu0 0.0
  %6477 = vmatprep.subr.mxu0 0.0
  %6478 = vmatpush1.msra.mxu0 0.0
  %6479 = vmatprep.subr.mxu0 0.0
  %6480 = vmatpush1.msra.mxu0 0.0
  %6481 = vmatprep.subr.mxu0 0.0
  %6482 = vmatpush1.msra.mxu0 0.0
  %6483 = vmatprep.subr.mxu0 0.0
  %6484 = vmatpush1.msra.mxu0 0.0
  %6485 = vmatprep.subr.mxu0 0.0
  %6486 = vmatpush1.msra.mxu0 0.0
  %6487 = vmatprep.subr.mxu0 0.0
  %6488 = vmatpush1.msra.mxu0 0.0
  %6489 = vmatprep.subr.mxu0 0.0
  %6490 = vmatpush1.msra.mxu0 0.0
  %6491 = vmatprep.subr.mxu0 0.0
  %6492 = vmatpush1.msra.mxu0 0.0
  %6493 = vmatprep.subr.mxu0 0.0
  %6494 = vmatpush1.msra.mxu0 0.0
  %6495 = vmatprep.subr.mxu0 0.0
  %6496 = vmatpush1.msra.mxu0 0.0
  %6497 = vmatprep.subr.mxu0 0.0
  %6498 = vmatpush1.msra.mxu0 0.0
  %6499 = vmatprep.subr.mxu0 0.0
  %6500 = vmatpush1.msra.mxu0 0.0
  %6501 = vmatprep.subr.mxu0 0.0
  %6502 = vmatpush1.msra.mxu0 0.0
  %6503 = vmatprep.subr.mxu0 0.0
  %6504 = vmatpush1.msra.mxu0 0.0
  %6505 = vmatprep.subr.mxu0 0.0
  %6506 = vmatpush1.msra.mxu0 0.0
  %6507 = vmatprep.mubr.f32.mxu0 0.0
  %6508 = vmatmul.mubr.f32.gmra.mrb[0].mxu0 %v6441
  %v6509 = vpop.f32.mrb[0].mxu0
  %v6510 = vadd.f32 0.0, %v6509
  %v6511 = vpop.f32.mrb[0].mxu0
  %6512 = vdwg.mxu0
  %v6514 = vsel %vm189, %v6436, 0
  %6516 = vmatprep.subr.mxu0 0.0
  %6517 = vmatpush1.msra.mxu0 %v106
  %6518 = vmatprep.subr.mxu0 0.0
  %6519 = vmatpush1.msra.mxu0 %v107
  %6520 = vmatprep.subr.mxu0 0.0
  %6521 = vmatpush1.msra.mxu0 %v108
  %6522 = vmatprep.subr.mxu0 0.0
  %6523 = vmatpush1.msra.mxu0 %v109
  %6524 = vmatprep.subr.mxu0 0.0
  %6525 = vmatpush1.msra.mxu0 0.0
  %6526 = vmatprep.subr.mxu0 0.0
  %6527 = vmatpush1.msra.mxu0 0.0
  %6528 = vmatprep.subr.mxu0 0.0
  %6529 = vmatpush1.msra.mxu0 0.0
  %6530 = vmatprep.subr.mxu0 0.0
  %6531 = vmatpush1.msra.mxu0 0.0
  %6532 = vmatprep.subr.mxu0 0.0
  %6533 = vmatpush1.msra.mxu0 0.0
  %6534 = vmatprep.subr.mxu0 0.0
  %6535 = vmatpush1.msra.mxu0 0.0
  %6536 = vmatprep.subr.mxu0 0.0
  %6537 = vmatpush1.msra.mxu0 0.0
  %6538 = vmatprep.subr.mxu0 0.0
  %6539 = vmatpush1.msra.mxu0 0.0
  %6540 = vmatprep.subr.mxu0 0.0
  %6541 = vmatpush1.msra.mxu0 0.0
  %6542 = vmatprep.subr.mxu0 0.0
  %6543 = vmatpush1.msra.mxu0 0.0
  %6544 = vmatprep.subr.mxu0 0.0
  %6545 = vmatpush1.msra.mxu0 0.0
  %6546 = vmatprep.subr.mxu0 0.0
  %6547 = vmatpush1.msra.mxu0 0.0
  %6548 = vmatprep.subr.mxu0 0.0
  %6549 = vmatpush1.msra.mxu0 0.0
  %6550 = vmatprep.subr.mxu0 0.0
  %6551 = vmatpush1.msra.mxu0 0.0
  %6552 = vmatprep.subr.mxu0 0.0
  %6553 = vmatpush1.msra.mxu0 0.0
  %6554 = vmatprep.subr.mxu0 0.0
  %6555 = vmatpush1.msra.mxu0 0.0
  %6556 = vmatprep.subr.mxu0 0.0
  %6557 = vmatpush1.msra.mxu0 0.0
  %6558 = vmatprep.subr.mxu0 0.0
  %6559 = vmatpush1.msra.mxu0 0.0
  %6560 = vmatprep.subr.mxu0 0.0
  %6561 = vmatpush1.msra.mxu0 0.0
  %6562 = vmatprep.subr.mxu0 0.0
  %6563 = vmatpush1.msra.mxu0 0.0
  %6564 = vmatprep.subr.mxu0 0.0
  %6565 = vmatpush1.msra.mxu0 0.0
  %6566 = vmatprep.subr.mxu0 0.0
  %6567 = vmatpush1.msra.mxu0 0.0
  %6568 = vmatprep.subr.mxu0 0.0
  %6569 = vmatpush1.msra.mxu0 0.0
  %6570 = vmatprep.subr.mxu0 0.0
  %6571 = vmatpush1.msra.mxu0 0.0
  %6572 = vmatprep.subr.mxu0 0.0
  %6573 = vmatpush1.msra.mxu0 0.0
  %6574 = vmatprep.subr.mxu0 0.0
  %6575 = vmatpush1.msra.mxu0 0.0
  %6576 = vmatprep.subr.mxu0 0.0
  %6577 = vmatpush1.msra.mxu0 0.0
  %6578 = vmatprep.subr.mxu0 0.0
  %6579 = vmatpush1.msra.mxu0 0.0
  %6580 = vmatprep.mubr.f32.mxu0 0.0
  %6581 = vmatmul.mubr.f32.gmra.mrb[0].mxu0 %v6514
  %v6582 = vpop.f32.mrb[0].mxu0
  %v6583 = vadd.f32 %v6510, %v6582
  %v6584 = vpop.f32.mrb[0].mxu0
  %6585 = vdwg.mxu0
  %v6586 = vadd.f32 %v6583, %v119
  %v6587 = vmax.f32 %v6586, 0.0
  %v6589 = vsel %vm189, %v6587, 0
  %6591 = vmatprep.subr.mxu0 0.0
  %6592 = vmatpush1.msra.mxu0 %v121
  %6593 = vmatprep.subr.mxu0 0.0
  %6594 = vmatpush1.msra.mxu0 %v122
  %6595 = vmatprep.subr.mxu0 0.0
  %6596 = vmatpush1.msra.mxu0 %v123
  %6597 = vmatprep.subr.mxu0 0.0
  %6598 = vmatpush1.msra.mxu0 %v124
  %6599 = vmatprep.subr.mxu0 0.0
  %6600 = vmatpush1.msra.mxu0 0.0
  %6601 = vmatprep.subr.mxu0 0.0
  %6602 = vmatpush1.msra.mxu0 0.0
  %6603 = vmatprep.subr.mxu0 0.0
  %6604 = vmatpush1.msra.mxu0 0.0
  %6605 = vmatprep.subr.mxu0 0.0
  %6606 = vmatpush1.msra.mxu0 0.0
  %6607 = vmatprep.subr.mxu0 0.0
  %6608 = vmatpush1.msra.mxu0 0.0
  %6609 = vmatprep.subr.mxu0 0.0
  %6610 = vmatpush1.msra.mxu0 0.0
  %6611 = vmatprep.subr.mxu0 0.0
  %6612 = vmatpush1.msra.mxu0 0.0
  %6613 = vmatprep.subr.mxu0 0.0
  %6614 = vmatpush1.msra.mxu0 0.0
  %6615 = vmatprep.subr.mxu0 0.0
  %6616 = vmatpush1.msra.mxu0 0.0
  %6617 = vmatprep.subr.mxu0 0.0
  %6618 = vmatpush1.msra.mxu0 0.0
  %6619 = vmatprep.subr.mxu0 0.0
  %6620 = vmatpush1.msra.mxu0 0.0
  %6621 = vmatprep.subr.mxu0 0.0
  %6622 = vmatpush1.msra.mxu0 0.0
  %6623 = vmatprep.subr.mxu0 0.0
  %6624 = vmatpush1.msra.mxu0 0.0
  %6625 = vmatprep.subr.mxu0 0.0
  %6626 = vmatpush1.msra.mxu0 0.0
  %6627 = vmatprep.subr.mxu0 0.0
  %6628 = vmatpush1.msra.mxu0 0.0
  %6629 = vmatprep.subr.mxu0 0.0
  %6630 = vmatpush1.msra.mxu0 0.0
  %6631 = vmatprep.subr.mxu0 0.0
  %6632 = vmatpush1.msra.mxu0 0.0
  %6633 = vmatprep.subr.mxu0 0.0
  %6634 = vmatpush1.msra.mxu0 0.0
  %6635 = vmatprep.subr.mxu0 0.0
  %6636 = vmatpush1.msra.mxu0 0.0
  %6637 = vmatprep.subr.mxu0 0.0
  %6638 = vmatpush1.msra.mxu0 0.0
  %6639 = vmatprep.subr.mxu0 0.0
  %6640 = vmatpush1.msra.mxu0 0.0
  %6641 = vmatprep.subr.mxu0 0.0
  %6642 = vmatpush1.msra.mxu0 0.0
  %6643 = vmatprep.subr.mxu0 0.0
  %6644 = vmatpush1.msra.mxu0 0.0
  %6645 = vmatprep.subr.mxu0 0.0
  %6646 = vmatpush1.msra.mxu0 0.0
  %6647 = vmatprep.subr.mxu0 0.0
  %6648 = vmatpush1.msra.mxu0 0.0
  %6649 = vmatprep.subr.mxu0 0.0
  %6650 = vmatpush1.msra.mxu0 0.0
  %6651 = vmatprep.subr.mxu0 0.0
  %6652 = vmatpush1.msra.mxu0 0.0
  %6653 = vmatprep.subr.mxu0 0.0
  %6654 = vmatpush1.msra.mxu0 0.0
  %6655 = vmatprep.mubr.f32.mxu0 0.0
  %6656 = vmatmul.mubr.f32.gmra.mrb[0].mxu0 %v6589
  %v6657 = vpop.f32.mrb[0].mxu0
  %v6658 = vadd.f32 %v130, %v6657
  %v6659 = vpop.f32.mrb[0].mxu0
  %6660 = vdwg.mxu0
  %v6661 = vtanh.pop %v6658
  %6662 = vmatprep.subr.mxu0 0.0
  %6663 = vmatpush1.msra.mxu0 %v136
  %6664 = vmatprep.subr.mxu0 0.0
  %6665 = vmatpush1.msra.mxu0 %v137
  %6666 = vmatprep.subr.mxu0 0.0
  %6667 = vmatpush1.msra.mxu0 %v138
  %6668 = vmatprep.subr.mxu0 0.0
  %6669 = vmatpush1.msra.mxu0 %v139
  %6670 = vmatprep.subr.mxu0 0.0
  %6671 = vmatpush1.msra.mxu0 0.0
  %6672 = vmatprep.subr.mxu0 0.0
  %6673 = vmatpush1.msra.mxu0 0.0
  %6674 = vmatprep.subr.mxu0 0.0
  %6675 = vmatpush1.msra.mxu0 0.0
  %6676 = vmatprep.subr.mxu0 0.0
  %6677 = vmatpush1.msra.mxu0 0.0
  %6678 = vmatprep.subr.mxu0 0.0
  %6679 = vmatpush1.msra.mxu0 0.0
  %6680 = vmatprep.subr.mxu0 0.0
  %6681 = vmatpush1.msra.mxu0 0.0
  %6682 = vmatprep.subr.mxu0 0.0
  %6683 = vmatpush1.msra.mxu0 0.0
  %6684 = vmatprep.subr.mxu0 0.0
  %6685 = vmatpush1.msra.mxu0 0.0
  %6686 = vmatprep.subr.mxu0 0.0
  %6687 = vmatpush1.msra.mxu0 0.0
  %6688 = vmatprep.subr.mxu0 0.0
  %6689 = vmatpush1.msra.mxu0 0.0
  %6690 = vmatprep.subr.mxu0 0.0
  %6691 = vmatpush1.msra.mxu0 0.0
  %6692 = vmatprep.subr.mxu0 0.0
  %6693 = vmatpush1.msra.mxu0 0.0
  %6694 = vmatprep.subr.mxu0 0.0
  %6695 = vmatpush1.msra.mxu0 0.0
  %6696 = vmatprep.subr.mxu0 0.0
  %6697 = vmatpush1.msra.mxu0 0.0
  %6698 = vmatprep.subr.mxu0 0.0
  %6699 = vmatpush1.msra.mxu0 0.0
  %6700 = vmatprep.subr.mxu0 0.0
  %6701 = vmatpush1.msra.mxu0 0.0
  %6702 = vmatprep.subr.mxu0 0.0
  %6703 = vmatpush1.msra.mxu0 0.0
  %6704 = vmatprep.subr.mxu0 0.0
  %6705 = vmatpush1.msra.mxu0 0.0
  %6706 = vmatprep.subr.mxu0 0.0
  %6707 = vmatpush1.msra.mxu0 0.0
  %6708 = vmatprep.subr.mxu0 0.0
  %6709 = vmatpush1.msra.mxu0 0.0
  %6710 = vmatprep.subr.mxu0 0.0
  %6711 = vmatpush1.msra.mxu0 0.0
  %6712 = vmatprep.subr.mxu0 0.0
  %6713 = vmatpush1.msra.mxu0 0.0
  %6714 = vmatprep.subr.mxu0 0.0
  %6715 = vmatpush1.msra.mxu0 0.0
  %6716 = vmatprep.subr.mxu0 0.0
  %6717 = vmatpush1.msra.mxu0 0.0
  %6718 = vmatprep.subr.mxu0 0.0
  %6719 = vmatpush1.msra.mxu0 0.0
  %6720 = vmatprep.subr.mxu0 0.0
  %6721 = vmatpush1.msra.mxu0 0.0
  %6722 = vmatprep.subr.mxu0 0.0
  %6723 = vmatpush1.msra.mxu0 0.0
  %6724 = vmatprep.subr.mxu0 0.0
  %6725 = vmatpush1.msra.mxu0 0.0
  %6726 = vmatprep.mubr.f32.mxu0 0.0
  %6727 = vmatmul.mubr.f32.gmra.mrb[0].mxu0 %v6441
  %v6728 = vpop.f32.mrb[0].mxu0
  %v6729 = vadd.f32 0.0, %v6728
  %v6730 = vpop.f32.mrb[0].mxu0
  %6731 = vdwg.mxu0
  %6732 = vmatprep.subr.mxu0 0.0
  %6733 = vmatpush1.msra.mxu0 %v132
  %6734 = vmatprep.subr.mxu0 0.0
  %6735 = vmatpush1.msra.mxu0 %v133
  %6736 = vmatprep.subr.mxu0 0.0
  %6737 = vmatpush1.msra.mxu0 %v134
  %6738 = vmatprep.subr.mxu0 0.0
  %6739 = vmatpush1.msra.mxu0 %v135
  %6740 = vmatprep.subr.mxu0 0.0
  %6741 = vmatpush1.msra.mxu0 0.0
  %6742 = vmatprep.subr.mxu0 0.0
  %6743 = vmatpush1.msra.mxu0 0.0
  %6744 = vmatprep.subr.mxu0 0.0
  %6745 = vmatpush1.msra.mxu0 0.0
  %6746 = vmatprep.subr.mxu0 0.0
  %6747 = vmatpush1.msra.mxu0 0.0
  %6748 = vmatprep.subr.mxu0 0.0
  %6749 = vmatpush1.msra.mxu0 0.0
  %6750 = vmatprep.subr.mxu0 0.0
  %6751 = vmatpush1.msra.mxu0 0.0
  %6752 = vmatprep.subr.mxu0 0.0
  %6753 = vmatpush1.msra.mxu0 0.0
  %6754 = vmatprep.subr.mxu0 0.0
  %6755 = vmatpush1.msra.mxu0 0.0
  %6756 = vmatprep.subr.mxu0 0.0
  %6757 = vmatpush1.msra.mxu0 0.0
  %6758 = vmatprep.subr.mxu0 0.0
  %6759 = vmatpush1.msra.mxu0 0.0
  %6760 = vmatprep.subr.mxu0 0.0
  %6761 = vmatpush1.msra.mxu0 0.0
  %6762 = vmatprep.subr.mxu0 0.0
  %6763 = vmatpush1.msra.mxu0 0.0
  %6764 = vmatprep.subr.mxu0 0.0
  %6765 = vmatpush1.msra.mxu0 0.0
  %6766 = vmatprep.subr.mxu0 0.0
  %6767 = vmatpush1.msra.mxu0 0.0
  %6768 = vmatprep.subr.mxu0 0.0
  %6769 = vmatpush1.msra.mxu0 0.0
  %6770 = vmatprep.subr.mxu0 0.0
  %6771 = vmatpush1.msra.mxu0 0.0
  %6772 = vmatprep.subr.mxu0 0.0
  %6773 = vmatpush1.msra.mxu0 0.0
  %6774 = vmatprep.subr.mxu0 0.0
  %6775 = vmatpush1.msra.mxu0 0.0
  %6776 = vmatprep.subr.mxu0 0.0
  %6777 = vmatpush1.msra.mxu0 0.0
  %6778 = vmatprep.subr.mxu0 0.0
  %6779 = vmatpush1.msra.mxu0 0.0
  %6780 = vmatprep.subr.mxu0 0.0
  %6781 = vmatpush1.msra.mxu0 0.0
  %6782 = vmatprep.subr.mxu0 0.0
  %6783 = vmatpush1.msra.mxu0 0.0
  %6784 = vmatprep.subr.mxu0 0.0
  %6785 = vmatpush1.msra.mxu0 0.0
  %6786 = vmatprep.subr.mxu0 0.0
  %6787 = vmatpush1.msra.mxu0 0.0
  %6788 = vmatprep.subr.mxu0 0.0
  %6789 = vmatpush1.msra.mxu0 0.0
  %6790 = vmatprep.subr.mxu0 0.0
  %6791 = vmatpush1.msra.mxu0 0.0
  %6792 = vmatprep.subr.mxu0 0.0
  %6793 = vmatpush1.msra.mxu0 0.0
  %6794 = vmatprep.subr.mxu0 0.0
  %6795 = vmatpush1.msra.mxu0 0.0
  %6796 = vmatprep.mubr.f32.mxu0 0.0
  %6797 = vmatmul.mubr.f32.gmra.mrb[0].mxu0 %v6514
  %v6798 = vpop.f32.mrb[0].mxu0
  %v6799 = vadd.f32 %v6729, %v6798
  %v6800 = vpop.f32.mrb[0].mxu0
  %6801 = vdwg.mxu0
  %6802 = vmatprep.subr.mxu0 0.0
  %6803 = vmatpush1.msra.mxu0 %v140
  %6804 = vmatprep.subr.mxu0 0.0
  %6805 = vmatpush1.msra.mxu0 %v141
  %6806 = vmatprep.subr.mxu0 0.0
  %6807 = vmatpush1.msra.mxu0 0.0
  %6808 = vmatprep.subr.mxu0 0.0
  %6809 = vmatpush1.msra.mxu0 0.0
  %6810 = vmatprep.subr.mxu0 0.0
  %6811 = vmatpush1.msra.mxu0 0.0
  %6812 = vmatprep.subr.mxu0 0.0
  %6813 = vmatpush1.msra.mxu0 0.0
  %6814 = vmatprep.subr.mxu0 0.0
  %6815 = vmatpush1.msra.mxu0 0.0
  %6816 = vmatprep.subr.mxu0 0.0
  %6817 = vmatpush1.msra.mxu0 0.0
  %6818 = vmatprep.subr.mxu0 0.0
  %6819 = vmatpush1.msra.mxu0 0.0
  %6820 = vmatprep.subr.mxu0 0.0
  %6821 = vmatpush1.msra.mxu0 0.0
  %6822 = vmatprep.subr.mxu0 0.0
  %6823 = vmatpush1.msra.mxu0 0.0
  %6824 = vmatprep.subr.mxu0 0.0
  %6825 = vmatpush1.msra.mxu0 0.0
  %6826 = vmatprep.subr.mxu0 0.0
  %6827 = vmatpush1.msra.mxu0 0.0
  %6828 = vmatprep.subr.mxu0 0.0
  %6829 = vmatpush1.msra.mxu0 0.0
  %6830 = vmatprep.subr.mxu0 0.0
  %6831 = vmatpush1.msra.mxu0 0.0
  %6832 = vmatprep.subr.mxu0 0.0
  %6833 = vmatpush1.msra.mxu0 0.0
  %6834 = vmatprep.subr.mxu0 0.0
  %6835 = vmatpush1.msra.mxu0 0.0
  %6836 = vmatprep.subr.mxu0 0.0
  %6837 = vmatpush1.msra.mxu0 0.0
  %6838 = vmatprep.subr.mxu0 0.0
  %6839 = vmatpush1.msra.mxu0 0.0
  %6840 = vmatprep.subr.mxu0 0.0
  %6841 = vmatpush1.msra.mxu0 0.0
  %6842 = vmatprep.subr.mxu0 0.0
  %6843 = vmatpush1.msra.mxu0 0.0
  %6844 = vmatprep.subr.mxu0 0.0
  %6845 = vmatpush1.msra.mxu0 0.0
  %6846 = vmatprep.subr.mxu0 0.0
  %6847 = vmatpush1.msra.mxu0 0.0
  %6848 = vmatprep.subr.mxu0 0.0
  %6849 = vmatpush1.msra.mxu0 0.0
  %6850 = vmatprep.subr.mxu0 0.0
  %6851 = vmatpush1.msra.mxu0 0.0
  %6852 = vmatprep.subr.mxu0 0.0
  %6853 = vmatpush1.msra.mxu0 0.0
  %6854 = vmatprep.subr.mxu0 0.0
  %6855 = vmatpush1.msra.mxu0 0.0
  %6856 = vmatprep.subr.mxu0 0.0
  %6857 = vmatpush1.msra.mxu0 0.0
  %6858 = vmatprep.subr.mxu0 0.0
  %6859 = vmatpush1.msra.mxu0 0.0
  %6860 = vmatprep.subr.mxu0 0.0
  %6861 = vmatpush1.msra.mxu0 0.0
  %6862 = vmatprep.subr.mxu0 0.0
  %6863 = vmatpush1.msra.mxu0 0.0
  %6864 = vmatprep.subr.mxu0 0.0
  %6865 = vmatpush1.msra.mxu0 0.0
  %6866 = vmatprep.mubr.f32.mxu0 0.0
  %6867 = vmatmul.mubr.f32.gmra.mrb[0].mxu0 %v5798
  %v6868 = vpop.f32.mrb[0].mxu0
  %v6869 = vadd.f32 0.0, %v6868
  %v6870 = vpop.f32.mrb[0].mxu0
  %6871 = vdwg.mxu0
  %v6872 = vadd.f32 %v6799, %v6869
  %v6873 = vadd.f32 %v6872, %v147
  %v6874 = vmax.f32 %v6873, 0.0
  %v6876 = vsel %vm581, %v6874, 0
  %6878 = vmatprep.subr.mxu0 0.0
  %6879 = vmatpush1.msra.mxu0 %v149
  %6880 = vmatprep.subr.mxu0 0.0
  %6881 = vmatpush1.msra.mxu0 %v150
  %6882 = vmatprep.subr.mxu0 0.0
  %6883 = vmatpush1.msra.mxu0 %v151
  %6884 = vmatprep.subr.mxu0 0.0
  %6885 = vmatpush1.msra.mxu0 %v152
  %6886 = vmatprep.subr.mxu0 0.0
  %6887 = vmatpush1.msra.mxu0 %v153
  %6888 = vmatprep.subr.mxu0 0.0
  %6889 = vmatpush1.msra.mxu0 %v154
  %6890 = vmatprep.subr.mxu0 0.0
  %6891 = vmatpush1.msra.mxu0 %v155
  %6892 = vmatprep.subr.mxu0 0.0
  %6893 = vmatpush1.msra.mxu0 %v156
  %6894 = vmatprep.subr.mxu0 0.0
  %6895 = vmatpush1.msra.mxu0 0.0
  %6896 = vmatprep.subr.mxu0 0.0
  %6897 = vmatpush1.msra.mxu0 0.0
  %6898 = vmatprep.subr.mxu0 0.0
  %6899 = vmatpush1.msra.mxu0 0.0
  %6900 = vmatprep.subr.mxu0 0.0
  %6901 = vmatpush1.msra.mxu0 0.0
  %6902 = vmatprep.subr.mxu0 0.0
  %6903 = vmatpush1.msra.mxu0 0.0
  %6904 = vmatprep.subr.mxu0 0.0
  %6905 = vmatpush1.msra.mxu0 0.0
  %6906 = vmatprep.subr.mxu0 0.0
  %6907 = vmatpush1.msra.mxu0 0.0
  %6908 = vmatprep.subr.mxu0 0.0
  %6909 = vmatpush1.msra.mxu0 0.0
  %6910 = vmatprep.subr.mxu0 0.0
  %6911 = vmatpush1.msra.mxu0 0.0
  %6912 = vmatprep.subr.mxu0 0.0
  %6913 = vmatpush1.msra.mxu0 0.0
  %6914 = vmatprep.subr.mxu0 0.0
  %6915 = vmatpush1.msra.mxu0 0.0
  %6916 = vmatprep.subr.mxu0 0.0
  %6917 = vmatpush1.msra.mxu0 0.0
  %6918 = vmatprep.subr.mxu0 0.0
  %6919 = vmatpush1.msra.mxu0 0.0
  %6920 = vmatprep.subr.mxu0 0.0
  %6921 = vmatpush1.msra.mxu0 0.0
  %6922 = vmatprep.subr.mxu0 0.0
  %6923 = vmatpush1.msra.mxu0 0.0
  %6924 = vmatprep.subr.mxu0 0.0
  %6925 = vmatpush1.msra.mxu0 0.0
  %6926 = vmatprep.subr.mxu0 0.0
  %6927 = vmatpush1.msra.mxu0 0.0
  %6928 = vmatprep.subr.mxu0 0.0
  %6929 = vmatpush1.msra.mxu0 0.0
  %6930 = vmatprep.subr.mxu0 0.0
  %6931 = vmatpush1.msra.mxu0 0.0
  %6932 = vmatprep.subr.mxu0 0.0
  %6933 = vmatpush1.msra.mxu0 0.0
  %6934 = vmatprep.subr.mxu0 0.0
  %6935 = vmatpush1.msra.mxu0 0.0
  %6936 = vmatprep.subr.mxu0 0.0
  %6937 = vmatpush1.msra.mxu0 0.0
  %6938 = vmatprep.subr.mxu0 0.0
  %6939 = vmatpush1.msra.mxu0 0.0
  %6940 = vmatprep.subr.mxu0 0.0
  %6941 = vmatpush1.msra.mxu0 0.0
  %6942 = vmatprep.mubr.f32.mxu0 0.0
  %6943 = vmatmul.mubr.f32.gmra.mrb[0].mxu0 %v6876
  %v6944 = vpop.f32.mrb[0].mxu0
  %v6945 = vadd.f32 %v162, %v6944
  %v6946 = vpop.f32.mrb[0].mxu0
  %6947 = vdwg.mxu0
  %v6948 = vxor.u32 %v6945, 2147483648
  %v6949 = vmul.f32 %v6948, 1.442695
  %v6950 = vpow.pop %v6949
  %v6951 = vadd.f32 %v6950, 1.0
  %v6952 = vrcp.pop %v6951
  %v6953 = vmul.f32 1.0, %v6952
  %v6954 = vmul.f32 %v6953, %v5796
  %6956 = vrot.lane.b32.xlu0 %v6661, 16
  %v6957 = vpop.permute.xlu0 %6956
  %v6959 = vmul.f32 %v6953, %v6957
  %6961 = vrot.lane.b32.xlu0 %v6959, 112
  %v6962 = vpop.permute.xlu0 %6961
  %v6964 = vadd.f32 %v6954, %v6962
  %v6966 = vsel %vm959, %v6964, 0
  %6968 = vmatprep.subr.mxu0 0.0
  %6969 = vmatpush1.msra.mxu0 %v168
  %6970 = vmatprep.subr.mxu0 0.0
  %6971 = vmatpush1.msra.mxu0 %v169
  %6972 = vmatprep.subr.mxu0 0.0
  %6973 = vmatpush1.msra.mxu0 0.0
  %6974 = vmatprep.subr.mxu0 0.0
  %6975 = vmatpush1.msra.mxu0 0.0
  %6976 = vmatprep.subr.mxu0 0.0
  %6977 = vmatpush1.msra.mxu0 0.0
  %6978 = vmatprep.subr.mxu0 0.0
  %6979 = vmatpush1.msra.mxu0 0.0
  %6980 = vmatprep.subr.mxu0 0.0
  %6981 = vmatpush1.msra.mxu0 0.0
  %6982 = vmatprep.subr.mxu0 0.0
  %6983 = vmatpush1.msra.mxu0 0.0
  %6984 = vmatprep.subr.mxu0 0.0
  %6985 = vmatpush1.msra.mxu0 0.0
  %6986 = vmatprep.subr.mxu0 0.0
  %6987 = vmatpush1.msra.mxu0 0.0
  %6988 = vmatprep.subr.mxu0 0.0
  %6989 = vmatpush1.msra.mxu0 0.0
  %6990 = vmatprep.subr.mxu0 0.0
  %6991 = vmatpush1.msra.mxu0 0.0
  %6992 = vmatprep.subr.mxu0 0.0
  %6993 = vmatpush1.msra.mxu0 0.0
  %6994 = vmatprep.subr.mxu0 0.0
  %6995 = vmatpush1.msra.mxu0 0.0
  %6996 = vmatprep.subr.mxu0 0.0
  %6997 = vmatpush1.msra.mxu0 0.0
  %6998 = vmatprep.subr.mxu0 0.0
  %6999 = vmatpush1.msra.mxu0 0.0
  %7000 = vmatprep.subr.mxu0 0.0
  %7001 = vmatpush1.msra.mxu0 0.0
  %7002 = vmatprep.subr.mxu0 0.0
  %7003 = vmatpush1.msra.mxu0 0.0
  %7004 = vmatprep.subr.mxu0 0.0
  %7005 = vmatpush1.msra.mxu0 0.0
  %7006 = vmatprep.subr.mxu0 0.0
  %7007 = vmatpush1.msra.mxu0 0.0
  %7008 = vmatprep.subr.mxu0 0.0
  %7009 = vmatpush1.msra.mxu0 0.0
  %7010 = vmatprep.subr.mxu0 0.0
  %7011 = vmatpush1.msra.mxu0 0.0
  %7012 = vmatprep.subr.mxu0 0.0
  %7013 = vmatpush1.msra.mxu0 0.0
  %7014 = vmatprep.subr.mxu0 0.0
  %7015 = vmatpush1.msra.mxu0 0.0
  %7016 = vmatprep.subr.mxu0 0.0
  %7017 = vmatpush1.msra.mxu0 0.0
  %7018 = vmatprep.subr.mxu0 0.0
  %7019 = vmatpush1.msra.mxu0 0.0
  %7020 = vmatprep.subr.mxu0 0.0
  %7021 = vmatpush1.msra.mxu0 0.0
  %7022 = vmatprep.subr.mxu0 0.0
  %7023 = vmatpush1.msra.mxu0 0.0
  %7024 = vmatprep.subr.mxu0 0.0
  %7025 = vmatpush1.msra.mxu0 0.0
  %7026 = vmatprep.subr.mxu0 0.0
  %7027 = vmatpush1.msra.mxu0 0.0
  %7028 = vmatprep.subr.mxu0 0.0
  %7029 = vmatpush1.msra.mxu0 0.0
  %7030 = vmatprep.subr.mxu0 0.0
  %7031 = vmatpush1.msra.mxu0 0.0
  %7032 = vmatprep.mubr.f32.mxu0 0.0
  %7033 = vmatmul.mubr.f32.gmra.mrb[0].mxu0 %v6966
  %v7034 = vpop.f32.mrb[0].mxu0
  %v7035 = vadd.f32 0.0, %v7034
  %v7036 = vpop.f32.mrb[0].mxu0
  %7037 = vdwg.mxu0
  %7039 = vrot.lane.b32.xlu0 %v6203, 32
  %v7040 = vpop.permute.xlu0 %7039
  %v7041 = vsel %vm189, %v7040, 0
  %7043 = vmatprep.subr.mxu0 0.0
  %7044 = vmatpush1.msra.mxu0 %v164
  %7045 = vmatprep.subr.mxu0 0.0
  %7046 = vmatpush1.msra.mxu0 %v165
  %7047 = vmatprep.subr.mxu0 0.0
  %7048 = vmatpush1.msra.mxu0 %v166
  %7049 = vmatprep.subr.mxu0 0.0
  %7050 = vmatpush1.msra.mxu0 %v167
  %7051 = vmatprep.subr.mxu0 0.0
  %7052 = vmatpush1.msra.mxu0 0.0
  %7053 = vmatprep.subr.mxu0 0.0
  %7054 = vmatpush1.msra.mxu0 0.0
  %7055 = vmatprep.subr.mxu0 0.0
  %7056 = vmatpush1.msra.mxu0 0.0
  %7057 = vmatprep.subr.mxu0 0.0
  %7058 = vmatpush1.msra.mxu0 0.0
  %7059 = vmatprep.subr.mxu0 0.0
  %7060 = vmatpush1.msra.mxu0 0.0
  %7061 = vmatprep.subr.mxu0 0.0
  %7062 = vmatpush1.msra.mxu0 0.0
  %7063 = vmatprep.subr.mxu0 0.0
  %7064 = vmatpush1.msra.mxu0 0.0
  %7065 = vmatprep.subr.mxu0 0.0
  %7066 = vmatpush1.msra.mxu0 0.0
  %7067 = vmatprep.subr.mxu0 0.0
  %7068 = vmatpush1.msra.mxu0 0.0
  %7069 = vmatprep.subr.mxu0 0.0
  %7070 = vmatpush1.msra.mxu0 0.0
  %7071 = vmatprep.subr.mxu0 0.0
  %7072 = vmatpush1.msra.mxu0 0.0
  %7073 = vmatprep.subr.mxu0 0.0
  %7074 = vmatpush1.msra.mxu0 0.0
  %7075 = vmatprep.subr.mxu0 0.0
  %7076 = vmatpush1.msra.mxu0 0.0
  %7077 = vmatprep.subr.mxu0 0.0
  %7078 = vmatpush1.msra.mxu0 0.0
  %7079 = vmatprep.subr.mxu0 0.0
  %7080 = vmatpush1.msra.mxu0 0.0
  %7081 = vmatprep.subr.mxu0 0.0
  %7082 = vmatpush1.msra.mxu0 0.0
  %7083 = vmatprep.subr.mxu0 0.0
  %7084 = vmatpush1.msra.mxu0 0.0
  %7085 = vmatprep.subr.mxu0 0.0
  %7086 = vmatpush1.msra.mxu0 0.0
  %7087 = vmatprep.subr.mxu0 0.0
  %7088 = vmatpush1.msra.mxu0 0.0
  %7089 = vmatprep.subr.mxu0 0.0
  %7090 = vmatpush1.msra.mxu0 0.0
  %7091 = vmatprep.subr.mxu0 0.0
  %7092 = vmatpush1.msra.mxu0 0.0
  %7093 = vmatprep.subr.mxu0 0.0
  %7094 = vmatpush1.msra.mxu0 0.0
  %7095 = vmatprep.subr.mxu0 0.0
  %7096 = vmatpush1.msra.mxu0 0.0
  %7097 = vmatprep.subr.mxu0 0.0
  %7098 = vmatpush1.msra.mxu0 0.0
  %7099 = vmatprep.subr.mxu0 0.0
  %7100 = vmatpush1.msra.mxu0 0.0
  %7101 = vmatprep.subr.mxu0 0.0
  %7102 = vmatpush1.msra.mxu0 0.0
  %7103 = vmatprep.subr.mxu0 0.0
  %7104 = vmatpush1.msra.mxu0 0.0
  %7105 = vmatprep.subr.mxu0 0.0
  %7106 = vmatpush1.msra.mxu0 0.0
  %7107 = vmatprep.mubr.f32.mxu0 0.0
  %7108 = vmatmul.mubr.f32.gmra.mrb[0].mxu0 %v7041
  %v7109 = vpop.f32.mrb[0].mxu0
  %v7110 = vadd.f32 %v7035, %v7109
  %v7111 = vpop.f32.mrb[0].mxu0
  %7112 = vdwg.mxu0
  %v7113 = vadd.f32 %v7110, %v175
  %v7114 = vmax.f32 %v7113, 0.0
  %v7116 = vsel %vm189, %v7114, 0
  %7118 = vmatprep.subr.mxu0 0.0
  %7119 = vmatpush1.msra.mxu0 %v177
  %7120 = vmatprep.subr.mxu0 0.0
  %7121 = vmatpush1.msra.mxu0 %v178
  %7122 = vmatprep.subr.mxu0 0.0
  %7123 = vmatpush1.msra.mxu0 %v179
  %7124 = vmatprep.subr.mxu0 0.0
  %7125 = vmatpush1.msra.mxu0 %v180
  %7126 = vmatprep.subr.mxu0 0.0
  %7127 = vmatpush1.msra.mxu0 0.0
  %7128 = vmatprep.subr.mxu0 0.0
  %7129 = vmatpush1.msra.mxu0 0.0
  %7130 = vmatprep.subr.mxu0 0.0
  %7131 = vmatpush1.msra.mxu0 0.0
  %7132 = vmatprep.subr.mxu0 0.0
  %7133 = vmatpush1.msra.mxu0 0.0
  %7134 = vmatprep.subr.mxu0 0.0
  %7135 = vmatpush1.msra.mxu0 0.0
  %7136 = vmatprep.subr.mxu0 0.0
  %7137 = vmatpush1.msra.mxu0 0.0
  %7138 = vmatprep.subr.mxu0 0.0
  %7139 = vmatpush1.msra.mxu0 0.0
  %7140 = vmatprep.subr.mxu0 0.0
  %7141 = vmatpush1.msra.mxu0 0.0
  %7142 = vmatprep.subr.mxu0 0.0
  %7143 = vmatpush1.msra.mxu0 0.0
  %7144 = vmatprep.subr.mxu0 0.0
  %7145 = vmatpush1.msra.mxu0 0.0
  %7146 = vmatprep.subr.mxu0 0.0
  %7147 = vmatpush1.msra.mxu0 0.0
  %7148 = vmatprep.subr.mxu0 0.0
  %7149 = vmatpush1.msra.mxu0 0.0
  %7150 = vmatprep.subr.mxu0 0.0
  %7151 = vmatpush1.msra.mxu0 0.0
  %7152 = vmatprep.subr.mxu0 0.0
  %7153 = vmatpush1.msra.mxu0 0.0
  %7154 = vmatprep.subr.mxu0 0.0
  %7155 = vmatpush1.msra.mxu0 0.0
  %7156 = vmatprep.subr.mxu0 0.0
  %7157 = vmatpush1.msra.mxu0 0.0
  %7158 = vmatprep.subr.mxu0 0.0
  %7159 = vmatpush1.msra.mxu0 0.0
  %7160 = vmatprep.subr.mxu0 0.0
  %7161 = vmatpush1.msra.mxu0 0.0
  %7162 = vmatprep.subr.mxu0 0.0
  %7163 = vmatpush1.msra.mxu0 0.0
  %7164 = vmatprep.subr.mxu0 0.0
  %7165 = vmatpush1.msra.mxu0 0.0
  %7166 = vmatprep.subr.mxu0 0.0
  %7167 = vmatpush1.msra.mxu0 0.0
  %7168 = vmatprep.subr.mxu0 0.0
  %7169 = vmatpush1.msra.mxu0 0.0
  %7170 = vmatprep.subr.mxu0 0.0
  %7171 = vmatpush1.msra.mxu0 0.0
  %7172 = vmatprep.subr.mxu0 0.0
  %7173 = vmatpush1.msra.mxu0 0.0
  %7174 = vmatprep.subr.mxu0 0.0
  %7175 = vmatpush1.msra.mxu0 0.0
  %7176 = vmatprep.subr.mxu0 0.0
  %7177 = vmatpush1.msra.mxu0 0.0
  %7178 = vmatprep.subr.mxu0 0.0
  %7179 = vmatpush1.msra.mxu0 0.0
  %7180 = vmatprep.subr.mxu0 0.0
  %7181 = vmatpush1.msra.mxu0 0.0
  %7182 = vmatprep.mubr.f32.mxu0 0.0
  %7183 = vmatmul.mubr.f32.gmra.mrb[0].mxu0 %v7116
  %v7184 = vpop.f32.mrb[0].mxu0
  %v7185 = vadd.f32 %v186, %v7184
  %v7186 = vpop.f32.mrb[0].mxu0
  %7187 = vdwg.mxu0
  %v7188 = vsel %vm1348, %v7185, -inf
  %7189 = vmax.xlane.f32.xlu0 %v7188
  %v7190 = vpop.xlane.xlu0 %7189
  %v7191 = vsub.f32 %v7185, %v7190
  %v7192 = vmul.f32 %v7191, 1.442695
  %v7193 = vpow.pop %v7192
  %v7194 = vsel %vm1348, %v7193, 0.0
  %7195 = vadd.xlane.f32.xlu0 %v7194
  %v7196 = vpop.xlane.xlu0 %7195
  %v7197 = vlog2.pop %v7196
  %v7198 = vmul.f32 %v7197, 0.6931472
  %v7199 = vsub.f32 %v7191, %v7198
  %s7200 = scalar_lea.vmem %s20, 40
  %7201 = vst.msk [vmem:[%s7200] sm:$0xff] %vm1348, %v7199
  %s7202 = scalar_lea.vmem %s0, 48
  %v7203 = vld [vmem:[%s7202] sm:$0xff]
  %7204 = vmatprep.subr.mxu0 0.0
  %7205 = vmatpush1.msra.mxu0 %v69
  %7206 = vmatprep.subr.mxu0 0.0
  %7207 = vmatpush1.msra.mxu0 %v70
  %7208 = vmatprep.subr.mxu0 0.0
  %7209 = vmatpush1.msra.mxu0 %v71
  %7210 = vmatprep.subr.mxu0 0.0
  %7211 = vmatpush1.msra.mxu0 %v72
  %7212 = vmatprep.subr.mxu0 0.0
  %7213 = vmatpush1.msra.mxu0 0.0
  %7214 = vmatprep.subr.mxu0 0.0
  %7215 = vmatpush1.msra.mxu0 0.0
  %7216 = vmatprep.subr.mxu0 0.0
  %7217 = vmatpush1.msra.mxu0 0.0
  %7218 = vmatprep.subr.mxu0 0.0
  %7219 = vmatpush1.msra.mxu0 0.0
  %7220 = vmatprep.subr.mxu0 0.0
  %7221 = vmatpush1.msra.mxu0 0.0
  %7222 = vmatprep.subr.mxu0 0.0
  %7223 = vmatpush1.msra.mxu0 0.0
  %7224 = vmatprep.subr.mxu0 0.0
  %7225 = vmatpush1.msra.mxu0 0.0
  %7226 = vmatprep.subr.mxu0 0.0
  %7227 = vmatpush1.msra.mxu0 0.0
  %7228 = vmatprep.subr.mxu0 0.0
  %7229 = vmatpush1.msra.mxu0 0.0
  %7230 = vmatprep.subr.mxu0 0.0
  %7231 = vmatpush1.msra.mxu0 0.0
  %7232 = vmatprep.subr.mxu0 0.0
  %7233 = vmatpush1.msra.mxu0 0.0
  %7234 = vmatprep.subr.mxu0 0.0
  %7235 = vmatpush1.msra.mxu0 0.0
  %7236 = vmatprep.subr.mxu0 0.0
  %7237 = vmatpush1.msra.mxu0 0.0
  %7238 = vmatprep.subr.mxu0 0.0
  %7239 = vmatpush1.msra.mxu0 0.0
  %7240 = vmatprep.subr.mxu0 0.0
  %7241 = vmatpush1.msra.mxu0 0.0
  %7242 = vmatprep.subr.mxu0 0.0
  %7243 = vmatpush1.msra.mxu0 0.0
  %7244 = vmatprep.subr.mxu0 0.0
  %7245 = vmatpush1.msra.mxu0 0.0
  %7246 = vmatprep.subr.mxu0 0.0
  %7247 = vmatpush1.msra.mxu0 0.0
  %7248 = vmatprep.subr.mxu0 0.0
  %7249 = vmatpush1.msra.mxu0 0.0
  %7250 = vmatprep.subr.mxu0 0.0
  %7251 = vmatpush1.msra.mxu0 0.0
  %7252 = vmatprep.subr.mxu0 0.0
  %7253 = vmatpush1.msra.mxu0 0.0
  %7254 = vmatprep.subr.mxu0 0.0
  %7255 = vmatpush1.msra.mxu0 0.0
  %7256 = vmatprep.subr.mxu0 0.0
  %7257 = vmatpush1.msra.mxu0 0.0
  %7258 = vmatprep.subr.mxu0 0.0
  %7259 = vmatpush1.msra.mxu0 0.0
  %7260 = vmatprep.subr.mxu0 0.0
  %7261 = vmatpush1.msra.mxu0 0.0
  %7262 = vmatprep.subr.mxu0 0.0
  %7263 = vmatpush1.msra.mxu0 0.0
  %7264 = vmatprep.subr.mxu0 0.0
  %7265 = vmatpush1.msra.mxu0 0.0
  %7266 = vmatprep.subr.mxu0 0.0
  %7267 = vmatpush1.msra.mxu0 0.0
  %7268 = vmatprep.mubr.f32.mxu0 0.0
  %7269 = vmatmul.mubr.f32.gmra.mrb[0].mxu0 %v7041
  %v7270 = vpop.f32.mrb[0].mxu0
  %v7271 = vadd.f32 0.0, %v7270
  %v7272 = vpop.f32.mrb[0].mxu0
  %7273 = vdwg.mxu0
  %v7275 = vsel %vm189, %v7203, 0
  %7277 = vmatprep.subr.mxu0 0.0
  %7278 = vmatpush1.msra.mxu0 %v65
  %7279 = vmatprep.subr.mxu0 0.0
  %7280 = vmatpush1.msra.mxu0 %v66
  %7281 = vmatprep.subr.mxu0 0.0
  %7282 = vmatpush1.msra.mxu0 %v67
  %7283 = vmatprep.subr.mxu0 0.0
  %7284 = vmatpush1.msra.mxu0 %v68
  %7285 = vmatprep.subr.mxu0 0.0
  %7286 = vmatpush1.msra.mxu0 0.0
  %7287 = vmatprep.subr.mxu0 0.0
  %7288 = vmatpush1.msra.mxu0 0.0
  %7289 = vmatprep.subr.mxu0 0.0
  %7290 = vmatpush1.msra.mxu0 0.0
  %7291 = vmatprep.subr.mxu0 0.0
  %7292 = vmatpush1.msra.mxu0 0.0
  %7293 = vmatprep.subr.mxu0 0.0
  %7294 = vmatpush1.msra.mxu0 0.0
  %7295 = vmatprep.subr.mxu0 0.0
  %7296 = vmatpush1.msra.mxu0 0.0
  %7297 = vmatprep.subr.mxu0 0.0
  %7298 = vmatpush1.msra.mxu0 0.0
  %7299 = vmatprep.subr.mxu0 0.0
  %7300 = vmatpush1.msra.mxu0 0.0
  %7301 = vmatprep.subr.mxu0 0.0
  %7302 = vmatpush1.msra.mxu0 0.0
  %7303 = vmatprep.subr.mxu0 0.0
  %7304 = vmatpush1.msra.mxu0 0.0
  %7305 = vmatprep.subr.mxu0 0.0
  %7306 = vmatpush1.msra.mxu0 0.0
  %7307 = vmatprep.subr.mxu0 0.0
  %7308 = vmatpush1.msra.mxu0 0.0
  %7309 = vmatprep.subr.mxu0 0.0
  %7310 = vmatpush1.msra.mxu0 0.0
  %7311 = vmatprep.subr.mxu0 0.0
  %7312 = vmatpush1.msra.mxu0 0.0
  %7313 = vmatprep.subr.mxu0 0.0
  %7314 = vmatpush1.msra.mxu0 0.0
  %7315 = vmatprep.subr.mxu0 0.0
  %7316 = vmatpush1.msra.mxu0 0.0
  %7317 = vmatprep.subr.mxu0 0.0
  %7318 = vmatpush1.msra.mxu0 0.0
  %7319 = vmatprep.subr.mxu0 0.0
  %7320 = vmatpush1.msra.mxu0 0.0
  %7321 = vmatprep.subr.mxu0 0.0
  %7322 = vmatpush1.msra.mxu0 0.0
  %7323 = vmatprep.subr.mxu0 0.0
  %7324 = vmatpush1.msra.mxu0 0.0
  %7325 = vmatprep.subr.mxu0 0.0
  %7326 = vmatpush1.msra.mxu0 0.0
  %7327 = vmatprep.subr.mxu0 0.0
  %7328 = vmatpush1.msra.mxu0 0.0
  %7329 = vmatprep.subr.mxu0 0.0
  %7330 = vmatpush1.msra.mxu0 0.0
  %7331 = vmatprep.subr.mxu0 0.0
  %7332 = vmatpush1.msra.mxu0 0.0
  %7333 = vmatprep.subr.mxu0 0.0
  %7334 = vmatpush1.msra.mxu0 0.0
  %7335 = vmatprep.subr.mxu0 0.0
  %7336 = vmatpush1.msra.mxu0 0.0
  %7337 = vmatprep.subr.mxu0 0.0
  %7338 = vmatpush1.msra.mxu0 0.0
  %7339 = vmatprep.subr.mxu0 0.0
  %7340 = vmatpush1.msra.mxu0 0.0
  %7341 = vmatprep.mubr.f32.mxu0 0.0
  %7342 = vmatmul.mubr.f32.gmra.mrb[0].mxu0 %v7275
  %v7343 = vpop.f32.mrb[0].mxu0
  %v7344 = vadd.f32 %v7271, %v7343
  %v7345 = vpop.f32.mrb[0].mxu0
  %7346 = vdwg.mxu0
  %v7347 = vadd.f32 %v7344, %v78
  %v7348 = vxor.u32 %v7347, 2147483648
  %v7349 = vmul.f32 %v7348, 1.442695
  %v7350 = vpow.pop %v7349
  %v7351 = vadd.f32 %v7350, 1.0
  %v7352 = vrcp.pop %v7351
  %v7353 = vmul.f32 1.0, %v7352
  %v7354 = vtanh.pop %v7347
  %v7355 = vmul.f32 %v7353, %v6197
  %7357 = vrot.lane.b32.xlu0 %v7354, 64
  %v7358 = vpop.permute.xlu0 %7357
  %v7360 = vmul.f32 %v7353, %v7358
  %7362 = vrot.lane.b32.xlu0 %v7360, 32
  %v7363 = vpop.permute.xlu0 %7362
  %v7365 = vadd.f32 %v7355, %v7363
  %v7366 = vtanh.pop %v7365
  %7368 = vrot.lane.b32.xlu0 %v7366, 64
  %v7369 = vpop.permute.xlu0 %7368
  %v7371 = vmul.f32 %v7353, %v7369
  %7373 = vrot.lane.b32.xlu0 %v7365, 96
  %v7374 = vpop.permute.xlu0 %7373
  %v7375 = vsel %vm189, %v7374, 0
  %7377 = vmatprep.subr.mxu0 0.0
  %7378 = vmatpush1.msra.mxu0 %v84
  %7379 = vmatprep.subr.mxu0 0.0
  %7380 = vmatpush1.msra.mxu0 %v85
  %7381 = vmatprep.subr.mxu0 0.0
  %7382 = vmatpush1.msra.mxu0 %v86
  %7383 = vmatprep.subr.mxu0 0.0
  %7384 = vmatpush1.msra.mxu0 %v87
  %7385 = vmatprep.subr.mxu0 0.0
  %7386 = vmatpush1.msra.mxu0 0.0
  %7387 = vmatprep.subr.mxu0 0.0
  %7388 = vmatpush1.msra.mxu0 0.0
  %7389 = vmatprep.subr.mxu0 0.0
  %7390 = vmatpush1.msra.mxu0 0.0
  %7391 = vmatprep.subr.mxu0 0.0
  %7392 = vmatpush1.msra.mxu0 0.0
  %7393 = vmatprep.subr.mxu0 0.0
  %7394 = vmatpush1.msra.mxu0 0.0
  %7395 = vmatprep.subr.mxu0 0.0
  %7396 = vmatpush1.msra.mxu0 0.0
  %7397 = vmatprep.subr.mxu0 0.0
  %7398 = vmatpush1.msra.mxu0 0.0
  %7399 = vmatprep.subr.mxu0 0.0
  %7400 = vmatpush1.msra.mxu0 0.0
  %7401 = vmatprep.subr.mxu0 0.0
  %7402 = vmatpush1.msra.mxu0 0.0
  %7403 = vmatprep.subr.mxu0 0.0
  %7404 = vmatpush1.msra.mxu0 0.0
  %7405 = vmatprep.subr.mxu0 0.0
  %7406 = vmatpush1.msra.mxu0 0.0
  %7407 = vmatprep.subr.mxu0 0.0
  %7408 = vmatpush1.msra.mxu0 0.0
  %7409 = vmatprep.subr.mxu0 0.0
  %7410 = vmatpush1.msra.mxu0 0.0
  %7411 = vmatprep.subr.mxu0 0.0
  %7412 = vmatpush1.msra.mxu0 0.0
  %7413 = vmatprep.subr.mxu0 0.0
  %7414 = vmatpush1.msra.mxu0 0.0
  %7415 = vmatprep.subr.mxu0 0.0
  %7416 = vmatpush1.msra.mxu0 0.0
  %7417 = vmatprep.subr.mxu0 0.0
  %7418 = vmatpush1.msra.mxu0 0.0
  %7419 = vmatprep.subr.mxu0 0.0
  %7420 = vmatpush1.msra.mxu0 0.0
  %7421 = vmatprep.subr.mxu0 0.0
  %7422 = vmatpush1.msra.mxu0 0.0
  %7423 = vmatprep.subr.mxu0 0.0
  %7424 = vmatpush1.msra.mxu0 0.0
  %7425 = vmatprep.subr.mxu0 0.0
  %7426 = vmatpush1.msra.mxu0 0.0
  %7427 = vmatprep.subr.mxu0 0.0
  %7428 = vmatpush1.msra.mxu0 0.0
  %7429 = vmatprep.subr.mxu0 0.0
  %7430 = vmatpush1.msra.mxu0 0.0
  %7431 = vmatprep.subr.mxu0 0.0
  %7432 = vmatpush1.msra.mxu0 0.0
  %7433 = vmatprep.subr.mxu0 0.0
  %7434 = vmatpush1.msra.mxu0 0.0
  %7435 = vmatprep.subr.mxu0 0.0
  %7436 = vmatpush1.msra.mxu0 0.0
  %7437 = vmatprep.subr.mxu0 0.0
  %7438 = vmatpush1.msra.mxu0 0.0
  %7439 = vmatprep.subr.mxu0 0.0
  %7440 = vmatpush1.msra.mxu0 0.0
  %7441 = vmatprep.mubr.f32.mxu0 0.0
  %7442 = vmatmul.mubr.f32.gmra.mrb[0].mxu0 %v7375
  %v7443 = vpop.f32.mrb[0].mxu0
  %v7444 = vadd.f32 0.0, %v7443
  %v7445 = vpop.f32.mrb[0].mxu0
  %7446 = vdwg.mxu0
  %7447 = vmatprep.subr.mxu0 0.0
  %7448 = vmatpush1.msra.mxu0 %v80
  %7449 = vmatprep.subr.mxu0 0.0
  %7450 = vmatpush1.msra.mxu0 %v81
  %7451 = vmatprep.subr.mxu0 0.0
  %7452 = vmatpush1.msra.mxu0 %v82
  %7453 = vmatprep.subr.mxu0 0.0
  %7454 = vmatpush1.msra.mxu0 %v83
  %7455 = vmatprep.subr.mxu0 0.0
  %7456 = vmatpush1.msra.mxu0 0.0
  %7457 = vmatprep.subr.mxu0 0.0
  %7458 = vmatpush1.msra.mxu0 0.0
  %7459 = vmatprep.subr.mxu0 0.0
  %7460 = vmatpush1.msra.mxu0 0.0
  %7461 = vmatprep.subr.mxu0 0.0
  %7462 = vmatpush1.msra.mxu0 0.0
  %7463 = vmatprep.subr.mxu0 0.0
  %7464 = vmatpush1.msra.mxu0 0.0
  %7465 = vmatprep.subr.mxu0 0.0
  %7466 = vmatpush1.msra.mxu0 0.0
  %7467 = vmatprep.subr.mxu0 0.0
  %7468 = vmatpush1.msra.mxu0 0.0
  %7469 = vmatprep.subr.mxu0 0.0
  %7470 = vmatpush1.msra.mxu0 0.0
  %7471 = vmatprep.subr.mxu0 0.0
  %7472 = vmatpush1.msra.mxu0 0.0
  %7473 = vmatprep.subr.mxu0 0.0
  %7474 = vmatpush1.msra.mxu0 0.0
  %7475 = vmatprep.subr.mxu0 0.0
  %7476 = vmatpush1.msra.mxu0 0.0
  %7477 = vmatprep.subr.mxu0 0.0
  %7478 = vmatpush1.msra.mxu0 0.0
  %7479 = vmatprep.subr.mxu0 0.0
  %7480 = vmatpush1.msra.mxu0 0.0
  %7481 = vmatprep.subr.mxu0 0.0
  %7482 = vmatpush1.msra.mxu0 0.0
  %7483 = vmatprep.subr.mxu0 0.0
  %7484 = vmatpush1.msra.mxu0 0.0
  %7485 = vmatprep.subr.mxu0 0.0
  %7486 = vmatpush1.msra.mxu0 0.0
  %7487 = vmatprep.subr.mxu0 0.0
  %7488 = vmatpush1.msra.mxu0 0.0
  %7489 = vmatprep.subr.mxu0 0.0
  %7490 = vmatpush1.msra.mxu0 0.0
  %7491 = vmatprep.subr.mxu0 0.0
  %7492 = vmatpush1.msra.mxu0 0.0
  %7493 = vmatprep.subr.mxu0 0.0
  %7494 = vmatpush1.msra.mxu0 0.0
  %7495 = vmatprep.subr.mxu0 0.0
  %7496 = vmatpush1.msra.mxu0 0.0
  %7497 = vmatprep.subr.mxu0 0.0
  %7498 = vmatpush1.msra.mxu0 0.0
  %7499 = vmatprep.subr.mxu0 0.0
  %7500 = vmatpush1.msra.mxu0 0.0
  %7501 = vmatprep.subr.mxu0 0.0
  %7502 = vmatpush1.msra.mxu0 0.0
  %7503 = vmatprep.subr.mxu0 0.0
  %7504 = vmatpush1.msra.mxu0 0.0
  %7505 = vmatprep.subr.mxu0 0.0
  %7506 = vmatpush1.msra.mxu0 0.0
  %7507 = vmatprep.subr.mxu0 0.0
  %7508 = vmatpush1.msra.mxu0 0.0
  %7509 = vmatprep.subr.mxu0 0.0
  %7510 = vmatpush1.msra.mxu0 0.0
  %7511 = vmatprep.mubr.f32.mxu0 0.0
  %7512 = vmatmul.mubr.f32.gmra.mrb[0].mxu0 %v6207
  %v7513 = vpop.f32.mrb[0].mxu0
  %v7514 = vadd.f32 %v7444, %v7513
  %v7515 = vpop.f32.mrb[0].mxu0
  %7516 = vdwg.mxu0
  %v7517 = vadd.f32 %v7514, %v93
  %v7518 = vmax.f32 %v7517, 0.0
  %v7520 = vsel %vm189, %v7518, 0
  %7522 = vmatprep.subr.mxu0 0.0
  %7523 = vmatpush1.msra.mxu0 %v95
  %7524 = vmatprep.subr.mxu0 0.0
  %7525 = vmatpush1.msra.mxu0 %v96
  %7526 = vmatprep.subr.mxu0 0.0
  %7527 = vmatpush1.msra.mxu0 %v97
  %7528 = vmatprep.subr.mxu0 0.0
  %7529 = vmatpush1.msra.mxu0 %v98
  %7530 = vmatprep.subr.mxu0 0.0
  %7531 = vmatpush1.msra.mxu0 0.0
  %7532 = vmatprep.subr.mxu0 0.0
  %7533 = vmatpush1.msra.mxu0 0.0
  %7534 = vmatprep.subr.mxu0 0.0
  %7535 = vmatpush1.msra.mxu0 0.0
  %7536 = vmatprep.subr.mxu0 0.0
  %7537 = vmatpush1.msra.mxu0 0.0
  %7538 = vmatprep.subr.mxu0 0.0
  %7539 = vmatpush1.msra.mxu0 0.0
  %7540 = vmatprep.subr.mxu0 0.0
  %7541 = vmatpush1.msra.mxu0 0.0
  %7542 = vmatprep.subr.mxu0 0.0
  %7543 = vmatpush1.msra.mxu0 0.0
  %7544 = vmatprep.subr.mxu0 0.0
  %7545 = vmatpush1.msra.mxu0 0.0
  %7546 = vmatprep.subr.mxu0 0.0
  %7547 = vmatpush1.msra.mxu0 0.0
  %7548 = vmatprep.subr.mxu0 0.0
  %7549 = vmatpush1.msra.mxu0 0.0
  %7550 = vmatprep.subr.mxu0 0.0
  %7551 = vmatpush1.msra.mxu0 0.0
  %7552 = vmatprep.subr.mxu0 0.0
  %7553 = vmatpush1.msra.mxu0 0.0
  %7554 = vmatprep.subr.mxu0 0.0
  %7555 = vmatpush1.msra.mxu0 0.0
  %7556 = vmatprep.subr.mxu0 0.0
  %7557 = vmatpush1.msra.mxu0 0.0
  %7558 = vmatprep.subr.mxu0 0.0
  %7559 = vmatpush1.msra.mxu0 0.0
  %7560 = vmatprep.subr.mxu0 0.0
  %7561 = vmatpush1.msra.mxu0 0.0
  %7562 = vmatprep.subr.mxu0 0.0
  %7563 = vmatpush1.msra.mxu0 0.0
  %7564 = vmatprep.subr.mxu0 0.0
  %7565 = vmatpush1.msra.mxu0 0.0
  %7566 = vmatprep.subr.mxu0 0.0
  %7567 = vmatpush1.msra.mxu0 0.0
  %7568 = vmatprep.subr.mxu0 0.0
  %7569 = vmatpush1.msra.mxu0 0.0
  %7570 = vmatprep.subr.mxu0 0.0
  %7571 = vmatpush1.msra.mxu0 0.0
  %7572 = vmatprep.subr.mxu0 0.0
  %7573 = vmatpush1.msra.mxu0 0.0
  %7574 = vmatprep.subr.mxu0 0.0
  %7575 = vmatpush1.msra.mxu0 0.0
  %7576 = vmatprep.subr.mxu0 0.0
  %7577 = vmatpush1.msra.mxu0 0.0
  %7578 = vmatprep.subr.mxu0 0.0
  %7579 = vmatpush1.msra.mxu0 0.0
  %7580 = vmatprep.subr.mxu0 0.0
  %7581 = vmatpush1.msra.mxu0 0.0
  %7582 = vmatprep.subr.mxu0 0.0
  %7583 = vmatpush1.msra.mxu0 0.0
  %7584 = vmatprep.subr.mxu0 0.0
  %7585 = vmatpush1.msra.mxu0 0.0
  %7586 = vmatprep.mubr.f32.mxu0 0.0
  %7587 = vmatmul.mubr.f32.gmra.mrb[0].mxu0 %v7520
  %v7588 = vpop.f32.mrb[0].mxu0
  %v7589 = vadd.f32 %v104, %v7588
  %v7590 = vpop.f32.mrb[0].mxu0
  %7591 = vdwg.mxu0
  %v7592 = vsel %vm581, %v7589, -inf
  %7593 = vmax.xlane.f32.xlu0 %v7592
  %v7594 = vpop.xlane.xlu0 %7593
  %v7595 = vsub.f32 %v7589, %v7594
  %v7596 = vmul.f32 %v7595, 1.442695
  %v7597 = vpow.pop %v7596
  %v7598 = vsel %vm581, %v7597, 0.0
  %7599 = vadd.xlane.f32.xlu0 %v7598
  %v7600 = vpop.xlane.xlu0 %7599
  %v7601 = vrcp.pop %v7600
  %v7602 = vmul.f32 %v7597, %v7601
  %v7604 = vmul.f32 %v7602, %v6206
  %v7605 = vmul.f32 %v7602, %v7365
  %7607 = vrot.lane.b32.xlu0 %v7605, 96
  %v7608 = vpop.permute.xlu0 %7607
  %v7609 = vsel %vm189, %v7608, 0
  %7611 = vmatprep.subr.mxu0 0.0
  %7612 = vmatpush1.msra.mxu0 %v110
  %7613 = vmatprep.subr.mxu0 0.0
  %7614 = vmatpush1.msra.mxu0 %v111
  %7615 = vmatprep.subr.mxu0 0.0
  %7616 = vmatpush1.msra.mxu0 %v112
  %7617 = vmatprep.subr.mxu0 0.0
  %7618 = vmatpush1.msra.mxu0 %v113
  %7619 = vmatprep.subr.mxu0 0.0
  %7620 = vmatpush1.msra.mxu0 0.0
  %7621 = vmatprep.subr.mxu0 0.0
  %7622 = vmatpush1.msra.mxu0 0.0
  %7623 = vmatprep.subr.mxu0 0.0
  %7624 = vmatpush1.msra.mxu0 0.0
  %7625 = vmatprep.subr.mxu0 0.0
  %7626 = vmatpush1.msra.mxu0 0.0
  %7627 = vmatprep.subr.mxu0 0.0
  %7628 = vmatpush1.msra.mxu0 0.0
  %7629 = vmatprep.subr.mxu0 0.0
  %7630 = vmatpush1.msra.mxu0 0.0
  %7631 = vmatprep.subr.mxu0 0.0
  %7632 = vmatpush1.msra.mxu0 0.0
  %7633 = vmatprep.subr.mxu0 0.0
  %7634 = vmatpush1.msra.mxu0 0.0
  %7635 = vmatprep.subr.mxu0 0.0
  %7636 = vmatpush1.msra.mxu0 0.0
  %7637 = vmatprep.subr.mxu0 0.0
  %7638 = vmatpush1.msra.mxu0 0.0
  %7639 = vmatprep.subr.mxu0 0.0
  %7640 = vmatpush1.msra.mxu0 0.0
  %7641 = vmatprep.subr.mxu0 0.0
  %7642 = vmatpush1.msra.mxu0 0.0
  %7643 = vmatprep.subr.mxu0 0.0
  %7644 = vmatpush1.msra.mxu0 0.0
  %7645 = vmatprep.subr.mxu0 0.0
  %7646 = vmatpush1.msra.mxu0 0.0
  %7647 = vmatprep.subr.mxu0 0.0
  %7648 = vmatpush1.msra.mxu0 0.0
  %7649 = vmatprep.subr.mxu0 0.0
  %7650 = vmatpush1.msra.mxu0 0.0
  %7651 = vmatprep.subr.mxu0 0.0
  %7652 = vmatpush1.msra.mxu0 0.0
  %7653 = vmatprep.subr.mxu0 0.0
  %7654 = vmatpush1.msra.mxu0 0.0
  %7655 = vmatprep.subr.mxu0 0.0
  %7656 = vmatpush1.msra.mxu0 0.0
  %7657 = vmatprep.subr.mxu0 0.0
  %7658 = vmatpush1.msra.mxu0 0.0
  %7659 = vmatprep.subr.mxu0 0.0
  %7660 = vmatpush1.msra.mxu0 0.0
  %7661 = vmatprep.subr.mxu0 0.0
  %7662 = vmatpush1.msra.mxu0 0.0
  %7663 = vmatprep.subr.mxu0 0.0
  %7664 = vmatpush1.msra.mxu0 0.0
  %7665 = vmatprep.subr.mxu0 0.0
  %7666 = vmatpush1.msra.mxu0 0.0
  %7667 = vmatprep.subr.mxu0 0.0
  %7668 = vmatpush1.msra.mxu0 0.0
  %7669 = vmatprep.subr.mxu0 0.0
  %7670 = vmatpush1.msra.mxu0 0.0
  %7671 = vmatprep.subr.mxu0 0.0
  %7672 = vmatpush1.msra.mxu0 0.0
  %7673 = vmatprep.subr.mxu0 0.0
  %7674 = vmatpush1.msra.mxu0 0.0
  %7675 = vmatprep.mubr.f32.mxu0 0.0
  %7676 = vmatmul.mubr.f32.gmra.mrb[0].mxu0 %v7609
  %v7677 = vpop.f32.mrb[0].mxu0
  %v7678 = vadd.f32 0.0, %v7677
  %v7679 = vpop.f32.mrb[0].mxu0
  %7680 = vdwg.mxu0
  %v7682 = vsel %vm189, %v7604, 0
  %7684 = vmatprep.subr.mxu0 0.0
  %7685 = vmatpush1.msra.mxu0 %v106
  %7686 = vmatprep.subr.mxu0 0.0
  %7687 = vmatpush1.msra.mxu0 %v107
  %7688 = vmatprep.subr.mxu0 0.0
  %7689 = vmatpush1.msra.mxu0 %v108
  %7690 = vmatprep.subr.mxu0 0.0
  %7691 = vmatpush1.msra.mxu0 %v109
  %7692 = vmatprep.subr.mxu0 0.0
  %7693 = vmatpush1.msra.mxu0 0.0
  %7694 = vmatprep.subr.mxu0 0.0
  %7695 = vmatpush1.msra.mxu0 0.0
  %7696 = vmatprep.subr.mxu0 0.0
  %7697 = vmatpush1.msra.mxu0 0.0
  %7698 = vmatprep.subr.mxu0 0.0
  %7699 = vmatpush1.msra.mxu0 0.0
  %7700 = vmatprep.subr.mxu0 0.0
  %7701 = vmatpush1.msra.mxu0 0.0
  %7702 = vmatprep.subr.mxu0 0.0
  %7703 = vmatpush1.msra.mxu0 0.0
  %7704 = vmatprep.subr.mxu0 0.0
  %7705 = vmatpush1.msra.mxu0 0.0
  %7706 = vmatprep.subr.mxu0 0.0
  %7707 = vmatpush1.msra.mxu0 0.0
  %7708 = vmatprep.subr.mxu0 0.0
  %7709 = vmatpush1.msra.mxu0 0.0
  %7710 = vmatprep.subr.mxu0 0.0
  %7711 = vmatpush1.msra.mxu0 0.0
  %7712 = vmatprep.subr.mxu0 0.0
  %7713 = vmatpush1.msra.mxu0 0.0
  %7714 = vmatprep.subr.mxu0 0.0
  %7715 = vmatpush1.msra.mxu0 0.0
  %7716 = vmatprep.subr.mxu0 0.0
  %7717 = vmatpush1.msra.mxu0 0.0
  %7718 = vmatprep.subr.mxu0 0.0
  %7719 = vmatpush1.msra.mxu0 0.0
  %7720 = vmatprep.subr.mxu0 0.0
  %7721 = vmatpush1.msra.mxu0 0.0
  %7722 = vmatprep.subr.mxu0 0.0
  %7723 = vmatpush1.msra.mxu0 0.0
  %7724 = vmatprep.subr.mxu0 0.0
  %7725 = vmatpush1.msra.mxu0 0.0
  %7726 = vmatprep.subr.mxu0 0.0
  %7727 = vmatpush1.msra.mxu0 0.0
  %7728 = vmatprep.subr.mxu0 0.0
  %7729 = vmatpush1.msra.mxu0 0.0
  %7730 = vmatprep.subr.mxu0 0.0
  %7731 = vmatpush1.msra.mxu0 0.0
  %7732 = vmatprep.subr.mxu0 0.0
  %7733 = vmatpush1.msra.mxu0 0.0
  %7734 = vmatprep.subr.mxu0 0.0
  %7735 = vmatpush1.msra.mxu0 0.0
  %7736 = vmatprep.subr.mxu0 0.0
  %7737 = vmatpush1.msra.mxu0 0.0
  %7738 = vmatprep.subr.mxu0 0.0
  %7739 = vmatpush1.msra.mxu0 0.0
  %7740 = vmatprep.subr.mxu0 0.0
  %7741 = vmatpush1.msra.mxu0 0.0
  %7742 = vmatprep.subr.mxu0 0.0
  %7743 = vmatpush1.msra.mxu0 0.0
  %7744 = vmatprep.subr.mxu0 0.0
  %7745 = vmatpush1.msra.mxu0 0.0
  %7746 = vmatprep.subr.mxu0 0.0
  %7747 = vmatpush1.msra.mxu0 0.0
  %7748 = vmatprep.mubr.f32.mxu0 0.0
  %7749 = vmatmul.mubr.f32.gmra.mrb[0].mxu0 %v7682
  %v7750 = vpop.f32.mrb[0].mxu0
  %v7751 = vadd.f32 %v7678, %v7750
  %v7752 = vpop.f32.mrb[0].mxu0
  %7753 = vdwg.mxu0
  %v7754 = vadd.f32 %v7751, %v119
  %v7755 = vmax.f32 %v7754, 0.0
  %v7757 = vsel %vm189, %v7755, 0
  %7759 = vmatprep.subr.mxu0 0.0
  %7760 = vmatpush1.msra.mxu0 %v121
  %7761 = vmatprep.subr.mxu0 0.0
  %7762 = vmatpush1.msra.mxu0 %v122
  %7763 = vmatprep.subr.mxu0 0.0
  %7764 = vmatpush1.msra.mxu0 %v123
  %7765 = vmatprep.subr.mxu0 0.0
  %7766 = vmatpush1.msra.mxu0 %v124
  %7767 = vmatprep.subr.mxu0 0.0
  %7768 = vmatpush1.msra.mxu0 0.0
  %7769 = vmatprep.subr.mxu0 0.0
  %7770 = vmatpush1.msra.mxu0 0.0
  %7771 = vmatprep.subr.mxu0 0.0
  %7772 = vmatpush1.msra.mxu0 0.0
  %7773 = vmatprep.subr.mxu0 0.0
  %7774 = vmatpush1.msra.mxu0 0.0
  %7775 = vmatprep.subr.mxu0 0.0
  %7776 = vmatpush1.msra.mxu0 0.0
  %7777 = vmatprep.subr.mxu0 0.0
  %7778 = vmatpush1.msra.mxu0 0.0
  %7779 = vmatprep.subr.mxu0 0.0
  %7780 = vmatpush1.msra.mxu0 0.0
  %7781 = vmatprep.subr.mxu0 0.0
  %7782 = vmatpush1.msra.mxu0 0.0
  %7783 = vmatprep.subr.mxu0 0.0
  %7784 = vmatpush1.msra.mxu0 0.0
  %7785 = vmatprep.subr.mxu0 0.0
  %7786 = vmatpush1.msra.mxu0 0.0
  %7787 = vmatprep.subr.mxu0 0.0
  %7788 = vmatpush1.msra.mxu0 0.0
  %7789 = vmatprep.subr.mxu0 0.0
  %7790 = vmatpush1.msra.mxu0 0.0
  %7791 = vmatprep.subr.mxu0 0.0
  %7792 = vmatpush1.msra.mxu0 0.0
  %7793 = vmatprep.subr.mxu0 0.0
  %7794 = vmatpush1.msra.mxu0 0.0
  %7795 = vmatprep.subr.mxu0 0.0
  %7796 = vmatpush1.msra.mxu0 0.0
  %7797 = vmatprep.subr.mxu0 0.0
  %7798 = vmatpush1.msra.mxu0 0.0
  %7799 = vmatprep.subr.mxu0 0.0
  %7800 = vmatpush1.msra.mxu0 0.0
  %7801 = vmatprep.subr.mxu0 0.0
  %7802 = vmatpush1.msra.mxu0 0.0
  %7803 = vmatprep.subr.mxu0 0.0
  %7804 = vmatpush1.msra.mxu0 0.0
  %7805 = vmatprep.subr.mxu0 0.0
  %7806 = vmatpush1.msra.mxu0 0.0
  %7807 = vmatprep.subr.mxu0 0.0
  %7808 = vmatpush1.msra.mxu0 0.0
  %7809 = vmatprep.subr.mxu0 0.0
  %7810 = vmatpush1.msra.mxu0 0.0
  %7811 = vmatprep.subr.mxu0 0.0
  %7812 = vmatpush1.msra.mxu0 0.0
  %7813 = vmatprep.subr.mxu0 0.0
  %7814 = vmatpush1.msra.mxu0 0.0
  %7815 = vmatprep.subr.mxu0 0.0
  %7816 = vmatpush1.msra.mxu0 0.0
  %7817 = vmatprep.subr.mxu0 0.0
  %7818 = vmatpush1.msra.mxu0 0.0
  %7819 = vmatprep.subr.mxu0 0.0
  %7820 = vmatpush1.msra.mxu0 0.0
  %7821 = vmatprep.subr.mxu0 0.0
  %7822 = vmatpush1.msra.mxu0 0.0
  %7823 = vmatprep.mubr.f32.mxu0 0.0
  %7824 = vmatmul.mubr.f32.gmra.mrb[0].mxu0 %v7757
  %v7825 = vpop.f32.mrb[0].mxu0
  %v7826 = vadd.f32 %v130, %v7825
  %v7827 = vpop.f32.mrb[0].mxu0
  %7828 = vdwg.mxu0
  %v7829 = vtanh.pop %v7826
  %7830 = vmatprep.subr.mxu0 0.0
  %7831 = vmatpush1.msra.mxu0 %v136
  %7832 = vmatprep.subr.mxu0 0.0
  %7833 = vmatpush1.msra.mxu0 %v137
  %7834 = vmatprep.subr.mxu0 0.0
  %7835 = vmatpush1.msra.mxu0 %v138
  %7836 = vmatprep.subr.mxu0 0.0
  %7837 = vmatpush1.msra.mxu0 %v139
  %7838 = vmatprep.subr.mxu0 0.0
  %7839 = vmatpush1.msra.mxu0 0.0
  %7840 = vmatprep.subr.mxu0 0.0
  %7841 = vmatpush1.msra.mxu0 0.0
  %7842 = vmatprep.subr.mxu0 0.0
  %7843 = vmatpush1.msra.mxu0 0.0
  %7844 = vmatprep.subr.mxu0 0.0
  %7845 = vmatpush1.msra.mxu0 0.0
  %7846 = vmatprep.subr.mxu0 0.0
  %7847 = vmatpush1.msra.mxu0 0.0
  %7848 = vmatprep.subr.mxu0 0.0
  %7849 = vmatpush1.msra.mxu0 0.0
  %7850 = vmatprep.subr.mxu0 0.0
  %7851 = vmatpush1.msra.mxu0 0.0
  %7852 = vmatprep.subr.mxu0 0.0
  %7853 = vmatpush1.msra.mxu0 0.0
  %7854 = vmatprep.subr.mxu0 0.0
  %7855 = vmatpush1.msra.mxu0 0.0
  %7856 = vmatprep.subr.mxu0 0.0
  %7857 = vmatpush1.msra.mxu0 0.0
  %7858 = vmatprep.subr.mxu0 0.0
  %7859 = vmatpush1.msra.mxu0 0.0
  %7860 = vmatprep.subr.mxu0 0.0
  %7861 = vmatpush1.msra.mxu0 0.0
  %7862 = vmatprep.subr.mxu0 0.0
  %7863 = vmatpush1.msra.mxu0 0.0
  %7864 = vmatprep.subr.mxu0 0.0
  %7865 = vmatpush1.msra.mxu0 0.0
  %7866 = vmatprep.subr.mxu0 0.0
  %7867 = vmatpush1.msra.mxu0 0.0
  %7868 = vmatprep.subr.mxu0 0.0
  %7869 = vmatpush1.msra.mxu0 0.0
  %7870 = vmatprep.subr.mxu0 0.0
  %7871 = vmatpush1.msra.mxu0 0.0
  %7872 = vmatprep.subr.mxu0 0.0
  %7873 = vmatpush1.msra.mxu0 0.0
  %7874 = vmatprep.subr.mxu0 0.0
  %7875 = vmatpush1.msra.mxu0 0.0
  %7876 = vmatprep.subr.mxu0 0.0
  %7877 = vmatpush1.msra.mxu0 0.0
  %7878 = vmatprep.subr.mxu0 0.0
  %7879 = vmatpush1.msra.mxu0 0.0
  %7880 = vmatprep.subr.mxu0 0.0
  %7881 = vmatpush1.msra.mxu0 0.0
  %7882 = vmatprep.subr.mxu0 0.0
  %7883 = vmatpush1.msra.mxu0 0.0
  %7884 = vmatprep.subr.mxu0 0.0
  %7885 = vmatpush1.msra.mxu0 0.0
  %7886 = vmatprep.subr.mxu0 0.0
  %7887 = vmatpush1.msra.mxu0 0.0
  %7888 = vmatprep.subr.mxu0 0.0
  %7889 = vmatpush1.msra.mxu0 0.0
  %7890 = vmatprep.subr.mxu0 0.0
  %7891 = vmatpush1.msra.mxu0 0.0
  %7892 = vmatprep.subr.mxu0 0.0
  %7893 = vmatpush1.msra.mxu0 0.0
  %7894 = vmatprep.mubr.f32.mxu0 0.0
  %7895 = vmatmul.mubr.f32.gmra.mrb[0].mxu0 %v7609
  %v7896 = vpop.f32.mrb[0].mxu0
  %v7897 = vadd.f32 0.0, %v7896
  %v7898 = vpop.f32.mrb[0].mxu0
  %7899 = vdwg.mxu0
  %7900 = vmatprep.subr.mxu0 0.0
  %7901 = vmatpush1.msra.mxu0 %v132
  %7902 = vmatprep.subr.mxu0 0.0
  %7903 = vmatpush1.msra.mxu0 %v133
  %7904 = vmatprep.subr.mxu0 0.0
  %7905 = vmatpush1.msra.mxu0 %v134
  %7906 = vmatprep.subr.mxu0 0.0
  %7907 = vmatpush1.msra.mxu0 %v135
  %7908 = vmatprep.subr.mxu0 0.0
  %7909 = vmatpush1.msra.mxu0 0.0
  %7910 = vmatprep.subr.mxu0 0.0
  %7911 = vmatpush1.msra.mxu0 0.0
  %7912 = vmatprep.subr.mxu0 0.0
  %7913 = vmatpush1.msra.mxu0 0.0
  %7914 = vmatprep.subr.mxu0 0.0
  %7915 = vmatpush1.msra.mxu0 0.0
  %7916 = vmatprep.subr.mxu0 0.0
  %7917 = vmatpush1.msra.mxu0 0.0
  %7918 = vmatprep.subr.mxu0 0.0
  %7919 = vmatpush1.msra.mxu0 0.0
  %7920 = vmatprep.subr.mxu0 0.0
  %7921 = vmatpush1.msra.mxu0 0.0
  %7922 = vmatprep.subr.mxu0 0.0
  %7923 = vmatpush1.msra.mxu0 0.0
  %7924 = vmatprep.subr.mxu0 0.0
  %7925 = vmatpush1.msra.mxu0 0.0
  %7926 = vmatprep.subr.mxu0 0.0
  %7927 = vmatpush1.msra.mxu0 0.0
  %7928 = vmatprep.subr.mxu0 0.0
  %7929 = vmatpush1.msra.mxu0 0.0
  %7930 = vmatprep.subr.mxu0 0.0
  %7931 = vmatpush1.msra.mxu0 0.0
  %7932 = vmatprep.subr.mxu0 0.0
  %7933 = vmatpush1.msra.mxu0 0.0
  %7934 = vmatprep.subr.mxu0 0.0
  %7935 = vmatpush1.msra.mxu0 0.0
  %7936 = vmatprep.subr.mxu0 0.0
  %7937 = vmatpush1.msra.mxu0 0.0
  %7938 = vmatprep.subr.mxu0 0.0
  %7939 = vmatpush1.msra.mxu0 0.0
  %7940 = vmatprep.subr.mxu0 0.0
  %7941 = vmatpush1.msra.mxu0 0.0
  %7942 = vmatprep.subr.mxu0 0.0
  %7943 = vmatpush1.msra.mxu0 0.0
  %7944 = vmatprep.subr.mxu0 0.0
  %7945 = vmatpush1.msra.mxu0 0.0
  %7946 = vmatprep.subr.mxu0 0.0
  %7947 = vmatpush1.msra.mxu0 0.0
  %7948 = vmatprep.subr.mxu0 0.0
  %7949 = vmatpush1.msra.mxu0 0.0
  %7950 = vmatprep.subr.mxu0 0.0
  %7951 = vmatpush1.msra.mxu0 0.0
  %7952 = vmatprep.subr.mxu0 0.0
  %7953 = vmatpush1.msra.mxu0 0.0
  %7954 = vmatprep.subr.mxu0 0.0
  %7955 = vmatpush1.msra.mxu0 0.0
  %7956 = vmatprep.subr.mxu0 0.0
  %7957 = vmatpush1.msra.mxu0 0.0
  %7958 = vmatprep.subr.mxu0 0.0
  %7959 = vmatpush1.msra.mxu0 0.0
  %7960 = vmatprep.subr.mxu0 0.0
  %7961 = vmatpush1.msra.mxu0 0.0
  %7962 = vmatprep.subr.mxu0 0.0
  %7963 = vmatpush1.msra.mxu0 0.0
  %7964 = vmatprep.mubr.f32.mxu0 0.0
  %7965 = vmatmul.mubr.f32.gmra.mrb[0].mxu0 %v7682
  %v7966 = vpop.f32.mrb[0].mxu0
  %v7967 = vadd.f32 %v7897, %v7966
  %v7968 = vpop.f32.mrb[0].mxu0
  %7969 = vdwg.mxu0
  %7970 = vmatprep.subr.mxu0 0.0
  %7971 = vmatpush1.msra.mxu0 %v140
  %7972 = vmatprep.subr.mxu0 0.0
  %7973 = vmatpush1.msra.mxu0 %v141
  %7974 = vmatprep.subr.mxu0 0.0
  %7975 = vmatpush1.msra.mxu0 0.0
  %7976 = vmatprep.subr.mxu0 0.0
  %7977 = vmatpush1.msra.mxu0 0.0
  %7978 = vmatprep.subr.mxu0 0.0
  %7979 = vmatpush1.msra.mxu0 0.0
  %7980 = vmatprep.subr.mxu0 0.0
  %7981 = vmatpush1.msra.mxu0 0.0
  %7982 = vmatprep.subr.mxu0 0.0
  %7983 = vmatpush1.msra.mxu0 0.0
  %7984 = vmatprep.subr.mxu0 0.0
  %7985 = vmatpush1.msra.mxu0 0.0
  %7986 = vmatprep.subr.mxu0 0.0
  %7987 = vmatpush1.msra.mxu0 0.0
  %7988 = vmatprep.subr.mxu0 0.0
  %7989 = vmatpush1.msra.mxu0 0.0
  %7990 = vmatprep.subr.mxu0 0.0
  %7991 = vmatpush1.msra.mxu0 0.0
  %7992 = vmatprep.subr.mxu0 0.0
  %7993 = vmatpush1.msra.mxu0 0.0
  %7994 = vmatprep.subr.mxu0 0.0
  %7995 = vmatpush1.msra.mxu0 0.0
  %7996 = vmatprep.subr.mxu0 0.0
  %7997 = vmatpush1.msra.mxu0 0.0
  %7998 = vmatprep.subr.mxu0 0.0
  %7999 = vmatpush1.msra.mxu0 0.0
  %8000 = vmatprep.subr.mxu0 0.0
  %8001 = vmatpush1.msra.mxu0 0.0
  %8002 = vmatprep.subr.mxu0 0.0
  %8003 = vmatpush1.msra.mxu0 0.0
  %8004 = vmatprep.subr.mxu0 0.0
  %8005 = vmatpush1.msra.mxu0 0.0
  %8006 = vmatprep.subr.mxu0 0.0
  %8007 = vmatpush1.msra.mxu0 0.0
  %8008 = vmatprep.subr.mxu0 0.0
  %8009 = vmatpush1.msra.mxu0 0.0
  %8010 = vmatprep.subr.mxu0 0.0
  %8011 = vmatpush1.msra.mxu0 0.0
  %8012 = vmatprep.subr.mxu0 0.0
  %8013 = vmatpush1.msra.mxu0 0.0
  %8014 = vmatprep.subr.mxu0 0.0
  %8015 = vmatpush1.msra.mxu0 0.0
  %8016 = vmatprep.subr.mxu0 0.0
  %8017 = vmatpush1.msra.mxu0 0.0
  %8018 = vmatprep.subr.mxu0 0.0
  %8019 = vmatpush1.msra.mxu0 0.0
  %8020 = vmatprep.subr.mxu0 0.0
  %8021 = vmatpush1.msra.mxu0 0.0
  %8022 = vmatprep.subr.mxu0 0.0
  %8023 = vmatpush1.msra.mxu0 0.0
  %8024 = vmatprep.subr.mxu0 0.0
  %8025 = vmatpush1.msra.mxu0 0.0
  %8026 = vmatprep.subr.mxu0 0.0
  %8027 = vmatpush1.msra.mxu0 0.0
  %8028 = vmatprep.subr.mxu0 0.0
  %8029 = vmatpush1.msra.mxu0 0.0
  %8030 = vmatprep.subr.mxu0 0.0
  %8031 = vmatpush1.msra.mxu0 0.0
  %8032 = vmatprep.subr.mxu0 0.0
  %8033 = vmatpush1.msra.mxu0 0.0
  %8034 = vmatprep.mubr.f32.mxu0 0.0
  %8035 = vmatmul.mubr.f32.gmra.mrb[0].mxu0 %v6966
  %v8036 = vpop.f32.mrb[0].mxu0
  %v8037 = vadd.f32 0.0, %v8036
  %v8038 = vpop.f32.mrb[0].mxu0
  %8039 = vdwg.mxu0
  %v8040 = vadd.f32 %v7967, %v8037
  %v8041 = vadd.f32 %v8040, %v147
  %v8042 = vmax.f32 %v8041, 0.0
  %v8044 = vsel %vm581, %v8042, 0
  %8046 = vmatprep.subr.mxu0 0.0
  %8047 = vmatpush1.msra.mxu0 %v149
  %8048 = vmatprep.subr.mxu0 0.0
  %8049 = vmatpush1.msra.mxu0 %v150
  %8050 = vmatprep.subr.mxu0 0.0
  %8051 = vmatpush1.msra.mxu0 %v151
  %8052 = vmatprep.subr.mxu0 0.0
  %8053 = vmatpush1.msra.mxu0 %v152
  %8054 = vmatprep.subr.mxu0 0.0
  %8055 = vmatpush1.msra.mxu0 %v153
  %8056 = vmatprep.subr.mxu0 0.0
  %8057 = vmatpush1.msra.mxu0 %v154
  %8058 = vmatprep.subr.mxu0 0.0
  %8059 = vmatpush1.msra.mxu0 %v155
  %8060 = vmatprep.subr.mxu0 0.0
  %8061 = vmatpush1.msra.mxu0 %v156
  %8062 = vmatprep.subr.mxu0 0.0
  %8063 = vmatpush1.msra.mxu0 0.0
  %8064 = vmatprep.subr.mxu0 0.0
  %8065 = vmatpush1.msra.mxu0 0.0
  %8066 = vmatprep.subr.mxu0 0.0
  %8067 = vmatpush1.msra.mxu0 0.0
  %8068 = vmatprep.subr.mxu0 0.0
  %8069 = vmatpush1.msra.mxu0 0.0
  %8070 = vmatprep.subr.mxu0 0.0
  %8071 = vmatpush1.msra.mxu0 0.0
  %8072 = vmatprep.subr.mxu0 0.0
  %8073 = vmatpush1.msra.mxu0 0.0
  %8074 = vmatprep.subr.mxu0 0.0
  %8075 = vmatpush1.msra.mxu0 0.0
  %8076 = vmatprep.subr.mxu0 0.0
  %8077 = vmatpush1.msra.mxu0 0.0
  %8078 = vmatprep.subr.mxu0 0.0
  %8079 = vmatpush1.msra.mxu0 0.0
  %8080 = vmatprep.subr.mxu0 0.0
  %8081 = vmatpush1.msra.mxu0 0.0
  %8082 = vmatprep.subr.mxu0 0.0
  %8083 = vmatpush1.msra.mxu0 0.0
  %8084 = vmatprep.subr.mxu0 0.0
  %8085 = vmatpush1.msra.mxu0 0.0
  %8086 = vmatprep.subr.mxu0 0.0
  %8087 = vmatpush1.msra.mxu0 0.0
  %8088 = vmatprep.subr.mxu0 0.0
  %8089 = vmatpush1.msra.mxu0 0.0
  %8090 = vmatprep.subr.mxu0 0.0
  %8091 = vmatpush1.msra.mxu0 0.0
  %8092 = vmatprep.subr.mxu0 0.0
  %8093 = vmatpush1.msra.mxu0 0.0
  %8094 = vmatprep.subr.mxu0 0.0
  %8095 = vmatpush1.msra.mxu0 0.0
  %8096 = vmatprep.subr.mxu0 0.0
  %8097 = vmatpush1.msra.mxu0 0.0
  %8098 = vmatprep.subr.mxu0 0.0
  %8099 = vmatpush1.msra.mxu0 0.0
  %8100 = vmatprep.subr.mxu0 0.0
  %8101 = vmatpush1.msra.mxu0 0.0
  %8102 = vmatprep.subr.mxu0 0.0
  %8103 = vmatpush1.msra.mxu0 0.0
  %8104 = vmatprep.subr.mxu0 0.0
  %8105 = vmatpush1.msra.mxu0 0.0
  %8106 = vmatprep.subr.mxu0 0.0
  %8107 = vmatpush1.msra.mxu0 0.0
  %8108 = vmatprep.subr.mxu0 0.0
  %8109 = vmatpush1.msra.mxu0 0.0
  %8110 = vmatprep.mubr.f32.mxu0 0.0
  %8111 = vmatmul.mubr.f32.gmra.mrb[0].mxu0 %v8044
  %v8112 = vpop.f32.mrb[0].mxu0
  %v8113 = vadd.f32 %v162, %v8112
  %v8114 = vpop.f32.mrb[0].mxu0
  %8115 = vdwg.mxu0
  %v8116 = vxor.u32 %v8113, 2147483648
  %v8117 = vmul.f32 %v8116, 1.442695
  %v8118 = vpow.pop %v8117
  %v8119 = vadd.f32 %v8118, 1.0
  %v8120 = vrcp.pop %v8119
  %v8121 = vmul.f32 1.0, %v8120
  %v8122 = vmul.f32 %v8121, %v6964
  %8124 = vrot.lane.b32.xlu0 %v7829, 16
  %v8125 = vpop.permute.xlu0 %8124
  %v8127 = vmul.f32 %v8121, %v8125
  %8129 = vrot.lane.b32.xlu0 %v8127, 112
  %v8130 = vpop.permute.xlu0 %8129
  %v8132 = vadd.f32 %v8122, %v8130
  %v8134 = vsel %vm959, %v8132, 0
  %8136 = vmatprep.subr.mxu0 0.0
  %8137 = vmatpush1.msra.mxu0 %v168
  %8138 = vmatprep.subr.mxu0 0.0
  %8139 = vmatpush1.msra.mxu0 %v169
  %8140 = vmatprep.subr.mxu0 0.0
  %8141 = vmatpush1.msra.mxu0 0.0
  %8142 = vmatprep.subr.mxu0 0.0
  %8143 = vmatpush1.msra.mxu0 0.0
  %8144 = vmatprep.subr.mxu0 0.0
  %8145 = vmatpush1.msra.mxu0 0.0
  %8146 = vmatprep.subr.mxu0 0.0
  %8147 = vmatpush1.msra.mxu0 0.0
  %8148 = vmatprep.subr.mxu0 0.0
  %8149 = vmatpush1.msra.mxu0 0.0
  %8150 = vmatprep.subr.mxu0 0.0
  %8151 = vmatpush1.msra.mxu0 0.0
  %8152 = vmatprep.subr.mxu0 0.0
  %8153 = vmatpush1.msra.mxu0 0.0
  %8154 = vmatprep.subr.mxu0 0.0
  %8155 = vmatpush1.msra.mxu0 0.0
  %8156 = vmatprep.subr.mxu0 0.0
  %8157 = vmatpush1.msra.mxu0 0.0
  %8158 = vmatprep.subr.mxu0 0.0
  %8159 = vmatpush1.msra.mxu0 0.0
  %8160 = vmatprep.subr.mxu0 0.0
  %8161 = vmatpush1.msra.mxu0 0.0
  %8162 = vmatprep.subr.mxu0 0.0
  %8163 = vmatpush1.msra.mxu0 0.0
  %8164 = vmatprep.subr.mxu0 0.0
  %8165 = vmatpush1.msra.mxu0 0.0
  %8166 = vmatprep.subr.mxu0 0.0
  %8167 = vmatpush1.msra.mxu0 0.0
  %8168 = vmatprep.subr.mxu0 0.0
  %8169 = vmatpush1.msra.mxu0 0.0
  %8170 = vmatprep.subr.mxu0 0.0
  %8171 = vmatpush1.msra.mxu0 0.0
  %8172 = vmatprep.subr.mxu0 0.0
  %8173 = vmatpush1.msra.mxu0 0.0
  %8174 = vmatprep.subr.mxu0 0.0
  %8175 = vmatpush1.msra.mxu0 0.0
  %8176 = vmatprep.subr.mxu0 0.0
  %8177 = vmatpush1.msra.mxu0 0.0
  %8178 = vmatprep.subr.mxu0 0.0
  %8179 = vmatpush1.msra.mxu0 0.0
  %8180 = vmatprep.subr.mxu0 0.0
  %8181 = vmatpush1.msra.mxu0 0.0
  %8182 = vmatprep.subr.mxu0 0.0
  %8183 = vmatpush1.msra.mxu0 0.0
  %8184 = vmatprep.subr.mxu0 0.0
  %8185 = vmatpush1.msra.mxu0 0.0
  %8186 = vmatprep.subr.mxu0 0.0
  %8187 = vmatpush1.msra.mxu0 0.0
  %8188 = vmatprep.subr.mxu0 0.0
  %8189 = vmatpush1.msra.mxu0 0.0
  %8190 = vmatprep.subr.mxu0 0.0
  %8191 = vmatpush1.msra.mxu0 0.0
  %8192 = vmatprep.subr.mxu0 0.0
  %8193 = vmatpush1.msra.mxu0 0.0
  %8194 = vmatprep.subr.mxu0 0.0
  %8195 = vmatpush1.msra.mxu0 0.0
  %8196 = vmatprep.subr.mxu0 0.0
  %8197 = vmatpush1.msra.mxu0 0.0
  %8198 = vmatprep.subr.mxu0 0.0
  %8199 = vmatpush1.msra.mxu0 0.0
  %8200 = vmatprep.mubr.f32.mxu0 0.0
  %8201 = vmatmul.mubr.f32.gmra.mrb[0].mxu0 %v8134
  %v8202 = vpop.f32.mrb[0].mxu0
  %v8203 = vadd.f32 0.0, %v8202
  %v8204 = vpop.f32.mrb[0].mxu0
  %8205 = vdwg.mxu0
  %8207 = vrot.lane.b32.xlu0 %v7371, 32
  %v8208 = vpop.permute.xlu0 %8207
  %v8209 = vsel %vm189, %v8208, 0
  %8211 = vmatprep.subr.mxu0 0.0
  %8212 = vmatpush1.msra.mxu0 %v164
  %8213 = vmatprep.subr.mxu0 0.0
  %8214 = vmatpush1.msra.mxu0 %v165
  %8215 = vmatprep.subr.mxu0 0.0
  %8216 = vmatpush1.msra.mxu0 %v166
  %8217 = vmatprep.subr.mxu0 0.0
  %8218 = vmatpush1.msra.mxu0 %v167
  %8219 = vmatprep.subr.mxu0 0.0
  %8220 = vmatpush1.msra.mxu0 0.0
  %8221 = vmatprep.subr.mxu0 0.0
  %8222 = vmatpush1.msra.mxu0 0.0
  %8223 = vmatprep.subr.mxu0 0.0
  %8224 = vmatpush1.msra.mxu0 0.0
  %8225 = vmatprep.subr.mxu0 0.0
  %8226 = vmatpush1.msra.mxu0 0.0
  %8227 = vmatprep.subr.mxu0 0.0
  %8228 = vmatpush1.msra.mxu0 0.0
  %8229 = vmatprep.subr.mxu0 0.0
  %8230 = vmatpush1.msra.mxu0 0.0
  %8231 = vmatprep.subr.mxu0 0.0
  %8232 = vmatpush1.msra.mxu0 0.0
  %8233 = vmatprep.subr.mxu0 0.0
  %8234 = vmatpush1.msra.mxu0 0.0
  %8235 = vmatprep.subr.mxu0 0.0
  %8236 = vmatpush1.msra.mxu0 0.0
  %8237 = vmatprep.subr.mxu0 0.0
  %8238 = vmatpush1.msra.mxu0 0.0
  %8239 = vmatprep.subr.mxu0 0.0
  %8240 = vmatpush1.msra.mxu0 0.0
  %8241 = vmatprep.subr.mxu0 0.0
  %8242 = vmatpush1.msra.mxu0 0.0
  %8243 = vmatprep.subr.mxu0 0.0
  %8244 = vmatpush1.msra.mxu0 0.0
  %8245 = vmatprep.subr.mxu0 0.0
  %8246 = vmatpush1.msra.mxu0 0.0
  %8247 = vmatprep.subr.mxu0 0.0
  %8248 = vmatpush1.msra.mxu0 0.0
  %8249 = vmatprep.subr.mxu0 0.0
  %8250 = vmatpush1.msra.mxu0 0.0
  %8251 = vmatprep.subr.mxu0 0.0
  %8252 = vmatpush1.msra.mxu0 0.0
  %8253 = vmatprep.subr.mxu0 0.0
  %8254 = vmatpush1.msra.mxu0 0.0
  %8255 = vmatprep.subr.mxu0 0.0
  %8256 = vmatpush1.msra.mxu0 0.0
  %8257 = vmatprep.subr.mxu0 0.0
  %8258 = vmatpush1.msra.mxu0 0.0
  %8259 = vmatprep.subr.mxu0 0.0
  %8260 = vmatpush1.msra.mxu0 0.0
  %8261 = vmatprep.subr.mxu0 0.0
  %8262 = vmatpush1.msra.mxu0 0.0
  %8263 = vmatprep.subr.mxu0 0.0
  %8264 = vmatpush1.msra.mxu0 0.0
  %8265 = vmatprep.subr.mxu0 0.0
  %8266 = vmatpush1.msra.mxu0 0.0
  %8267 = vmatprep.subr.mxu0 0.0
  %8268 = vmatpush1.msra.mxu0 0.0
  %8269 = vmatprep.subr.mxu0 0.0
  %8270 = vmatpush1.msra.mxu0 0.0
  %8271 = vmatprep.subr.mxu0 0.0
  %8272 = vmatpush1.msra.mxu0 0.0
  %8273 = vmatprep.subr.mxu0 0.0
  %8274 = vmatpush1.msra.mxu0 0.0
  %8275 = vmatprep.mubr.f32.mxu0 0.0
  %8276 = vmatmul.mubr.f32.gmra.mrb[0].mxu0 %v8209
  %v8277 = vpop.f32.mrb[0].mxu0
  %v8278 = vadd.f32 %v8203, %v8277
  %v8279 = vpop.f32.mrb[0].mxu0
  %8280 = vdwg.mxu0
  %v8281 = vadd.f32 %v8278, %v175
  %v8282 = vmax.f32 %v8281, 0.0
  %v8284 = vsel %vm189, %v8282, 0
  %8286 = vmatprep.subr.mxu0 0.0
  %8287 = vmatpush1.msra.mxu0 %v177
  %8288 = vmatprep.subr.mxu0 0.0
  %8289 = vmatpush1.msra.mxu0 %v178
  %8290 = vmatprep.subr.mxu0 0.0
  %8291 = vmatpush1.msra.mxu0 %v179
  %8292 = vmatprep.subr.mxu0 0.0
  %8293 = vmatpush1.msra.mxu0 %v180
  %8294 = vmatprep.subr.mxu0 0.0
  %8295 = vmatpush1.msra.mxu0 0.0
  %8296 = vmatprep.subr.mxu0 0.0
  %8297 = vmatpush1.msra.mxu0 0.0
  %8298 = vmatprep.subr.mxu0 0.0
  %8299 = vmatpush1.msra.mxu0 0.0
  %8300 = vmatprep.subr.mxu0 0.0
  %8301 = vmatpush1.msra.mxu0 0.0
  %8302 = vmatprep.subr.mxu0 0.0
  %8303 = vmatpush1.msra.mxu0 0.0
  %8304 = vmatprep.subr.mxu0 0.0
  %8305 = vmatpush1.msra.mxu0 0.0
  %8306 = vmatprep.subr.mxu0 0.0
  %8307 = vmatpush1.msra.mxu0 0.0
  %8308 = vmatprep.subr.mxu0 0.0
  %8309 = vmatpush1.msra.mxu0 0.0
  %8310 = vmatprep.subr.mxu0 0.0
  %8311 = vmatpush1.msra.mxu0 0.0
  %8312 = vmatprep.subr.mxu0 0.0
  %8313 = vmatpush1.msra.mxu0 0.0
  %8314 = vmatprep.subr.mxu0 0.0
  %8315 = vmatpush1.msra.mxu0 0.0
  %8316 = vmatprep.subr.mxu0 0.0
  %8317 = vmatpush1.msra.mxu0 0.0
  %8318 = vmatprep.subr.mxu0 0.0
  %8319 = vmatpush1.msra.mxu0 0.0
  %8320 = vmatprep.subr.mxu0 0.0
  %8321 = vmatpush1.msra.mxu0 0.0
  %8322 = vmatprep.subr.mxu0 0.0
  %8323 = vmatpush1.msra.mxu0 0.0
  %8324 = vmatprep.subr.mxu0 0.0
  %8325 = vmatpush1.msra.mxu0 0.0
  %8326 = vmatprep.subr.mxu0 0.0
  %8327 = vmatpush1.msra.mxu0 0.0
  %8328 = vmatprep.subr.mxu0 0.0
  %8329 = vmatpush1.msra.mxu0 0.0
  %8330 = vmatprep.subr.mxu0 0.0
  %8331 = vmatpush1.msra.mxu0 0.0
  %8332 = vmatprep.subr.mxu0 0.0
  %8333 = vmatpush1.msra.mxu0 0.0
  %8334 = vmatprep.subr.mxu0 0.0
  %8335 = vmatpush1.msra.mxu0 0.0
  %8336 = vmatprep.subr.mxu0 0.0
  %8337 = vmatpush1.msra.mxu0 0.0
  %8338 = vmatprep.subr.mxu0 0.0
  %8339 = vmatpush1.msra.mxu0 0.0
  %8340 = vmatprep.subr.mxu0 0.0
  %8341 = vmatpush1.msra.mxu0 0.0
  %8342 = vmatprep.subr.mxu0 0.0
  %8343 = vmatpush1.msra.mxu0 0.0
  %8344 = vmatprep.subr.mxu0 0.0
  %8345 = vmatpush1.msra.mxu0 0.0
  %8346 = vmatprep.subr.mxu0 0.0
  %8347 = vmatpush1.msra.mxu0 0.0
  %8348 = vmatprep.subr.mxu0 0.0
  %8349 = vmatpush1.msra.mxu0 0.0
  %8350 = vmatprep.mubr.f32.mxu0 0.0
  %8351 = vmatmul.mubr.f32.gmra.mrb[0].mxu0 %v8284
  %v8352 = vpop.f32.mrb[0].mxu0
  %v8353 = vadd.f32 %v186, %v8352
  %v8354 = vpop.f32.mrb[0].mxu0
  %8355 = vdwg.mxu0
  %v8356 = vsel %vm1348, %v8353, -inf
  %8357 = vmax.xlane.f32.xlu0 %v8356
  %v8358 = vpop.xlane.xlu0 %8357
  %v8359 = vsub.f32 %v8353, %v8358
  %v8360 = vmul.f32 %v8359, 1.442695
  %v8361 = vpow.pop %v8360
  %v8362 = vsel %vm1348, %v8361, 0.0
  %8363 = vadd.xlane.f32.xlu0 %v8362
  %v8364 = vpop.xlane.xlu0 %8363
  %v8365 = vlog2.pop %v8364
  %v8366 = vmul.f32 %v8365, 0.6931472
  %v8367 = vsub.f32 %v8359, %v8366
  %s8368 = scalar_lea.vmem %s20, 48
  %8369 = vst.msk [vmem:[%s8368] sm:$0xff] %vm1348, %v8367
  %s8370 = scalar_lea.vmem %s0, 56
  %v8371 = vld [vmem:[%s8370] sm:$0xff]
  %8372 = vmatprep.subr.mxu0 0.0
  %8373 = vmatpush1.msra.mxu0 %v69
  %8374 = vmatprep.subr.mxu0 0.0
  %8375 = vmatpush1.msra.mxu0 %v70
  %8376 = vmatprep.subr.mxu0 0.0
  %8377 = vmatpush1.msra.mxu0 %v71
  %8378 = vmatprep.subr.mxu0 0.0
  %8379 = vmatpush1.msra.mxu0 %v72
  %8380 = vmatprep.subr.mxu0 0.0
  %8381 = vmatpush1.msra.mxu0 0.0
  %8382 = vmatprep.subr.mxu0 0.0
  %8383 = vmatpush1.msra.mxu0 0.0
  %8384 = vmatprep.subr.mxu0 0.0
  %8385 = vmatpush1.msra.mxu0 0.0
  %8386 = vmatprep.subr.mxu0 0.0
  %8387 = vmatpush1.msra.mxu0 0.0
  %8388 = vmatprep.subr.mxu0 0.0
  %8389 = vmatpush1.msra.mxu0 0.0
  %8390 = vmatprep.subr.mxu0 0.0
  %8391 = vmatpush1.msra.mxu0 0.0
  %8392 = vmatprep.subr.mxu0 0.0
  %8393 = vmatpush1.msra.mxu0 0.0
  %8394 = vmatprep.subr.mxu0 0.0
  %8395 = vmatpush1.msra.mxu0 0.0
  %8396 = vmatprep.subr.mxu0 0.0
  %8397 = vmatpush1.msra.mxu0 0.0
  %8398 = vmatprep.subr.mxu0 0.0
  %8399 = vmatpush1.msra.mxu0 0.0
  %8400 = vmatprep.subr.mxu0 0.0
  %8401 = vmatpush1.msra.mxu0 0.0
  %8402 = vmatprep.subr.mxu0 0.0
  %8403 = vmatpush1.msra.mxu0 0.0
  %8404 = vmatprep.subr.mxu0 0.0
  %8405 = vmatpush1.msra.mxu0 0.0
  %8406 = vmatprep.subr.mxu0 0.0
  %8407 = vmatpush1.msra.mxu0 0.0
  %8408 = vmatprep.subr.mxu0 0.0
  %8409 = vmatpush1.msra.mxu0 0.0
  %8410 = vmatprep.subr.mxu0 0.0
  %8411 = vmatpush1.msra.mxu0 0.0
  %8412 = vmatprep.subr.mxu0 0.0
  %8413 = vmatpush1.msra.mxu0 0.0
  %8414 = vmatprep.subr.mxu0 0.0
  %8415 = vmatpush1.msra.mxu0 0.0
  %8416 = vmatprep.subr.mxu0 0.0
  %8417 = vmatpush1.msra.mxu0 0.0
  %8418 = vmatprep.subr.mxu0 0.0
  %8419 = vmatpush1.msra.mxu0 0.0
  %8420 = vmatprep.subr.mxu0 0.0
  %8421 = vmatpush1.msra.mxu0 0.0
  %8422 = vmatprep.subr.mxu0 0.0
  %8423 = vmatpush1.msra.mxu0 0.0
  %8424 = vmatprep.subr.mxu0 0.0
  %8425 = vmatpush1.msra.mxu0 0.0
  %8426 = vmatprep.subr.mxu0 0.0
  %8427 = vmatpush1.msra.mxu0 0.0
  %8428 = vmatprep.subr.mxu0 0.0
  %8429 = vmatpush1.msra.mxu0 0.0
  %8430 = vmatprep.subr.mxu0 0.0
  %8431 = vmatpush1.msra.mxu0 0.0
  %8432 = vmatprep.subr.mxu0 0.0
  %8433 = vmatpush1.msra.mxu0 0.0
  %8434 = vmatprep.subr.mxu0 0.0
  %8435 = vmatpush1.msra.mxu0 0.0
  %8436 = vmatprep.mubr.f32.mxu0 0.0
  %8437 = vmatmul.mubr.f32.gmra.mrb[0].mxu0 %v8209
  %v8438 = vpop.f32.mrb[0].mxu0
  %v8439 = vadd.f32 0.0, %v8438
  %v8440 = vpop.f32.mrb[0].mxu0
  %8441 = vdwg.mxu0
  %v8443 = vsel %vm189, %v8371, 0
  %8445 = vmatprep.subr.mxu0 0.0
  %8446 = vmatpush1.msra.mxu0 %v65
  %8447 = vmatprep.subr.mxu0 0.0
  %8448 = vmatpush1.msra.mxu0 %v66
  %8449 = vmatprep.subr.mxu0 0.0
  %8450 = vmatpush1.msra.mxu0 %v67
  %8451 = vmatprep.subr.mxu0 0.0
  %8452 = vmatpush1.msra.mxu0 %v68
  %8453 = vmatprep.subr.mxu0 0.0
  %8454 = vmatpush1.msra.mxu0 0.0
  %8455 = vmatprep.subr.mxu0 0.0
  %8456 = vmatpush1.msra.mxu0 0.0
  %8457 = vmatprep.subr.mxu0 0.0
  %8458 = vmatpush1.msra.mxu0 0.0
  %8459 = vmatprep.subr.mxu0 0.0
  %8460 = vmatpush1.msra.mxu0 0.0
  %8461 = vmatprep.subr.mxu0 0.0
  %8462 = vmatpush1.msra.mxu0 0.0
  %8463 = vmatprep.subr.mxu0 0.0
  %8464 = vmatpush1.msra.mxu0 0.0
  %8465 = vmatprep.subr.mxu0 0.0
  %8466 = vmatpush1.msra.mxu0 0.0
  %8467 = vmatprep.subr.mxu0 0.0
  %8468 = vmatpush1.msra.mxu0 0.0
  %8469 = vmatprep.subr.mxu0 0.0
  %8470 = vmatpush1.msra.mxu0 0.0
  %8471 = vmatprep.subr.mxu0 0.0
  %8472 = vmatpush1.msra.mxu0 0.0
  %8473 = vmatprep.subr.mxu0 0.0
  %8474 = vmatpush1.msra.mxu0 0.0
  %8475 = vmatprep.subr.mxu0 0.0
  %8476 = vmatpush1.msra.mxu0 0.0
  %8477 = vmatprep.subr.mxu0 0.0
  %8478 = vmatpush1.msra.mxu0 0.0
  %8479 = vmatprep.subr.mxu0 0.0
  %8480 = vmatpush1.msra.mxu0 0.0
  %8481 = vmatprep.subr.mxu0 0.0
  %8482 = vmatpush1.msra.mxu0 0.0
  %8483 = vmatprep.subr.mxu0 0.0
  %8484 = vmatpush1.msra.mxu0 0.0
  %8485 = vmatprep.subr.mxu0 0.0
  %8486 = vmatpush1.msra.mxu0 0.0
  %8487 = vmatprep.subr.mxu0 0.0
  %8488 = vmatpush1.msra.mxu0 0.0
  %8489 = vmatprep.subr.mxu0 0.0
  %8490 = vmatpush1.msra.mxu0 0.0
  %8491 = vmatprep.subr.mxu0 0.0
  %8492 = vmatpush1.msra.mxu0 0.0
  %8493 = vmatprep.subr.mxu0 0.0
  %8494 = vmatpush1.msra.mxu0 0.0
  %8495 = vmatprep.subr.mxu0 0.0
  %8496 = vmatpush1.msra.mxu0 0.0
  %8497 = vmatprep.subr.mxu0 0.0
  %8498 = vmatpush1.msra.mxu0 0.0
  %8499 = vmatprep.subr.mxu0 0.0
  %8500 = vmatpush1.msra.mxu0 0.0
  %8501 = vmatprep.subr.mxu0 0.0
  %8502 = vmatpush1.msra.mxu0 0.0
  %8503 = vmatprep.subr.mxu0 0.0
  %8504 = vmatpush1.msra.mxu0 0.0
  %8505 = vmatprep.subr.mxu0 0.0
  %8506 = vmatpush1.msra.mxu0 0.0
  %8507 = vmatprep.subr.mxu0 0.0
  %8508 = vmatpush1.msra.mxu0 0.0
  %8509 = vmatprep.mubr.f32.mxu0 0.0
  %8510 = vmatmul.mubr.f32.gmra.mrb[0].mxu0 %v8443
  %v8511 = vpop.f32.mrb[0].mxu0
  %v8512 = vadd.f32 %v8439, %v8511
  %v8513 = vpop.f32.mrb[0].mxu0
  %8514 = vdwg.mxu0
  %v8515 = vadd.f32 %v8512, %v78
  %v8516 = vxor.u32 %v8515, 2147483648
  %v8517 = vmul.f32 %v8516, 1.442695
  %v8518 = vpow.pop %v8517
  %v8519 = vadd.f32 %v8518, 1.0
  %v8520 = vrcp.pop %v8519
  %v8521 = vmul.f32 1.0, %v8520
  %v8522 = vtanh.pop %v8515
  %v8523 = vmul.f32 %v8521, %v7365
  %8525 = vrot.lane.b32.xlu0 %v8522, 64
  %v8526 = vpop.permute.xlu0 %8525
  %v8528 = vmul.f32 %v8521, %v8526
  %8530 = vrot.lane.b32.xlu0 %v8528, 32
  %v8531 = vpop.permute.xlu0 %8530
  %v8533 = vadd.f32 %v8523, %v8531
  %v8534 = vtanh.pop %v8533
  %8536 = vrot.lane.b32.xlu0 %v8534, 64
  %v8537 = vpop.permute.xlu0 %8536
  %v8539 = vmul.f32 %v8521, %v8537
  %8541 = vrot.lane.b32.xlu0 %v8533, 96
  %v8542 = vpop.permute.xlu0 %8541
  %v8543 = vsel %vm189, %v8542, 0
  %8545 = vmatprep.subr.mxu0 0.0
  %8546 = vmatpush1.msra.mxu0 %v84
  %8547 = vmatprep.subr.mxu0 0.0
  %8548 = vmatpush1.msra.mxu0 %v85
  %8549 = vmatprep.subr.mxu0 0.0
  %8550 = vmatpush1.msra.mxu0 %v86
  %8551 = vmatprep.subr.mxu0 0.0
  %8552 = vmatpush1.msra.mxu0 %v87
  %8553 = vmatprep.subr.mxu0 0.0
  %8554 = vmatpush1.msra.mxu0 0.0
  %8555 = vmatprep.subr.mxu0 0.0
  %8556 = vmatpush1.msra.mxu0 0.0
  %8557 = vmatprep.subr.mxu0 0.0
  %8558 = vmatpush1.msra.mxu0 0.0
  %8559 = vmatprep.subr.mxu0 0.0
  %8560 = vmatpush1.msra.mxu0 0.0
  %8561 = vmatprep.subr.mxu0 0.0
  %8562 = vmatpush1.msra.mxu0 0.0
  %8563 = vmatprep.subr.mxu0 0.0
  %8564 = vmatpush1.msra.mxu0 0.0
  %8565 = vmatprep.subr.mxu0 0.0
  %8566 = vmatpush1.msra.mxu0 0.0
  %8567 = vmatprep.subr.mxu0 0.0
  %8568 = vmatpush1.msra.mxu0 0.0
  %8569 = vmatprep.subr.mxu0 0.0
  %8570 = vmatpush1.msra.mxu0 0.0
  %8571 = vmatprep.subr.mxu0 0.0
  %8572 = vmatpush1.msra.mxu0 0.0
  %8573 = vmatprep.subr.mxu0 0.0
  %8574 = vmatpush1.msra.mxu0 0.0
  %8575 = vmatprep.subr.mxu0 0.0
  %8576 = vmatpush1.msra.mxu0 0.0
  %8577 = vmatprep.subr.mxu0 0.0
  %8578 = vmatpush1.msra.mxu0 0.0
  %8579 = vmatprep.subr.mxu0 0.0
  %8580 = vmatpush1.msra.mxu0 0.0
  %8581 = vmatprep.subr.mxu0 0.0
  %8582 = vmatpush1.msra.mxu0 0.0
  %8583 = vmatprep.subr.mxu0 0.0
  %8584 = vmatpush1.msra.mxu0 0.0
  %8585 = vmatprep.subr.mxu0 0.0
  %8586 = vmatpush1.msra.mxu0 0.0
  %8587 = vmatprep.subr.mxu0 0.0
  %8588 = vmatpush1.msra.mxu0 0.0
  %8589 = vmatprep.subr.mxu0 0.0
  %8590 = vmatpush1.msra.mxu0 0.0
  %8591 = vmatprep.subr.mxu0 0.0
  %8592 = vmatpush1.msra.mxu0 0.0
  %8593 = vmatprep.subr.mxu0 0.0
  %8594 = vmatpush1.msra.mxu0 0.0
  %8595 = vmatprep.subr.mxu0 0.0
  %8596 = vmatpush1.msra.mxu0 0.0
  %8597 = vmatprep.subr.mxu0 0.0
  %8598 = vmatpush1.msra.mxu0 0.0
  %8599 = vmatprep.subr.mxu0 0.0
  %8600 = vmatpush1.msra.mxu0 0.0
  %8601 = vmatprep.subr.mxu0 0.0
  %8602 = vmatpush1.msra.mxu0 0.0
  %8603 = vmatprep.subr.mxu0 0.0
  %8604 = vmatpush1.msra.mxu0 0.0
  %8605 = vmatprep.subr.mxu0 0.0
  %8606 = vmatpush1.msra.mxu0 0.0
  %8607 = vmatprep.subr.mxu0 0.0
  %8608 = vmatpush1.msra.mxu0 0.0
  %8609 = vmatprep.mubr.f32.mxu0 0.0
  %8610 = vmatmul.mubr.f32.gmra.mrb[0].mxu0 %v8543
  %v8611 = vpop.f32.mrb[0].mxu0
  %v8612 = vadd.f32 0.0, %v8611
  %v8613 = vpop.f32.mrb[0].mxu0
  %8614 = vdwg.mxu0
  %8615 = vmatprep.subr.mxu0 0.0
  %8616 = vmatpush1.msra.mxu0 %v80
  %8617 = vmatprep.subr.mxu0 0.0
  %8618 = vmatpush1.msra.mxu0 %v81
  %8619 = vmatprep.subr.mxu0 0.0
  %8620 = vmatpush1.msra.mxu0 %v82
  %8621 = vmatprep.subr.mxu0 0.0
  %8622 = vmatpush1.msra.mxu0 %v83
  %8623 = vmatprep.subr.mxu0 0.0
  %8624 = vmatpush1.msra.mxu0 0.0
  %8625 = vmatprep.subr.mxu0 0.0
  %8626 = vmatpush1.msra.mxu0 0.0
  %8627 = vmatprep.subr.mxu0 0.0
  %8628 = vmatpush1.msra.mxu0 0.0
  %8629 = vmatprep.subr.mxu0 0.0
  %8630 = vmatpush1.msra.mxu0 0.0
  %8631 = vmatprep.subr.mxu0 0.0
  %8632 = vmatpush1.msra.mxu0 0.0
  %8633 = vmatprep.subr.mxu0 0.0
  %8634 = vmatpush1.msra.mxu0 0.0
  %8635 = vmatprep.subr.mxu0 0.0
  %8636 = vmatpush1.msra.mxu0 0.0
  %8637 = vmatprep.subr.mxu0 0.0
  %8638 = vmatpush1.msra.mxu0 0.0
  %8639 = vmatprep.subr.mxu0 0.0
  %8640 = vmatpush1.msra.mxu0 0.0
  %8641 = vmatprep.subr.mxu0 0.0
  %8642 = vmatpush1.msra.mxu0 0.0
  %8643 = vmatprep.subr.mxu0 0.0
  %8644 = vmatpush1.msra.mxu0 0.0
  %8645 = vmatprep.subr.mxu0 0.0
  %8646 = vmatpush1.msra.mxu0 0.0
  %8647 = vmatprep.subr.mxu0 0.0
  %8648 = vmatpush1.msra.mxu0 0.0
  %8649 = vmatprep.subr.mxu0 0.0
  %8650 = vmatpush1.msra.mxu0 0.0
  %8651 = vmatprep.subr.mxu0 0.0
  %8652 = vmatpush1.msra.mxu0 0.0
  %8653 = vmatprep.subr.mxu0 0.0
  %8654 = vmatpush1.msra.mxu0 0.0
  %8655 = vmatprep.subr.mxu0 0.0
  %8656 = vmatpush1.msra.mxu0 0.0
  %8657 = vmatprep.subr.mxu0 0.0
  %8658 = vmatpush1.msra.mxu0 0.0
  %8659 = vmatprep.subr.mxu0 0.0
  %8660 = vmatpush1.msra.mxu0 0.0
  %8661 = vmatprep.subr.mxu0 0.0
  %8662 = vmatpush1.msra.mxu0 0.0
  %8663 = vmatprep.subr.mxu0 0.0
  %8664 = vmatpush1.msra.mxu0 0.0
  %8665 = vmatprep.subr.mxu0 0.0
  %8666 = vmatpush1.msra.mxu0 0.0
  %8667 = vmatprep.subr.mxu0 0.0
  %8668 = vmatpush1.msra.mxu0 0.0
  %8669 = vmatprep.subr.mxu0 0.0
  %8670 = vmatpush1.msra.mxu0 0.0
  %8671 = vmatprep.subr.mxu0 0.0
  %8672 = vmatpush1.msra.mxu0 0.0
  %8673 = vmatprep.subr.mxu0 0.0
  %8674 = vmatpush1.msra.mxu0 0.0
  %8675 = vmatprep.subr.mxu0 0.0
  %8676 = vmatpush1.msra.mxu0 0.0
  %8677 = vmatprep.subr.mxu0 0.0
  %8678 = vmatpush1.msra.mxu0 0.0
  %8679 = vmatprep.mubr.f32.mxu0 0.0
  %8680 = vmatmul.mubr.f32.gmra.mrb[0].mxu0 %v7375
  %v8681 = vpop.f32.mrb[0].mxu0
  %v8682 = vadd.f32 %v8612, %v8681
  %v8683 = vpop.f32.mrb[0].mxu0
  %8684 = vdwg.mxu0
  %v8685 = vadd.f32 %v8682, %v93
  %v8686 = vmax.f32 %v8685, 0.0
  %v8688 = vsel %vm189, %v8686, 0
  %8690 = vmatprep.subr.mxu0 0.0
  %8691 = vmatpush1.msra.mxu0 %v95
  %8692 = vmatprep.subr.mxu0 0.0
  %8693 = vmatpush1.msra.mxu0 %v96
  %8694 = vmatprep.subr.mxu0 0.0
  %8695 = vmatpush1.msra.mxu0 %v97
  %8696 = vmatprep.subr.mxu0 0.0
  %8697 = vmatpush1.msra.mxu0 %v98
  %8698 = vmatprep.subr.mxu0 0.0
  %8699 = vmatpush1.msra.mxu0 0.0
  %8700 = vmatprep.subr.mxu0 0.0
  %8701 = vmatpush1.msra.mxu0 0.0
  %8702 = vmatprep.subr.mxu0 0.0
  %8703 = vmatpush1.msra.mxu0 0.0
  %8704 = vmatprep.subr.mxu0 0.0
  %8705 = vmatpush1.msra.mxu0 0.0
  %8706 = vmatprep.subr.mxu0 0.0
  %8707 = vmatpush1.msra.mxu0 0.0
  %8708 = vmatprep.subr.mxu0 0.0
  %8709 = vmatpush1.msra.mxu0 0.0
  %8710 = vmatprep.subr.mxu0 0.0
  %8711 = vmatpush1.msra.mxu0 0.0
  %8712 = vmatprep.subr.mxu0 0.0
  %8713 = vmatpush1.msra.mxu0 0.0
  %8714 = vmatprep.subr.mxu0 0.0
  %8715 = vmatpush1.msra.mxu0 0.0
  %8716 = vmatprep.subr.mxu0 0.0
  %8717 = vmatpush1.msra.mxu0 0.0
  %8718 = vmatprep.subr.mxu0 0.0
  %8719 = vmatpush1.msra.mxu0 0.0
  %8720 = vmatprep.subr.mxu0 0.0
  %8721 = vmatpush1.msra.mxu0 0.0
  %8722 = vmatprep.subr.mxu0 0.0
  %8723 = vmatpush1.msra.mxu0 0.0
  %8724 = vmatprep.subr.mxu0 0.0
  %8725 = vmatpush1.msra.mxu0 0.0
  %8726 = vmatprep.subr.mxu0 0.0
  %8727 = vmatpush1.msra.mxu0 0.0
  %8728 = vmatprep.subr.mxu0 0.0
  %8729 = vmatpush1.msra.mxu0 0.0
  %8730 = vmatprep.subr.mxu0 0.0
  %8731 = vmatpush1.msra.mxu0 0.0
  %8732 = vmatprep.subr.mxu0 0.0
  %8733 = vmatpush1.msra.mxu0 0.0
  %8734 = vmatprep.subr.mxu0 0.0
  %8735 = vmatpush1.msra.mxu0 0.0
  %8736 = vmatprep.subr.mxu0 0.0
  %8737 = vmatpush1.msra.mxu0 0.0
  %8738 = vmatprep.subr.mxu0 0.0
  %8739 = vmatpush1.msra.mxu0 0.0
  %8740 = vmatprep.subr.mxu0 0.0
  %8741 = vmatpush1.msra.mxu0 0.0
  %8742 = vmatprep.subr.mxu0 0.0
  %8743 = vmatpush1.msra.mxu0 0.0
  %8744 = vmatprep.subr.mxu0 0.0
  %8745 = vmatpush1.msra.mxu0 0.0
  %8746 = vmatprep.subr.mxu0 0.0
  %8747 = vmatpush1.msra.mxu0 0.0
  %8748 = vmatprep.subr.mxu0 0.0
  %8749 = vmatpush1.msra.mxu0 0.0
  %8750 = vmatprep.subr.mxu0 0.0
  %8751 = vmatpush1.msra.mxu0 0.0
  %8752 = vmatprep.subr.mxu0 0.0
  %8753 = vmatpush1.msra.mxu0 0.0
  %8754 = vmatprep.mubr.f32.mxu0 0.0
  %8755 = vmatmul.mubr.f32.gmra.mrb[0].mxu0 %v8688
  %v8756 = vpop.f32.mrb[0].mxu0
  %v8757 = vadd.f32 %v104, %v8756
  %v8758 = vpop.f32.mrb[0].mxu0
  %8759 = vdwg.mxu0
  %v8760 = vsel %vm581, %v8757, -inf
  %8761 = vmax.xlane.f32.xlu0 %v8760
  %v8762 = vpop.xlane.xlu0 %8761
  %v8763 = vsub.f32 %v8757, %v8762
  %v8764 = vmul.f32 %v8763, 1.442695
  %v8765 = vpow.pop %v8764
  %v8766 = vsel %vm581, %v8765, 0.0
  %8767 = vadd.xlane.f32.xlu0 %v8766
  %v8768 = vpop.xlane.xlu0 %8767
  %v8769 = vrcp.pop %v8768
  %v8770 = vmul.f32 %v8765, %v8769
  %v8772 = vmul.f32 %v8770, %v7374
  %v8773 = vmul.f32 %v8770, %v8533
  %8775 = vrot.lane.b32.xlu0 %v8773, 96
  %v8776 = vpop.permute.xlu0 %8775
  %v8777 = vsel %vm189, %v8776, 0
  %8779 = vmatprep.subr.mxu0 0.0
  %8780 = vmatpush1.msra.mxu0 %v110
  %8781 = vmatprep.subr.mxu0 0.0
  %8782 = vmatpush1.msra.mxu0 %v111
  %8783 = vmatprep.subr.mxu0 0.0
  %8784 = vmatpush1.msra.mxu0 %v112
  %8785 = vmatprep.subr.mxu0 0.0
  %8786 = vmatpush1.msra.mxu0 %v113
  %8787 = vmatprep.subr.mxu0 0.0
  %8788 = vmatpush1.msra.mxu0 0.0
  %8789 = vmatprep.subr.mxu0 0.0
  %8790 = vmatpush1.msra.mxu0 0.0
  %8791 = vmatprep.subr.mxu0 0.0
  %8792 = vmatpush1.msra.mxu0 0.0
  %8793 = vmatprep.subr.mxu0 0.0
  %8794 = vmatpush1.msra.mxu0 0.0
  %8795 = vmatprep.subr.mxu0 0.0
  %8796 = vmatpush1.msra.mxu0 0.0
  %8797 = vmatprep.subr.mxu0 0.0
  %8798 = vmatpush1.msra.mxu0 0.0
  %8799 = vmatprep.subr.mxu0 0.0
  %8800 = vmatpush1.msra.mxu0 0.0
  %8801 = vmatprep.subr.mxu0 0.0
  %8802 = vmatpush1.msra.mxu0 0.0
  %8803 = vmatprep.subr.mxu0 0.0
  %8804 = vmatpush1.msra.mxu0 0.0
  %8805 = vmatprep.subr.mxu0 0.0
  %8806 = vmatpush1.msra.mxu0 0.0
  %8807 = vmatprep.subr.mxu0 0.0
  %8808 = vmatpush1.msra.mxu0 0.0
  %8809 = vmatprep.subr.mxu0 0.0
  %8810 = vmatpush1.msra.mxu0 0.0
  %8811 = vmatprep.subr.mxu0 0.0
  %8812 = vmatpush1.msra.mxu0 0.0
  %8813 = vmatprep.subr.mxu0 0.0
  %8814 = vmatpush1.msra.mxu0 0.0
  %8815 = vmatprep.subr.mxu0 0.0
  %8816 = vmatpush1.msra.mxu0 0.0
  %8817 = vmatprep.subr.mxu0 0.0
  %8818 = vmatpush1.msra.mxu0 0.0
  %8819 = vmatprep.subr.mxu0 0.0
  %8820 = vmatpush1.msra.mxu0 0.0
  %8821 = vmatprep.subr.mxu0 0.0
  %8822 = vmatpush1.msra.mxu0 0.0
  %8823 = vmatprep.subr.mxu0 0.0
  %8824 = vmatpush1.msra.mxu0 0.0
  %8825 = vmatprep.subr.mxu0 0.0
  %8826 = vmatpush1.msra.mxu0 0.0
  %8827 = vmatprep.subr.mxu0 0.0
  %8828 = vmatpush1.msra.mxu0 0.0
  %8829 = vmatprep.subr.mxu0 0.0
  %8830 = vmatpush1.msra.mxu0 0.0
  %8831 = vmatprep.subr.mxu0 0.0
  %8832 = vmatpush1.msra.mxu0 0.0
  %8833 = vmatprep.subr.mxu0 0.0
  %8834 = vmatpush1.msra.mxu0 0.0
  %8835 = vmatprep.subr.mxu0 0.0
  %8836 = vmatpush1.msra.mxu0 0.0
  %8837 = vmatprep.subr.mxu0 0.0
  %8838 = vmatpush1.msra.mxu0 0.0
  %8839 = vmatprep.subr.mxu0 0.0
  %8840 = vmatpush1.msra.mxu0 0.0
  %8841 = vmatprep.subr.mxu0 0.0
  %8842 = vmatpush1.msra.mxu0 0.0
  %8843 = vmatprep.mubr.f32.mxu0 0.0
  %8844 = vmatmul.mubr.f32.gmra.mrb[0].mxu0 %v8777
  %v8845 = vpop.f32.mrb[0].mxu0
  %v8846 = vadd.f32 0.0, %v8845
  %v8847 = vpop.f32.mrb[0].mxu0
  %8848 = vdwg.mxu0
  %v8850 = vsel %vm189, %v8772, 0
  %8852 = vmatprep.subr.mxu0 0.0
  %8853 = vmatpush1.msra.mxu0 %v106
  %8854 = vmatprep.subr.mxu0 0.0
  %8855 = vmatpush1.msra.mxu0 %v107
  %8856 = vmatprep.subr.mxu0 0.0
  %8857 = vmatpush1.msra.mxu0 %v108
  %8858 = vmatprep.subr.mxu0 0.0
  %8859 = vmatpush1.msra.mxu0 %v109
  %8860 = vmatprep.subr.mxu0 0.0
  %8861 = vmatpush1.msra.mxu0 0.0
  %8862 = vmatprep.subr.mxu0 0.0
  %8863 = vmatpush1.msra.mxu0 0.0
  %8864 = vmatprep.subr.mxu0 0.0
  %8865 = vmatpush1.msra.mxu0 0.0
  %8866 = vmatprep.subr.mxu0 0.0
  %8867 = vmatpush1.msra.mxu0 0.0
  %8868 = vmatprep.subr.mxu0 0.0
  %8869 = vmatpush1.msra.mxu0 0.0
  %8870 = vmatprep.subr.mxu0 0.0
  %8871 = vmatpush1.msra.mxu0 0.0
  %8872 = vmatprep.subr.mxu0 0.0
  %8873 = vmatpush1.msra.mxu0 0.0
  %8874 = vmatprep.subr.mxu0 0.0
  %8875 = vmatpush1.msra.mxu0 0.0
  %8876 = vmatprep.subr.mxu0 0.0
  %8877 = vmatpush1.msra.mxu0 0.0
  %8878 = vmatprep.subr.mxu0 0.0
  %8879 = vmatpush1.msra.mxu0 0.0
  %8880 = vmatprep.subr.mxu0 0.0
  %8881 = vmatpush1.msra.mxu0 0.0
  %8882 = vmatprep.subr.mxu0 0.0
  %8883 = vmatpush1.msra.mxu0 0.0
  %8884 = vmatprep.subr.mxu0 0.0
  %8885 = vmatpush1.msra.mxu0 0.0
  %8886 = vmatprep.subr.mxu0 0.0
  %8887 = vmatpush1.msra.mxu0 0.0
  %8888 = vmatprep.subr.mxu0 0.0
  %8889 = vmatpush1.msra.mxu0 0.0
  %8890 = vmatprep.subr.mxu0 0.0
  %8891 = vmatpush1.msra.mxu0 0.0
  %8892 = vmatprep.subr.mxu0 0.0
  %8893 = vmatpush1.msra.mxu0 0.0
  %8894 = vmatprep.subr.mxu0 0.0
  %8895 = vmatpush1.msra.mxu0 0.0
  %8896 = vmatprep.subr.mxu0 0.0
  %8897 = vmatpush1.msra.mxu0 0.0
  %8898 = vmatprep.subr.mxu0 0.0
  %8899 = vmatpush1.msra.mxu0 0.0
  %8900 = vmatprep.subr.mxu0 0.0
  %8901 = vmatpush1.msra.mxu0 0.0
  %8902 = vmatprep.subr.mxu0 0.0
  %8903 = vmatpush1.msra.mxu0 0.0
  %8904 = vmatprep.subr.mxu0 0.0
  %8905 = vmatpush1.msra.mxu0 0.0
  %8906 = vmatprep.subr.mxu0 0.0
  %8907 = vmatpush1.msra.mxu0 0.0
  %8908 = vmatprep.subr.mxu0 0.0
  %8909 = vmatpush1.msra.mxu0 0.0
  %8910 = vmatprep.subr.mxu0 0.0
  %8911 = vmatpush1.msra.mxu0 0.0
  %8912 = vmatprep.subr.mxu0 0.0
  %8913 = vmatpush1.msra.mxu0 0.0
  %8914 = vmatprep.subr.mxu0 0.0
  %8915 = vmatpush1.msra.mxu0 0.0
  %8916 = vmatprep.mubr.f32.mxu0 0.0
  %8917 = vmatmul.mubr.f32.gmra.mrb[0].mxu0 %v8850
  %v8918 = vpop.f32.mrb[0].mxu0
  %v8919 = vadd.f32 %v8846, %v8918
  %v8920 = vpop.f32.mrb[0].mxu0
  %8921 = vdwg.mxu0
  %v8922 = vadd.f32 %v8919, %v119
  %v8923 = vmax.f32 %v8922, 0.0
  %v8925 = vsel %vm189, %v8923, 0
  %8927 = vmatprep.subr.mxu0 0.0
  %8928 = vmatpush1.msra.mxu0 %v121
  %8929 = vmatprep.subr.mxu0 0.0
  %8930 = vmatpush1.msra.mxu0 %v122
  %8931 = vmatprep.subr.mxu0 0.0
  %8932 = vmatpush1.msra.mxu0 %v123
  %8933 = vmatprep.subr.mxu0 0.0
  %8934 = vmatpush1.msra.mxu0 %v124
  %8935 = vmatprep.subr.mxu0 0.0
  %8936 = vmatpush1.msra.mxu0 0.0
  %8937 = vmatprep.subr.mxu0 0.0
  %8938 = vmatpush1.msra.mxu0 0.0
  %8939 = vmatprep.subr.mxu0 0.0
  %8940 = vmatpush1.msra.mxu0 0.0
  %8941 = vmatprep.subr.mxu0 0.0
  %8942 = vmatpush1.msra.mxu0 0.0
  %8943 = vmatprep.subr.mxu0 0.0
  %8944 = vmatpush1.msra.mxu0 0.0
  %8945 = vmatprep.subr.mxu0 0.0
  %8946 = vmatpush1.msra.mxu0 0.0
  %8947 = vmatprep.subr.mxu0 0.0
  %8948 = vmatpush1.msra.mxu0 0.0
  %8949 = vmatprep.subr.mxu0 0.0
  %8950 = vmatpush1.msra.mxu0 0.0
  %8951 = vmatprep.subr.mxu0 0.0
  %8952 = vmatpush1.msra.mxu0 0.0
  %8953 = vmatprep.subr.mxu0 0.0
  %8954 = vmatpush1.msra.mxu0 0.0
  %8955 = vmatprep.subr.mxu0 0.0
  %8956 = vmatpush1.msra.mxu0 0.0
  %8957 = vmatprep.subr.mxu0 0.0
  %8958 = vmatpush1.msra.mxu0 0.0
  %8959 = vmatprep.subr.mxu0 0.0
  %8960 = vmatpush1.msra.mxu0 0.0
  %8961 = vmatprep.subr.mxu0 0.0
  %8962 = vmatpush1.msra.mxu0 0.0
  %8963 = vmatprep.subr.mxu0 0.0
  %8964 = vmatpush1.msra.mxu0 0.0
  %8965 = vmatprep.subr.mxu0 0.0
  %8966 = vmatpush1.msra.mxu0 0.0
  %8967 = vmatprep.subr.mxu0 0.0
  %8968 = vmatpush1.msra.mxu0 0.0
  %8969 = vmatprep.subr.mxu0 0.0
  %8970 = vmatpush1.msra.mxu0 0.0
  %8971 = vmatprep.subr.mxu0 0.0
  %8972 = vmatpush1.msra.mxu0 0.0
  %8973 = vmatprep.subr.mxu0 0.0
  %8974 = vmatpush1.msra.mxu0 0.0
  %8975 = vmatprep.subr.mxu0 0.0
  %8976 = vmatpush1.msra.mxu0 0.0
  %8977 = vmatprep.subr.mxu0 0.0
  %8978 = vmatpush1.msra.mxu0 0.0
  %8979 = vmatprep.subr.mxu0 0.0
  %8980 = vmatpush1.msra.mxu0 0.0
  %8981 = vmatprep.subr.mxu0 0.0
  %8982 = vmatpush1.msra.mxu0 0.0
  %8983 = vmatprep.subr.mxu0 0.0
  %8984 = vmatpush1.msra.mxu0 0.0
  %8985 = vmatprep.subr.mxu0 0.0
  %8986 = vmatpush1.msra.mxu0 0.0
  %8987 = vmatprep.subr.mxu0 0.0
  %8988 = vmatpush1.msra.mxu0 0.0
  %8989 = vmatprep.subr.mxu0 0.0
  %8990 = vmatpush1.msra.mxu0 0.0
  %8991 = vmatprep.mubr.f32.mxu0 0.0
  %8992 = vmatmul.mubr.f32.gmra.mrb[0].mxu0 %v8925
  %v8993 = vpop.f32.mrb[0].mxu0
  %v8994 = vadd.f32 %v130, %v8993
  %v8995 = vpop.f32.mrb[0].mxu0
  %8996 = vdwg.mxu0
  %v8997 = vtanh.pop %v8994
  %8998 = vmatprep.subr.mxu0 0.0
  %8999 = vmatpush1.msra.mxu0 %v136
  %9000 = vmatprep.subr.mxu0 0.0
  %9001 = vmatpush1.msra.mxu0 %v137
  %9002 = vmatprep.subr.mxu0 0.0
  %9003 = vmatpush1.msra.mxu0 %v138
  %9004 = vmatprep.subr.mxu0 0.0
  %9005 = vmatpush1.msra.mxu0 %v139
  %9006 = vmatprep.subr.mxu0 0.0
  %9007 = vmatpush1.msra.mxu0 0.0
  %9008 = vmatprep.subr.mxu0 0.0
  %9009 = vmatpush1.msra.mxu0 0.0
  %9010 = vmatprep.subr.mxu0 0.0
  %9011 = vmatpush1.msra.mxu0 0.0
  %9012 = vmatprep.subr.mxu0 0.0
  %9013 = vmatpush1.msra.mxu0 0.0
  %9014 = vmatprep.subr.mxu0 0.0
  %9015 = vmatpush1.msra.mxu0 0.0
  %9016 = vmatprep.subr.mxu0 0.0
  %9017 = vmatpush1.msra.mxu0 0.0
  %9018 = vmatprep.subr.mxu0 0.0
  %9019 = vmatpush1.msra.mxu0 0.0
  %9020 = vmatprep.subr.mxu0 0.0
  %9021 = vmatpush1.msra.mxu0 0.0
  %9022 = vmatprep.subr.mxu0 0.0
  %9023 = vmatpush1.msra.mxu0 0.0
  %9024 = vmatprep.subr.mxu0 0.0
  %9025 = vmatpush1.msra.mxu0 0.0
  %9026 = vmatprep.subr.mxu0 0.0
  %9027 = vmatpush1.msra.mxu0 0.0
  %9028 = vmatprep.subr.mxu0 0.0
  %9029 = vmatpush1.msra.mxu0 0.0
  %9030 = vmatprep.subr.mxu0 0.0
  %9031 = vmatpush1.msra.mxu0 0.0
  %9032 = vmatprep.subr.mxu0 0.0
  %9033 = vmatpush1.msra.mxu0 0.0
  %9034 = vmatprep.subr.mxu0 0.0
  %9035 = vmatpush1.msra.mxu0 0.0
  %9036 = vmatprep.subr.mxu0 0.0
  %9037 = vmatpush1.msra.mxu0 0.0
  %9038 = vmatprep.subr.mxu0 0.0
  %9039 = vmatpush1.msra.mxu0 0.0
  %9040 = vmatprep.subr.mxu0 0.0
  %9041 = vmatpush1.msra.mxu0 0.0
  %9042 = vmatprep.subr.mxu0 0.0
  %9043 = vmatpush1.msra.mxu0 0.0
  %9044 = vmatprep.subr.mxu0 0.0
  %9045 = vmatpush1.msra.mxu0 0.0
  %9046 = vmatprep.subr.mxu0 0.0
  %9047 = vmatpush1.msra.mxu0 0.0
  %9048 = vmatprep.subr.mxu0 0.0
  %9049 = vmatpush1.msra.mxu0 0.0
  %9050 = vmatprep.subr.mxu0 0.0
  %9051 = vmatpush1.msra.mxu0 0.0
  %9052 = vmatprep.subr.mxu0 0.0
  %9053 = vmatpush1.msra.mxu0 0.0
  %9054 = vmatprep.subr.mxu0 0.0
  %9055 = vmatpush1.msra.mxu0 0.0
  %9056 = vmatprep.subr.mxu0 0.0
  %9057 = vmatpush1.msra.mxu0 0.0
  %9058 = vmatprep.subr.mxu0 0.0
  %9059 = vmatpush1.msra.mxu0 0.0
  %9060 = vmatprep.subr.mxu0 0.0
  %9061 = vmatpush1.msra.mxu0 0.0
  %9062 = vmatprep.mubr.f32.mxu0 0.0
  %9063 = vmatmul.mubr.f32.gmra.mrb[0].mxu0 %v8777
  %v9064 = vpop.f32.mrb[0].mxu0
  %v9065 = vadd.f32 0.0, %v9064
  %v9066 = vpop.f32.mrb[0].mxu0
  %9067 = vdwg.mxu0
  %9068 = vmatprep.subr.mxu0 0.0
  %9069 = vmatpush1.msra.mxu0 %v132
  %9070 = vmatprep.subr.mxu0 0.0
  %9071 = vmatpush1.msra.mxu0 %v133
  %9072 = vmatprep.subr.mxu0 0.0
  %9073 = vmatpush1.msra.mxu0 %v134
  %9074 = vmatprep.subr.mxu0 0.0
  %9075 = vmatpush1.msra.mxu0 %v135
  %9076 = vmatprep.subr.mxu0 0.0
  %9077 = vmatpush1.msra.mxu0 0.0
  %9078 = vmatprep.subr.mxu0 0.0
  %9079 = vmatpush1.msra.mxu0 0.0
  %9080 = vmatprep.subr.mxu0 0.0
  %9081 = vmatpush1.msra.mxu0 0.0
  %9082 = vmatprep.subr.mxu0 0.0
  %9083 = vmatpush1.msra.mxu0 0.0
  %9084 = vmatprep.subr.mxu0 0.0
  %9085 = vmatpush1.msra.mxu0 0.0
  %9086 = vmatprep.subr.mxu0 0.0
  %9087 = vmatpush1.msra.mxu0 0.0
  %9088 = vmatprep.subr.mxu0 0.0
  %9089 = vmatpush1.msra.mxu0 0.0
  %9090 = vmatprep.subr.mxu0 0.0
  %9091 = vmatpush1.msra.mxu0 0.0
  %9092 = vmatprep.subr.mxu0 0.0
  %9093 = vmatpush1.msra.mxu0 0.0
  %9094 = vmatprep.subr.mxu0 0.0
  %9095 = vmatpush1.msra.mxu0 0.0
  %9096 = vmatprep.subr.mxu0 0.0
  %9097 = vmatpush1.msra.mxu0 0.0
  %9098 = vmatprep.subr.mxu0 0.0
  %9099 = vmatpush1.msra.mxu0 0.0
  %9100 = vmatprep.subr.mxu0 0.0
  %9101 = vmatpush1.msra.mxu0 0.0
  %9102 = vmatprep.subr.mxu0 0.0
  %9103 = vmatpush1.msra.mxu0 0.0
  %9104 = vmatprep.subr.mxu0 0.0
  %9105 = vmatpush1.msra.mxu0 0.0
  %9106 = vmatprep.subr.mxu0 0.0
  %9107 = vmatpush1.msra.mxu0 0.0
  %9108 = vmatprep.subr.mxu0 0.0
  %9109 = vmatpush1.msra.mxu0 0.0
  %9110 = vmatprep.subr.mxu0 0.0
  %9111 = vmatpush1.msra.mxu0 0.0
  %9112 = vmatprep.subr.mxu0 0.0
  %9113 = vmatpush1.msra.mxu0 0.0
  %9114 = vmatprep.subr.mxu0 0.0
  %9115 = vmatpush1.msra.mxu0 0.0
  %9116 = vmatprep.subr.mxu0 0.0
  %9117 = vmatpush1.msra.mxu0 0.0
  %9118 = vmatprep.subr.mxu0 0.0
  %9119 = vmatpush1.msra.mxu0 0.0
  %9120 = vmatprep.subr.mxu0 0.0
  %9121 = vmatpush1.msra.mxu0 0.0
  %9122 = vmatprep.subr.mxu0 0.0
  %9123 = vmatpush1.msra.mxu0 0.0
  %9124 = vmatprep.subr.mxu0 0.0
  %9125 = vmatpush1.msra.mxu0 0.0
  %9126 = vmatprep.subr.mxu0 0.0
  %9127 = vmatpush1.msra.mxu0 0.0
  %9128 = vmatprep.subr.mxu0 0.0
  %9129 = vmatpush1.msra.mxu0 0.0
  %9130 = vmatprep.subr.mxu0 0.0
  %9131 = vmatpush1.msra.mxu0 0.0
  %9132 = vmatprep.mubr.f32.mxu0 0.0
  %9133 = vmatmul.mubr.f32.gmra.mrb[0].mxu0 %v8850
  %v9134 = vpop.f32.mrb[0].mxu0
  %v9135 = vadd.f32 %v9065, %v9134
  %v9136 = vpop.f32.mrb[0].mxu0
  %9137 = vdwg.mxu0
  %9138 = vmatprep.subr.mxu0 0.0
  %9139 = vmatpush1.msra.mxu0 %v140
  %9140 = vmatprep.subr.mxu0 0.0
  %9141 = vmatpush1.msra.mxu0 %v141
  %9142 = vmatprep.subr.mxu0 0.0
  %9143 = vmatpush1.msra.mxu0 0.0
  %9144 = vmatprep.subr.mxu0 0.0
  %9145 = vmatpush1.msra.mxu0 0.0
  %9146 = vmatprep.subr.mxu0 0.0
  %9147 = vmatpush1.msra.mxu0 0.0
  %9148 = vmatprep.subr.mxu0 0.0
  %9149 = vmatpush1.msra.mxu0 0.0
  %9150 = vmatprep.subr.mxu0 0.0
  %9151 = vmatpush1.msra.mxu0 0.0
  %9152 = vmatprep.subr.mxu0 0.0
  %9153 = vmatpush1.msra.mxu0 0.0
  %9154 = vmatprep.subr.mxu0 0.0
  %9155 = vmatpush1.msra.mxu0 0.0
  %9156 = vmatprep.subr.mxu0 0.0
  %9157 = vmatpush1.msra.mxu0 0.0
  %9158 = vmatprep.subr.mxu0 0.0
  %9159 = vmatpush1.msra.mxu0 0.0
  %9160 = vmatprep.subr.mxu0 0.0
  %9161 = vmatpush1.msra.mxu0 0.0
  %9162 = vmatprep.subr.mxu0 0.0
  %9163 = vmatpush1.msra.mxu0 0.0
  %9164 = vmatprep.subr.mxu0 0.0
  %9165 = vmatpush1.msra.mxu0 0.0
  %9166 = vmatprep.subr.mxu0 0.0
  %9167 = vmatpush1.msra.mxu0 0.0
  %9168 = vmatprep.subr.mxu0 0.0
  %9169 = vmatpush1.msra.mxu0 0.0
  %9170 = vmatprep.subr.mxu0 0.0
  %9171 = vmatpush1.msra.mxu0 0.0
  %9172 = vmatprep.subr.mxu0 0.0
  %9173 = vmatpush1.msra.mxu0 0.0
  %9174 = vmatprep.subr.mxu0 0.0
  %9175 = vmatpush1.msra.mxu0 0.0
  %9176 = vmatprep.subr.mxu0 0.0
  %9177 = vmatpush1.msra.mxu0 0.0
  %9178 = vmatprep.subr.mxu0 0.0
  %9179 = vmatpush1.msra.mxu0 0.0
  %9180 = vmatprep.subr.mxu0 0.0
  %9181 = vmatpush1.msra.mxu0 0.0
  %9182 = vmatprep.subr.mxu0 0.0
  %9183 = vmatpush1.msra.mxu0 0.0
  %9184 = vmatprep.subr.mxu0 0.0
  %9185 = vmatpush1.msra.mxu0 0.0
  %9186 = vmatprep.subr.mxu0 0.0
  %9187 = vmatpush1.msra.mxu0 0.0
  %9188 = vmatprep.subr.mxu0 0.0
  %9189 = vmatpush1.msra.mxu0 0.0
  %9190 = vmatprep.subr.mxu0 0.0
  %9191 = vmatpush1.msra.mxu0 0.0
  %9192 = vmatprep.subr.mxu0 0.0
  %9193 = vmatpush1.msra.mxu0 0.0
  %9194 = vmatprep.subr.mxu0 0.0
  %9195 = vmatpush1.msra.mxu0 0.0
  %9196 = vmatprep.subr.mxu0 0.0
  %9197 = vmatpush1.msra.mxu0 0.0
  %9198 = vmatprep.subr.mxu0 0.0
  %9199 = vmatpush1.msra.mxu0 0.0
  %9200 = vmatprep.subr.mxu0 0.0
  %9201 = vmatpush1.msra.mxu0 0.0
  %9202 = vmatprep.mubr.f32.mxu0 0.0
  %9203 = vmatmul.mubr.f32.gmra.mrb[0].mxu0 %v8134
  %v9204 = vpop.f32.mrb[0].mxu0
  %v9205 = vadd.f32 0.0, %v9204
  %v9206 = vpop.f32.mrb[0].mxu0
  %9207 = vdwg.mxu0
  %v9208 = vadd.f32 %v9135, %v9205
  %v9209 = vadd.f32 %v9208, %v147
  %v9210 = vmax.f32 %v9209, 0.0
  %v9212 = vsel %vm581, %v9210, 0
  %9214 = vmatprep.subr.mxu0 0.0
  %9215 = vmatpush1.msra.mxu0 %v149
  %9216 = vmatprep.subr.mxu0 0.0
  %9217 = vmatpush1.msra.mxu0 %v150
  %9218 = vmatprep.subr.mxu0 0.0
  %9219 = vmatpush1.msra.mxu0 %v151
  %9220 = vmatprep.subr.mxu0 0.0
  %9221 = vmatpush1.msra.mxu0 %v152
  %9222 = vmatprep.subr.mxu0 0.0
  %9223 = vmatpush1.msra.mxu0 %v153
  %9224 = vmatprep.subr.mxu0 0.0
  %9225 = vmatpush1.msra.mxu0 %v154
  %9226 = vmatprep.subr.mxu0 0.0
  %9227 = vmatpush1.msra.mxu0 %v155
  %9228 = vmatprep.subr.mxu0 0.0
  %9229 = vmatpush1.msra.mxu0 %v156
  %9230 = vmatprep.subr.mxu0 0.0
  %9231 = vmatpush1.msra.mxu0 0.0
  %9232 = vmatprep.subr.mxu0 0.0
  %9233 = vmatpush1.msra.mxu0 0.0
  %9234 = vmatprep.subr.mxu0 0.0
  %9235 = vmatpush1.msra.mxu0 0.0
  %9236 = vmatprep.subr.mxu0 0.0
  %9237 = vmatpush1.msra.mxu0 0.0
  %9238 = vmatprep.subr.mxu0 0.0
  %9239 = vmatpush1.msra.mxu0 0.0
  %9240 = vmatprep.subr.mxu0 0.0
  %9241 = vmatpush1.msra.mxu0 0.0
  %9242 = vmatprep.subr.mxu0 0.0
  %9243 = vmatpush1.msra.mxu0 0.0
  %9244 = vmatprep.subr.mxu0 0.0
  %9245 = vmatpush1.msra.mxu0 0.0
  %9246 = vmatprep.subr.mxu0 0.0
  %9247 = vmatpush1.msra.mxu0 0.0
  %9248 = vmatprep.subr.mxu0 0.0
  %9249 = vmatpush1.msra.mxu0 0.0
  %9250 = vmatprep.subr.mxu0 0.0
  %9251 = vmatpush1.msra.mxu0 0.0
  %9252 = vmatprep.subr.mxu0 0.0
  %9253 = vmatpush1.msra.mxu0 0.0
  %9254 = vmatprep.subr.mxu0 0.0
  %9255 = vmatpush1.msra.mxu0 0.0
  %9256 = vmatprep.subr.mxu0 0.0
  %9257 = vmatpush1.msra.mxu0 0.0
  %9258 = vmatprep.subr.mxu0 0.0
  %9259 = vmatpush1.msra.mxu0 0.0
  %9260 = vmatprep.subr.mxu0 0.0
  %9261 = vmatpush1.msra.mxu0 0.0
  %9262 = vmatprep.subr.mxu0 0.0
  %9263 = vmatpush1.msra.mxu0 0.0
  %9264 = vmatprep.subr.mxu0 0.0
  %9265 = vmatpush1.msra.mxu0 0.0
  %9266 = vmatprep.subr.mxu0 0.0
  %9267 = vmatpush1.msra.mxu0 0.0
  %9268 = vmatprep.subr.mxu0 0.0
  %9269 = vmatpush1.msra.mxu0 0.0
  %9270 = vmatprep.subr.mxu0 0.0
  %9271 = vmatpush1.msra.mxu0 0.0
  %9272 = vmatprep.subr.mxu0 0.0
  %9273 = vmatpush1.msra.mxu0 0.0
  %9274 = vmatprep.subr.mxu0 0.0
  %9275 = vmatpush1.msra.mxu0 0.0
  %9276 = vmatprep.subr.mxu0 0.0
  %9277 = vmatpush1.msra.mxu0 0.0
  %9278 = vmatprep.mubr.f32.mxu0 0.0
  %9279 = vmatmul.mubr.f32.gmra.mrb[0].mxu0 %v9212
  %v9280 = vpop.f32.mrb[0].mxu0
  %v9281 = vadd.f32 %v162, %v9280
  %v9282 = vpop.f32.mrb[0].mxu0
  %9283 = vdwg.mxu0
  %v9284 = vxor.u32 %v9281, 2147483648
  %v9285 = vmul.f32 %v9284, 1.442695
  %v9286 = vpow.pop %v9285
  %v9287 = vadd.f32 %v9286, 1.0
  %v9288 = vrcp.pop %v9287
  %v9289 = vmul.f32 1.0, %v9288
  %v9290 = vmul.f32 %v9289, %v8132
  %9292 = vrot.lane.b32.xlu0 %v8997, 16
  %v9293 = vpop.permute.xlu0 %9292
  %v9295 = vmul.f32 %v9289, %v9293
  %9297 = vrot.lane.b32.xlu0 %v9295, 112
  %v9298 = vpop.permute.xlu0 %9297
  %v9300 = vadd.f32 %v9290, %v9298
  %v9302 = vsel %vm959, %v9300, 0
  %9304 = vmatprep.subr.mxu0 0.0
  %9305 = vmatpush1.msra.mxu0 %v168
  %9306 = vmatprep.subr.mxu0 0.0
  %9307 = vmatpush1.msra.mxu0 %v169
  %9308 = vmatprep.subr.mxu0 0.0
  %9309 = vmatpush1.msra.mxu0 0.0
  %9310 = vmatprep.subr.mxu0 0.0
  %9311 = vmatpush1.msra.mxu0 0.0
  %9312 = vmatprep.subr.mxu0 0.0
  %9313 = vmatpush1.msra.mxu0 0.0
  %9314 = vmatprep.subr.mxu0 0.0
  %9315 = vmatpush1.msra.mxu0 0.0
  %9316 = vmatprep.subr.mxu0 0.0
  %9317 = vmatpush1.msra.mxu0 0.0
  %9318 = vmatprep.subr.mxu0 0.0
  %9319 = vmatpush1.msra.mxu0 0.0
  %9320 = vmatprep.subr.mxu0 0.0
  %9321 = vmatpush1.msra.mxu0 0.0
  %9322 = vmatprep.subr.mxu0 0.0
  %9323 = vmatpush1.msra.mxu0 0.0
  %9324 = vmatprep.subr.mxu0 0.0
  %9325 = vmatpush1.msra.mxu0 0.0
  %9326 = vmatprep.subr.mxu0 0.0
  %9327 = vmatpush1.msra.mxu0 0.0
  %9328 = vmatprep.subr.mxu0 0.0
  %9329 = vmatpush1.msra.mxu0 0.0
  %9330 = vmatprep.subr.mxu0 0.0
  %9331 = vmatpush1.msra.mxu0 0.0
  %9332 = vmatprep.subr.mxu0 0.0
  %9333 = vmatpush1.msra.mxu0 0.0
  %9334 = vmatprep.subr.mxu0 0.0
  %9335 = vmatpush1.msra.mxu0 0.0
  %9336 = vmatprep.subr.mxu0 0.0
  %9337 = vmatpush1.msra.mxu0 0.0
  %9338 = vmatprep.subr.mxu0 0.0
  %9339 = vmatpush1.msra.mxu0 0.0
  %9340 = vmatprep.subr.mxu0 0.0
  %9341 = vmatpush1.msra.mxu0 0.0
  %9342 = vmatprep.subr.mxu0 0.0
  %9343 = vmatpush1.msra.mxu0 0.0
  %9344 = vmatprep.subr.mxu0 0.0
  %9345 = vmatpush1.msra.mxu0 0.0
  %9346 = vmatprep.subr.mxu0 0.0
  %9347 = vmatpush1.msra.mxu0 0.0
  %9348 = vmatprep.subr.mxu0 0.0
  %9349 = vmatpush1.msra.mxu0 0.0
  %9350 = vmatprep.subr.mxu0 0.0
  %9351 = vmatpush1.msra.mxu0 0.0
  %9352 = vmatprep.subr.mxu0 0.0
  %9353 = vmatpush1.msra.mxu0 0.0
  %9354 = vmatprep.subr.mxu0 0.0
  %9355 = vmatpush1.msra.mxu0 0.0
  %9356 = vmatprep.subr.mxu0 0.0
  %9357 = vmatpush1.msra.mxu0 0.0
  %9358 = vmatprep.subr.mxu0 0.0
  %9359 = vmatpush1.msra.mxu0 0.0
  %9360 = vmatprep.subr.mxu0 0.0
  %9361 = vmatpush1.msra.mxu0 0.0
  %9362 = vmatprep.subr.mxu0 0.0
  %9363 = vmatpush1.msra.mxu0 0.0
  %9364 = vmatprep.subr.mxu0 0.0
  %9365 = vmatpush1.msra.mxu0 0.0
  %9366 = vmatprep.subr.mxu0 0.0
  %9367 = vmatpush1.msra.mxu0 0.0
  %9368 = vmatprep.mubr.f32.mxu0 0.0
  %9369 = vmatmul.mubr.f32.gmra.mrb[0].mxu0 %v9302
  %v9370 = vpop.f32.mrb[0].mxu0
  %v9371 = vadd.f32 0.0, %v9370
  %v9372 = vpop.f32.mrb[0].mxu0
  %9373 = vdwg.mxu0
  %9375 = vrot.lane.b32.xlu0 %v8539, 32
  %v9376 = vpop.permute.xlu0 %9375
  %v9377 = vsel %vm189, %v9376, 0
  %9379 = vmatprep.subr.mxu0 0.0
  %9380 = vmatpush1.msra.mxu0 %v164
  %9381 = vmatprep.subr.mxu0 0.0
  %9382 = vmatpush1.msra.mxu0 %v165
  %9383 = vmatprep.subr.mxu0 0.0
  %9384 = vmatpush1.msra.mxu0 %v166
  %9385 = vmatprep.subr.mxu0 0.0
  %9386 = vmatpush1.msra.mxu0 %v167
  %9387 = vmatprep.subr.mxu0 0.0
  %9388 = vmatpush1.msra.mxu0 0.0
  %9389 = vmatprep.subr.mxu0 0.0
  %9390 = vmatpush1.msra.mxu0 0.0
  %9391 = vmatprep.subr.mxu0 0.0
  %9392 = vmatpush1.msra.mxu0 0.0
  %9393 = vmatprep.subr.mxu0 0.0
  %9394 = vmatpush1.msra.mxu0 0.0
  %9395 = vmatprep.subr.mxu0 0.0
  %9396 = vmatpush1.msra.mxu0 0.0
  %9397 = vmatprep.subr.mxu0 0.0
  %9398 = vmatpush1.msra.mxu0 0.0
  %9399 = vmatprep.subr.mxu0 0.0
  %9400 = vmatpush1.msra.mxu0 0.0
  %9401 = vmatprep.subr.mxu0 0.0
  %9402 = vmatpush1.msra.mxu0 0.0
  %9403 = vmatprep.subr.mxu0 0.0
  %9404 = vmatpush1.msra.mxu0 0.0
  %9405 = vmatprep.subr.mxu0 0.0
  %9406 = vmatpush1.msra.mxu0 0.0
  %9407 = vmatprep.subr.mxu0 0.0
  %9408 = vmatpush1.msra.mxu0 0.0
  %9409 = vmatprep.subr.mxu0 0.0
  %9410 = vmatpush1.msra.mxu0 0.0
  %9411 = vmatprep.subr.mxu0 0.0
  %9412 = vmatpush1.msra.mxu0 0.0
  %9413 = vmatprep.subr.mxu0 0.0
  %9414 = vmatpush1.msra.mxu0 0.0
  %9415 = vmatprep.subr.mxu0 0.0
  %9416 = vmatpush1.msra.mxu0 0.0
  %9417 = vmatprep.subr.mxu0 0.0
  %9418 = vmatpush1.msra.mxu0 0.0
  %9419 = vmatprep.subr.mxu0 0.0
  %9420 = vmatpush1.msra.mxu0 0.0
  %9421 = vmatprep.subr.mxu0 0.0
  %9422 = vmatpush1.msra.mxu0 0.0
  %9423 = vmatprep.subr.mxu0 0.0
  %9424 = vmatpush1.msra.mxu0 0.0
  %9425 = vmatprep.subr.mxu0 0.0
  %9426 = vmatpush1.msra.mxu0 0.0
  %9427 = vmatprep.subr.mxu0 0.0
  %9428 = vmatpush1.msra.mxu0 0.0
  %9429 = vmatprep.subr.mxu0 0.0
  %9430 = vmatpush1.msra.mxu0 0.0
  %9431 = vmatprep.subr.mxu0 0.0
  %9432 = vmatpush1.msra.mxu0 0.0
  %9433 = vmatprep.subr.mxu0 0.0
  %9434 = vmatpush1.msra.mxu0 0.0
  %9435 = vmatprep.subr.mxu0 0.0
  %9436 = vmatpush1.msra.mxu0 0.0
  %9437 = vmatprep.subr.mxu0 0.0
  %9438 = vmatpush1.msra.mxu0 0.0
  %9439 = vmatprep.subr.mxu0 0.0
  %9440 = vmatpush1.msra.mxu0 0.0
  %9441 = vmatprep.subr.mxu0 0.0
  %9442 = vmatpush1.msra.mxu0 0.0
  %9443 = vmatprep.mubr.f32.mxu0 0.0
  %9444 = vmatmul.mubr.f32.gmra.mrb[0].mxu0 %v9377
  %v9445 = vpop.f32.mrb[0].mxu0
  %v9446 = vadd.f32 %v9371, %v9445
  %v9447 = vpop.f32.mrb[0].mxu0
  %9448 = vdwg.mxu0
  %v9449 = vadd.f32 %v9446, %v175
  %v9450 = vmax.f32 %v9449, 0.0
  %v9452 = vsel %vm189, %v9450, 0
  %9454 = vmatprep.subr.mxu0 0.0
  %9455 = vmatpush1.msra.mxu0 %v177
  %9456 = vmatprep.subr.mxu0 0.0
  %9457 = vmatpush1.msra.mxu0 %v178
  %9458 = vmatprep.subr.mxu0 0.0
  %9459 = vmatpush1.msra.mxu0 %v179
  %9460 = vmatprep.subr.mxu0 0.0
  %9461 = vmatpush1.msra.mxu0 %v180
  %9462 = vmatprep.subr.mxu0 0.0
  %9463 = vmatpush1.msra.mxu0 0.0
  %9464 = vmatprep.subr.mxu0 0.0
  %9465 = vmatpush1.msra.mxu0 0.0
  %9466 = vmatprep.subr.mxu0 0.0
  %9467 = vmatpush1.msra.mxu0 0.0
  %9468 = vmatprep.subr.mxu0 0.0
  %9469 = vmatpush1.msra.mxu0 0.0
  %9470 = vmatprep.subr.mxu0 0.0
  %9471 = vmatpush1.msra.mxu0 0.0
  %9472 = vmatprep.subr.mxu0 0.0
  %9473 = vmatpush1.msra.mxu0 0.0
  %9474 = vmatprep.subr.mxu0 0.0
  %9475 = vmatpush1.msra.mxu0 0.0
  %9476 = vmatprep.subr.mxu0 0.0
  %9477 = vmatpush1.msra.mxu0 0.0
  %9478 = vmatprep.subr.mxu0 0.0
  %9479 = vmatpush1.msra.mxu0 0.0
  %9480 = vmatprep.subr.mxu0 0.0
  %9481 = vmatpush1.msra.mxu0 0.0
  %9482 = vmatprep.subr.mxu0 0.0
  %9483 = vmatpush1.msra.mxu0 0.0
  %9484 = vmatprep.subr.mxu0 0.0
  %9485 = vmatpush1.msra.mxu0 0.0
  %9486 = vmatprep.subr.mxu0 0.0
  %9487 = vmatpush1.msra.mxu0 0.0
  %9488 = vmatprep.subr.mxu0 0.0
  %9489 = vmatpush1.msra.mxu0 0.0
  %9490 = vmatprep.subr.mxu0 0.0
  %9491 = vmatpush1.msra.mxu0 0.0
  %9492 = vmatprep.subr.mxu0 0.0
  %9493 = vmatpush1.msra.mxu0 0.0
  %9494 = vmatprep.subr.mxu0 0.0
  %9495 = vmatpush1.msra.mxu0 0.0
  %9496 = vmatprep.subr.mxu0 0.0
  %9497 = vmatpush1.msra.mxu0 0.0
  %9498 = vmatprep.subr.mxu0 0.0
  %9499 = vmatpush1.msra.mxu0 0.0
  %9500 = vmatprep.subr.mxu0 0.0
  %9501 = vmatpush1.msra.mxu0 0.0
  %9502 = vmatprep.subr.mxu0 0.0
  %9503 = vmatpush1.msra.mxu0 0.0
  %9504 = vmatprep.subr.mxu0 0.0
  %9505 = vmatpush1.msra.mxu0 0.0
  %9506 = vmatprep.subr.mxu0 0.0
  %9507 = vmatpush1.msra.mxu0 0.0
  %9508 = vmatprep.subr.mxu0 0.0
  %9509 = vmatpush1.msra.mxu0 0.0
  %9510 = vmatprep.subr.mxu0 0.0
  %9511 = vmatpush1.msra.mxu0 0.0
  %9512 = vmatprep.subr.mxu0 0.0
  %9513 = vmatpush1.msra.mxu0 0.0
  %9514 = vmatprep.subr.mxu0 0.0
  %9515 = vmatpush1.msra.mxu0 0.0
  %9516 = vmatprep.subr.mxu0 0.0
  %9517 = vmatpush1.msra.mxu0 0.0
  %9518 = vmatprep.mubr.f32.mxu0 0.0
  %9519 = vmatmul.mubr.f32.gmra.mrb[0].mxu0 %v9452
  %v9520 = vpop.f32.mrb[0].mxu0
  %v9521 = vadd.f32 %v186, %v9520
  %v9522 = vpop.f32.mrb[0].mxu0
  %9523 = vdwg.mxu0
  %v9524 = vsel %vm1348, %v9521, -inf
  %9525 = vmax.xlane.f32.xlu0 %v9524
  %v9526 = vpop.xlane.xlu0 %9525
  %v9527 = vsub.f32 %v9521, %v9526
  %v9528 = vmul.f32 %v9527, 1.442695
  %v9529 = vpow.pop %v9528
  %v9530 = vsel %vm1348, %v9529, 0.0
  %9531 = vadd.xlane.f32.xlu0 %v9530
  %v9532 = vpop.xlane.xlu0 %9531
  %v9533 = vlog2.pop %v9532
  %v9534 = vmul.f32 %v9533, 0.6931472
  %v9535 = vsub.f32 %v9527, %v9534
  %s9536 = scalar_lea.vmem %s20, 56
  %9537 = vst.msk [vmem:[%s9536] sm:$0xff] %vm1348, %v9535
  // Predicated region
  $region82: #{tpu_custom_call.1} parent=0 // pred_check
    _
  $region83: #{tpu_custom_call.1} parent=0 // pred_check_branch
    %9539 = sbr.rel (0) target = $region85
  $region84: #{tpu_custom_call.1} parent=0 // pred_region
    _
  $region85: #{tpu_custom_call.1} parent=0 // pred_fallthru
    _
  // Predicated region
  $region86: #{tpu_custom_call.1} parent=0 // pred_check
    _
  $region87: #{tpu_custom_call.1} parent=0 // pred_check_branch
    %9541 = sbr.rel (0) target = $region89
  $region88: #{tpu_custom_call.1} parent=0 // pred_region
    _
  $region89: #{tpu_custom_call.1} parent=0 // pred_fallthru
    _

</llo_original>
